<compile_context>
chip_gen: v7x
topology: tpu7x:2x2x1
jax: 0.10.0
libtpu: 0.0.40
codegen_flags: <defaults>
</compile_context>

<pallas_src>
import jax
import jax.numpy as jnp
import numpy as np
from jax.experimental import pallas as pl
from jax.experimental.pallas import tpu as pltpu

BN_EPS = 1e-5
_BLK = 8  # per-(h,w) row block in the fused conv3+classifier kernel (batch padded to 8)


# ----------------------------------------------------------------------------
# Pallas kernel 1: fused  Conv3x3 (as im2col matmul) + BN(folded) + ReLU + MaxPool2x2
#   a_ref: [4, M, K] bf16   (four pooling-phase im2col matrices, rows ordered (n,i,j))
#   w_ref: [K, C]    bf16   (BN scale pre-folded into the columns)
#   b_ref: [1, C]    f32    (conv bias + BN shift, pre-folded)
#   o_ref: [M, C]    bf16   pooled activation map
# ----------------------------------------------------------------------------
def _conv_pool_kernel(a_ref, w_ref, b_ref, o_ref):
    w = w_ref[...]
    z = jnp.dot(a_ref[0], w, preferred_element_type=jnp.float32)
    for r in range(1, 4):
        z = jnp.maximum(z, jnp.dot(a_ref[r], w, preferred_element_type=jnp.float32))
    # max-pool commutes with the (shared per-channel) bias add and with ReLU.
    o_ref[...] = jnp.maximum(z + b_ref[...], 0.0).astype(o_ref.dtype)


def conv_bn_relu_pool(a4, w, b):
    _, m, k = a4.shape
    c = w.shape[1]
    return pl.pallas_call(
        _conv_pool_kernel,
        out_shape=jax.ShapeDtypeStruct((m, c), jnp.bfloat16),
        grid=(1,),
        in_specs=[
            pl.BlockSpec((4, m, k), lambda i: (0, 0, 0)),
            pl.BlockSpec((k, c), lambda i: (0, 0)),
            pl.BlockSpec((1, c), lambda i: (0, 0)),
        ],
        out_specs=pl.BlockSpec((m, c), lambda i: (0, 0)),
        compiler_params=pltpu.CompilerParams(dimension_semantics=("arbitrary",)),
    )(a4, w, b)


# ----------------------------------------------------------------------------
# Pallas kernel 2: fused  Conv3 + BN + ReLU + MaxPool + Flatten + fc1 + BN + ReLU + fc2
#   a_ref:  [4, 9*_BLK, 576] bf16  (rows grouped as 9 blocks of _BLK: block m = h*3+w,
#                                   batch samples first inside a block, rest zero-pad)
#   w3_ref: [576, 128] bf16 ; b3_ref: [1, 128] f32
#   w1_ref: [9, 128, 128] bf16 (fc1 weight, BN scale folded, rows permuted to HWC order
#                               and pre-split into the nine per-(h,w) blocks)
#   b1_ref: [1, 128] f32 ; w2_ref: [1, 128] f32 ; b2_ref: [1, 1] f32
#   o_ref:  [_BLK, 1] f32  (rows 0..N-1 valid)
# ----------------------------------------------------------------------------
def _conv_pool_fc_kernel(a_ref, w3_ref, b3_ref, w1_ref, b1_ref, w2_ref, b2_ref, o_ref):
    w3 = w3_ref[...]
    z = jnp.dot(a_ref[0], w3, preferred_element_type=jnp.float32)
    for r in range(1, 4):
        z = jnp.maximum(z, jnp.dot(a_ref[r], w3, preferred_element_type=jnp.float32))
    p = jnp.maximum(z + b3_ref[...], 0.0)            # [9*_BLK, 128] pooled conv3 map
    p = p.astype(jnp.bfloat16)                       # bf16 operands for the fc1 matmuls

    # fc1 (1152 -> 128): the NHWC flatten is never materialized -- it is the sum of the
    # nine per-(h,w) block matmuls (fc1 weight rows were permuted offline to HWC order).
    h = jnp.dot(p[0:_BLK, :], w1_ref[0], preferred_element_type=jnp.float32)
    for m in range(1, 9):
        h = h + jnp.dot(p[m * _BLK:(m + 1) * _BLK, :], w1_ref[m],
                        preferred_element_type=jnp.float32)
    h = jnp.maximum(h + b1_ref[...], 0.0)            # [_BLK, 128]

    # fc2 (128 -> 1) as a VPU multiply + lane reduction, then sigmoid.
    logit = jnp.sum(h * w2_ref[...], axis=-1, keepdims=True) + b2_ref[...]
    o_ref[...] = 1.0 / (1.0 + jnp.exp(-logit))


def conv_pool_fc(a4, w3, b3, w1, b1, w2, b2):
    _, m, k = a4.shape            # (4, 9*_BLK, 576)
    c = w3.shape[1]               # 128
    return pl.pallas_call(
        _conv_pool_fc_kernel,
        out_shape=jax.ShapeDtypeStruct((_BLK, 1), jnp.float32),
        grid=(1,),
        in_specs=[
            pl.BlockSpec((4, m, k), lambda i: (0, 0, 0)),
            pl.BlockSpec((k, c), lambda i: (0, 0)),
            pl.BlockSpec((1, c), lambda i: (0, 0)),
            pl.BlockSpec((9, c, 128), lambda i: (0, 0, 0)),
            pl.BlockSpec((1, 128), lambda i: (0, 0)),
            pl.BlockSpec((1, 128), lambda i: (0, 0)),
            pl.BlockSpec((1, 1), lambda i: (0, 0)),
        ],
        out_specs=pl.BlockSpec((_BLK, 1), lambda i: (0, 0)),
        compiler_params=pltpu.CompilerParams(dimension_semantics=("arbitrary",)),
    )(a4, w3, b3, w1, b1, w2, b2)


# ----------------------------------------------------------------------------
# JAX glue: pooling-phase im2col builders (tiny XLA ops between the Pallas calls)
# ----------------------------------------------------------------------------
def _im2col_pool4(x):
    """x: [N,H,W,Cin] -> [4, N*(H//2)*(W//2), 9*Cin] bf16.

    Phase (r,s) holds the 3x3 im2col patches of the conv-output pixels that land at
    position (r,s) inside each 2x2 max-pool window, rows ordered (n, i, j).  The
    kernel's elementwise max over the 4 phases therefore realizes the max-pool."""
    n, h, w, c = x.shape
    ho, wo = h // 2, w // 2
    xp = jnp.pad(x, ((0, 0), (1, 1), (1, 1), (0, 0)))
    phases = []
    for r in range(2):
        for s in range(2):
            cols = [xp[:, r + dy: r + dy + 2 * ho: 2, s + dx: s + dx + 2 * wo: 2, :]
                    for dy in range(3) for dx in range(3)]
            a = jnp.concatenate(cols, axis=-1).reshape(n * ho * wo, 9 * c)
            phases.append(a)
    return jnp.stack(phases, axis=0).astype(jnp.bfloat16)


def _im2col_pool4_blocked(x, block):
    """Same as _im2col_pool4, but rows are grouped per pooled pixel (i,j): nine blocks
    of `block` rows (batch first inside a block, zero-padded), so the fused conv3+fc
    kernel can slice per-(i,j) activation blocks at 8-aligned sublane offsets."""
    n, h, w, c = x.shape
    ho, wo = h // 2, w // 2
    xp = jnp.pad(x, ((0, 0), (1, 1), (1, 1), (0, 0)))
    phases = []
    for r in range(2):
        for s in range(2):
            cols = [xp[:, r + dy: r + dy + 2 * ho: 2, s + dx: s + dx + 2 * wo: 2, :]
                    for dy in range(3) for dx in range(3)]
            a = jnp.concatenate(cols, axis=-1)                    # [N, Ho, Wo, 9*Cin]
            a = jnp.transpose(a, (1, 2, 0, 3)).reshape(ho * wo, n, 9 * c)
            a = jnp.pad(a, ((0, 0), (0, block - n), (0, 0)))
            phases.append(a.reshape(ho * wo * block, 9 * c))
    return jnp.stack(phases, axis=0).astype(jnp.bfloat16)


# ----------------------------------------------------------------------------
# Parameter construction (deterministic, synthetic) + BN folding into W / bias
# ----------------------------------------------------------------------------
def _bn_fold(gamma, beta, rmean, rvar, pre_bias):
    scale = gamma / jnp.sqrt(rvar + BN_EPS)
    bias = beta + scale * (pre_bias - rmean)
    return scale, bias


def init_params(key):
    params = {}

    def bn_stats(ks, cout):
        gamma = jax.random.uniform(ks[0], (cout,), jnp.float32, 0.5, 1.5)
        beta = 0.1 * jax.random.normal(ks[1], (cout,), jnp.float32)
        rmean = 0.1 * jax.random.normal(ks[2], (cout,), jnp.float32)
        rvar = jax.random.uniform(ks[3], (cout,), jnp.float32, 0.5, 1.5)
        return gamma, beta, rmean, rvar

    def conv_block(key, cin, cout, name):
        ks = jax.random.split(key, 6)
        w = jax.random.normal(ks[0], (3, 3, cin, cout), jnp.float32) / np.sqrt(9.0 * cin)
        b = 0.05 * jax.random.normal(ks[1], (cout,), jnp.float32)
        scale, bias = _bn_fold(*bn_stats(ks[2:6], cout), b)
        w = (w * scale).reshape(9 * cin, cout)          # fold BN scale into the weights
        params[name] = dict(w=w.astype(jnp.bfloat16),
                            b=bias.reshape(1, cout).astype(jnp.float32))

    def fc1_block(key):
        cin, cout = 128 * 3 * 3, 128
        ks = jax.random.split(key, 6)
        w = jax.random.normal(ks[0], (cin, cout), jnp.float32) / np.sqrt(cin)
        b = 0.05 * jax.random.normal(ks[1], (cout,), jnp.float32)
        scale, bias = _bn_fold(*bn_stats(ks[2:6], cout), b)
        w = w * scale                                   # fold BN1d scale into columns
        # Permute rows from PyTorch CHW-flatten order to HWC order (removes the runtime
        # NHWC->NCHW transpose) and pre-split into the nine per-(h,w) 128-row blocks.
        w = w.reshape(128, 3, 3, cout).transpose(1, 2, 0, 3).reshape(cin, cout)
        params["fc1"] = dict(w=w.reshape(9, 128, cout).astype(jnp.bfloat16),
                             b=bias.reshape(1, cout).astype(jnp.float32))

    def fc2_block(key):
        ks = jax.random.split(key, 2)
        w = jax.random.normal(ks[0], (128, 1), jnp.float32) / np.sqrt(128.0)
        b = 0.05 * jax.random.normal(ks[1], (1,), jnp.float32)
        params["fc2"] = dict(w=w.reshape(1, 128), b=b.reshape(1, 1))

    k1, k2, k3, k4, k5 = jax.random.split(key, 5)
    conv_block(k1, 1, 32, "conv1")
    conv_block(k2, 32, 64, "conv2")
    conv_block(k3, 64, 128, "conv3")
    fc1_block(k4)
    fc2_block(k5)
    return params


# ----------------------------------------------------------------------------
# Forward pass
# ----------------------------------------------------------------------------
def breast_cnn_forward(x_nchw, params):
    # x_nchw: [N, 1, 28, 28] float32 (PyTorch NCHW); internal layout is NHWC.
    n = x_nchw.shape[0]
    assert n <= _BLK, "fused classifier kernel pads the batch to _BLK=8 rows"
    x = jnp.transpose(x_nchw, (0, 2, 3, 1))             # [N, 28, 28, 1]

    # Two fused Pallas calls: Conv3x3 + BN(folded) + ReLU + MaxPool2x2 each.
    for name in ("conv1", "conv2"):
        p = params[name]
        ho, wo = x.shape[1] // 2, x.shape[2] // 2
        a4 = _im2col_pool4(x)                           # [4, N*Ho*Wo, 9*Cin] bf16
        y = conv_bn_relu_pool(a4, p["w"], p["b"])       # [N*Ho*Wo, Cout]  (pooled)
        x = y.reshape(n, ho, wo, p["w"].shape[1])       # dropout = identity (eval)

    # One fused Pallas call: conv3 + BN + ReLU + pool + flatten + fc1 + BN + ReLU + fc2.
    p3, pf1, pf2 = params["conv3"], params["fc1"], params["fc2"]
    a4 = _im2col_pool4_blocked(x, block=_BLK)           # [4, 9*_BLK, 576] bf16
    out = conv_pool_fc(a4, p3["w"], p3["b"], pf1["w"], pf1["b"], pf2["w"], pf2["b"])
    return out[:n]                                      # [N, 1] sigmoid probabilities


if __name__ == "__main__":
    key = jax.random.PRNGKey(0)
    k_params, k_x = jax.random.split(key)

    params = init_params(k_params)
    # BreastMNIST-shaped input: batch=2, 1 channel, 28x28 (required so the flattened
    # feature size is 128*3*3, as in the PyTorch module).
    x = jax.random.normal(k_x, (2, 1, 28, 28), jnp.float32)

    out = jax.jit(breast_cnn_forward)(x, params)
    out = jax.block_until_ready(out)

    assert out.shape == (2, 1), out.shape
    assert bool(jnp.all(jnp.isfinite(out)))
    assert bool(jnp.all((out >= 0.0) & (out <= 1.0)))
    print("KERNEL_OK")
</pallas_src>

<mosaic_0001>
module attributes {stable_mosaic.version = 11 : i64} {
  func.func @_conv_pool_kernel(%arg0: i32, %arg1: memref<4x392x9xbf16, #tpu.memory_space<vmem>>, %arg2: memref<9x32xbf16, #tpu.memory_space<vmem>>, %arg3: memref<1x32xf32, #tpu.memory_space<vmem>>, %arg4: memref<392x32xbf16, #tpu.memory_space<vmem>>) attributes {dimension_semantics = [#tpu.dimension_semantics<arbitrary>], iteration_bounds = array<i64: 1>, scalar_prefetch = 0 : i64, scratch_operands = 0 : i64, tpu.core_type = #tpu.core_type<tc>, window_params = [{pipeline_mode = #tpu.pipeline_mode<synchronous>, transform_indices = @transform_0, window_bounds = array<i64: 4, 392, 9>}, {pipeline_mode = #tpu.pipeline_mode<synchronous>, transform_indices = @transform_1, window_bounds = array<i64: 9, 32>}, {pipeline_mode = #tpu.pipeline_mode<synchronous>, transform_indices = @transform_2, window_bounds = array<i64: 1, 32>}, {pipeline_mode = #tpu.pipeline_mode<synchronous>, transform_indices = @transform_3, window_bounds = array<i64: 392, 32>}]} {
    %c0 = arith.constant 0 : index
    %c0_0 = arith.constant 0 : index
    %0 = vector.load %arg2[%c0, %c0_0] : memref<9x32xbf16, #tpu.memory_space<vmem>>, vector<9x32xbf16>
    %c0_1 = arith.constant 0 : index
    %c0_2 = arith.constant 0 : index
    %c0_3 = arith.constant 0 : index
    %1 = vector.load %arg1[%c0_1, %c0_2, %c0_3] : memref<4x392x9xbf16, #tpu.memory_space<vmem>>, vector<1x392x9xbf16>
    %2 = vector.shape_cast %1 : vector<1x392x9xbf16> to vector<392x9xbf16>
    %cst = arith.constant dense<0.000000e+00> : vector<392x32xf32>
    %3 = tpu.matmul %2, %0, %cst {dimension_numbers = #tpu.dot_dimension_numbers<[1], [0], [0], [1], [0, 0, 1, 1], [], []>} : vector<392x9xbf16>, vector<9x32xbf16>, vector<392x32xf32> -> vector<392x32xf32>
    %c1 = arith.constant 1 : index
    %c0_4 = arith.constant 0 : index
    %c0_5 = arith.constant 0 : index
    %4 = vector.load %arg1[%c1, %c0_4, %c0_5] : memref<4x392x9xbf16, #tpu.memory_space<vmem>>, vector<1x392x9xbf16>
    %5 = vector.shape_cast %4 : vector<1x392x9xbf16> to vector<392x9xbf16>
    %cst_6 = arith.constant dense<0.000000e+00> : vector<392x32xf32>
    %6 = tpu.matmul %5, %0, %cst_6 {dimension_numbers = #tpu.dot_dimension_numbers<[1], [0], [0], [1], [0, 0, 1, 1], [], []>} : vector<392x9xbf16>, vector<9x32xbf16>, vector<392x32xf32> -> vector<392x32xf32>
    %7 = arith.maximumf %3, %6 : vector<392x32xf32>
    %c2 = arith.constant 2 : index
    %c0_7 = arith.constant 0 : index
    %c0_8 = arith.constant 0 : index
    %8 = vector.load %arg1[%c2, %c0_7, %c0_8] : memref<4x392x9xbf16, #tpu.memory_space<vmem>>, vector<1x392x9xbf16>
    %9 = vector.shape_cast %8 : vector<1x392x9xbf16> to vector<392x9xbf16>
    %cst_9 = arith.constant dense<0.000000e+00> : vector<392x32xf32>
    %10 = tpu.matmul %9, %0, %cst_9 {dimension_numbers = #tpu.dot_dimension_numbers<[1], [0], [0], [1], [0, 0, 1, 1], [], []>} : vector<392x9xbf16>, vector<9x32xbf16>, vector<392x32xf32> -> vector<392x32xf32>
    %11 = arith.maximumf %7, %10 : vector<392x32xf32>
    %c3 = arith.constant 3 : index
    %c0_10 = arith.constant 0 : index
    %c0_11 = arith.constant 0 : index
    %12 = vector.load %arg1[%c3, %c0_10, %c0_11] : memref<4x392x9xbf16, #tpu.memory_space<vmem>>, vector<1x392x9xbf16>
    %13 = vector.shape_cast %12 : vector<1x392x9xbf16> to vector<392x9xbf16>
    %cst_12 = arith.constant dense<0.000000e+00> : vector<392x32xf32>
    %14 = tpu.matmul %13, %0, %cst_12 {dimension_numbers = #tpu.dot_dimension_numbers<[1], [0], [0], [1], [0, 0, 1, 1], [], []>} : vector<392x9xbf16>, vector<9x32xbf16>, vector<392x32xf32> -> vector<392x32xf32>
    %15 = arith.maximumf %11, %14 : vector<392x32xf32>
    %c0_13 = arith.constant 0 : index
    %c0_14 = arith.constant 0 : index
    %16 = vector.load %arg3[%c0_13, %c0_14] : memref<1x32xf32, #tpu.memory_space<vmem>>, vector<1x32xf32>
    %17 = vector.broadcast %16 : vector<1x32xf32> to vector<392x32xf32>
    %18 = arith.addf %15, %17 : vector<392x32xf32>
    %cst_15 = arith.constant 0.000000e+00 : f32
    %19 = vector.broadcast %cst_15 : f32 to vector<392x32xf32>
    %20 = arith.maximumf %18, %19 : vector<392x32xf32>
    %21 = arith.truncf %20 : vector<392x32xf32> to vector<392x32xbf16>
    %c0_16 = arith.constant 0 : index
    %c0_17 = arith.constant 0 : index
    %22 = vector.load %arg4[%c0_16, %c0_17] : memref<392x32xbf16, #tpu.memory_space<vmem>>, vector<392x32xbf16>
    tpu.vector_store %arg4[%c0_16, %c0_17], %21 {strides = array<i32>} : memref<392x32xbf16, #tpu.memory_space<vmem>>, vector<392x32xbf16>,
    return
  }
  func.func @transform_0(%arg0: i32) -> (i32, i32, i32) {
    %c0_i32 = arith.constant 0 : i32
    %c0_i32_0 = arith.constant 0 : i32
    %c0_i32_1 = arith.constant 0 : i32
    %c0_i32_2 = arith.constant 0 : i32
    return %c0_i32, %c0_i32_0, %c0_i32_1 : i32, i32, i32
  }
  func.func @transform_1(%arg0: i32) -> (i32, i32) {
    %c0_i32 = arith.constant 0 : i32
    %c0_i32_0 = arith.constant 0 : i32
    %c0_i32_1 = arith.constant 0 : i32
    return %c0_i32, %c0_i32_0 : i32, i32
  }
  func.func @transform_2(%arg0: i32) -> (i32, i32) {
    %c0_i32 = arith.constant 0 : i32
    %c0_i32_0 = arith.constant 0 : i32
    %c0_i32_1 = arith.constant 0 : i32
    return %c0_i32, %c0_i32_0 : i32, i32
  }
  func.func @transform_3(%arg0: i32) -> (i32, i32) {
    %c0_i32 = arith.constant 0 : i32
    %c0_i32_0 = arith.constant 0 : i32
    %c0_i32_1 = arith.constant 0 : i32
    return %c0_i32, %c0_i32_0 : i32, i32
  }
}

module attributes {stable_mosaic.version = 11 : i64} {
  func.func @_conv_pool_kernel(%arg0: i32, %arg1: memref<4x98x288xbf16, #tpu.memory_space<vmem>>, %arg2: memref<288x64xbf16, #tpu.memory_space<vmem>>, %arg3: memref<1x64xf32, #tpu.memory_space<vmem>>, %arg4: memref<98x64xbf16, #tpu.memory_space<vmem>>) attributes {dimension_semantics = [#tpu.dimension_semantics<arbitrary>], iteration_bounds = array<i64: 1>, scalar_prefetch = 0 : i64, scratch_operands = 0 : i64, tpu.core_type = #tpu.core_type<tc>, window_params = [{pipeline_mode = #tpu.pipeline_mode<synchronous>, transform_indices = @transform_0, window_bounds = array<i64: 4, 98, 288>}, {pipeline_mode = #tpu.pipeline_mode<synchronous>, transform_indices = @transform_1, window_bounds = array<i64: 288, 64>}, {pipeline_mode = #tpu.pipeline_mode<synchronous>, transform_indices = @transform_2, window_bounds = array<i64: 1, 64>}, {pipeline_mode = #tpu.pipeline_mode<synchronous>, transform_indices = @transform_3, window_bounds = array<i64: 98, 64>}]} {
    %c0 = arith.constant 0 : index
    %c0_0 = arith.constant 0 : index
    %0 = vector.load %arg2[%c0, %c0_0] : memref<288x64xbf16, #tpu.memory_space<vmem>>, vector<288x64xbf16>
    %c0_1 = arith.constant 0 : index
    %c0_2 = arith.constant 0 : index
    %c0_3 = arith.constant 0 : index
    %1 = vector.load %arg1[%c0_1, %c0_2, %c0_3] : memref<4x98x288xbf16, #tpu.memory_space<vmem>>, vector<1x98x288xbf16>
    %2 = vector.shape_cast %1 : vector<1x98x288xbf16> to vector<98x288xbf16>
    %cst = arith.constant dense<0.000000e+00> : vector<98x64xf32>
    %3 = tpu.matmul %2, %0, %cst {dimension_numbers = #tpu.dot_dimension_numbers<[1], [0], [0], [1], [0, 0, 1, 1], [], []>} : vector<98x288xbf16>, vector<288x64xbf16>, vector<98x64xf32> -> vector<98x64xf32>
    %c1 = arith.constant 1 : index
    %c0_4 = arith.constant 0 : index
    %c0_5 = arith.constant 0 : index
    %4 = vector.load %arg1[%c1, %c0_4, %c0_5] : memref<4x98x288xbf16, #tpu.memory_space<vmem>>, vector<1x98x288xbf16>
    %5 = vector.shape_cast %4 : vector<1x98x288xbf16> to vector<98x288xbf16>
    %cst_6 = arith.constant dense<0.000000e+00> : vector<98x64xf32>
    %6 = tpu.matmul %5, %0, %cst_6 {dimension_numbers = #tpu.dot_dimension_numbers<[1], [0], [0], [1], [0, 0, 1, 1], [], []>} : vector<98x288xbf16>, vector<288x64xbf16>, vector<98x64xf32> -> vector<98x64xf32>
    %7 = arith.maximumf %3, %6 : vector<98x64xf32>
    %c2 = arith.constant 2 : index
    %c0_7 = arith.constant 0 : index
    %c0_8 = arith.constant 0 : index
    %8 = vector.load %arg1[%c2, %c0_7, %c0_8] : memref<4x98x288xbf16, #tpu.memory_space<vmem>>, vector<1x98x288xbf16>
    %9 = vector.shape_cast %8 : vector<1x98x288xbf16> to vector<98x288xbf16>
    %cst_9 = arith.constant dense<0.000000e+00> : vector<98x64xf32>
    %10 = tpu.matmul %9, %0, %cst_9 {dimension_numbers = #tpu.dot_dimension_numbers<[1], [0], [0], [1], [0, 0, 1, 1], [], []>} : vector<98x288xbf16>, vector<288x64xbf16>, vector<98x64xf32> -> vector<98x64xf32>
    %11 = arith.maximumf %7, %10 : vector<98x64xf32>
    %c3 = arith.constant 3 : index
    %c0_10 = arith.constant 0 : index
    %c0_11 = arith.constant 0 : index
    %12 = vector.load %arg1[%c3, %c0_10, %c0_11] : memref<4x98x288xbf16, #tpu.memory_space<vmem>>, vector<1x98x288xbf16>
    %13 = vector.shape_cast %12 : vector<1x98x288xbf16> to vector<98x288xbf16>
    %cst_12 = arith.constant dense<0.000000e+00> : vector<98x64xf32>
    %14 = tpu.matmul %13, %0, %cst_12 {dimension_numbers = #tpu.dot_dimension_numbers<[1], [0], [0], [1], [0, 0, 1, 1], [], []>} : vector<98x288xbf16>, vector<288x64xbf16>, vector<98x64xf32> -> vector<98x64xf32>
    %15 = arith.maximumf %11, %14 : vector<98x64xf32>
    %c0_13 = arith.constant 0 : index
    %c0_14 = arith.constant 0 : index
    %16 = vector.load %arg3[%c0_13, %c0_14] : memref<1x64xf32, #tpu.memory_space<vmem>>, vector<1x64xf32>
    %17 = vector.broadcast %16 : vector<1x64xf32> to vector<98x64xf32>
    %18 = arith.addf %15, %17 : vector<98x64xf32>
    %cst_15 = arith.constant 0.000000e+00 : f32
    %19 = vector.broadcast %cst_15 : f32 to vector<98x64xf32>
    %20 = arith.maximumf %18, %19 : vector<98x64xf32>
    %21 = arith.truncf %20 : vector<98x64xf32> to vector<98x64xbf16>
    %c0_16 = arith.constant 0 : index
    %c0_17 = arith.constant 0 : index
    %22 = vector.load %arg4[%c0_16, %c0_17] : memref<98x64xbf16, #tpu.memory_space<vmem>>, vector<98x64xbf16>
    tpu.vector_store %arg4[%c0_16, %c0_17], %21 {strides = array<i32>} : memref<98x64xbf16, #tpu.memory_space<vmem>>, vector<98x64xbf16>,
    return
  }
  func.func @transform_0(%arg0: i32) -> (i32, i32, i32) {
    %c0_i32 = arith.constant 0 : i32
    %c0_i32_0 = arith.constant 0 : i32
    %c0_i32_1 = arith.constant 0 : i32
    %c0_i32_2 = arith.constant 0 : i32
    return %c0_i32, %c0_i32_0, %c0_i32_1 : i32, i32, i32
  }
  func.func @transform_1(%arg0: i32) -> (i32, i32) {
    %c0_i32 = arith.constant 0 : i32
    %c0_i32_0 = arith.constant 0 : i32
    %c0_i32_1 = arith.constant 0 : i32
    return %c0_i32, %c0_i32_0 : i32, i32
  }
  func.func @transform_2(%arg0: i32) -> (i32, i32) {
    %c0_i32 = arith.constant 0 : i32
    %c0_i32_0 = arith.constant 0 : i32
    %c0_i32_1 = arith.constant 0 : i32
    return %c0_i32, %c0_i32_0 : i32, i32
  }
  func.func @transform_3(%arg0: i32) -> (i32, i32) {
    %c0_i32 = arith.constant 0 : i32
    %c0_i32_0 = arith.constant 0 : i32
    %c0_i32_1 = arith.constant 0 : i32
    return %c0_i32, %c0_i32_0 : i32, i32
  }
}

module attributes {stable_mosaic.version = 11 : i64} {
  func.func @_conv_pool_fc_kernel(%arg0: i32, %arg1: memref<4x72x576xbf16, #tpu.memory_space<vmem>>, %arg2: memref<576x128xbf16, #tpu.memory_space<vmem>>, %arg3: memref<1x128xf32, #tpu.memory_space<vmem>>, %arg4: memref<9x128x128xbf16, #tpu.memory_space<vmem>>, %arg5: memref<1x128xf32, #tpu.memory_space<vmem>>, %arg6: memref<1x128xf32, #tpu.memory_space<vmem>>, %arg7: memref<1x1xf32, #tpu.memory_space<vmem>>, %arg8: memref<8x1xf32, #tpu.memory_space<vmem>>) attributes {dimension_semantics = [#tpu.dimension_semantics<arbitrary>], iteration_bounds = array<i64: 1>, scalar_prefetch = 0 : i64, scratch_operands = 0 : i64, tpu.core_type = #tpu.core_type<tc>, window_params = [{pipeline_mode = #tpu.pipeline_mode<synchronous>, transform_indices = @transform_0, window_bounds = array<i64: 4, 72, 576>}, {pipeline_mode = #tpu.pipeline_mode<synchronous>, transform_indices = @transform_1, window_bounds = array<i64: 576, 128>}, {pipeline_mode = #tpu.pipeline_mode<synchronous>, transform_indices = @transform_2, window_bounds = array<i64: 1, 128>}, {pipeline_mode = #tpu.pipeline_mode<synchronous>, transform_indices = @transform_3, window_bounds = array<i64: 9, 128, 128>}, {pipeline_mode = #tpu.pipeline_mode<synchronous>, transform_indices = @transform_4, window_bounds = array<i64: 1, 128>}, {pipeline_mode = #tpu.pipeline_mode<synchronous>, transform_indices = @transform_5, window_bounds = array<i64: 1, 128>}, {pipeline_mode = #tpu.pipeline_mode<synchronous>, transform_indices = @transform_6, window_bounds = array<i64: 1, 1>}, {pipeline_mode = #tpu.pipeline_mode<synchronous>, transform_indices = @transform_7, window_bounds = array<i64: 8, 1>}]} {
    %c0 = arith.constant 0 : index
    %c0_0 = arith.constant 0 : index
    %0 = vector.load %arg2[%c0, %c0_0] : memref<576x128xbf16, #tpu.memory_space<vmem>>, vector<576x128xbf16>
    %c0_1 = arith.constant 0 : index
    %c0_2 = arith.constant 0 : index
    %c0_3 = arith.constant 0 : index
    %1 = vector.load %arg1[%c0_1, %c0_2, %c0_3] : memref<4x72x576xbf16, #tpu.memory_space<vmem>>, vector<1x72x576xbf16>
    %2 = vector.shape_cast %1 : vector<1x72x576xbf16> to vector<72x576xbf16>
    %cst = arith.constant dense<0.000000e+00> : vector<72x128xf32>
    %3 = tpu.matmul %2, %0, %cst {dimension_numbers = #tpu.dot_dimension_numbers<[1], [0], [0], [1], [0, 0, 1, 1], [], []>} : vector<72x576xbf16>, vector<576x128xbf16>, vector<72x128xf32> -> vector<72x128xf32>
    %c1 = arith.constant 1 : index
    %c0_4 = arith.constant 0 : index
    %c0_5 = arith.constant 0 : index
    %4 = vector.load %arg1[%c1, %c0_4, %c0_5] : memref<4x72x576xbf16, #tpu.memory_space<vmem>>, vector<1x72x576xbf16>
    %5 = vector.shape_cast %4 : vector<1x72x576xbf16> to vector<72x576xbf16>
    %cst_6 = arith.constant dense<0.000000e+00> : vector<72x128xf32>
    %6 = tpu.matmul %5, %0, %cst_6 {dimension_numbers = #tpu.dot_dimension_numbers<[1], [0], [0], [1], [0, 0, 1, 1], [], []>} : vector<72x576xbf16>, vector<576x128xbf16>, vector<72x128xf32> -> vector<72x128xf32>
    %7 = arith.maximumf %3, %6 : vector<72x128xf32>
    %c2 = arith.constant 2 : index
    %c0_7 = arith.constant 0 : index
    %c0_8 = arith.constant 0 : index
    %8 = vector.load %arg1[%c2, %c0_7, %c0_8] : memref<4x72x576xbf16, #tpu.memory_space<vmem>>, vector<1x72x576xbf16>
    %9 = vector.shape_cast %8 : vector<1x72x576xbf16> to vector<72x576xbf16>
    %cst_9 = arith.constant dense<0.000000e+00> : vector<72x128xf32>
    %10 = tpu.matmul %9, %0, %cst_9 {dimension_numbers = #tpu.dot_dimension_numbers<[1], [0], [0], [1], [0, 0, 1, 1], [], []>} : vector<72x576xbf16>, vector<576x128xbf16>, vector<72x128xf32> -> vector<72x128xf32>
    %11 = arith.maximumf %7, %10 : vector<72x128xf32>
    %c3 = arith.constant 3 : index
    %c0_10 = arith.constant 0 : index
    %c0_11 = arith.constant 0 : index
    %12 = vector.load %arg1[%c3, %c0_10, %c0_11] : memref<4x72x576xbf16, #tpu.memory_space<vmem>>, vector<1x72x576xbf16>
    %13 = vector.shape_cast %12 : vector<1x72x576xbf16> to vector<72x576xbf16>
    %cst_12 = arith.constant dense<0.000000e+00> : vector<72x128xf32>
    %14 = tpu.matmul %13, %0, %cst_12 {dimension_numbers = #tpu.dot_dimension_numbers<[1], [0], [0], [1], [0, 0, 1, 1], [], []>} : vector<72x576xbf16>, vector<576x128xbf16>, vector<72x128xf32> -> vector<72x128xf32>
    %15 = arith.maximumf %11, %14 : vector<72x128xf32>
    %c0_13 = arith.constant 0 : index
    %c0_14 = arith.constant 0 : index
    %16 = vector.load %arg3[%c0_13, %c0_14] : memref<1x128xf32, #tpu.memory_space<vmem>>, vector<1x128xf32>
    %17 = vector.broadcast %16 : vector<1x128xf32> to vector<72x128xf32>
    %18 = arith.addf %15, %17 : vector<72x128xf32>
    %cst_15 = arith.constant 0.000000e+00 : f32
    %19 = vector.broadcast %cst_15 : f32 to vector<72x128xf32>
    %20 = arith.maximumf %18, %19 : vector<72x128xf32>
    %21 = arith.truncf %20 : vector<72x128xf32> to vector<72x128xbf16>
    %22 = vector.extract_strided_slice %21 {offsets = [0, 0], sizes = [8, 128], strides = [1, 1]} : vector<72x128xbf16> to vector<8x128xbf16>
    %c0_16 = arith.constant 0 : index
    %c0_17 = arith.constant 0 : index
    %c0_18 = arith.constant 0 : index
    %23 = vector.load %arg4[%c0_16, %c0_17, %c0_18] : memref<9x128x128xbf16, #tpu.memory_space<vmem>>, vector<1x128x128xbf16>
    %24 = vector.shape_cast %23 : vector<1x128x128xbf16> to vector<128x128xbf16>
    %cst_19 = arith.constant dense<0.000000e+00> : vector<8x128xf32>
    %25 = tpu.matmul %22, %24, %cst_19 {dimension_numbers = #tpu.dot_dimension_numbers<[1], [0], [0], [1], [0, 0, 1, 1], [], []>} : vector<8x128xbf16>, vector<128x128xbf16>, vector<8x128xf32> -> vector<8x128xf32>
    %26 = vector.extract_strided_slice %21 {offsets = [8, 0], sizes = [8, 128], strides = [1, 1]} : vector<72x128xbf16> to vector<8x128xbf16>
    %c1_20 = arith.constant 1 : index
    %c0_21 = arith.constant 0 : index
    %c0_22 = arith.constant 0 : index
    %27 = vector.load %arg4[%c1_20, %c0_21, %c0_22] : memref<9x128x128xbf16, #tpu.memory_space<vmem>>, vector<1x128x128xbf16>
    %28 = vector.shape_cast %27 : vector<1x128x128xbf16> to vector<128x128xbf16>
    %cst_23 = arith.constant dense<0.000000e+00> : vector<8x128xf32>
    %29 = tpu.matmul %26, %28, %cst_23 {dimension_numbers = #tpu.dot_dimension_numbers<[1], [0], [0], [1], [0, 0, 1, 1], [], []>} : vector<8x128xbf16>, vector<128x128xbf16>, vector<8x128xf32> -> vector<8x128xf32>
    %30 = arith.addf %25, %29 : vector<8x128xf32>
    %31 = vector.extract_strided_slice %21 {offsets = [16, 0], sizes = [8, 128], strides = [1, 1]} : vector<72x128xbf16> to vector<8x128xbf16>
    %c2_24 = arith.constant 2 : index
    %c0_25 = arith.constant 0 : index
    %c0_26 = arith.constant 0 : index
    %32 = vector.load %arg4[%c2_24, %c0_25, %c0_26] : memref<9x128x128xbf16, #tpu.memory_space<vmem>>, vector<1x128x128xbf16>
    %33 = vector.shape_cast %32 : vector<1x128x128xbf16> to vector<128x128xbf16>
    %cst_27 = arith.constant dense<0.000000e+00> : vector<8x128xf32>
    %34 = tpu.matmul %31, %33, %cst_27 {dimension_numbers = #tpu.dot_dimension_numbers<[1], [0], [0], [1], [0, 0, 1, 1], [], []>} : vector<8x128xbf16>, vector<128x128xbf16>, vector<8x128xf32> -> vector<8x128xf32>
    %35 = arith.addf %30, %34 : vector<8x128xf32>
    %36 = vector.extract_strided_slice %21 {offsets = [24, 0], sizes = [8, 128], strides = [1, 1]} : vector<72x128xbf16> to vector<8x128xbf16>
    %c3_28 = arith.constant 3 : index
    %c0_29 = arith.constant 0 : index
    %c0_30 = arith.constant 0 : index
    %37 = vector.load %arg4[%c3_28, %c0_29, %c0_30] : memref<9x128x128xbf16, #tpu.memory_space<vmem>>, vector<1x128x128xbf16>
    %38 = vector.shape_cast %37 : vector<1x128x128xbf16> to vector<128x128xbf16>
    %cst_31 = arith.constant dense<0.000000e+00> : vector<8x128xf32>
    %39 = tpu.matmul %36, %38, %cst_31 {dimension_numbers = #tpu.dot_dimension_numbers<[1], [0], [0], [1], [0, 0, 1, 1], [], []>} : vector<8x128xbf16>, vector<128x128xbf16>, vector<8x128xf32> -> vector<8x128xf32>
    %40 = arith.addf %35, %39 : vector<8x128xf32>
    %41 = vector.extract_strided_slice %21 {offsets = [32, 0], sizes = [8, 128], strides = [1, 1]} : vector<72x128xbf16> to vector<8x128xbf16>
    %c4 = arith.constant 4 : index
    %c0_32 = arith.constant 0 : index
    %c0_33 = arith.constant 0 : index
    %42 = vector.load %arg4[%c4, %c0_32, %c0_33] : memref<9x128x128xbf16, #tpu.memory_space<vmem>>, vector<1x128x128xbf16>
    %43 = vector.shape_cast %42 : vector<1x128x128xbf16> to vector<128x128xbf16>
    %cst_34 = arith.constant dense<0.000000e+00> : vector<8x128xf32>
    %44 = tpu.matmul %41, %43, %cst_34 {dimension_numbers = #tpu.dot_dimension_numbers<[1], [0], [0], [1], [0, 0, 1, 1], [], []>} : vector<8x128xbf16>, vector<128x128xbf16>, vector<8x128xf32> -> vector<8x128xf32>
    %45 = arith.addf %40, %44 : vector<8x128xf32>
    %46 = vector.extract_strided_slice %21 {offsets = [40, 0], sizes = [8, 128], strides = [1, 1]} : vector<72x128xbf16> to vector<8x128xbf16>
    %c5 = arith.constant 5 : index
    %c0_35 = arith.constant 0 : index
    %c0_36 = arith.constant 0 : index
    %47 = vector.load %arg4[%c5, %c0_35, %c0_36] : memref<9x128x128xbf16, #tpu.memory_space<vmem>>, vector<1x128x128xbf16>
    %48 = vector.shape_cast %47 : vector<1x128x128xbf16> to vector<128x128xbf16>
    %cst_37 = arith.constant dense<0.000000e+00> : vector<8x128xf32>
    %49 = tpu.matmul %46, %48, %cst_37 {dimension_numbers = #tpu.dot_dimension_numbers<[1], [0], [0], [1], [0, 0, 1, 1], [], []>} : vector<8x128xbf16>, vector<128x128xbf16>, vector<8x128xf32> -> vector<8x128xf32>
    %50 = arith.addf %45, %49 : vector<8x128xf32>
    %51 = vector.extract_strided_slice %21 {offsets = [48, 0], sizes = [8, 128], strides = [1, 1]} : vector<72x128xbf16> to vector<8x128xbf16>
    %c6 = arith.constant 6 : index
    %c0_38 = arith.constant 0 : index
    %c0_39 = arith.constant 0 : index
    %52 = vector.load %arg4[%c6, %c0_38, %c0_39] : memref<9x128x128xbf16, #tpu.memory_space<vmem>>, vector<1x128x128xbf16>
    %53 = vector.shape_cast %52 : vector<1x128x128xbf16> to vector<128x128xbf16>
    %cst_40 = arith.constant dense<0.000000e+00> : vector<8x128xf32>
    %54 = tpu.matmul %51, %53, %cst_40 {dimension_numbers = #tpu.dot_dimension_numbers<[1], [0], [0], [1], [0, 0, 1, 1], [], []>} : vector<8x128xbf16>, vector<128x128xbf16>, vector<8x128xf32> -> vector<8x128xf32>
    %55 = arith.addf %50, %54 : vector<8x128xf32>
    %56 = vector.extract_strided_slice %21 {offsets = [56, 0], sizes = [8, 128], strides = [1, 1]} : vector<72x128xbf16> to vector<8x128xbf16>
    %c7 = arith.constant 7 : index
    %c0_41 = arith.constant 0 : index
    %c0_42 = arith.constant 0 : index
    %57 = vector.load %arg4[%c7, %c0_41, %c0_42] : memref<9x128x128xbf16, #tpu.memory_space<vmem>>, vector<1x128x128xbf16>
    %58 = vector.shape_cast %57 : vector<1x128x128xbf16> to vector<128x128xbf16>
    %cst_43 = arith.constant dense<0.000000e+00> : vector<8x128xf32>
    %59 = tpu.matmul %56, %58, %cst_43 {dimension_numbers = #tpu.dot_dimension_numbers<[1], [0], [0], [1], [0, 0, 1, 1], [], []>} : vector<8x128xbf16>, vector<128x128xbf16>, vector<8x128xf32> -> vector<8x128xf32>
    %60 = arith.addf %55, %59 : vector<8x128xf32>
    %61 = vector.extract_strided_slice %21 {offsets = [64, 0], sizes = [8, 128], strides = [1, 1]} : vector<72x128xbf16> to vector<8x128xbf16>
    %c8 = arith.constant 8 : index
    %c0_44 = arith.constant 0 : index
    %c0_45 = arith.constant 0 : index
    %62 = vector.load %arg4[%c8, %c0_44, %c0_45] : memref<9x128x128xbf16, #tpu.memory_space<vmem>>, vector<1x128x128xbf16>
    %63 = vector.shape_cast %62 : vector<1x128x128xbf16> to vector<128x128xbf16>
    %cst_46 = arith.constant dense<0.000000e+00> : vector<8x128xf32>
    %64 = tpu.matmul %61, %63, %cst_46 {dimension_numbers = #tpu.dot_dimension_numbers<[1], [0], [0], [1], [0, 0, 1, 1], [], []>} : vector<8x128xbf16>, vector<128x128xbf16>, vector<8x128xf32> -> vector<8x128xf32>
    %65 = arith.addf %60, %64 : vector<8x128xf32>
    %c0_47 = arith.constant 0 : index
    %c0_48 = arith.constant 0 : index
    %66 = vector.load %arg5[%c0_47, %c0_48] : memref<1x128xf32, #tpu.memory_space<vmem>>, vector<1x128xf32>
    %67 = vector.broadcast %66 : vector<1x128xf32> to vector<8x128xf32>
    %68 = arith.addf %65, %67 : vector<8x128xf32>
    %cst_49 = arith.constant 0.000000e+00 : f32
    %69 = vector.broadcast %cst_49 : f32 to vector<8x128xf32>
    %70 = arith.maximumf %68, %69 : vector<8x128xf32>
    %c0_50 = arith.constant 0 : index
    %c0_51 = arith.constant 0 : index
    %71 = vector.load %arg6[%c0_50, %c0_51] : memref<1x128xf32, #tpu.memory_space<vmem>>, vector<1x128xf32>
    %72 = vector.broadcast %71 : vector<1x128xf32> to vector<8x128xf32>
    %73 = arith.mulf %70, %72 : vector<8x128xf32>
    %cst_52 = arith.constant dense<0.000000e+00> : vector<8xf32>
    %74 = vector.multi_reduction <add>, %73, %cst_52 [1] : vector<8x128xf32> to vector<8xf32>
    %75 = vector.shape_cast %74 : vector<8xf32> to vector<8x1xf32>
    %c0_53 = arith.constant 0 : index
    %c0_54 = arith.constant 0 : index
    %76 = vector.load %arg7[%c0_53, %c0_54] : memref<1x1xf32, #tpu.memory_space<vmem>>, vector<1x1xf32>
    %77 = vector.broadcast %76 : vector<1x1xf32> to vector<8x1xf32>
    %78 = arith.addf %75, %77 : vector<8x1xf32>
    %cst_55 = arith.constant 0.000000e+00 : f32
    %79 = vector.broadcast %cst_55 : f32 to vector<8x1xf32>
    %80 = arith.subf %79, %78 : vector<8x1xf32>
    %81 = math.exp %80 : vector<8x1xf32>
    %cst_56 = arith.constant 1.000000e+00 : f32
    %82 = vector.broadcast %cst_56 : f32 to vector<8x1xf32>
    %83 = arith.addf %82, %81 : vector<8x1xf32>
    %cst_57 = arith.constant 1.000000e+00 : f32
    %84 = vector.broadcast %cst_57 : f32 to vector<8x1xf32>
    %85 = arith.divf %84, %83 : vector<8x1xf32>
    %c0_58 = arith.constant 0 : index
    %c0_59 = arith.constant 0 : index
    %86 = vector.load %arg8[%c0_58, %c0_59] : memref<8x1xf32, #tpu.memory_space<vmem>>, vector<8x1xf32>
    tpu.vector_store %arg8[%c0_58, %c0_59], %85 {strides = array<i32>} : memref<8x1xf32, #tpu.memory_space<vmem>>, vector<8x1xf32>,
    return
  }
  func.func @transform_0(%arg0: i32) -> (i32, i32, i32) {
    %c0_i32 = arith.constant 0 : i32
    %c0_i32_0 = arith.constant 0 : i32
    %c0_i32_1 = arith.constant 0 : i32
    %c0_i32_2 = arith.constant 0 : i32
    return %c0_i32, %c0_i32_0, %c0_i32_1 : i32, i32, i32
  }
  func.func @transform_1(%arg0: i32) -> (i32, i32) {
    %c0_i32 = arith.constant 0 : i32
    %c0_i32_0 = arith.constant 0 : i32
    %c0_i32_1 = arith.constant 0 : i32
    return %c0_i32, %c0_i32_0 : i32, i32
  }
  func.func @transform_2(%arg0: i32) -> (i32, i32) {
    %c0_i32 = arith.constant 0 : i32
    %c0_i32_0 = arith.constant 0 : i32
    %c0_i32_1 = arith.constant 0 : i32
    return %c0_i32, %c0_i32_0 : i32, i32
  }
  func.func @transform_3(%arg0: i32) -> (i32, i32, i32) {
    %c0_i32 = arith.constant 0 : i32
    %c0_i32_0 = arith.constant 0 : i32
    %c0_i32_1 = arith.constant 0 : i32
    %c0_i32_2 = arith.constant 0 : i32
    return %c0_i32, %c0_i32_0, %c0_i32_1 : i32, i32, i32
  }
  func.func @transform_4(%arg0: i32) -> (i32, i32) {
    %c0_i32 = arith.constant 0 : i32
    %c0_i32_0 = arith.constant 0 : i32
    %c0_i32_1 = arith.constant 0 : i32
    return %c0_i32, %c0_i32_0 : i32, i32
  }
  func.func @transform_5(%arg0: i32) -> (i32, i32) {
    %c0_i32 = arith.constant 0 : i32
    %c0_i32_0 = arith.constant 0 : i32
    %c0_i32_1 = arith.constant 0 : i32
    return %c0_i32, %c0_i32_0 : i32, i32
  }
  func.func @transform_6(%arg0: i32) -> (i32, i32) {
    %c0_i32 = arith.constant 0 : i32
    %c0_i32_0 = arith.constant 0 : i32
    %c0_i32_1 = arith.constant 0 : i32
    return %c0_i32, %c0_i32_0 : i32, i32
  }
  func.func @transform_7(%arg0: i32) -> (i32, i32) {
    %c0_i32 = arith.constant 0 : i32
    %c0_i32_0 = arith.constant 0 : i32
    %c0_i32_1 = arith.constant 0 : i32
    return %c0_i32, %c0_i32_0 : i32, i32
  }
}

</mosaic_0001>

<llo_original>
// kernel: breast_cnn_forward.3
$region0: #{breast_cnn_forward.3}
  #allocation0 [shape = 'u32[]', space=smem, size = 0x4, offset = 0x4, fixed_abs, tag = 'smem constant byte address 0x4 - core index']
  #allocation1 [shape = 'u32[144,128]{1,0:T(1,128)}', space=vmem, size = 0x12000, scoped, tag = 'internal scratch']
  %s0 = inlined_call_operand.vmem [shape: bf16[4,392,9], index: 0, kind: input, shape index: {}]
  %s1 = inlined_call_operand.vmem [shape: bf16[9,32], index: 1, kind: input, shape index: {}]
  %s2 = inlined_call_operand.vmem [shape: f32[1,32], index: 2, kind: input, shape index: {}]
  %s3 = inlined_call_operand.vmem [shape: bf16[392,32], index: 3, kind: output, shape index: {}]
  %s4 = sld [smem:[#allocation0]]
  $region22: #{breast_cnn_forward.3} parent=0
    _
  %s6 = ssub.s32 1, %s4
  %s7 = scalar_select 0, %s6, %s4
  // Predicated region
  $region2: #{breast_cnn_forward.3} parent=0 // pred_check
    _
  $region3: #{breast_cnn_forward.3} parent=0 // pred_check_branch
    %9 = sbr.rel (0) target = $region5
  $region4: #{breast_cnn_forward.3} parent=0 // pred_region
    _
  $region5: #{breast_cnn_forward.3} parent=0 // pred_fallthru
    _
  // Predicated region
  $region6: #{breast_cnn_forward.3} parent=0 // pred_check
    _
  $region7: #{breast_cnn_forward.3} parent=0 // pred_check_branch
    %11 = sbr.rel (0) target = $region9
  $region8: #{breast_cnn_forward.3} parent=0 // pred_region
    _
  $region9: #{breast_cnn_forward.3} parent=0 // pred_fallthru
    _
  // Predicated region
  $region10: #{breast_cnn_forward.3} parent=0 // pred_check
    _
  $region11: #{breast_cnn_forward.3} parent=0 // pred_check_branch
    %13 = sbr.rel (0) target = $region13
  $region12: #{breast_cnn_forward.3} parent=0 // pred_region
    _
  $region13: #{breast_cnn_forward.3} parent=0 // pred_fallthru
    _
  %v15 = vld [vmem:[%s1] sm:$0xf]
  %v16 = vld [vmem:[%s1 + $0x4] sm:$0x1]
  %v17 = vld [vmem:[%s0] sm:$0xf]
  %v18 = vld [vmem:[%s0 + $0x4] sm:$0xf]
  %v19 = vld [vmem:[%s0 + $0x8] sm:$0xf]
  %v20 = vld [vmem:[%s0 + $0xc] sm:$0xf]
  %v21 = vld [vmem:[%s0 + $0x10] sm:$0xf]
  %v22 = vld [vmem:[%s0 + $0x14] sm:$0xf]
  %v23 = vld [vmem:[%s0 + $0x18] sm:$0xf]
  %v24 = vld [vmem:[%s0 + $0x1c] sm:$0xf]
  %v25 = vld [vmem:[%s0 + $0x20] sm:$0xf]
  %v26 = vld [vmem:[%s0 + $0x24] sm:$0xf]
  %v27 = vld [vmem:[%s0 + $0x28] sm:$0xf]
  %v28 = vld [vmem:[%s0 + $0x2c] sm:$0xf]
  %v29 = vld [vmem:[%s0 + $0x30] sm:$0xf]
  %v30 = vld [vmem:[%s0 + $0x34] sm:$0xf]
  %v31 = vld [vmem:[%s0 + $0x38] sm:$0xf]
  %v32 = vld [vmem:[%s0 + $0x3c] sm:$0xf]
  %v33 = vld [vmem:[%s0 + $0x40] sm:$0xf]
  %v34 = vld [vmem:[%s0 + $0x44] sm:$0xf]
  %v35 = vld [vmem:[%s0 + $0x48] sm:$0xf]
  %v36 = vld [vmem:[%s0 + $0x4c] sm:$0xf]
  %v37 = vld [vmem:[%s0 + $0x50] sm:$0xf]
  %v38 = vld [vmem:[%s0 + $0x54] sm:$0xf]
  %v39 = vld [vmem:[%s0 + $0x58] sm:$0xf]
  %v40 = vld [vmem:[%s0 + $0x5c] sm:$0xf]
  %v41 = vld [vmem:[%s0 + $0x60] sm:$0xf]
  %v42 = vld [vmem:[%s0 + $0x64] sm:$0xf]
  %v43 = vld [vmem:[%s0 + $0x68] sm:$0xf]
  %v44 = vld [vmem:[%s0 + $0x6c] sm:$0xf]
  %v45 = vld [vmem:[%s0 + $0x70] sm:$0xf]
  %v46 = vld [vmem:[%s0 + $0x74] sm:$0xf]
  %v47 = vld [vmem:[%s0 + $0x78] sm:$0xf]
  %v48 = vld [vmem:[%s0 + $0x7c] sm:$0xf]
  %v49 = vld [vmem:[%s0 + $0x80] sm:$0xf]
  %v50 = vld [vmem:[%s0 + $0x84] sm:$0xf]
  %v51 = vld [vmem:[%s0 + $0x88] sm:$0xf]
  %v52 = vld [vmem:[%s0 + $0x8c] sm:$0xf]
  %v53 = vld [vmem:[%s0 + $0x90] sm:$0xf]
  %v54 = vld [vmem:[%s0 + $0x94] sm:$0xf]
  %v55 = vld [vmem:[%s0 + $0x98] sm:$0xf]
  %v56 = vld [vmem:[%s0 + $0x9c] sm:$0xf]
  %v57 = vld [vmem:[%s0 + $0xa0] sm:$0xf]
  %v58 = vld [vmem:[%s0 + $0xa4] sm:$0xf]
  %v59 = vld [vmem:[%s0 + $0xa8] sm:$0xf]
  %v60 = vld [vmem:[%s0 + $0xac] sm:$0xf]
  %v61 = vld [vmem:[%s0 + $0xb0] sm:$0xf]
  %v62 = vld [vmem:[%s0 + $0xb4] sm:$0xf]
  %v63 = vld [vmem:[%s0 + $0xb8] sm:$0xf]
  %v64 = vld [vmem:[%s0 + $0xbc] sm:$0xf]
  %v65 = vld [vmem:[%s0 + $0xc0] sm:$0xf]
  %v115 = vunpack.c.l.b16 %v17
  %v116 = vunpack.c.l.b16 %v18
  %v117 = vunpack.c.l.b16 %v19
  %v118 = vunpack.c.l.b16 %v20
  %v119 = vunpack.c.l.b16 %v21
  %v120 = vunpack.c.l.b16 %v22
  %v121 = vunpack.c.l.b16 %v23
  %v122 = vunpack.c.l.b16 %v24
  %v123 = vunpack.c.l.b16 %v25
  %v124 = vunpack.c.l.b16 %v26
  %v125 = vunpack.c.l.b16 %v27
  %v126 = vunpack.c.l.b16 %v28
  %v127 = vunpack.c.l.b16 %v29
  %v128 = vunpack.c.l.b16 %v30
  %v129 = vunpack.c.l.b16 %v31
  %v130 = vunpack.c.l.b16 %v32
  %v131 = vunpack.c.l.b16 %v33
  %v132 = vunpack.c.l.b16 %v34
  %v133 = vunpack.c.l.b16 %v35
  %v134 = vunpack.c.l.b16 %v36
  %v135 = vunpack.c.l.b16 %v37
  %v136 = vunpack.c.l.b16 %v38
  %v137 = vunpack.c.l.b16 %v39
  %v138 = vunpack.c.l.b16 %v40
  %v139 = vunpack.c.l.b16 %v41
  %v140 = vunpack.c.l.b16 %v42
  %v141 = vunpack.c.l.b16 %v43
  %v142 = vunpack.c.l.b16 %v44
  %v143 = vunpack.c.l.b16 %v45
  %v144 = vunpack.c.l.b16 %v46
  %v145 = vunpack.c.l.b16 %v47
  %v146 = vunpack.c.l.b16 %v48
  %v147 = vunpack.c.l.b16 %v49
  %v148 = vunpack.c.l.b16 %v50
  %v149 = vunpack.c.l.b16 %v51
  %v150 = vunpack.c.l.b16 %v52
  %v151 = vunpack.c.l.b16 %v53
  %v152 = vunpack.c.l.b16 %v54
  %v153 = vunpack.c.l.b16 %v55
  %v154 = vunpack.c.l.b16 %v56
  %v155 = vunpack.c.l.b16 %v57
  %v156 = vunpack.c.l.b16 %v58
  %v157 = vunpack.c.l.b16 %v59
  %v158 = vunpack.c.l.b16 %v60
  %v159 = vunpack.c.l.b16 %v61
  %v160 = vunpack.c.l.b16 %v62
  %v161 = vunpack.c.l.b16 %v63
  %v162 = vunpack.c.l.b16 %v64
  %v163 = vunpack.c.l.b16 %v65
  %v164 = vpack.c.b16 %v116, %v115
  %v165 = vpack.c.b16 %v118, %v117
  %v166 = vpack.c.b16 %v120, %v119
  %v167 = vpack.c.b16 %v122, %v121
  %v168 = vpack.c.b16 %v124, %v123
  %v169 = vpack.c.b16 %v126, %v125
  %v170 = vpack.c.b16 %v128, %v127
  %v171 = vpack.c.b16 %v130, %v129
  %v172 = vpack.c.b16 %v132, %v131
  %v173 = vpack.c.b16 %v134, %v133
  %v174 = vpack.c.b16 %v136, %v135
  %v175 = vpack.c.b16 %v138, %v137
  %v176 = vpack.c.b16 %v140, %v139
  %v177 = vpack.c.b16 %v142, %v141
  %v178 = vpack.c.b16 %v144, %v143
  %v179 = vpack.c.b16 %v146, %v145
  %v180 = vpack.c.b16 %v148, %v147
  %v181 = vpack.c.b16 %v150, %v149
  %v182 = vpack.c.b16 %v152, %v151
  %v183 = vpack.c.b16 %v154, %v153
  %v184 = vpack.c.b16 %v156, %v155
  %v185 = vpack.c.b16 %v158, %v157
  %v186 = vpack.c.b16 %v160, %v159
  %v187 = vpack.c.b16 %v162, %v161
  %v188 = vpack.c.b16 %v163, %v163
  %v191 = vunpack.c.l.b16 %v15
  %v192 = vunpack.c.l.b16 %v16
  %v193 = vpack.c.b16 %v192, %v191
  %vm194 = vcmask 72704
  %v196 = vsel %vm194, %v164, 0
  %v199 = vsel %vm194, %v165, 0
  %v202 = vsel %vm194, %v166, 0
  %v205 = vsel %vm194, %v167, 0
  %v208 = vsel %vm194, %v168, 0
  %v211 = vsel %vm194, %v169, 0
  %v214 = vsel %vm194, %v170, 0
  %v217 = vsel %vm194, %v171, 0
  %v220 = vsel %vm194, %v172, 0
  %v223 = vsel %vm194, %v173, 0
  %v226 = vsel %vm194, %v174, 0
  %v229 = vsel %vm194, %v175, 0
  %v232 = vsel %vm194, %v176, 0
  %v235 = vsel %vm194, %v177, 0
  %v238 = vsel %vm194, %v178, 0
  %v241 = vsel %vm194, %v179, 0
  %v244 = vsel %vm194, %v180, 0
  %v247 = vsel %vm194, %v181, 0
  %v250 = vsel %vm194, %v182, 0
  %v253 = vsel %vm194, %v183, 0
  %v256 = vsel %vm194, %v184, 0
  %v259 = vsel %vm194, %v185, 0
  %v262 = vsel %vm194, %v186, 0
  %v265 = vsel %vm194, %v187, 0
  %v268 = vsel %vm194, %v188, 0
  %vm270 = vcmask 1043456
  %vm271 = vcmask 1044480
  %v272 = vsel %vm270, 4294967295, 65535
  %v273 = vsel %vm271, %v272, 0
  %v275 = vand.u32 %v193, %v273
  %277 = vmatprep.subr.bf16.mxu0 0
  %278 = vmatpush1.bf16.msra.mxu0 %v275
  %279 = vmatprep.subr.bf16.mxu0 0
  %280 = vmatpush1.bf16.msra.mxu0 0
  %281 = vmatprep.subr.bf16.mxu0 0
  %282 = vmatpush1.bf16.msra.mxu0 0
  %283 = vmatprep.subr.bf16.mxu0 0
  %284 = vmatpush1.bf16.msra.mxu0 0
  %285 = vmatprep.subr.bf16.mxu0 0
  %286 = vmatpush1.bf16.msra.mxu0 0
  %287 = vmatprep.subr.bf16.mxu0 0
  %288 = vmatpush1.bf16.msra.mxu0 0
  %289 = vmatprep.subr.bf16.mxu0 0
  %290 = vmatpush1.bf16.msra.mxu0 0
  %291 = vmatprep.subr.bf16.mxu0 0
  %292 = vmatpush1.bf16.msra.mxu0 0
  %293 = vmatprep.subr.bf16.mxu0 0
  %294 = vmatpush1.bf16.msra.mxu0 0
  %295 = vmatprep.subr.bf16.mxu0 0
  %296 = vmatpush1.bf16.msra.mxu0 0
  %297 = vmatprep.subr.bf16.mxu0 0
  %298 = vmatpush1.bf16.msra.mxu0 0
  %299 = vmatprep.subr.bf16.mxu0 0
  %300 = vmatpush1.bf16.msra.mxu0 0
  %301 = vmatprep.subr.bf16.mxu0 0
  %302 = vmatpush1.bf16.msra.mxu0 0
  %303 = vmatprep.subr.bf16.mxu0 0
  %304 = vmatpush1.bf16.msra.mxu0 0
  %305 = vmatprep.subr.bf16.mxu0 0
  %306 = vmatpush1.bf16.msra.mxu0 0
  %307 = vmatprep.subr.bf16.mxu0 0
  %308 = vmatpush1.bf16.msra.mxu0 0
  %309 = vmatprep.mubr.bf16.mxu0 0
  %310 = vmatmul.mubr.bf16.gmra.mrb[0].mxu0 %v196
  %v311 = vpop.f32.mrb[0].mxu0
  %v312 = vadd.f32 0.0, %v311
  %v313 = vpop.f32.mrb[0].mxu0
  %v314 = vpop.f32.mrb[0].mxu0
  %v315 = vadd.f32 0.0, %v314
  %v316 = vpop.f32.mrb[0].mxu0
  %317 = vmatprep.mubr.bf16.mxu0 0
  %318 = vmatmul.mubr.bf16.gmra.mrb[0].mxu0 %v199
  %v319 = vpop.f32.mrb[0].mxu0
  %v320 = vadd.f32 0.0, %v319
  %v321 = vpop.f32.mrb[0].mxu0
  %v322 = vpop.f32.mrb[0].mxu0
  %v323 = vadd.f32 0.0, %v322
  %v324 = vpop.f32.mrb[0].mxu0
  %325 = vmatprep.mubr.bf16.mxu0 0
  %326 = vmatmul.mubr.bf16.gmra.mrb[0].mxu0 %v202
  %v327 = vpop.f32.mrb[0].mxu0
  %v328 = vadd.f32 0.0, %v327
  %v329 = vpop.f32.mrb[0].mxu0
  %v330 = vpop.f32.mrb[0].mxu0
  %v331 = vadd.f32 0.0, %v330
  %v332 = vpop.f32.mrb[0].mxu0
  %333 = vmatprep.mubr.bf16.mxu0 0
  %334 = vmatmul.mubr.bf16.gmra.mrb[0].mxu0 %v205
  %v335 = vpop.f32.mrb[0].mxu0
  %v336 = vadd.f32 0.0, %v335
  %v337 = vpop.f32.mrb[0].mxu0
  %v338 = vpop.f32.mrb[0].mxu0
  %v339 = vadd.f32 0.0, %v338
  %v340 = vpop.f32.mrb[0].mxu0
  %341 = vmatprep.mubr.bf16.mxu0 0
  %342 = vmatmul.mubr.bf16.gmra.mrb[0].mxu0 %v208
  %v343 = vpop.f32.mrb[0].mxu0
  %v344 = vadd.f32 0.0, %v343
  %v345 = vpop.f32.mrb[0].mxu0
  %v346 = vpop.f32.mrb[0].mxu0
  %v347 = vadd.f32 0.0, %v346
  %v348 = vpop.f32.mrb[0].mxu0
  %349 = vmatprep.mubr.bf16.mxu0 0
  %350 = vmatmul.mubr.bf16.gmra.mrb[0].mxu0 %v211
  %v351 = vpop.f32.mrb[0].mxu0
  %v352 = vadd.f32 0.0, %v351
  %v353 = vpop.f32.mrb[0].mxu0
  %v354 = vpop.f32.mrb[0].mxu0
  %v355 = vadd.f32 0.0, %v354
  %v356 = vpop.f32.mrb[0].mxu0
  %357 = vmatprep.mubr.bf16.mxu0 0
  %358 = vmatmul.mubr.bf16.gmra.mrb[0].mxu0 %v214
  %v359 = vpop.f32.mrb[0].mxu0
  %v360 = vadd.f32 0.0, %v359
  %v361 = vpop.f32.mrb[0].mxu0
  %v362 = vpop.f32.mrb[0].mxu0
  %v363 = vadd.f32 0.0, %v362
  %v364 = vpop.f32.mrb[0].mxu0
  %365 = vmatprep.mubr.bf16.mxu0 0
  %366 = vmatmul.mubr.bf16.gmra.mrb[0].mxu0 %v217
  %v367 = vpop.f32.mrb[0].mxu0
  %v368 = vadd.f32 0.0, %v367
  %v369 = vpop.f32.mrb[0].mxu0
  %v370 = vpop.f32.mrb[0].mxu0
  %v371 = vadd.f32 0.0, %v370
  %v372 = vpop.f32.mrb[0].mxu0
  %373 = vmatprep.mubr.bf16.mxu0 0
  %374 = vmatmul.mubr.bf16.gmra.mrb[0].mxu0 %v220
  %v375 = vpop.f32.mrb[0].mxu0
  %v376 = vadd.f32 0.0, %v375
  %v377 = vpop.f32.mrb[0].mxu0
  %v378 = vpop.f32.mrb[0].mxu0
  %v379 = vadd.f32 0.0, %v378
  %v380 = vpop.f32.mrb[0].mxu0
  %381 = vmatprep.mubr.bf16.mxu0 0
  %382 = vmatmul.mubr.bf16.gmra.mrb[0].mxu0 %v223
  %v383 = vpop.f32.mrb[0].mxu0
  %v384 = vadd.f32 0.0, %v383
  %v385 = vpop.f32.mrb[0].mxu0
  %v386 = vpop.f32.mrb[0].mxu0
  %v387 = vadd.f32 0.0, %v386
  %v388 = vpop.f32.mrb[0].mxu0
  %389 = vmatprep.mubr.bf16.mxu0 0
  %390 = vmatmul.mubr.bf16.gmra.mrb[0].mxu0 %v226
  %v391 = vpop.f32.mrb[0].mxu0
  %v392 = vadd.f32 0.0, %v391
  %v393 = vpop.f32.mrb[0].mxu0
  %v394 = vpop.f32.mrb[0].mxu0
  %v395 = vadd.f32 0.0, %v394
  %v396 = vpop.f32.mrb[0].mxu0
  %397 = vmatprep.mubr.bf16.mxu0 0
  %398 = vmatmul.mubr.bf16.gmra.mrb[0].mxu0 %v229
  %v399 = vpop.f32.mrb[0].mxu0
  %v400 = vadd.f32 0.0, %v399
  %v401 = vpop.f32.mrb[0].mxu0
  %v402 = vpop.f32.mrb[0].mxu0
  %v403 = vadd.f32 0.0, %v402
  %v404 = vpop.f32.mrb[0].mxu0
  %405 = vmatprep.mubr.bf16.mxu0 0
  %406 = vmatmul.mubr.bf16.gmra.mrb[0].mxu0 %v232
  %v407 = vpop.f32.mrb[0].mxu0
  %v408 = vadd.f32 0.0, %v407
  %v409 = vpop.f32.mrb[0].mxu0
  %v410 = vpop.f32.mrb[0].mxu0
  %v411 = vadd.f32 0.0, %v410
  %v412 = vpop.f32.mrb[0].mxu0
  %413 = vmatprep.mubr.bf16.mxu0 0
  %414 = vmatmul.mubr.bf16.gmra.mrb[0].mxu0 %v235
  %v415 = vpop.f32.mrb[0].mxu0
  %v416 = vadd.f32 0.0, %v415
  %v417 = vpop.f32.mrb[0].mxu0
  %v418 = vpop.f32.mrb[0].mxu0
  %v419 = vadd.f32 0.0, %v418
  %v420 = vpop.f32.mrb[0].mxu0
  %421 = vmatprep.mubr.bf16.mxu0 0
  %422 = vmatmul.mubr.bf16.gmra.mrb[0].mxu0 %v238
  %v423 = vpop.f32.mrb[0].mxu0
  %v424 = vadd.f32 0.0, %v423
  %v425 = vpop.f32.mrb[0].mxu0
  %v426 = vpop.f32.mrb[0].mxu0
  %v427 = vadd.f32 0.0, %v426
  %v428 = vpop.f32.mrb[0].mxu0
  %429 = vmatprep.mubr.bf16.mxu0 0
  %430 = vmatmul.mubr.bf16.gmra.mrb[0].mxu0 %v241
  %v431 = vpop.f32.mrb[0].mxu0
  %v432 = vadd.f32 0.0, %v431
  %v433 = vpop.f32.mrb[0].mxu0
  %v434 = vpop.f32.mrb[0].mxu0
  %v435 = vadd.f32 0.0, %v434
  %v436 = vpop.f32.mrb[0].mxu0
  %437 = vmatprep.mubr.bf16.mxu0 0
  %438 = vmatmul.mubr.bf16.gmra.mrb[0].mxu0 %v244
  %v439 = vpop.f32.mrb[0].mxu0
  %v440 = vadd.f32 0.0, %v439
  %v441 = vpop.f32.mrb[0].mxu0
  %v442 = vpop.f32.mrb[0].mxu0
  %v443 = vadd.f32 0.0, %v442
  %v444 = vpop.f32.mrb[0].mxu0
  %445 = vmatprep.mubr.bf16.mxu0 0
  %446 = vmatmul.mubr.bf16.gmra.mrb[0].mxu0 %v247
  %v447 = vpop.f32.mrb[0].mxu0
  %v448 = vadd.f32 0.0, %v447
  %v449 = vpop.f32.mrb[0].mxu0
  %v450 = vpop.f32.mrb[0].mxu0
  %v451 = vadd.f32 0.0, %v450
  %v452 = vpop.f32.mrb[0].mxu0
  %453 = vmatprep.mubr.bf16.mxu0 0
  %454 = vmatmul.mubr.bf16.gmra.mrb[0].mxu0 %v250
  %v455 = vpop.f32.mrb[0].mxu0
  %v456 = vadd.f32 0.0, %v455
  %v457 = vpop.f32.mrb[0].mxu0
  %v458 = vpop.f32.mrb[0].mxu0
  %v459 = vadd.f32 0.0, %v458
  %v460 = vpop.f32.mrb[0].mxu0
  %461 = vmatprep.mubr.bf16.mxu0 0
  %462 = vmatmul.mubr.bf16.gmra.mrb[0].mxu0 %v253
  %v463 = vpop.f32.mrb[0].mxu0
  %v464 = vadd.f32 0.0, %v463
  %v465 = vpop.f32.mrb[0].mxu0
  %v466 = vpop.f32.mrb[0].mxu0
  %v467 = vadd.f32 0.0, %v466
  %v468 = vpop.f32.mrb[0].mxu0
  %469 = vmatprep.mubr.bf16.mxu0 0
  %470 = vmatmul.mubr.bf16.gmra.mrb[0].mxu0 %v256
  %v471 = vpop.f32.mrb[0].mxu0
  %v472 = vadd.f32 0.0, %v471
  %v473 = vpop.f32.mrb[0].mxu0
  %v474 = vpop.f32.mrb[0].mxu0
  %v475 = vadd.f32 0.0, %v474
  %v476 = vpop.f32.mrb[0].mxu0
  %477 = vmatprep.mubr.bf16.mxu0 0
  %478 = vmatmul.mubr.bf16.gmra.mrb[0].mxu0 %v259
  %v479 = vpop.f32.mrb[0].mxu0
  %v480 = vadd.f32 0.0, %v479
  %v481 = vpop.f32.mrb[0].mxu0
  %v482 = vpop.f32.mrb[0].mxu0
  %v483 = vadd.f32 0.0, %v482
  %v484 = vpop.f32.mrb[0].mxu0
  %485 = vmatprep.mubr.bf16.mxu0 0
  %486 = vmatmul.mubr.bf16.gmra.mrb[0].mxu0 %v262
  %v487 = vpop.f32.mrb[0].mxu0
  %v488 = vadd.f32 0.0, %v487
  %v489 = vpop.f32.mrb[0].mxu0
  %v490 = vpop.f32.mrb[0].mxu0
  %v491 = vadd.f32 0.0, %v490
  %v492 = vpop.f32.mrb[0].mxu0
  %493 = vmatprep.mubr.bf16.mxu0 0
  %494 = vmatmul.mubr.bf16.gmra.mrb[0].mxu0 %v265
  %v495 = vpop.f32.mrb[0].mxu0
  %v496 = vadd.f32 0.0, %v495
  %v497 = vpop.f32.mrb[0].mxu0
  %v498 = vpop.f32.mrb[0].mxu0
  %v499 = vadd.f32 0.0, %v498
  %v500 = vpop.f32.mrb[0].mxu0
  %501 = vmatprep.mubr.bf16.mxu0 0
  %502 = vmatmul.mubr.bf16.gmra.mrb[0].mxu0 %v268
  %v503 = vpop.f32.mrb[0].mxu0
  %v504 = vadd.f32 0.0, %v503
  %v505 = vpop.f32.mrb[0].mxu0
  %v506 = vpop.f32.mrb[0].mxu0
  %v507 = vpop.f32.mrb[0].mxu0
  %508 = vdwg.mxu0
  %s509 = scalar_lea.vmem %s0, 196
  %v510 = vld [vmem:[%s509] sm:$0xf]
  %v511 = vld [vmem:[%s509 + $0x4] sm:$0xf]
  %v512 = vld [vmem:[%s509 + $0x8] sm:$0xf]
  %v513 = vld [vmem:[%s509 + $0xc] sm:$0xf]
  %v514 = vld [vmem:[%s509 + $0x10] sm:$0xf]
  %v515 = vld [vmem:[%s509 + $0x14] sm:$0xf]
  %v516 = vld [vmem:[%s509 + $0x18] sm:$0xf]
  %v517 = vld [vmem:[%s509 + $0x1c] sm:$0xf]
  %v518 = vld [vmem:[%s509 + $0x20] sm:$0xf]
  %v519 = vld [vmem:[%s509 + $0x24] sm:$0xf]
  %v520 = vld [vmem:[%s509 + $0x28] sm:$0xf]
  %v521 = vld [vmem:[%s509 + $0x2c] sm:$0xf]
  %v522 = vld [vmem:[%s509 + $0x30] sm:$0xf]
  %v523 = vld [vmem:[%s509 + $0x34] sm:$0xf]
  %v524 = vld [vmem:[%s509 + $0x38] sm:$0xf]
  %v525 = vld [vmem:[%s509 + $0x3c] sm:$0xf]
  %v526 = vld [vmem:[%s509 + $0x40] sm:$0xf]
  %v527 = vld [vmem:[%s509 + $0x44] sm:$0xf]
  %v528 = vld [vmem:[%s509 + $0x48] sm:$0xf]
  %v529 = vld [vmem:[%s509 + $0x4c] sm:$0xf]
  %v530 = vld [vmem:[%s509 + $0x50] sm:$0xf]
  %v531 = vld [vmem:[%s509 + $0x54] sm:$0xf]
  %v532 = vld [vmem:[%s509 + $0x58] sm:$0xf]
  %v533 = vld [vmem:[%s509 + $0x5c] sm:$0xf]
  %v534 = vld [vmem:[%s509 + $0x60] sm:$0xf]
  %v535 = vld [vmem:[%s509 + $0x64] sm:$0xf]
  %v536 = vld [vmem:[%s509 + $0x68] sm:$0xf]
  %v537 = vld [vmem:[%s509 + $0x6c] sm:$0xf]
  %v538 = vld [vmem:[%s509 + $0x70] sm:$0xf]
  %v539 = vld [vmem:[%s509 + $0x74] sm:$0xf]
  %v540 = vld [vmem:[%s509 + $0x78] sm:$0xf]
  %v541 = vld [vmem:[%s509 + $0x7c] sm:$0xf]
  %v542 = vld [vmem:[%s509 + $0x80] sm:$0xf]
  %v543 = vld [vmem:[%s509 + $0x84] sm:$0xf]
  %v544 = vld [vmem:[%s509 + $0x88] sm:$0xf]
  %v545 = vld [vmem:[%s509 + $0x8c] sm:$0xf]
  %v546 = vld [vmem:[%s509 + $0x90] sm:$0xf]
  %v547 = vld [vmem:[%s509 + $0x94] sm:$0xf]
  %v548 = vld [vmem:[%s509 + $0x98] sm:$0xf]
  %v549 = vld [vmem:[%s509 + $0x9c] sm:$0xf]
  %v550 = vld [vmem:[%s509 + $0xa0] sm:$0xf]
  %v551 = vld [vmem:[%s509 + $0xa4] sm:$0xf]
  %v552 = vld [vmem:[%s509 + $0xa8] sm:$0xf]
  %v553 = vld [vmem:[%s509 + $0xac] sm:$0xf]
  %v554 = vld [vmem:[%s509 + $0xb0] sm:$0xf]
  %v555 = vld [vmem:[%s509 + $0xb4] sm:$0xf]
  %v556 = vld [vmem:[%s509 + $0xb8] sm:$0xf]
  %v557 = vld [vmem:[%s509 + $0xbc] sm:$0xf]
  %v558 = vld [vmem:[%s509 + $0xc0] sm:$0xf]
  %v608 = vunpack.c.l.b16 %v510
  %v609 = vunpack.c.l.b16 %v511
  %v610 = vunpack.c.l.b16 %v512
  %v611 = vunpack.c.l.b16 %v513
  %v612 = vunpack.c.l.b16 %v514
  %v613 = vunpack.c.l.b16 %v515
  %v614 = vunpack.c.l.b16 %v516
  %v615 = vunpack.c.l.b16 %v517
  %v616 = vunpack.c.l.b16 %v518
  %v617 = vunpack.c.l.b16 %v519
  %v618 = vunpack.c.l.b16 %v520
  %v619 = vunpack.c.l.b16 %v521
  %v620 = vunpack.c.l.b16 %v522
  %v621 = vunpack.c.l.b16 %v523
  %v622 = vunpack.c.l.b16 %v524
  %v623 = vunpack.c.l.b16 %v525
  %v624 = vunpack.c.l.b16 %v526
  %v625 = vunpack.c.l.b16 %v527
  %v626 = vunpack.c.l.b16 %v528
  %v627 = vunpack.c.l.b16 %v529
  %v628 = vunpack.c.l.b16 %v530
  %v629 = vunpack.c.l.b16 %v531
  %v630 = vunpack.c.l.b16 %v532
  %v631 = vunpack.c.l.b16 %v533
  %v632 = vunpack.c.l.b16 %v534
  %v633 = vunpack.c.l.b16 %v535
  %v634 = vunpack.c.l.b16 %v536
  %v635 = vunpack.c.l.b16 %v537
  %v636 = vunpack.c.l.b16 %v538
  %v637 = vunpack.c.l.b16 %v539
  %v638 = vunpack.c.l.b16 %v540
  %v639 = vunpack.c.l.b16 %v541
  %v640 = vunpack.c.l.b16 %v542
  %v641 = vunpack.c.l.b16 %v543
  %v642 = vunpack.c.l.b16 %v544
  %v643 = vunpack.c.l.b16 %v545
  %v644 = vunpack.c.l.b16 %v546
  %v645 = vunpack.c.l.b16 %v547
  %v646 = vunpack.c.l.b16 %v548
  %v647 = vunpack.c.l.b16 %v549
  %v648 = vunpack.c.l.b16 %v550
  %v649 = vunpack.c.l.b16 %v551
  %v650 = vunpack.c.l.b16 %v552
  %v651 = vunpack.c.l.b16 %v553
  %v652 = vunpack.c.l.b16 %v554
  %v653 = vunpack.c.l.b16 %v555
  %v654 = vunpack.c.l.b16 %v556
  %v655 = vunpack.c.l.b16 %v557
  %v656 = vunpack.c.l.b16 %v558
  %v657 = vpack.c.b16 %v609, %v608
  %v658 = vpack.c.b16 %v611, %v610
  %v659 = vpack.c.b16 %v613, %v612
  %v660 = vpack.c.b16 %v615, %v614
  %v661 = vpack.c.b16 %v617, %v616
  %v662 = vpack.c.b16 %v619, %v618
  %v663 = vpack.c.b16 %v621, %v620
  %v664 = vpack.c.b16 %v623, %v622
  %v665 = vpack.c.b16 %v625, %v624
  %v666 = vpack.c.b16 %v627, %v626
  %v667 = vpack.c.b16 %v629, %v628
  %v668 = vpack.c.b16 %v631, %v630
  %v669 = vpack.c.b16 %v633, %v632
  %v670 = vpack.c.b16 %v635, %v634
  %v671 = vpack.c.b16 %v637, %v636
  %v672 = vpack.c.b16 %v639, %v638
  %v673 = vpack.c.b16 %v641, %v640
  %v674 = vpack.c.b16 %v643, %v642
  %v675 = vpack.c.b16 %v645, %v644
  %v676 = vpack.c.b16 %v647, %v646
  %v677 = vpack.c.b16 %v649, %v648
  %v678 = vpack.c.b16 %v651, %v650
  %v679 = vpack.c.b16 %v653, %v652
  %v680 = vpack.c.b16 %v655, %v654
  %v681 = vpack.c.b16 %v656, %v656
  %v683 = vsel %vm194, %v657, 0
  %v686 = vsel %vm194, %v658, 0
  %v689 = vsel %vm194, %v659, 0
  %v692 = vsel %vm194, %v660, 0
  %v695 = vsel %vm194, %v661, 0
  %v698 = vsel %vm194, %v662, 0
  %v701 = vsel %vm194, %v663, 0
  %v704 = vsel %vm194, %v664, 0
  %v707 = vsel %vm194, %v665, 0
  %v710 = vsel %vm194, %v666, 0
  %v713 = vsel %vm194, %v667, 0
  %v716 = vsel %vm194, %v668, 0
  %v719 = vsel %vm194, %v669, 0
  %v722 = vsel %vm194, %v670, 0
  %v725 = vsel %vm194, %v671, 0
  %v728 = vsel %vm194, %v672, 0
  %v731 = vsel %vm194, %v673, 0
  %v734 = vsel %vm194, %v674, 0
  %v737 = vsel %vm194, %v675, 0
  %v740 = vsel %vm194, %v676, 0
  %v743 = vsel %vm194, %v677, 0
  %v746 = vsel %vm194, %v678, 0
  %v749 = vsel %vm194, %v679, 0
  %v752 = vsel %vm194, %v680, 0
  %v755 = vsel %vm194, %v681, 0
  %757 = vmatprep.subr.bf16.mxu0 0
  %758 = vmatpush1.bf16.msra.mxu0 %v275
  %759 = vmatprep.subr.bf16.mxu0 0
  %760 = vmatpush1.bf16.msra.mxu0 0
  %761 = vmatprep.subr.bf16.mxu0 0
  %762 = vmatpush1.bf16.msra.mxu0 0
  %763 = vmatprep.subr.bf16.mxu0 0
  %764 = vmatpush1.bf16.msra.mxu0 0
  %765 = vmatprep.subr.bf16.mxu0 0
  %766 = vmatpush1.bf16.msra.mxu0 0
  %767 = vmatprep.subr.bf16.mxu0 0
  %768 = vmatpush1.bf16.msra.mxu0 0
  %769 = vmatprep.subr.bf16.mxu0 0
  %770 = vmatpush1.bf16.msra.mxu0 0
  %771 = vmatprep.subr.bf16.mxu0 0
  %772 = vmatpush1.bf16.msra.mxu0 0
  %773 = vmatprep.subr.bf16.mxu0 0
  %774 = vmatpush1.bf16.msra.mxu0 0
  %775 = vmatprep.subr.bf16.mxu0 0
  %776 = vmatpush1.bf16.msra.mxu0 0
  %777 = vmatprep.subr.bf16.mxu0 0
  %778 = vmatpush1.bf16.msra.mxu0 0
  %779 = vmatprep.subr.bf16.mxu0 0
  %780 = vmatpush1.bf16.msra.mxu0 0
  %781 = vmatprep.subr.bf16.mxu0 0
  %782 = vmatpush1.bf16.msra.mxu0 0
  %783 = vmatprep.subr.bf16.mxu0 0
  %784 = vmatpush1.bf16.msra.mxu0 0
  %785 = vmatprep.subr.bf16.mxu0 0
  %786 = vmatpush1.bf16.msra.mxu0 0
  %787 = vmatprep.subr.bf16.mxu0 0
  %788 = vmatpush1.bf16.msra.mxu0 0
  %789 = vmatprep.mubr.bf16.mxu0 0
  %790 = vmatmul.mubr.bf16.gmra.mrb[0].mxu0 %v683
  %v791 = vpop.f32.mrb[0].mxu0
  %v792 = vadd.f32 0.0, %v791
  %v793 = vpop.f32.mrb[0].mxu0
  %v794 = vpop.f32.mrb[0].mxu0
  %v795 = vadd.f32 0.0, %v794
  %v796 = vpop.f32.mrb[0].mxu0
  %797 = vmatprep.mubr.bf16.mxu0 0
  %798 = vmatmul.mubr.bf16.gmra.mrb[0].mxu0 %v686
  %v799 = vpop.f32.mrb[0].mxu0
  %v800 = vadd.f32 0.0, %v799
  %v801 = vpop.f32.mrb[0].mxu0
  %v802 = vpop.f32.mrb[0].mxu0
  %v803 = vadd.f32 0.0, %v802
  %v804 = vpop.f32.mrb[0].mxu0
  %805 = vmatprep.mubr.bf16.mxu0 0
  %806 = vmatmul.mubr.bf16.gmra.mrb[0].mxu0 %v689
  %v807 = vpop.f32.mrb[0].mxu0
  %v808 = vadd.f32 0.0, %v807
  %v809 = vpop.f32.mrb[0].mxu0
  %v810 = vpop.f32.mrb[0].mxu0
  %v811 = vadd.f32 0.0, %v810
  %v812 = vpop.f32.mrb[0].mxu0
  %813 = vmatprep.mubr.bf16.mxu0 0
  %814 = vmatmul.mubr.bf16.gmra.mrb[0].mxu0 %v692
  %v815 = vpop.f32.mrb[0].mxu0
  %v816 = vadd.f32 0.0, %v815
  %v817 = vpop.f32.mrb[0].mxu0
  %v818 = vpop.f32.mrb[0].mxu0
  %v819 = vadd.f32 0.0, %v818
  %v820 = vpop.f32.mrb[0].mxu0
  %821 = vmatprep.mubr.bf16.mxu0 0
  %822 = vmatmul.mubr.bf16.gmra.mrb[0].mxu0 %v695
  %v823 = vpop.f32.mrb[0].mxu0
  %v824 = vadd.f32 0.0, %v823
  %v825 = vpop.f32.mrb[0].mxu0
  %v826 = vpop.f32.mrb[0].mxu0
  %v827 = vadd.f32 0.0, %v826
  %v828 = vpop.f32.mrb[0].mxu0
  %829 = vmatprep.mubr.bf16.mxu0 0
  %830 = vmatmul.mubr.bf16.gmra.mrb[0].mxu0 %v698
  %v831 = vpop.f32.mrb[0].mxu0
  %v832 = vadd.f32 0.0, %v831
  %v833 = vpop.f32.mrb[0].mxu0
  %v834 = vpop.f32.mrb[0].mxu0
  %v835 = vadd.f32 0.0, %v834
  %v836 = vpop.f32.mrb[0].mxu0
  %837 = vmatprep.mubr.bf16.mxu0 0
  %838 = vmatmul.mubr.bf16.gmra.mrb[0].mxu0 %v701
  %v839 = vpop.f32.mrb[0].mxu0
  %v840 = vadd.f32 0.0, %v839
  %v841 = vpop.f32.mrb[0].mxu0
  %v842 = vpop.f32.mrb[0].mxu0
  %v843 = vadd.f32 0.0, %v842
  %v844 = vpop.f32.mrb[0].mxu0
  %845 = vmatprep.mubr.bf16.mxu0 0
  %846 = vmatmul.mubr.bf16.gmra.mrb[0].mxu0 %v704
  %v847 = vpop.f32.mrb[0].mxu0
  %v848 = vadd.f32 0.0, %v847
  %v849 = vpop.f32.mrb[0].mxu0
  %v850 = vpop.f32.mrb[0].mxu0
  %v851 = vadd.f32 0.0, %v850
  %v852 = vpop.f32.mrb[0].mxu0
  %853 = vmatprep.mubr.bf16.mxu0 0
  %854 = vmatmul.mubr.bf16.gmra.mrb[0].mxu0 %v707
  %v855 = vpop.f32.mrb[0].mxu0
  %v856 = vadd.f32 0.0, %v855
  %v857 = vpop.f32.mrb[0].mxu0
  %v858 = vpop.f32.mrb[0].mxu0
  %v859 = vadd.f32 0.0, %v858
  %v860 = vpop.f32.mrb[0].mxu0
  %861 = vmatprep.mubr.bf16.mxu0 0
  %862 = vmatmul.mubr.bf16.gmra.mrb[0].mxu0 %v710
  %v863 = vpop.f32.mrb[0].mxu0
  %v864 = vadd.f32 0.0, %v863
  %v865 = vpop.f32.mrb[0].mxu0
  %v866 = vpop.f32.mrb[0].mxu0
  %v867 = vadd.f32 0.0, %v866
  %v868 = vpop.f32.mrb[0].mxu0
  %869 = vmatprep.mubr.bf16.mxu0 0
  %870 = vmatmul.mubr.bf16.gmra.mrb[0].mxu0 %v713
  %v871 = vpop.f32.mrb[0].mxu0
  %v872 = vadd.f32 0.0, %v871
  %v873 = vpop.f32.mrb[0].mxu0
  %v874 = vpop.f32.mrb[0].mxu0
  %v875 = vadd.f32 0.0, %v874
  %v876 = vpop.f32.mrb[0].mxu0
  %877 = vmatprep.mubr.bf16.mxu0 0
  %878 = vmatmul.mubr.bf16.gmra.mrb[0].mxu0 %v716
  %v879 = vpop.f32.mrb[0].mxu0
  %v880 = vadd.f32 0.0, %v879
  %v881 = vpop.f32.mrb[0].mxu0
  %v882 = vpop.f32.mrb[0].mxu0
  %v883 = vadd.f32 0.0, %v882
  %v884 = vpop.f32.mrb[0].mxu0
  %885 = vmatprep.mubr.bf16.mxu0 0
  %886 = vmatmul.mubr.bf16.gmra.mrb[0].mxu0 %v719
  %v887 = vpop.f32.mrb[0].mxu0
  %v888 = vadd.f32 0.0, %v887
  %v889 = vpop.f32.mrb[0].mxu0
  %v890 = vpop.f32.mrb[0].mxu0
  %v891 = vadd.f32 0.0, %v890
  %v892 = vpop.f32.mrb[0].mxu0
  %893 = vmatprep.mubr.bf16.mxu0 0
  %894 = vmatmul.mubr.bf16.gmra.mrb[0].mxu0 %v722
  %v895 = vpop.f32.mrb[0].mxu0
  %v896 = vadd.f32 0.0, %v895
  %v897 = vpop.f32.mrb[0].mxu0
  %v898 = vpop.f32.mrb[0].mxu0
  %v899 = vadd.f32 0.0, %v898
  %v900 = vpop.f32.mrb[0].mxu0
  %901 = vmatprep.mubr.bf16.mxu0 0
  %902 = vmatmul.mubr.bf16.gmra.mrb[0].mxu0 %v725
  %v903 = vpop.f32.mrb[0].mxu0
  %v904 = vadd.f32 0.0, %v903
  %v905 = vpop.f32.mrb[0].mxu0
  %v906 = vpop.f32.mrb[0].mxu0
  %v907 = vadd.f32 0.0, %v906
  %v908 = vpop.f32.mrb[0].mxu0
  %909 = vmatprep.mubr.bf16.mxu0 0
  %910 = vmatmul.mubr.bf16.gmra.mrb[0].mxu0 %v728
  %v911 = vpop.f32.mrb[0].mxu0
  %v912 = vadd.f32 0.0, %v911
  %v913 = vpop.f32.mrb[0].mxu0
  %v914 = vpop.f32.mrb[0].mxu0
  %v915 = vadd.f32 0.0, %v914
  %v916 = vpop.f32.mrb[0].mxu0
  %917 = vmatprep.mubr.bf16.mxu0 0
  %918 = vmatmul.mubr.bf16.gmra.mrb[0].mxu0 %v731
  %v919 = vpop.f32.mrb[0].mxu0
  %v920 = vadd.f32 0.0, %v919
  %v921 = vpop.f32.mrb[0].mxu0
  %v922 = vpop.f32.mrb[0].mxu0
  %v923 = vadd.f32 0.0, %v922
  %v924 = vpop.f32.mrb[0].mxu0
  %925 = vmatprep.mubr.bf16.mxu0 0
  %926 = vmatmul.mubr.bf16.gmra.mrb[0].mxu0 %v734
  %v927 = vpop.f32.mrb[0].mxu0
  %v928 = vadd.f32 0.0, %v927
  %v929 = vpop.f32.mrb[0].mxu0
  %v930 = vpop.f32.mrb[0].mxu0
  %v931 = vadd.f32 0.0, %v930
  %v932 = vpop.f32.mrb[0].mxu0
  %933 = vmatprep.mubr.bf16.mxu0 0
  %934 = vmatmul.mubr.bf16.gmra.mrb[0].mxu0 %v737
  %v935 = vpop.f32.mrb[0].mxu0
  %v936 = vadd.f32 0.0, %v935
  %v937 = vpop.f32.mrb[0].mxu0
  %v938 = vpop.f32.mrb[0].mxu0
  %v939 = vadd.f32 0.0, %v938
  %v940 = vpop.f32.mrb[0].mxu0
  %941 = vmatprep.mubr.bf16.mxu0 0
  %942 = vmatmul.mubr.bf16.gmra.mrb[0].mxu0 %v740
  %v943 = vpop.f32.mrb[0].mxu0
  %v944 = vadd.f32 0.0, %v943
  %v945 = vpop.f32.mrb[0].mxu0
  %v946 = vpop.f32.mrb[0].mxu0
  %v947 = vadd.f32 0.0, %v946
  %v948 = vpop.f32.mrb[0].mxu0
  %949 = vmatprep.mubr.bf16.mxu0 0
  %950 = vmatmul.mubr.bf16.gmra.mrb[0].mxu0 %v743
  %v951 = vpop.f32.mrb[0].mxu0
  %v952 = vadd.f32 0.0, %v951
  %v953 = vpop.f32.mrb[0].mxu0
  %v954 = vpop.f32.mrb[0].mxu0
  %v955 = vadd.f32 0.0, %v954
  %v956 = vpop.f32.mrb[0].mxu0
  %957 = vmatprep.mubr.bf16.mxu0 0
  %958 = vmatmul.mubr.bf16.gmra.mrb[0].mxu0 %v746
  %v959 = vpop.f32.mrb[0].mxu0
  %v960 = vadd.f32 0.0, %v959
  %v961 = vpop.f32.mrb[0].mxu0
  %v962 = vpop.f32.mrb[0].mxu0
  %v963 = vadd.f32 0.0, %v962
  %v964 = vpop.f32.mrb[0].mxu0
  %965 = vmatprep.mubr.bf16.mxu0 0
  %966 = vmatmul.mubr.bf16.gmra.mrb[0].mxu0 %v749
  %v967 = vpop.f32.mrb[0].mxu0
  %v968 = vadd.f32 0.0, %v967
  %v969 = vpop.f32.mrb[0].mxu0
  %v970 = vpop.f32.mrb[0].mxu0
  %v971 = vadd.f32 0.0, %v970
  %v972 = vpop.f32.mrb[0].mxu0
  %973 = vmatprep.mubr.bf16.mxu0 0
  %974 = vmatmul.mubr.bf16.gmra.mrb[0].mxu0 %v752
  %v975 = vpop.f32.mrb[0].mxu0
  %v976 = vadd.f32 0.0, %v975
  %v977 = vpop.f32.mrb[0].mxu0
  %v978 = vpop.f32.mrb[0].mxu0
  %v979 = vadd.f32 0.0, %v978
  %v980 = vpop.f32.mrb[0].mxu0
  %981 = vmatprep.mubr.bf16.mxu0 0
  %982 = vmatmul.mubr.bf16.gmra.mrb[0].mxu0 %v755
  %v983 = vpop.f32.mrb[0].mxu0
  %v984 = vadd.f32 0.0, %v983
  %v985 = vpop.f32.mrb[0].mxu0
  %v986 = vpop.f32.mrb[0].mxu0
  %v987 = vpop.f32.mrb[0].mxu0
  %988 = vdwg.mxu0
  %v989 = vmax.f32 %v312, %v792
  %v990 = vmax.f32 %v315, %v795
  %v991 = vmax.f32 %v320, %v800
  %v992 = vmax.f32 %v323, %v803
  %v993 = vmax.f32 %v328, %v808
  %v994 = vmax.f32 %v331, %v811
  %v995 = vmax.f32 %v336, %v816
  %v996 = vmax.f32 %v339, %v819
  %v997 = vmax.f32 %v344, %v824
  %v998 = vmax.f32 %v347, %v827
  %v999 = vmax.f32 %v352, %v832
  %v1000 = vmax.f32 %v355, %v835
  %v1001 = vmax.f32 %v360, %v840
  %v1002 = vmax.f32 %v363, %v843
  %v1003 = vmax.f32 %v368, %v848
  %v1004 = vmax.f32 %v371, %v851
  %v1005 = vmax.f32 %v376, %v856
  %v1006 = vmax.f32 %v379, %v859
  %v1007 = vmax.f32 %v384, %v864
  %v1008 = vmax.f32 %v387, %v867
  %v1009 = vmax.f32 %v392, %v872
  %v1010 = vmax.f32 %v395, %v875
  %v1011 = vmax.f32 %v400, %v880
  %v1012 = vmax.f32 %v403, %v883
  %v1013 = vmax.f32 %v408, %v888
  %v1014 = vmax.f32 %v411, %v891
  %v1015 = vmax.f32 %v416, %v896
  %v1016 = vmax.f32 %v419, %v899
  %v1017 = vmax.f32 %v424, %v904
  %v1018 = vmax.f32 %v427, %v907
  %v1019 = vmax.f32 %v432, %v912
  %v1020 = vmax.f32 %v435, %v915
  %v1021 = vmax.f32 %v440, %v920
  %v1022 = vmax.f32 %v443, %v923
  %v1023 = vmax.f32 %v448, %v928
  %v1024 = vmax.f32 %v451, %v931
  %v1025 = vmax.f32 %v456, %v936
  %v1026 = vmax.f32 %v459, %v939
  %v1027 = vmax.f32 %v464, %v944
  %v1028 = vmax.f32 %v467, %v947
  %v1029 = vmax.f32 %v472, %v952
  %v1030 = vmax.f32 %v475, %v955
  %v1031 = vmax.f32 %v480, %v960
  %v1032 = vmax.f32 %v483, %v963
  %v1033 = vmax.f32 %v488, %v968
  %v1034 = vmax.f32 %v491, %v971
  %v1035 = vmax.f32 %v496, %v976
  %v1036 = vmax.f32 %v499, %v979
  %v1037 = vmax.f32 %v504, %v984
  %s1038 = scalar_lea.vmem %s0, 392
  %v1039 = vld [vmem:[%s1038] sm:$0xf]
  %v1040 = vld [vmem:[%s1038 + $0x4] sm:$0xf]
  %v1041 = vld [vmem:[%s1038 + $0x8] sm:$0xf]
  %v1042 = vld [vmem:[%s1038 + $0xc] sm:$0xf]
  %v1043 = vld [vmem:[%s1038 + $0x10] sm:$0xf]
  %v1044 = vld [vmem:[%s1038 + $0x14] sm:$0xf]
  %v1045 = vld [vmem:[%s1038 + $0x18] sm:$0xf]
  %v1046 = vld [vmem:[%s1038 + $0x1c] sm:$0xf]
  %v1047 = vld [vmem:[%s1038 + $0x20] sm:$0xf]
  %v1048 = vld [vmem:[%s1038 + $0x24] sm:$0xf]
  %v1049 = vld [vmem:[%s1038 + $0x28] sm:$0xf]
  %v1050 = vld [vmem:[%s1038 + $0x2c] sm:$0xf]
  %v1051 = vld [vmem:[%s1038 + $0x30] sm:$0xf]
  %v1052 = vld [vmem:[%s1038 + $0x34] sm:$0xf]
  %v1053 = vld [vmem:[%s1038 + $0x38] sm:$0xf]
  %v1054 = vld [vmem:[%s1038 + $0x3c] sm:$0xf]
  %v1055 = vld [vmem:[%s1038 + $0x40] sm:$0xf]
  %v1056 = vld [vmem:[%s1038 + $0x44] sm:$0xf]
  %v1057 = vld [vmem:[%s1038 + $0x48] sm:$0xf]
  %v1058 = vld [vmem:[%s1038 + $0x4c] sm:$0xf]
  %v1059 = vld [vmem:[%s1038 + $0x50] sm:$0xf]
  %v1060 = vld [vmem:[%s1038 + $0x54] sm:$0xf]
  %v1061 = vld [vmem:[%s1038 + $0x58] sm:$0xf]
  %v1062 = vld [vmem:[%s1038 + $0x5c] sm:$0xf]
  %v1063 = vld [vmem:[%s1038 + $0x60] sm:$0xf]
  %v1064 = vld [vmem:[%s1038 + $0x64] sm:$0xf]
  %v1065 = vld [vmem:[%s1038 + $0x68] sm:$0xf]
  %v1066 = vld [vmem:[%s1038 + $0x6c] sm:$0xf]
  %v1067 = vld [vmem:[%s1038 + $0x70] sm:$0xf]
  %v1068 = vld [vmem:[%s1038 + $0x74] sm:$0xf]
  %v1069 = vld [vmem:[%s1038 + $0x78] sm:$0xf]
  %v1070 = vld [vmem:[%s1038 + $0x7c] sm:$0xf]
  %v1071 = vld [vmem:[%s1038 + $0x80] sm:$0xf]
  %v1072 = vld [vmem:[%s1038 + $0x84] sm:$0xf]
  %v1073 = vld [vmem:[%s1038 + $0x88] sm:$0xf]
  %v1074 = vld [vmem:[%s1038 + $0x8c] sm:$0xf]
  %v1075 = vld [vmem:[%s1038 + $0x90] sm:$0xf]
  %v1076 = vld [vmem:[%s1038 + $0x94] sm:$0xf]
  %v1077 = vld [vmem:[%s1038 + $0x98] sm:$0xf]
  %v1078 = vld [vmem:[%s1038 + $0x9c] sm:$0xf]
  %v1079 = vld [vmem:[%s1038 + $0xa0] sm:$0xf]
  %v1080 = vld [vmem:[%s1038 + $0xa4] sm:$0xf]
  %v1081 = vld [vmem:[%s1038 + $0xa8] sm:$0xf]
  %v1082 = vld [vmem:[%s1038 + $0xac] sm:$0xf]
  %v1083 = vld [vmem:[%s1038 + $0xb0] sm:$0xf]
  %v1084 = vld [vmem:[%s1038 + $0xb4] sm:$0xf]
  %v1085 = vld [vmem:[%s1038 + $0xb8] sm:$0xf]
  %v1086 = vld [vmem:[%s1038 + $0xbc] sm:$0xf]
  %v1087 = vld [vmem:[%s1038 + $0xc0] sm:$0xf]
  %v1137 = vunpack.c.l.b16 %v1039
  %v1138 = vunpack.c.l.b16 %v1040
  %v1139 = vunpack.c.l.b16 %v1041
  %v1140 = vunpack.c.l.b16 %v1042
  %v1141 = vunpack.c.l.b16 %v1043
  %v1142 = vunpack.c.l.b16 %v1044
  %v1143 = vunpack.c.l.b16 %v1045
  %v1144 = vunpack.c.l.b16 %v1046
  %v1145 = vunpack.c.l.b16 %v1047
  %v1146 = vunpack.c.l.b16 %v1048
  %v1147 = vunpack.c.l.b16 %v1049
  %v1148 = vunpack.c.l.b16 %v1050
  %v1149 = vunpack.c.l.b16 %v1051
  %v1150 = vunpack.c.l.b16 %v1052
  %v1151 = vunpack.c.l.b16 %v1053
  %v1152 = vunpack.c.l.b16 %v1054
  %v1153 = vunpack.c.l.b16 %v1055
  %v1154 = vunpack.c.l.b16 %v1056
  %v1155 = vunpack.c.l.b16 %v1057
  %v1156 = vunpack.c.l.b16 %v1058
  %v1157 = vunpack.c.l.b16 %v1059
  %v1158 = vunpack.c.l.b16 %v1060
  %v1159 = vunpack.c.l.b16 %v1061
  %v1160 = vunpack.c.l.b16 %v1062
  %v1161 = vunpack.c.l.b16 %v1063
  %v1162 = vunpack.c.l.b16 %v1064
  %v1163 = vunpack.c.l.b16 %v1065
  %v1164 = vunpack.c.l.b16 %v1066
  %v1165 = vunpack.c.l.b16 %v1067
  %v1166 = vunpack.c.l.b16 %v1068
  %v1167 = vunpack.c.l.b16 %v1069
  %v1168 = vunpack.c.l.b16 %v1070
  %v1169 = vunpack.c.l.b16 %v1071
  %v1170 = vunpack.c.l.b16 %v1072
  %v1171 = vunpack.c.l.b16 %v1073
  %v1172 = vunpack.c.l.b16 %v1074
  %v1173 = vunpack.c.l.b16 %v1075
  %v1174 = vunpack.c.l.b16 %v1076
  %v1175 = vunpack.c.l.b16 %v1077
  %v1176 = vunpack.c.l.b16 %v1078
  %v1177 = vunpack.c.l.b16 %v1079
  %v1178 = vunpack.c.l.b16 %v1080
  %v1179 = vunpack.c.l.b16 %v1081
  %v1180 = vunpack.c.l.b16 %v1082
  %v1181 = vunpack.c.l.b16 %v1083
  %v1182 = vunpack.c.l.b16 %v1084
  %v1183 = vunpack.c.l.b16 %v1085
  %v1184 = vunpack.c.l.b16 %v1086
  %v1185 = vunpack.c.l.b16 %v1087
  %v1186 = vpack.c.b16 %v1138, %v1137
  %v1187 = vpack.c.b16 %v1140, %v1139
  %v1188 = vpack.c.b16 %v1142, %v1141
  %v1189 = vpack.c.b16 %v1144, %v1143
  %v1190 = vpack.c.b16 %v1146, %v1145
  %v1191 = vpack.c.b16 %v1148, %v1147
  %v1192 = vpack.c.b16 %v1150, %v1149
  %v1193 = vpack.c.b16 %v1152, %v1151
  %v1194 = vpack.c.b16 %v1154, %v1153
  %v1195 = vpack.c.b16 %v1156, %v1155
  %v1196 = vpack.c.b16 %v1158, %v1157
  %v1197 = vpack.c.b16 %v1160, %v1159
  %v1198 = vpack.c.b16 %v1162, %v1161
  %v1199 = vpack.c.b16 %v1164, %v1163
  %v1200 = vpack.c.b16 %v1166, %v1165
  %v1201 = vpack.c.b16 %v1168, %v1167
  %v1202 = vpack.c.b16 %v1170, %v1169
  %v1203 = vpack.c.b16 %v1172, %v1171
  %v1204 = vpack.c.b16 %v1174, %v1173
  %v1205 = vpack.c.b16 %v1176, %v1175
  %v1206 = vpack.c.b16 %v1178, %v1177
  %v1207 = vpack.c.b16 %v1180, %v1179
  %v1208 = vpack.c.b16 %v1182, %v1181
  %v1209 = vpack.c.b16 %v1184, %v1183
  %v1210 = vpack.c.b16 %v1185, %v1185
  %v1212 = vsel %vm194, %v1186, 0
  %v1215 = vsel %vm194, %v1187, 0
  %v1218 = vsel %vm194, %v1188, 0
  %v1221 = vsel %vm194, %v1189, 0
  %v1224 = vsel %vm194, %v1190, 0
  %v1227 = vsel %vm194, %v1191, 0
  %v1230 = vsel %vm194, %v1192, 0
  %v1233 = vsel %vm194, %v1193, 0
  %v1236 = vsel %vm194, %v1194, 0
  %v1239 = vsel %vm194, %v1195, 0
  %v1242 = vsel %vm194, %v1196, 0
  %v1245 = vsel %vm194, %v1197, 0
  %v1248 = vsel %vm194, %v1198, 0
  %v1251 = vsel %vm194, %v1199, 0
  %v1254 = vsel %vm194, %v1200, 0
  %v1257 = vsel %vm194, %v1201, 0
  %v1260 = vsel %vm194, %v1202, 0
  %v1263 = vsel %vm194, %v1203, 0
  %v1266 = vsel %vm194, %v1204, 0
  %v1269 = vsel %vm194, %v1205, 0
  %v1272 = vsel %vm194, %v1206, 0
  %v1275 = vsel %vm194, %v1207, 0
  %v1278 = vsel %vm194, %v1208, 0
  %v1281 = vsel %vm194, %v1209, 0
  %v1284 = vsel %vm194, %v1210, 0
  %1286 = vmatprep.subr.bf16.mxu0 0
  %1287 = vmatpush1.bf16.msra.mxu0 %v275
  %1288 = vmatprep.subr.bf16.mxu0 0
  %1289 = vmatpush1.bf16.msra.mxu0 0
  %1290 = vmatprep.subr.bf16.mxu0 0
  %1291 = vmatpush1.bf16.msra.mxu0 0
  %1292 = vmatprep.subr.bf16.mxu0 0
  %1293 = vmatpush1.bf16.msra.mxu0 0
  %1294 = vmatprep.subr.bf16.mxu0 0
  %1295 = vmatpush1.bf16.msra.mxu0 0
  %1296 = vmatprep.subr.bf16.mxu0 0
  %1297 = vmatpush1.bf16.msra.mxu0 0
  %1298 = vmatprep.subr.bf16.mxu0 0
  %1299 = vmatpush1.bf16.msra.mxu0 0
  %1300 = vmatprep.subr.bf16.mxu0 0
  %1301 = vmatpush1.bf16.msra.mxu0 0
  %1302 = vmatprep.subr.bf16.mxu0 0
  %1303 = vmatpush1.bf16.msra.mxu0 0
  %1304 = vmatprep.subr.bf16.mxu0 0
  %1305 = vmatpush1.bf16.msra.mxu0 0
  %1306 = vmatprep.subr.bf16.mxu0 0
  %1307 = vmatpush1.bf16.msra.mxu0 0
  %1308 = vmatprep.subr.bf16.mxu0 0
  %1309 = vmatpush1.bf16.msra.mxu0 0
  %1310 = vmatprep.subr.bf16.mxu0 0
  %1311 = vmatpush1.bf16.msra.mxu0 0
  %1312 = vmatprep.subr.bf16.mxu0 0
  %1313 = vmatpush1.bf16.msra.mxu0 0
  %1314 = vmatprep.subr.bf16.mxu0 0
  %1315 = vmatpush1.bf16.msra.mxu0 0
  %1316 = vmatprep.subr.bf16.mxu0 0
  %1317 = vmatpush1.bf16.msra.mxu0 0
  %1318 = vmatprep.mubr.bf16.mxu0 0
  %1319 = vmatmul.mubr.bf16.gmra.mrb[0].mxu0 %v1212
  %v1320 = vpop.f32.mrb[0].mxu0
  %v1321 = vadd.f32 0.0, %v1320
  %v1322 = vpop.f32.mrb[0].mxu0
  %v1323 = vpop.f32.mrb[0].mxu0
  %v1324 = vadd.f32 0.0, %v1323
  %v1325 = vpop.f32.mrb[0].mxu0
  %1326 = vmatprep.mubr.bf16.mxu0 0
  %1327 = vmatmul.mubr.bf16.gmra.mrb[0].mxu0 %v1215
  %v1328 = vpop.f32.mrb[0].mxu0
  %v1329 = vadd.f32 0.0, %v1328
  %v1330 = vpop.f32.mrb[0].mxu0
  %v1331 = vpop.f32.mrb[0].mxu0
  %v1332 = vadd.f32 0.0, %v1331
  %v1333 = vpop.f32.mrb[0].mxu0
  %1334 = vmatprep.mubr.bf16.mxu0 0
  %1335 = vmatmul.mubr.bf16.gmra.mrb[0].mxu0 %v1218
  %v1336 = vpop.f32.mrb[0].mxu0
  %v1337 = vadd.f32 0.0, %v1336
  %v1338 = vpop.f32.mrb[0].mxu0
  %v1339 = vpop.f32.mrb[0].mxu0
  %v1340 = vadd.f32 0.0, %v1339
  %v1341 = vpop.f32.mrb[0].mxu0
  %1342 = vmatprep.mubr.bf16.mxu0 0
  %1343 = vmatmul.mubr.bf16.gmra.mrb[0].mxu0 %v1221
  %v1344 = vpop.f32.mrb[0].mxu0
  %v1345 = vadd.f32 0.0, %v1344
  %v1346 = vpop.f32.mrb[0].mxu0
  %v1347 = vpop.f32.mrb[0].mxu0
  %v1348 = vadd.f32 0.0, %v1347
  %v1349 = vpop.f32.mrb[0].mxu0
  %1350 = vmatprep.mubr.bf16.mxu0 0
  %1351 = vmatmul.mubr.bf16.gmra.mrb[0].mxu0 %v1224
  %v1352 = vpop.f32.mrb[0].mxu0
  %v1353 = vadd.f32 0.0, %v1352
  %v1354 = vpop.f32.mrb[0].mxu0
  %v1355 = vpop.f32.mrb[0].mxu0
  %v1356 = vadd.f32 0.0, %v1355
  %v1357 = vpop.f32.mrb[0].mxu0
  %1358 = vmatprep.mubr.bf16.mxu0 0
  %1359 = vmatmul.mubr.bf16.gmra.mrb[0].mxu0 %v1227
  %v1360 = vpop.f32.mrb[0].mxu0
  %v1361 = vadd.f32 0.0, %v1360
  %v1362 = vpop.f32.mrb[0].mxu0
  %v1363 = vpop.f32.mrb[0].mxu0
  %v1364 = vadd.f32 0.0, %v1363
  %v1365 = vpop.f32.mrb[0].mxu0
  %1366 = vmatprep.mubr.bf16.mxu0 0
  %1367 = vmatmul.mubr.bf16.gmra.mrb[0].mxu0 %v1230
  %v1368 = vpop.f32.mrb[0].mxu0
  %v1369 = vadd.f32 0.0, %v1368
  %v1370 = vpop.f32.mrb[0].mxu0
  %v1371 = vpop.f32.mrb[0].mxu0
  %v1372 = vadd.f32 0.0, %v1371
  %v1373 = vpop.f32.mrb[0].mxu0
  %1374 = vmatprep.mubr.bf16.mxu0 0
  %1375 = vmatmul.mubr.bf16.gmra.mrb[0].mxu0 %v1233
  %v1376 = vpop.f32.mrb[0].mxu0
  %v1377 = vadd.f32 0.0, %v1376
  %v1378 = vpop.f32.mrb[0].mxu0
  %v1379 = vpop.f32.mrb[0].mxu0
  %v1380 = vadd.f32 0.0, %v1379
  %v1381 = vpop.f32.mrb[0].mxu0
  %1382 = vmatprep.mubr.bf16.mxu0 0
  %1383 = vmatmul.mubr.bf16.gmra.mrb[0].mxu0 %v1236
  %v1384 = vpop.f32.mrb[0].mxu0
  %v1385 = vadd.f32 0.0, %v1384
  %v1386 = vpop.f32.mrb[0].mxu0
  %v1387 = vpop.f32.mrb[0].mxu0
  %v1388 = vadd.f32 0.0, %v1387
  %v1389 = vpop.f32.mrb[0].mxu0
  %1390 = vmatprep.mubr.bf16.mxu0 0
  %1391 = vmatmul.mubr.bf16.gmra.mrb[0].mxu0 %v1239
  %v1392 = vpop.f32.mrb[0].mxu0
  %v1393 = vadd.f32 0.0, %v1392
  %v1394 = vpop.f32.mrb[0].mxu0
  %v1395 = vpop.f32.mrb[0].mxu0
  %v1396 = vadd.f32 0.0, %v1395
  %v1397 = vpop.f32.mrb[0].mxu0
  %1398 = vmatprep.mubr.bf16.mxu0 0
  %1399 = vmatmul.mubr.bf16.gmra.mrb[0].mxu0 %v1242
  %v1400 = vpop.f32.mrb[0].mxu0
  %v1401 = vadd.f32 0.0, %v1400
  %v1402 = vpop.f32.mrb[0].mxu0
  %v1403 = vpop.f32.mrb[0].mxu0
  %v1404 = vadd.f32 0.0, %v1403
  %v1405 = vpop.f32.mrb[0].mxu0
  %1406 = vmatprep.mubr.bf16.mxu0 0
  %1407 = vmatmul.mubr.bf16.gmra.mrb[0].mxu0 %v1245
  %v1408 = vpop.f32.mrb[0].mxu0
  %v1409 = vadd.f32 0.0, %v1408
  %v1410 = vpop.f32.mrb[0].mxu0
  %v1411 = vpop.f32.mrb[0].mxu0
  %v1412 = vadd.f32 0.0, %v1411
  %v1413 = vpop.f32.mrb[0].mxu0
  %1414 = vmatprep.mubr.bf16.mxu0 0
  %1415 = vmatmul.mubr.bf16.gmra.mrb[0].mxu0 %v1248
  %v1416 = vpop.f32.mrb[0].mxu0
  %v1417 = vadd.f32 0.0, %v1416
  %v1418 = vpop.f32.mrb[0].mxu0
  %v1419 = vpop.f32.mrb[0].mxu0
  %v1420 = vadd.f32 0.0, %v1419
  %v1421 = vpop.f32.mrb[0].mxu0
  %1422 = vmatprep.mubr.bf16.mxu0 0
  %1423 = vmatmul.mubr.bf16.gmra.mrb[0].mxu0 %v1251
  %v1424 = vpop.f32.mrb[0].mxu0
  %v1425 = vadd.f32 0.0, %v1424
  %v1426 = vpop.f32.mrb[0].mxu0
  %v1427 = vpop.f32.mrb[0].mxu0
  %v1428 = vadd.f32 0.0, %v1427
  %v1429 = vpop.f32.mrb[0].mxu0
  %1430 = vmatprep.mubr.bf16.mxu0 0
  %1431 = vmatmul.mubr.bf16.gmra.mrb[0].mxu0 %v1254
  %v1432 = vpop.f32.mrb[0].mxu0
  %v1433 = vadd.f32 0.0, %v1432
  %v1434 = vpop.f32.mrb[0].mxu0
  %v1435 = vpop.f32.mrb[0].mxu0
  %v1436 = vadd.f32 0.0, %v1435
  %v1437 = vpop.f32.mrb[0].mxu0
  %1438 = vmatprep.mubr.bf16.mxu0 0
  %1439 = vmatmul.mubr.bf16.gmra.mrb[0].mxu0 %v1257
  %v1440 = vpop.f32.mrb[0].mxu0
  %v1441 = vadd.f32 0.0, %v1440
  %v1442 = vpop.f32.mrb[0].mxu0
  %v1443 = vpop.f32.mrb[0].mxu0
  %v1444 = vadd.f32 0.0, %v1443
  %v1445 = vpop.f32.mrb[0].mxu0
  %1446 = vmatprep.mubr.bf16.mxu0 0
  %1447 = vmatmul.mubr.bf16.gmra.mrb[0].mxu0 %v1260
  %v1448 = vpop.f32.mrb[0].mxu0
  %v1449 = vadd.f32 0.0, %v1448
  %v1450 = vpop.f32.mrb[0].mxu0
  %v1451 = vpop.f32.mrb[0].mxu0
  %v1452 = vadd.f32 0.0, %v1451
  %v1453 = vpop.f32.mrb[0].mxu0
  %1454 = vmatprep.mubr.bf16.mxu0 0
  %1455 = vmatmul.mubr.bf16.gmra.mrb[0].mxu0 %v1263
  %v1456 = vpop.f32.mrb[0].mxu0
  %v1457 = vadd.f32 0.0, %v1456
  %v1458 = vpop.f32.mrb[0].mxu0
  %v1459 = vpop.f32.mrb[0].mxu0
  %v1460 = vadd.f32 0.0, %v1459
  %v1461 = vpop.f32.mrb[0].mxu0
  %1462 = vmatprep.mubr.bf16.mxu0 0
  %1463 = vmatmul.mubr.bf16.gmra.mrb[0].mxu0 %v1266
  %v1464 = vpop.f32.mrb[0].mxu0
  %v1465 = vadd.f32 0.0, %v1464
  %v1466 = vpop.f32.mrb[0].mxu0
  %v1467 = vpop.f32.mrb[0].mxu0
  %v1468 = vadd.f32 0.0, %v1467
  %v1469 = vpop.f32.mrb[0].mxu0
  %1470 = vmatprep.mubr.bf16.mxu0 0
  %1471 = vmatmul.mubr.bf16.gmra.mrb[0].mxu0 %v1269
  %v1472 = vpop.f32.mrb[0].mxu0
  %v1473 = vadd.f32 0.0, %v1472
  %v1474 = vpop.f32.mrb[0].mxu0
  %v1475 = vpop.f32.mrb[0].mxu0
  %v1476 = vadd.f32 0.0, %v1475
  %v1477 = vpop.f32.mrb[0].mxu0
  %1478 = vmatprep.mubr.bf16.mxu0 0
  %1479 = vmatmul.mubr.bf16.gmra.mrb[0].mxu0 %v1272
  %v1480 = vpop.f32.mrb[0].mxu0
  %v1481 = vadd.f32 0.0, %v1480
  %v1482 = vpop.f32.mrb[0].mxu0
  %v1483 = vpop.f32.mrb[0].mxu0
  %v1484 = vadd.f32 0.0, %v1483
  %v1485 = vpop.f32.mrb[0].mxu0
  %1486 = vmatprep.mubr.bf16.mxu0 0
  %1487 = vmatmul.mubr.bf16.gmra.mrb[0].mxu0 %v1275
  %v1488 = vpop.f32.mrb[0].mxu0
  %v1489 = vadd.f32 0.0, %v1488
  %v1490 = vpop.f32.mrb[0].mxu0
  %v1491 = vpop.f32.mrb[0].mxu0
  %v1492 = vadd.f32 0.0, %v1491
  %v1493 = vpop.f32.mrb[0].mxu0
  %1494 = vmatprep.mubr.bf16.mxu0 0
  %1495 = vmatmul.mubr.bf16.gmra.mrb[0].mxu0 %v1278
  %v1496 = vpop.f32.mrb[0].mxu0
  %v1497 = vadd.f32 0.0, %v1496
  %v1498 = vpop.f32.mrb[0].mxu0
  %v1499 = vpop.f32.mrb[0].mxu0
  %v1500 = vadd.f32 0.0, %v1499
  %v1501 = vpop.f32.mrb[0].mxu0
  %1502 = vmatprep.mubr.bf16.mxu0 0
  %1503 = vmatmul.mubr.bf16.gmra.mrb[0].mxu0 %v1281
  %v1504 = vpop.f32.mrb[0].mxu0
  %v1505 = vadd.f32 0.0, %v1504
  %v1506 = vpop.f32.mrb[0].mxu0
  %v1507 = vpop.f32.mrb[0].mxu0
  %v1508 = vadd.f32 0.0, %v1507
  %v1509 = vpop.f32.mrb[0].mxu0
  %1510 = vmatprep.mubr.bf16.mxu0 0
  %1511 = vmatmul.mubr.bf16.gmra.mrb[0].mxu0 %v1284
  %v1512 = vpop.f32.mrb[0].mxu0
  %v1513 = vadd.f32 0.0, %v1512
  %v1514 = vpop.f32.mrb[0].mxu0
  %v1515 = vpop.f32.mrb[0].mxu0
  %v1516 = vpop.f32.mrb[0].mxu0
  %1517 = vdwg.mxu0
  %v1518 = vmax.f32 %v989, %v1321
  %v1519 = vmax.f32 %v990, %v1324
  %v1520 = vmax.f32 %v991, %v1329
  %v1521 = vmax.f32 %v992, %v1332
  %v1522 = vmax.f32 %v993, %v1337
  %v1523 = vmax.f32 %v994, %v1340
  %v1524 = vmax.f32 %v995, %v1345
  %v1525 = vmax.f32 %v996, %v1348
  %v1526 = vmax.f32 %v997, %v1353
  %v1527 = vmax.f32 %v998, %v1356
  %v1528 = vmax.f32 %v999, %v1361
  %v1529 = vmax.f32 %v1000, %v1364
  %v1530 = vmax.f32 %v1001, %v1369
  %v1531 = vmax.f32 %v1002, %v1372
  %v1532 = vmax.f32 %v1003, %v1377
  %v1533 = vmax.f32 %v1004, %v1380
  %v1534 = vmax.f32 %v1005, %v1385
  %v1535 = vmax.f32 %v1006, %v1388
  %v1536 = vmax.f32 %v1007, %v1393
  %v1537 = vmax.f32 %v1008, %v1396
  %v1538 = vmax.f32 %v1009, %v1401
  %v1539 = vmax.f32 %v1010, %v1404
  %v1540 = vmax.f32 %v1011, %v1409
  %v1541 = vmax.f32 %v1012, %v1412
  %v1542 = vmax.f32 %v1013, %v1417
  %v1543 = vmax.f32 %v1014, %v1420
  %v1544 = vmax.f32 %v1015, %v1425
  %v1545 = vmax.f32 %v1016, %v1428
  %v1546 = vmax.f32 %v1017, %v1433
  %v1547 = vmax.f32 %v1018, %v1436
  %v1548 = vmax.f32 %v1019, %v1441
  %v1549 = vmax.f32 %v1020, %v1444
  %v1550 = vmax.f32 %v1021, %v1449
  %v1551 = vmax.f32 %v1022, %v1452
  %v1552 = vmax.f32 %v1023, %v1457
  %v1553 = vmax.f32 %v1024, %v1460
  %v1554 = vmax.f32 %v1025, %v1465
  %v1555 = vmax.f32 %v1026, %v1468
  %v1556 = vmax.f32 %v1027, %v1473
  %v1557 = vmax.f32 %v1028, %v1476
  %v1558 = vmax.f32 %v1029, %v1481
  %v1559 = vmax.f32 %v1030, %v1484
  %v1560 = vmax.f32 %v1031, %v1489
  %v1561 = vmax.f32 %v1032, %v1492
  %v1562 = vmax.f32 %v1033, %v1497
  %v1563 = vmax.f32 %v1034, %v1500
  %v1564 = vmax.f32 %v1035, %v1505
  %v1565 = vmax.f32 %v1036, %v1508
  %v1566 = vmax.f32 %v1037, %v1513
  %s1567 = scalar_lea.vmem %s0, 588
  %v1568 = vld [vmem:[%s1567] sm:$0xf]
  %v1569 = vld [vmem:[%s1567 + $0x4] sm:$0xf]
  %v1570 = vld [vmem:[%s1567 + $0x8] sm:$0xf]
  %v1571 = vld [vmem:[%s1567 + $0xc] sm:$0xf]
  %v1572 = vld [vmem:[%s1567 + $0x10] sm:$0xf]
  %v1573 = vld [vmem:[%s1567 + $0x14] sm:$0xf]
  %v1574 = vld [vmem:[%s1567 + $0x18] sm:$0xf]
  %v1575 = vld [vmem:[%s1567 + $0x1c] sm:$0xf]
  %v1576 = vld [vmem:[%s1567 + $0x20] sm:$0xf]
  %v1577 = vld [vmem:[%s1567 + $0x24] sm:$0xf]
  %v1578 = vld [vmem:[%s1567 + $0x28] sm:$0xf]
  %v1579 = vld [vmem:[%s1567 + $0x2c] sm:$0xf]
  %v1580 = vld [vmem:[%s1567 + $0x30] sm:$0xf]
  %v1581 = vld [vmem:[%s1567 + $0x34] sm:$0xf]
  %v1582 = vld [vmem:[%s1567 + $0x38] sm:$0xf]
  %v1583 = vld [vmem:[%s1567 + $0x3c] sm:$0xf]
  %v1584 = vld [vmem:[%s1567 + $0x40] sm:$0xf]
  %v1585 = vld [vmem:[%s1567 + $0x44] sm:$0xf]
  %v1586 = vld [vmem:[%s1567 + $0x48] sm:$0xf]
  %v1587 = vld [vmem:[%s1567 + $0x4c] sm:$0xf]
  %v1588 = vld [vmem:[%s1567 + $0x50] sm:$0xf]
  %v1589 = vld [vmem:[%s1567 + $0x54] sm:$0xf]
  %v1590 = vld [vmem:[%s1567 + $0x58] sm:$0xf]
  %v1591 = vld [vmem:[%s1567 + $0x5c] sm:$0xf]
  %v1592 = vld [vmem:[%s1567 + $0x60] sm:$0xf]
  %v1593 = vld [vmem:[%s1567 + $0x64] sm:$0xf]
  %v1594 = vld [vmem:[%s1567 + $0x68] sm:$0xf]
  %v1595 = vld [vmem:[%s1567 + $0x6c] sm:$0xf]
  %v1596 = vld [vmem:[%s1567 + $0x70] sm:$0xf]
  %v1597 = vld [vmem:[%s1567 + $0x74] sm:$0xf]
  %v1598 = vld [vmem:[%s1567 + $0x78] sm:$0xf]
  %v1599 = vld [vmem:[%s1567 + $0x7c] sm:$0xf]
  %v1600 = vld [vmem:[%s1567 + $0x80] sm:$0xf]
  %v1601 = vld [vmem:[%s1567 + $0x84] sm:$0xf]
  %v1602 = vld [vmem:[%s1567 + $0x88] sm:$0xf]
  %v1603 = vld [vmem:[%s1567 + $0x8c] sm:$0xf]
  %v1604 = vld [vmem:[%s1567 + $0x90] sm:$0xf]
  %v1605 = vld [vmem:[%s1567 + $0x94] sm:$0xf]
  %v1606 = vld [vmem:[%s1567 + $0x98] sm:$0xf]
  %v1607 = vld [vmem:[%s1567 + $0x9c] sm:$0xf]
  %v1608 = vld [vmem:[%s1567 + $0xa0] sm:$0xf]
  %v1609 = vld [vmem:[%s1567 + $0xa4] sm:$0xf]
  %v1610 = vld [vmem:[%s1567 + $0xa8] sm:$0xf]
  %v1611 = vld [vmem:[%s1567 + $0xac] sm:$0xf]
  %v1612 = vld [vmem:[%s1567 + $0xb0] sm:$0xf]
  %v1613 = vld [vmem:[%s1567 + $0xb4] sm:$0xf]
  %v1614 = vld [vmem:[%s1567 + $0xb8] sm:$0xf]
  %v1615 = vld [vmem:[%s1567 + $0xbc] sm:$0xf]
  %v1616 = vld [vmem:[%s1567 + $0xc0] sm:$0xf]
  %v1666 = vunpack.c.l.b16 %v1568
  %v1667 = vunpack.c.l.b16 %v1569
  %v1668 = vunpack.c.l.b16 %v1570
  %v1669 = vunpack.c.l.b16 %v1571
  %v1670 = vunpack.c.l.b16 %v1572
  %v1671 = vunpack.c.l.b16 %v1573
  %v1672 = vunpack.c.l.b16 %v1574
  %v1673 = vunpack.c.l.b16 %v1575
  %v1674 = vunpack.c.l.b16 %v1576
  %v1675 = vunpack.c.l.b16 %v1577
  %v1676 = vunpack.c.l.b16 %v1578
  %v1677 = vunpack.c.l.b16 %v1579
  %v1678 = vunpack.c.l.b16 %v1580
  %v1679 = vunpack.c.l.b16 %v1581
  %v1680 = vunpack.c.l.b16 %v1582
  %v1681 = vunpack.c.l.b16 %v1583
  %v1682 = vunpack.c.l.b16 %v1584
  %v1683 = vunpack.c.l.b16 %v1585
  %v1684 = vunpack.c.l.b16 %v1586
  %v1685 = vunpack.c.l.b16 %v1587
  %v1686 = vunpack.c.l.b16 %v1588
  %v1687 = vunpack.c.l.b16 %v1589
  %v1688 = vunpack.c.l.b16 %v1590
  %v1689 = vunpack.c.l.b16 %v1591
  %v1690 = vunpack.c.l.b16 %v1592
  %v1691 = vunpack.c.l.b16 %v1593
  %v1692 = vunpack.c.l.b16 %v1594
  %v1693 = vunpack.c.l.b16 %v1595
  %v1694 = vunpack.c.l.b16 %v1596
  %v1695 = vunpack.c.l.b16 %v1597
  %v1696 = vunpack.c.l.b16 %v1598
  %v1697 = vunpack.c.l.b16 %v1599
  %v1698 = vunpack.c.l.b16 %v1600
  %v1699 = vunpack.c.l.b16 %v1601
  %v1700 = vunpack.c.l.b16 %v1602
  %v1701 = vunpack.c.l.b16 %v1603
  %v1702 = vunpack.c.l.b16 %v1604
  %v1703 = vunpack.c.l.b16 %v1605
  %v1704 = vunpack.c.l.b16 %v1606
  %v1705 = vunpack.c.l.b16 %v1607
  %v1706 = vunpack.c.l.b16 %v1608
  %v1707 = vunpack.c.l.b16 %v1609
  %v1708 = vunpack.c.l.b16 %v1610
  %v1709 = vunpack.c.l.b16 %v1611
  %v1710 = vunpack.c.l.b16 %v1612
  %v1711 = vunpack.c.l.b16 %v1613
  %v1712 = vunpack.c.l.b16 %v1614
  %v1713 = vunpack.c.l.b16 %v1615
  %v1714 = vunpack.c.l.b16 %v1616
  %v1715 = vpack.c.b16 %v1667, %v1666
  %v1716 = vpack.c.b16 %v1669, %v1668
  %v1717 = vpack.c.b16 %v1671, %v1670
  %v1718 = vpack.c.b16 %v1673, %v1672
  %v1719 = vpack.c.b16 %v1675, %v1674
  %v1720 = vpack.c.b16 %v1677, %v1676
  %v1721 = vpack.c.b16 %v1679, %v1678
  %v1722 = vpack.c.b16 %v1681, %v1680
  %v1723 = vpack.c.b16 %v1683, %v1682
  %v1724 = vpack.c.b16 %v1685, %v1684
  %v1725 = vpack.c.b16 %v1687, %v1686
  %v1726 = vpack.c.b16 %v1689, %v1688
  %v1727 = vpack.c.b16 %v1691, %v1690
  %v1728 = vpack.c.b16 %v1693, %v1692
  %v1729 = vpack.c.b16 %v1695, %v1694
  %v1730 = vpack.c.b16 %v1697, %v1696
  %v1731 = vpack.c.b16 %v1699, %v1698
  %v1732 = vpack.c.b16 %v1701, %v1700
  %v1733 = vpack.c.b16 %v1703, %v1702
  %v1734 = vpack.c.b16 %v1705, %v1704
  %v1735 = vpack.c.b16 %v1707, %v1706
  %v1736 = vpack.c.b16 %v1709, %v1708
  %v1737 = vpack.c.b16 %v1711, %v1710
  %v1738 = vpack.c.b16 %v1713, %v1712
  %v1739 = vpack.c.b16 %v1714, %v1714
  %v1741 = vsel %vm194, %v1715, 0
  %v1744 = vsel %vm194, %v1716, 0
  %v1747 = vsel %vm194, %v1717, 0
  %v1750 = vsel %vm194, %v1718, 0
  %v1753 = vsel %vm194, %v1719, 0
  %v1756 = vsel %vm194, %v1720, 0
  %v1759 = vsel %vm194, %v1721, 0
  %v1762 = vsel %vm194, %v1722, 0
  %v1765 = vsel %vm194, %v1723, 0
  %v1768 = vsel %vm194, %v1724, 0
  %v1771 = vsel %vm194, %v1725, 0
  %v1774 = vsel %vm194, %v1726, 0
  %v1777 = vsel %vm194, %v1727, 0
  %v1780 = vsel %vm194, %v1728, 0
  %v1783 = vsel %vm194, %v1729, 0
  %v1786 = vsel %vm194, %v1730, 0
  %v1789 = vsel %vm194, %v1731, 0
  %v1792 = vsel %vm194, %v1732, 0
  %v1795 = vsel %vm194, %v1733, 0
  %v1798 = vsel %vm194, %v1734, 0
  %v1801 = vsel %vm194, %v1735, 0
  %v1804 = vsel %vm194, %v1736, 0
  %v1807 = vsel %vm194, %v1737, 0
  %v1810 = vsel %vm194, %v1738, 0
  %v1813 = vsel %vm194, %v1739, 0
  %1815 = vmatprep.subr.bf16.mxu0 0
  %1816 = vmatpush1.bf16.msra.mxu0 %v275
  %1817 = vmatprep.subr.bf16.mxu0 0
  %1818 = vmatpush1.bf16.msra.mxu0 0
  %1819 = vmatprep.subr.bf16.mxu0 0
  %1820 = vmatpush1.bf16.msra.mxu0 0
  %1821 = vmatprep.subr.bf16.mxu0 0
  %1822 = vmatpush1.bf16.msra.mxu0 0
  %1823 = vmatprep.subr.bf16.mxu0 0
  %1824 = vmatpush1.bf16.msra.mxu0 0
  %1825 = vmatprep.subr.bf16.mxu0 0
  %1826 = vmatpush1.bf16.msra.mxu0 0
  %1827 = vmatprep.subr.bf16.mxu0 0
  %1828 = vmatpush1.bf16.msra.mxu0 0
  %1829 = vmatprep.subr.bf16.mxu0 0
  %1830 = vmatpush1.bf16.msra.mxu0 0
  %1831 = vmatprep.subr.bf16.mxu0 0
  %1832 = vmatpush1.bf16.msra.mxu0 0
  %1833 = vmatprep.subr.bf16.mxu0 0
  %1834 = vmatpush1.bf16.msra.mxu0 0
  %1835 = vmatprep.subr.bf16.mxu0 0
  %1836 = vmatpush1.bf16.msra.mxu0 0
  %1837 = vmatprep.subr.bf16.mxu0 0
  %1838 = vmatpush1.bf16.msra.mxu0 0
  %1839 = vmatprep.subr.bf16.mxu0 0
  %1840 = vmatpush1.bf16.msra.mxu0 0
  %1841 = vmatprep.subr.bf16.mxu0 0
  %1842 = vmatpush1.bf16.msra.mxu0 0
  %1843 = vmatprep.subr.bf16.mxu0 0
  %1844 = vmatpush1.bf16.msra.mxu0 0
  %1845 = vmatprep.subr.bf16.mxu0 0
  %1846 = vmatpush1.bf16.msra.mxu0 0
  %1847 = vmatprep.mubr.bf16.mxu0 0
  %1848 = vmatmul.mubr.bf16.gmra.mrb[0].mxu0 %v1741
  %v1849 = vpop.f32.mrb[0].mxu0
  %v1850 = vadd.f32 0.0, %v1849
  %v1851 = vpop.f32.mrb[0].mxu0
  %v1852 = vpop.f32.mrb[0].mxu0
  %v1853 = vadd.f32 0.0, %v1852
  %v1854 = vpop.f32.mrb[0].mxu0
  %1855 = vmatprep.mubr.bf16.mxu0 0
  %1856 = vmatmul.mubr.bf16.gmra.mrb[0].mxu0 %v1744
  %v1857 = vpop.f32.mrb[0].mxu0
  %v1858 = vadd.f32 0.0, %v1857
  %v1859 = vpop.f32.mrb[0].mxu0
  %v1860 = vpop.f32.mrb[0].mxu0
  %v1861 = vadd.f32 0.0, %v1860
  %v1862 = vpop.f32.mrb[0].mxu0
  %1863 = vmatprep.mubr.bf16.mxu0 0
  %1864 = vmatmul.mubr.bf16.gmra.mrb[0].mxu0 %v1747
  %v1865 = vpop.f32.mrb[0].mxu0
  %v1866 = vadd.f32 0.0, %v1865
  %v1867 = vpop.f32.mrb[0].mxu0
  %v1868 = vpop.f32.mrb[0].mxu0
  %v1869 = vadd.f32 0.0, %v1868
  %v1870 = vpop.f32.mrb[0].mxu0
  %1871 = vmatprep.mubr.bf16.mxu0 0
  %1872 = vmatmul.mubr.bf16.gmra.mrb[0].mxu0 %v1750
  %v1873 = vpop.f32.mrb[0].mxu0
  %v1874 = vadd.f32 0.0, %v1873
  %v1875 = vpop.f32.mrb[0].mxu0
  %v1876 = vpop.f32.mrb[0].mxu0
  %v1877 = vadd.f32 0.0, %v1876
  %v1878 = vpop.f32.mrb[0].mxu0
  %1879 = vmatprep.mubr.bf16.mxu0 0
  %1880 = vmatmul.mubr.bf16.gmra.mrb[0].mxu0 %v1753
  %v1881 = vpop.f32.mrb[0].mxu0
  %v1882 = vadd.f32 0.0, %v1881
  %v1883 = vpop.f32.mrb[0].mxu0
  %v1884 = vpop.f32.mrb[0].mxu0
  %v1885 = vadd.f32 0.0, %v1884
  %v1886 = vpop.f32.mrb[0].mxu0
  %1887 = vmatprep.mubr.bf16.mxu0 0
  %1888 = vmatmul.mubr.bf16.gmra.mrb[0].mxu0 %v1756
  %v1889 = vpop.f32.mrb[0].mxu0
  %v1890 = vadd.f32 0.0, %v1889
  %v1891 = vpop.f32.mrb[0].mxu0
  %v1892 = vpop.f32.mrb[0].mxu0
  %v1893 = vadd.f32 0.0, %v1892
  %v1894 = vpop.f32.mrb[0].mxu0
  %1895 = vmatprep.mubr.bf16.mxu0 0
  %1896 = vmatmul.mubr.bf16.gmra.mrb[0].mxu0 %v1759
  %v1897 = vpop.f32.mrb[0].mxu0
  %v1898 = vadd.f32 0.0, %v1897
  %v1899 = vpop.f32.mrb[0].mxu0
  %v1900 = vpop.f32.mrb[0].mxu0
  %v1901 = vadd.f32 0.0, %v1900
  %v1902 = vpop.f32.mrb[0].mxu0
  %1903 = vmatprep.mubr.bf16.mxu0 0
  %1904 = vmatmul.mubr.bf16.gmra.mrb[0].mxu0 %v1762
  %v1905 = vpop.f32.mrb[0].mxu0
  %v1906 = vadd.f32 0.0, %v1905
  %v1907 = vpop.f32.mrb[0].mxu0
  %v1908 = vpop.f32.mrb[0].mxu0
  %v1909 = vadd.f32 0.0, %v1908
  %v1910 = vpop.f32.mrb[0].mxu0
  %1911 = vmatprep.mubr.bf16.mxu0 0
  %1912 = vmatmul.mubr.bf16.gmra.mrb[0].mxu0 %v1765
  %v1913 = vpop.f32.mrb[0].mxu0
  %v1914 = vadd.f32 0.0, %v1913
  %v1915 = vpop.f32.mrb[0].mxu0
  %v1916 = vpop.f32.mrb[0].mxu0
  %v1917 = vadd.f32 0.0, %v1916
  %v1918 = vpop.f32.mrb[0].mxu0
  %1919 = vmatprep.mubr.bf16.mxu0 0
  %1920 = vmatmul.mubr.bf16.gmra.mrb[0].mxu0 %v1768
  %v1921 = vpop.f32.mrb[0].mxu0
  %v1922 = vadd.f32 0.0, %v1921
  %v1923 = vpop.f32.mrb[0].mxu0
  %v1924 = vpop.f32.mrb[0].mxu0
  %v1925 = vadd.f32 0.0, %v1924
  %v1926 = vpop.f32.mrb[0].mxu0
  %1927 = vmatprep.mubr.bf16.mxu0 0
  %1928 = vmatmul.mubr.bf16.gmra.mrb[0].mxu0 %v1771
  %v1929 = vpop.f32.mrb[0].mxu0
  %v1930 = vadd.f32 0.0, %v1929
  %v1931 = vpop.f32.mrb[0].mxu0
  %v1932 = vpop.f32.mrb[0].mxu0
  %v1933 = vadd.f32 0.0, %v1932
  %v1934 = vpop.f32.mrb[0].mxu0
  %1935 = vmatprep.mubr.bf16.mxu0 0
  %1936 = vmatmul.mubr.bf16.gmra.mrb[0].mxu0 %v1774
  %v1937 = vpop.f32.mrb[0].mxu0
  %v1938 = vadd.f32 0.0, %v1937
  %v1939 = vpop.f32.mrb[0].mxu0
  %v1940 = vpop.f32.mrb[0].mxu0
  %v1941 = vadd.f32 0.0, %v1940
  %v1942 = vpop.f32.mrb[0].mxu0
  %1943 = vmatprep.mubr.bf16.mxu0 0
  %1944 = vmatmul.mubr.bf16.gmra.mrb[0].mxu0 %v1777
  %v1945 = vpop.f32.mrb[0].mxu0
  %v1946 = vadd.f32 0.0, %v1945
  %v1947 = vpop.f32.mrb[0].mxu0
  %v1948 = vpop.f32.mrb[0].mxu0
  %v1949 = vadd.f32 0.0, %v1948
  %v1950 = vpop.f32.mrb[0].mxu0
  %1951 = vmatprep.mubr.bf16.mxu0 0
  %1952 = vmatmul.mubr.bf16.gmra.mrb[0].mxu0 %v1780
  %v1953 = vpop.f32.mrb[0].mxu0
  %v1954 = vadd.f32 0.0, %v1953
  %v1955 = vpop.f32.mrb[0].mxu0
  %v1956 = vpop.f32.mrb[0].mxu0
  %v1957 = vadd.f32 0.0, %v1956
  %v1958 = vpop.f32.mrb[0].mxu0
  %1959 = vmatprep.mubr.bf16.mxu0 0
  %1960 = vmatmul.mubr.bf16.gmra.mrb[0].mxu0 %v1783
  %v1961 = vpop.f32.mrb[0].mxu0
  %v1962 = vadd.f32 0.0, %v1961
  %v1963 = vpop.f32.mrb[0].mxu0
  %v1964 = vpop.f32.mrb[0].mxu0
  %v1965 = vadd.f32 0.0, %v1964
  %v1966 = vpop.f32.mrb[0].mxu0
  %1967 = vmatprep.mubr.bf16.mxu0 0
  %1968 = vmatmul.mubr.bf16.gmra.mrb[0].mxu0 %v1786
  %v1969 = vpop.f32.mrb[0].mxu0
  %v1970 = vadd.f32 0.0, %v1969
  %v1971 = vpop.f32.mrb[0].mxu0
  %v1972 = vpop.f32.mrb[0].mxu0
  %v1973 = vadd.f32 0.0, %v1972
  %v1974 = vpop.f32.mrb[0].mxu0
  %1975 = vmatprep.mubr.bf16.mxu0 0
  %1976 = vmatmul.mubr.bf16.gmra.mrb[0].mxu0 %v1789
  %v1977 = vpop.f32.mrb[0].mxu0
  %v1978 = vadd.f32 0.0, %v1977
  %v1979 = vpop.f32.mrb[0].mxu0
  %v1980 = vpop.f32.mrb[0].mxu0
  %v1981 = vadd.f32 0.0, %v1980
  %v1982 = vpop.f32.mrb[0].mxu0
  %1983 = vmatprep.mubr.bf16.mxu0 0
  %1984 = vmatmul.mubr.bf16.gmra.mrb[0].mxu0 %v1792
  %v1985 = vpop.f32.mrb[0].mxu0
  %v1986 = vadd.f32 0.0, %v1985
  %v1987 = vpop.f32.mrb[0].mxu0
  %v1988 = vpop.f32.mrb[0].mxu0
  %v1989 = vadd.f32 0.0, %v1988
  %v1990 = vpop.f32.mrb[0].mxu0
  %1991 = vmatprep.mubr.bf16.mxu0 0
  %1992 = vmatmul.mubr.bf16.gmra.mrb[0].mxu0 %v1795
  %v1993 = vpop.f32.mrb[0].mxu0
  %v1994 = vadd.f32 0.0, %v1993
  %v1995 = vpop.f32.mrb[0].mxu0
  %v1996 = vpop.f32.mrb[0].mxu0
  %v1997 = vadd.f32 0.0, %v1996
  %v1998 = vpop.f32.mrb[0].mxu0
  %1999 = vmatprep.mubr.bf16.mxu0 0
  %2000 = vmatmul.mubr.bf16.gmra.mrb[0].mxu0 %v1798
  %v2001 = vpop.f32.mrb[0].mxu0
  %v2002 = vadd.f32 0.0, %v2001
  %v2003 = vpop.f32.mrb[0].mxu0
  %v2004 = vpop.f32.mrb[0].mxu0
  %v2005 = vadd.f32 0.0, %v2004
  %v2006 = vpop.f32.mrb[0].mxu0
  %2007 = vmatprep.mubr.bf16.mxu0 0
  %2008 = vmatmul.mubr.bf16.gmra.mrb[0].mxu0 %v1801
  %v2009 = vpop.f32.mrb[0].mxu0
  %v2010 = vadd.f32 0.0, %v2009
  %v2011 = vpop.f32.mrb[0].mxu0
  %v2012 = vpop.f32.mrb[0].mxu0
  %v2013 = vadd.f32 0.0, %v2012
  %v2014 = vpop.f32.mrb[0].mxu0
  %2015 = vmatprep.mubr.bf16.mxu0 0
  %2016 = vmatmul.mubr.bf16.gmra.mrb[0].mxu0 %v1804
  %v2017 = vpop.f32.mrb[0].mxu0
  %v2018 = vadd.f32 0.0, %v2017
  %v2019 = vpop.f32.mrb[0].mxu0
  %v2020 = vpop.f32.mrb[0].mxu0
  %v2021 = vadd.f32 0.0, %v2020
  %v2022 = vpop.f32.mrb[0].mxu0
  %2023 = vmatprep.mubr.bf16.mxu0 0
  %2024 = vmatmul.mubr.bf16.gmra.mrb[0].mxu0 %v1807
  %v2025 = vpop.f32.mrb[0].mxu0
  %v2026 = vadd.f32 0.0, %v2025
  %v2027 = vpop.f32.mrb[0].mxu0
  %v2028 = vpop.f32.mrb[0].mxu0
  %v2029 = vadd.f32 0.0, %v2028
  %v2030 = vpop.f32.mrb[0].mxu0
  %2031 = vmatprep.mubr.bf16.mxu0 0
  %2032 = vmatmul.mubr.bf16.gmra.mrb[0].mxu0 %v1810
  %v2033 = vpop.f32.mrb[0].mxu0
  %v2034 = vadd.f32 0.0, %v2033
  %v2035 = vpop.f32.mrb[0].mxu0
  %v2036 = vpop.f32.mrb[0].mxu0
  %v2037 = vadd.f32 0.0, %v2036
  %v2038 = vpop.f32.mrb[0].mxu0
  %2039 = vmatprep.mubr.bf16.mxu0 0
  %2040 = vmatmul.mubr.bf16.gmra.mrb[0].mxu0 %v1813
  %v2041 = vpop.f32.mrb[0].mxu0
  %v2042 = vadd.f32 0.0, %v2041
  %v2043 = vpop.f32.mrb[0].mxu0
  %v2044 = vpop.f32.mrb[0].mxu0
  %v2045 = vpop.f32.mrb[0].mxu0
  %2046 = vdwg.mxu0
  %v2047 = vmax.f32 %v1518, %v1850
  %v2048 = vmax.f32 %v1519, %v1853
  %v2049 = vmax.f32 %v1520, %v1858
  %v2050 = vmax.f32 %v1521, %v1861
  %v2051 = vmax.f32 %v1522, %v1866
  %v2052 = vmax.f32 %v1523, %v1869
  %v2053 = vmax.f32 %v1524, %v1874
  %v2054 = vmax.f32 %v1525, %v1877
  %v2055 = vmax.f32 %v1526, %v1882
  %v2056 = vmax.f32 %v1527, %v1885
  %v2057 = vmax.f32 %v1528, %v1890
  %v2058 = vmax.f32 %v1529, %v1893
  %v2059 = vmax.f32 %v1530, %v1898
  %v2060 = vmax.f32 %v1531, %v1901
  %v2061 = vmax.f32 %v1532, %v1906
  %v2062 = vmax.f32 %v1533, %v1909
  %v2063 = vmax.f32 %v1534, %v1914
  %v2064 = vmax.f32 %v1535, %v1917
  %v2065 = vmax.f32 %v1536, %v1922
  %v2066 = vmax.f32 %v1537, %v1925
  %v2067 = vmax.f32 %v1538, %v1930
  %v2068 = vmax.f32 %v1539, %v1933
  %v2069 = vmax.f32 %v1540, %v1938
  %v2070 = vmax.f32 %v1541, %v1941
  %v2071 = vmax.f32 %v1542, %v1946
  %v2072 = vmax.f32 %v1543, %v1949
  %v2073 = vmax.f32 %v1544, %v1954
  %v2074 = vmax.f32 %v1545, %v1957
  %v2075 = vmax.f32 %v1546, %v1962
  %v2076 = vmax.f32 %v1547, %v1965
  %v2077 = vmax.f32 %v1548, %v1970
  %v2078 = vmax.f32 %v1549, %v1973
  %v2079 = vmax.f32 %v1550, %v1978
  %v2080 = vmax.f32 %v1551, %v1981
  %v2081 = vmax.f32 %v1552, %v1986
  %v2082 = vmax.f32 %v1553, %v1989
  %v2083 = vmax.f32 %v1554, %v1994
  %v2084 = vmax.f32 %v1555, %v1997
  %v2085 = vmax.f32 %v1556, %v2002
  %v2086 = vmax.f32 %v1557, %v2005
  %v2087 = vmax.f32 %v1558, %v2010
  %v2088 = vmax.f32 %v1559, %v2013
  %v2089 = vmax.f32 %v1560, %v2018
  %v2090 = vmax.f32 %v1561, %v2021
  %v2091 = vmax.f32 %v1562, %v2026
  %v2092 = vmax.f32 %v1563, %v2029
  %v2093 = vmax.f32 %v1564, %v2034
  %v2094 = vmax.f32 %v1565, %v2037
  %v2095 = vmax.f32 %v1566, %v2042
  %v2096 = vld [vmem:[%s2] sm:$0x1]
  %v2098 = vlaneseq
  %v2099 = vshrl.u32 %v2098, 7
  %v2100 = vsub.s32 0, %v2099
  %v2101 = vrot.slane %v2096, %v2100
  %v2103 = vadd.f32 %v2047, %v2101
  %v2104 = vadd.f32 %v2048, %v2101
  %v2105 = vadd.f32 %v2049, %v2101
  %v2106 = vadd.f32 %v2050, %v2101
  %v2107 = vadd.f32 %v2051, %v2101
  %v2108 = vadd.f32 %v2052, %v2101
  %v2109 = vadd.f32 %v2053, %v2101
  %v2110 = vadd.f32 %v2054, %v2101
  %v2111 = vadd.f32 %v2055, %v2101
  %v2112 = vadd.f32 %v2056, %v2101
  %v2113 = vadd.f32 %v2057, %v2101
  %v2114 = vadd.f32 %v2058, %v2101
  %v2115 = vadd.f32 %v2059, %v2101
  %v2116 = vadd.f32 %v2060, %v2101
  %v2117 = vadd.f32 %v2061, %v2101
  %v2118 = vadd.f32 %v2062, %v2101
  %v2119 = vadd.f32 %v2063, %v2101
  %v2120 = vadd.f32 %v2064, %v2101
  %v2121 = vadd.f32 %v2065, %v2101
  %v2122 = vadd.f32 %v2066, %v2101
  %v2123 = vadd.f32 %v2067, %v2101
  %v2124 = vadd.f32 %v2068, %v2101
  %v2125 = vadd.f32 %v2069, %v2101
  %v2126 = vadd.f32 %v2070, %v2101
  %v2127 = vadd.f32 %v2071, %v2101
  %v2128 = vadd.f32 %v2072, %v2101
  %v2129 = vadd.f32 %v2073, %v2101
  %v2130 = vadd.f32 %v2074, %v2101
  %v2131 = vadd.f32 %v2075, %v2101
  %v2132 = vadd.f32 %v2076, %v2101
  %v2133 = vadd.f32 %v2077, %v2101
  %v2134 = vadd.f32 %v2078, %v2101
  %v2135 = vadd.f32 %v2079, %v2101
  %v2136 = vadd.f32 %v2080, %v2101
  %v2137 = vadd.f32 %v2081, %v2101
  %v2138 = vadd.f32 %v2082, %v2101
  %v2139 = vadd.f32 %v2083, %v2101
  %v2140 = vadd.f32 %v2084, %v2101
  %v2141 = vadd.f32 %v2085, %v2101
  %v2142 = vadd.f32 %v2086, %v2101
  %v2143 = vadd.f32 %v2087, %v2101
  %v2144 = vadd.f32 %v2088, %v2101
  %v2145 = vadd.f32 %v2089, %v2101
  %v2146 = vadd.f32 %v2090, %v2101
  %v2147 = vadd.f32 %v2091, %v2101
  %v2148 = vadd.f32 %v2092, %v2101
  %v2149 = vadd.f32 %v2093, %v2101
  %v2150 = vadd.f32 %v2094, %v2101
  %v2151 = vadd.f32 %v2095, %v2101
  %v2152 = vmax.f32 %v2103, 0.0
  %v2153 = vmax.f32 %v2104, 0.0
  %v2154 = vmax.f32 %v2105, 0.0
  %v2155 = vmax.f32 %v2106, 0.0
  %v2156 = vmax.f32 %v2107, 0.0
  %v2157 = vmax.f32 %v2108, 0.0
  %v2158 = vmax.f32 %v2109, 0.0
  %v2159 = vmax.f32 %v2110, 0.0
  %v2160 = vmax.f32 %v2111, 0.0
  %v2161 = vmax.f32 %v2112, 0.0
  %v2162 = vmax.f32 %v2113, 0.0
  %v2163 = vmax.f32 %v2114, 0.0
  %v2164 = vmax.f32 %v2115, 0.0
  %v2165 = vmax.f32 %v2116, 0.0
  %v2166 = vmax.f32 %v2117, 0.0
  %v2167 = vmax.f32 %v2118, 0.0
  %v2168 = vmax.f32 %v2119, 0.0
  %v2169 = vmax.f32 %v2120, 0.0
  %v2170 = vmax.f32 %v2121, 0.0
  %v2171 = vmax.f32 %v2122, 0.0
  %v2172 = vmax.f32 %v2123, 0.0
  %v2173 = vmax.f32 %v2124, 0.0
  %v2174 = vmax.f32 %v2125, 0.0
  %v2175 = vmax.f32 %v2126, 0.0
  %v2176 = vmax.f32 %v2127, 0.0
  %v2177 = vmax.f32 %v2128, 0.0
  %v2178 = vmax.f32 %v2129, 0.0
  %v2179 = vmax.f32 %v2130, 0.0
  %v2180 = vmax.f32 %v2131, 0.0
  %v2181 = vmax.f32 %v2132, 0.0
  %v2182 = vmax.f32 %v2133, 0.0
  %v2183 = vmax.f32 %v2134, 0.0
  %v2184 = vmax.f32 %v2135, 0.0
  %v2185 = vmax.f32 %v2136, 0.0
  %v2186 = vmax.f32 %v2137, 0.0
  %v2187 = vmax.f32 %v2138, 0.0
  %v2188 = vmax.f32 %v2139, 0.0
  %v2189 = vmax.f32 %v2140, 0.0
  %v2190 = vmax.f32 %v2141, 0.0
  %v2191 = vmax.f32 %v2142, 0.0
  %v2192 = vmax.f32 %v2143, 0.0
  %v2193 = vmax.f32 %v2144, 0.0
  %v2194 = vmax.f32 %v2145, 0.0
  %v2195 = vmax.f32 %v2146, 0.0
  %v2196 = vmax.f32 %v2147, 0.0
  %v2197 = vmax.f32 %v2148, 0.0
  %v2198 = vmax.f32 %v2149, 0.0
  %v2199 = vmax.f32 %v2150, 0.0
  %v2200 = vmax.f32 %v2151, 0.0
  %v2201 = vpack.c.bf16 %v2153, %v2152
  %v2202 = vpack.c.bf16 %v2155, %v2154
  %v2203 = vpack.c.bf16 %v2157, %v2156
  %v2204 = vpack.c.bf16 %v2159, %v2158
  %v2205 = vpack.c.bf16 %v2161, %v2160
  %v2206 = vpack.c.bf16 %v2163, %v2162
  %v2207 = vpack.c.bf16 %v2165, %v2164
  %v2208 = vpack.c.bf16 %v2167, %v2166
  %v2209 = vpack.c.bf16 %v2169, %v2168
  %v2210 = vpack.c.bf16 %v2171, %v2170
  %v2211 = vpack.c.bf16 %v2173, %v2172
  %v2212 = vpack.c.bf16 %v2175, %v2174
  %v2213 = vpack.c.bf16 %v2177, %v2176
  %v2214 = vpack.c.bf16 %v2179, %v2178
  %v2215 = vpack.c.bf16 %v2181, %v2180
  %v2216 = vpack.c.bf16 %v2183, %v2182
  %v2217 = vpack.c.bf16 %v2185, %v2184
  %v2218 = vpack.c.bf16 %v2187, %v2186
  %v2219 = vpack.c.bf16 %v2189, %v2188
  %v2220 = vpack.c.bf16 %v2191, %v2190
  %v2221 = vpack.c.bf16 %v2193, %v2192
  %v2222 = vpack.c.bf16 %v2195, %v2194
  %v2223 = vpack.c.bf16 %v2197, %v2196
  %v2224 = vpack.c.bf16 %v2199, %v2198
  %v2225 = vpack.c.bf16 %v2200, %v2200
  %v2251 = vunpack.c.l.b16 %v2201
  %v2252 = vunpack.c.h.b16 %v2201
  %v2253 = vunpack.c.l.b16 %v2202
  %v2254 = vunpack.c.h.b16 %v2202
  %v2255 = vunpack.c.l.b16 %v2203
  %v2256 = vunpack.c.h.b16 %v2203
  %v2257 = vunpack.c.l.b16 %v2204
  %v2258 = vunpack.c.h.b16 %v2204
  %v2259 = vunpack.c.l.b16 %v2205
  %v2260 = vunpack.c.h.b16 %v2205
  %v2261 = vunpack.c.l.b16 %v2206
  %v2262 = vunpack.c.h.b16 %v2206
  %v2263 = vunpack.c.l.b16 %v2207
  %v2264 = vunpack.c.h.b16 %v2207
  %v2265 = vunpack.c.l.b16 %v2208
  %v2266 = vunpack.c.h.b16 %v2208
  %v2267 = vunpack.c.l.b16 %v2209
  %v2268 = vunpack.c.h.b16 %v2209
  %v2269 = vunpack.c.l.b16 %v2210
  %v2270 = vunpack.c.h.b16 %v2210
  %v2271 = vunpack.c.l.b16 %v2211
  %v2272 = vunpack.c.h.b16 %v2211
  %v2273 = vunpack.c.l.b16 %v2212
  %v2274 = vunpack.c.h.b16 %v2212
  %v2275 = vunpack.c.l.b16 %v2213
  %v2276 = vunpack.c.h.b16 %v2213
  %v2277 = vunpack.c.l.b16 %v2214
  %v2278 = vunpack.c.h.b16 %v2214
  %v2279 = vunpack.c.l.b16 %v2215
  %v2280 = vunpack.c.h.b16 %v2215
  %v2281 = vunpack.c.l.b16 %v2216
  %v2282 = vunpack.c.h.b16 %v2216
  %v2283 = vunpack.c.l.b16 %v2217
  %v2284 = vunpack.c.h.b16 %v2217
  %v2285 = vunpack.c.l.b16 %v2218
  %v2286 = vunpack.c.h.b16 %v2218
  %v2287 = vunpack.c.l.b16 %v2219
  %v2288 = vunpack.c.h.b16 %v2219
  %v2289 = vunpack.c.l.b16 %v2220
  %v2290 = vunpack.c.h.b16 %v2220
  %v2291 = vunpack.c.l.b16 %v2221
  %v2292 = vunpack.c.h.b16 %v2221
  %v2293 = vunpack.c.l.b16 %v2222
  %v2294 = vunpack.c.h.b16 %v2222
  %v2295 = vunpack.c.l.b16 %v2223
  %v2296 = vunpack.c.h.b16 %v2223
  %v2297 = vunpack.c.l.b16 %v2224
  %v2298 = vunpack.c.h.b16 %v2224
  %v2299 = vunpack.c.l.b16 %v2225
  %v2300 = vpack.c.b16 %v2251, %v2251
  %v2301 = vpack.c.b16 %v2252, %v2252
  %v2302 = vpack.c.b16 %v2253, %v2253
  %v2303 = vpack.c.b16 %v2254, %v2254
  %v2304 = vpack.c.b16 %v2255, %v2255
  %v2305 = vpack.c.b16 %v2256, %v2256
  %v2306 = vpack.c.b16 %v2257, %v2257
  %v2307 = vpack.c.b16 %v2258, %v2258
  %v2308 = vpack.c.b16 %v2259, %v2259
  %v2309 = vpack.c.b16 %v2260, %v2260
  %v2310 = vpack.c.b16 %v2261, %v2261
  %v2311 = vpack.c.b16 %v2262, %v2262
  %v2312 = vpack.c.b16 %v2263, %v2263
  %v2313 = vpack.c.b16 %v2264, %v2264
  %v2314 = vpack.c.b16 %v2265, %v2265
  %v2315 = vpack.c.b16 %v2266, %v2266
  %v2316 = vpack.c.b16 %v2267, %v2267
  %v2317 = vpack.c.b16 %v2268, %v2268
  %v2318 = vpack.c.b16 %v2269, %v2269
  %v2319 = vpack.c.b16 %v2270, %v2270
  %v2320 = vpack.c.b16 %v2271, %v2271
  %v2321 = vpack.c.b16 %v2272, %v2272
  %v2322 = vpack.c.b16 %v2273, %v2273
  %v2323 = vpack.c.b16 %v2274, %v2274
  %v2324 = vpack.c.b16 %v2275, %v2275
  %v2325 = vpack.c.b16 %v2276, %v2276
  %v2326 = vpack.c.b16 %v2277, %v2277
  %v2327 = vpack.c.b16 %v2278, %v2278
  %v2328 = vpack.c.b16 %v2279, %v2279
  %v2329 = vpack.c.b16 %v2280, %v2280
  %v2330 = vpack.c.b16 %v2281, %v2281
  %v2331 = vpack.c.b16 %v2282, %v2282
  %v2332 = vpack.c.b16 %v2283, %v2283
  %v2333 = vpack.c.b16 %v2284, %v2284
  %v2334 = vpack.c.b16 %v2285, %v2285
  %v2335 = vpack.c.b16 %v2286, %v2286
  %v2336 = vpack.c.b16 %v2287, %v2287
  %v2337 = vpack.c.b16 %v2288, %v2288
  %v2338 = vpack.c.b16 %v2289, %v2289
  %v2339 = vpack.c.b16 %v2290, %v2290
  %v2340 = vpack.c.b16 %v2291, %v2291
  %v2341 = vpack.c.b16 %v2292, %v2292
  %v2342 = vpack.c.b16 %v2293, %v2293
  %v2343 = vpack.c.b16 %v2294, %v2294
  %v2344 = vpack.c.b16 %v2295, %v2295
  %v2345 = vpack.c.b16 %v2296, %v2296
  %v2346 = vpack.c.b16 %v2297, %v2297
  %v2347 = vpack.c.b16 %v2298, %v2298
  %v2348 = vpack.c.b16 %v2299, %v2299
  %vm2398 = vcmask 257024
  %2399 = vst.msk [vmem:[%s3] sm:$0xf] %vm2398, %v2300
  %2400 = vst.msk [vmem:[%s3 + $0x4] sm:$0xf] %vm2398, %v2301
  %2401 = vst.msk [vmem:[%s3 + $0x8] sm:$0xf] %vm2398, %v2302
  %2402 = vst.msk [vmem:[%s3 + $0xc] sm:$0xf] %vm2398, %v2303
  %2403 = vst.msk [vmem:[%s3 + $0x10] sm:$0xf] %vm2398, %v2304
  %2404 = vst.msk [vmem:[%s3 + $0x14] sm:$0xf] %vm2398, %v2305
  %2405 = vst.msk [vmem:[%s3 + $0x18] sm:$0xf] %vm2398, %v2306
  %2406 = vst.msk [vmem:[%s3 + $0x1c] sm:$0xf] %vm2398, %v2307
  %2407 = vst.msk [vmem:[%s3 + $0x20] sm:$0xf] %vm2398, %v2308
  %2408 = vst.msk [vmem:[%s3 + $0x24] sm:$0xf] %vm2398, %v2309
  %2409 = vst.msk [vmem:[%s3 + $0x28] sm:$0xf] %vm2398, %v2310
  %2410 = vst.msk [vmem:[%s3 + $0x2c] sm:$0xf] %vm2398, %v2311
  %2411 = vst.msk [vmem:[%s3 + $0x30] sm:$0xf] %vm2398, %v2312
  %2412 = vst.msk [vmem:[%s3 + $0x34] sm:$0xf] %vm2398, %v2313
  %2413 = vst.msk [vmem:[%s3 + $0x38] sm:$0xf] %vm2398, %v2314
  %2414 = vst.msk [vmem:[%s3 + $0x3c] sm:$0xf] %vm2398, %v2315
  %2415 = vst.msk [vmem:[%s3 + $0x40] sm:$0xf] %vm2398, %v2316
  %2416 = vst.msk [vmem:[%s3 + $0x44] sm:$0xf] %vm2398, %v2317
  %2417 = vst.msk [vmem:[%s3 + $0x48] sm:$0xf] %vm2398, %v2318
  %2418 = vst.msk [vmem:[%s3 + $0x4c] sm:$0xf] %vm2398, %v2319
  %2419 = vst.msk [vmem:[%s3 + $0x50] sm:$0xf] %vm2398, %v2320
  %2420 = vst.msk [vmem:[%s3 + $0x54] sm:$0xf] %vm2398, %v2321
  %2421 = vst.msk [vmem:[%s3 + $0x58] sm:$0xf] %vm2398, %v2322
  %2422 = vst.msk [vmem:[%s3 + $0x5c] sm:$0xf] %vm2398, %v2323
  %2423 = vst.msk [vmem:[%s3 + $0x60] sm:$0xf] %vm2398, %v2324
  %2424 = vst.msk [vmem:[%s3 + $0x64] sm:$0xf] %vm2398, %v2325
  %2425 = vst.msk [vmem:[%s3 + $0x68] sm:$0xf] %vm2398, %v2326
  %2426 = vst.msk [vmem:[%s3 + $0x6c] sm:$0xf] %vm2398, %v2327
  %2427 = vst.msk [vmem:[%s3 + $0x70] sm:$0xf] %vm2398, %v2328
  %2428 = vst.msk [vmem:[%s3 + $0x74] sm:$0xf] %vm2398, %v2329
  %2429 = vst.msk [vmem:[%s3 + $0x78] sm:$0xf] %vm2398, %v2330
  %2430 = vst.msk [vmem:[%s3 + $0x7c] sm:$0xf] %vm2398, %v2331
  %2431 = vst.msk [vmem:[%s3 + $0x80] sm:$0xf] %vm2398, %v2332
  %2432 = vst.msk [vmem:[%s3 + $0x84] sm:$0xf] %vm2398, %v2333
  %2433 = vst.msk [vmem:[%s3 + $0x88] sm:$0xf] %vm2398, %v2334
  %2434 = vst.msk [vmem:[%s3 + $0x8c] sm:$0xf] %vm2398, %v2335
  %2435 = vst.msk [vmem:[%s3 + $0x90] sm:$0xf] %vm2398, %v2336
  %2436 = vst.msk [vmem:[%s3 + $0x94] sm:$0xf] %vm2398, %v2337
  %2437 = vst.msk [vmem:[%s3 + $0x98] sm:$0xf] %vm2398, %v2338
  %2438 = vst.msk [vmem:[%s3 + $0x9c] sm:$0xf] %vm2398, %v2339
  %2439 = vst.msk [vmem:[%s3 + $0xa0] sm:$0xf] %vm2398, %v2340
  %2440 = vst.msk [vmem:[%s3 + $0xa4] sm:$0xf] %vm2398, %v2341
  %2441 = vst.msk [vmem:[%s3 + $0xa8] sm:$0xf] %vm2398, %v2342
  %2442 = vst.msk [vmem:[%s3 + $0xac] sm:$0xf] %vm2398, %v2343
  %2443 = vst.msk [vmem:[%s3 + $0xb0] sm:$0xf] %vm2398, %v2344
  %2444 = vst.msk [vmem:[%s3 + $0xb4] sm:$0xf] %vm2398, %v2345
  %2445 = vst.msk [vmem:[%s3 + $0xb8] sm:$0xf] %vm2398, %v2346
  %2446 = vst.msk [vmem:[%s3 + $0xbc] sm:$0xf] %vm2398, %v2347
  %2447 = vst.msk [vmem:[%s3 + $0xc0] sm:$0xf] %vm2398, %v2348
  // Predicated region
  $region14: #{breast_cnn_forward.3} parent=0 // pred_check
    _
  $region15: #{breast_cnn_forward.3} parent=0 // pred_check_branch
    %2449 = sbr.rel (0) target = $region17
  $region16: #{breast_cnn_forward.3} parent=0 // pred_region
    _
  $region17: #{breast_cnn_forward.3} parent=0 // pred_fallthru
    _
  // Predicated region
  $region18: #{breast_cnn_forward.3} parent=0 // pred_check
    _
  $region19: #{breast_cnn_forward.3} parent=0 // pred_check_branch
    %2451 = sbr.rel (0) target = $region21
  $region20: #{breast_cnn_forward.3} parent=0 // pred_region
    _
  $region21: #{breast_cnn_forward.3} parent=0 // pred_fallthru
    _

// kernel: breast_cnn_forward.4
$region0: #{breast_cnn_forward.4}
  #allocation0 [shape = 'u32[]', space=smem, size = 0x4, offset = 0x4, fixed_abs, tag = 'smem constant byte address 0x4 - core index']
  #allocation1 [shape = 'u32[144,128]{1,0:T(1,128)}', space=vmem, size = 0x12000, scoped, tag = 'internal scratch']
  %s0 = inlined_call_operand.vmem [shape: bf16[4,98,288], index: 0, kind: input, shape index: {}]
  %s1 = inlined_call_operand.vmem [shape: bf16[288,64], index: 1, kind: input, shape index: {}]
  %s2 = inlined_call_operand.vmem [shape: f32[1,64], index: 2, kind: input, shape index: {}]
  %s3 = inlined_call_operand.vmem [shape: bf16[98,64], index: 3, kind: output, shape index: {}]
  %s4 = sld [smem:[#allocation0]]
  $region22: #{breast_cnn_forward.4} parent=0
    _
  %s6 = ssub.s32 1, %s4
  %s7 = scalar_select 0, %s6, %s4
  // Predicated region
  $region2: #{breast_cnn_forward.4} parent=0 // pred_check
    _
  $region3: #{breast_cnn_forward.4} parent=0 // pred_check_branch
    %9 = sbr.rel (0) target = $region5
  $region4: #{breast_cnn_forward.4} parent=0 // pred_region
    _
  $region5: #{breast_cnn_forward.4} parent=0 // pred_fallthru
    _
  // Predicated region
  $region6: #{breast_cnn_forward.4} parent=0 // pred_check
    _
  $region7: #{breast_cnn_forward.4} parent=0 // pred_check_branch
    %11 = sbr.rel (0) target = $region9
  $region8: #{breast_cnn_forward.4} parent=0 // pred_region
    _
  $region9: #{breast_cnn_forward.4} parent=0 // pred_fallthru
    _
  // Predicated region
  $region10: #{breast_cnn_forward.4} parent=0 // pred_check
    _
  $region11: #{breast_cnn_forward.4} parent=0 // pred_check_branch
    %13 = sbr.rel (0) target = $region13
  $region12: #{breast_cnn_forward.4} parent=0 // pred_region
    _
  $region13: #{breast_cnn_forward.4} parent=0 // pred_fallthru
    _
  %v15 = vld [vmem:[%s1] sm:$0xf]
  %v16 = vld [vmem:[%s1 + $0x4] sm:$0xf]
  %v17 = vld [vmem:[%s1 + $0x8] sm:$0xf]
  %v18 = vld [vmem:[%s1 + $0xc] sm:$0xf]
  %v19 = vld [vmem:[%s1 + $0x10] sm:$0xf]
  %v20 = vld [vmem:[%s1 + $0x14] sm:$0xf]
  %v21 = vld [vmem:[%s1 + $0x18] sm:$0xf]
  %v22 = vld [vmem:[%s1 + $0x1c] sm:$0xf]
  %v23 = vld [vmem:[%s1 + $0x20] sm:$0xf]
  %v24 = vld [vmem:[%s1 + $0x24] sm:$0xf]
  %v25 = vld [vmem:[%s1 + $0x28] sm:$0xf]
  %v26 = vld [vmem:[%s1 + $0x2c] sm:$0xf]
  %v27 = vld [vmem:[%s1 + $0x30] sm:$0xf]
  %v28 = vld [vmem:[%s1 + $0x34] sm:$0xf]
  %v29 = vld [vmem:[%s1 + $0x38] sm:$0xf]
  %v30 = vld [vmem:[%s1 + $0x3c] sm:$0xf]
  %v31 = vld [vmem:[%s1 + $0x40] sm:$0xf]
  %v32 = vld [vmem:[%s1 + $0x44] sm:$0xf]
  %v33 = vld [vmem:[%s1 + $0x48] sm:$0xf]
  %v34 = vld [vmem:[%s1 + $0x4c] sm:$0xf]
  %v35 = vld [vmem:[%s1 + $0x50] sm:$0xf]
  %v36 = vld [vmem:[%s1 + $0x54] sm:$0xf]
  %v37 = vld [vmem:[%s1 + $0x58] sm:$0xf]
  %v38 = vld [vmem:[%s1 + $0x5c] sm:$0xf]
  %v39 = vld [vmem:[%s1 + $0x60] sm:$0xf]
  %v40 = vld [vmem:[%s1 + $0x64] sm:$0xf]
  %v41 = vld [vmem:[%s1 + $0x68] sm:$0xf]
  %v42 = vld [vmem:[%s1 + $0x6c] sm:$0xf]
  %v43 = vld [vmem:[%s1 + $0x70] sm:$0xf]
  %v44 = vld [vmem:[%s1 + $0x74] sm:$0xf]
  %v45 = vld [vmem:[%s1 + $0x78] sm:$0xf]
  %v46 = vld [vmem:[%s1 + $0x7c] sm:$0xf]
  %v47 = vld [vmem:[%s1 + $0x80] sm:$0xf]
  %v48 = vld [vmem:[%s1 + $0x84] sm:$0xf]
  %v49 = vld [vmem:[%s1 + $0x88] sm:$0xf]
  %v50 = vld [vmem:[%s1 + $0x8c] sm:$0xf]
  %v51 = vld [vmem:[%s0] sm:$0xff]
  %v52 = vld [vmem:[%s0 + $0x8] sm:$0xf]
  %v53 = vld [vmem:[%s0 + $0xc] sm:$0xff]
  %v54 = vld [vmem:[%s0 + $0x14] sm:$0xf]
  %v55 = vld [vmem:[%s0 + $0x18] sm:$0xff]
  %v56 = vld [vmem:[%s0 + $0x20] sm:$0xf]
  %v57 = vld [vmem:[%s0 + $0x24] sm:$0xff]
  %v58 = vld [vmem:[%s0 + $0x2c] sm:$0xf]
  %v59 = vld [vmem:[%s0 + $0x30] sm:$0xff]
  %v60 = vld [vmem:[%s0 + $0x38] sm:$0xf]
  %v61 = vld [vmem:[%s0 + $0x3c] sm:$0xff]
  %v62 = vld [vmem:[%s0 + $0x44] sm:$0xf]
  %v63 = vld [vmem:[%s0 + $0x48] sm:$0xff]
  %v64 = vld [vmem:[%s0 + $0x50] sm:$0xf]
  %v65 = vld [vmem:[%s0 + $0x54] sm:$0xff]
  %v66 = vld [vmem:[%s0 + $0x5c] sm:$0xf]
  %v67 = vld [vmem:[%s0 + $0x60] sm:$0xff]
  %v68 = vld [vmem:[%s0 + $0x68] sm:$0xf]
  %v69 = vld [vmem:[%s0 + $0x6c] sm:$0xff]
  %v70 = vld [vmem:[%s0 + $0x74] sm:$0xf]
  %v71 = vld [vmem:[%s0 + $0x78] sm:$0xff]
  %v72 = vld [vmem:[%s0 + $0x80] sm:$0xf]
  %v73 = vld [vmem:[%s0 + $0x84] sm:$0xff]
  %v74 = vld [vmem:[%s0 + $0x8c] sm:$0xf]
  %v75 = vld [vmem:[%s0 + $0x90] sm:$0x11]
  %v76 = vld [vmem:[%s0 + $0x98] sm:$0x1]
  %v103 = vunpack.c.l.b16 %v51
  %v104 = vunpack.c.h.b16 %v51
  %v105 = vunpack.c.l.b16 %v52
  %v106 = vunpack.c.l.b16 %v53
  %v107 = vunpack.c.h.b16 %v53
  %v108 = vunpack.c.l.b16 %v54
  %v109 = vunpack.c.l.b16 %v55
  %v110 = vunpack.c.h.b16 %v55
  %v111 = vunpack.c.l.b16 %v56
  %v112 = vunpack.c.l.b16 %v57
  %v113 = vunpack.c.h.b16 %v57
  %v114 = vunpack.c.l.b16 %v58
  %v115 = vunpack.c.l.b16 %v59
  %v116 = vunpack.c.h.b16 %v59
  %v117 = vunpack.c.l.b16 %v60
  %v118 = vunpack.c.l.b16 %v61
  %v119 = vunpack.c.h.b16 %v61
  %v120 = vunpack.c.l.b16 %v62
  %v121 = vunpack.c.l.b16 %v63
  %v122 = vunpack.c.h.b16 %v63
  %v123 = vunpack.c.l.b16 %v64
  %v124 = vunpack.c.l.b16 %v65
  %v125 = vunpack.c.h.b16 %v65
  %v126 = vunpack.c.l.b16 %v66
  %v127 = vunpack.c.l.b16 %v67
  %v128 = vunpack.c.h.b16 %v67
  %v129 = vunpack.c.l.b16 %v68
  %v130 = vunpack.c.l.b16 %v69
  %v131 = vunpack.c.h.b16 %v69
  %v132 = vunpack.c.l.b16 %v70
  %v133 = vunpack.c.l.b16 %v71
  %v134 = vunpack.c.h.b16 %v71
  %v135 = vunpack.c.l.b16 %v72
  %v136 = vunpack.c.l.b16 %v73
  %v137 = vunpack.c.h.b16 %v73
  %v138 = vunpack.c.l.b16 %v74
  %v139 = vunpack.c.l.b16 %v75
  %v140 = vunpack.c.h.b16 %v75
  %v141 = vunpack.c.l.b16 %v76
  %v142 = vpack.c.b16 %v106, %v103
  %v143 = vpack.c.b16 %v107, %v104
  %v144 = vpack.c.b16 %v108, %v105
  %v145 = vpack.c.b16 %v112, %v109
  %v146 = vpack.c.b16 %v113, %v110
  %v147 = vpack.c.b16 %v114, %v111
  %v148 = vpack.c.b16 %v118, %v115
  %v149 = vpack.c.b16 %v119, %v116
  %v150 = vpack.c.b16 %v120, %v117
  %v151 = vpack.c.b16 %v124, %v121
  %v152 = vpack.c.b16 %v125, %v122
  %v153 = vpack.c.b16 %v126, %v123
  %v154 = vpack.c.b16 %v130, %v127
  %v155 = vpack.c.b16 %v131, %v128
  %v156 = vpack.c.b16 %v132, %v129
  %v157 = vpack.c.b16 %v136, %v133
  %v158 = vpack.c.b16 %v137, %v134
  %v159 = vpack.c.b16 %v138, %v135
  %v160 = vpack.c.b16 %v139, %v139
  %v161 = vpack.c.b16 %v140, %v140
  %v162 = vpack.c.b16 %v141, %v141
  %v213 = vunpack.c.l.b16 %v15
  %v214 = vunpack.c.l.b16 %v16
  %v215 = vunpack.c.l.b16 %v17
  %v216 = vunpack.c.l.b16 %v18
  %v217 = vunpack.c.l.b16 %v19
  %v218 = vunpack.c.l.b16 %v20
  %v219 = vunpack.c.l.b16 %v21
  %v220 = vunpack.c.l.b16 %v22
  %v221 = vunpack.c.l.b16 %v23
  %v222 = vunpack.c.l.b16 %v24
  %v223 = vunpack.c.l.b16 %v25
  %v224 = vunpack.c.l.b16 %v26
  %v225 = vunpack.c.l.b16 %v27
  %v226 = vunpack.c.l.b16 %v28
  %v227 = vunpack.c.l.b16 %v29
  %v228 = vunpack.c.l.b16 %v30
  %v229 = vunpack.c.l.b16 %v31
  %v230 = vunpack.c.l.b16 %v32
  %v231 = vunpack.c.l.b16 %v33
  %v232 = vunpack.c.l.b16 %v34
  %v233 = vunpack.c.l.b16 %v35
  %v234 = vunpack.c.l.b16 %v36
  %v235 = vunpack.c.l.b16 %v37
  %v236 = vunpack.c.l.b16 %v38
  %v237 = vunpack.c.l.b16 %v39
  %v238 = vunpack.c.l.b16 %v40
  %v239 = vunpack.c.l.b16 %v41
  %v240 = vunpack.c.l.b16 %v42
  %v241 = vunpack.c.l.b16 %v43
  %v242 = vunpack.c.l.b16 %v44
  %v243 = vunpack.c.l.b16 %v45
  %v244 = vunpack.c.l.b16 %v46
  %v245 = vunpack.c.l.b16 %v47
  %v246 = vunpack.c.l.b16 %v48
  %v247 = vunpack.c.l.b16 %v49
  %v248 = vunpack.c.l.b16 %v50
  %v249 = vpack.c.b16 %v214, %v213
  %v250 = vpack.c.b16 %v216, %v215
  %v251 = vpack.c.b16 %v218, %v217
  %v252 = vpack.c.b16 %v220, %v219
  %v253 = vpack.c.b16 %v222, %v221
  %v254 = vpack.c.b16 %v224, %v223
  %v255 = vpack.c.b16 %v226, %v225
  %v256 = vpack.c.b16 %v228, %v227
  %v257 = vpack.c.b16 %v230, %v229
  %v258 = vpack.c.b16 %v232, %v231
  %v259 = vpack.c.b16 %v234, %v233
  %v260 = vpack.c.b16 %v236, %v235
  %v261 = vpack.c.b16 %v238, %v237
  %v262 = vpack.c.b16 %v240, %v239
  %v263 = vpack.c.b16 %v242, %v241
  %v264 = vpack.c.b16 %v244, %v243
  %v265 = vpack.c.b16 %v246, %v245
  %v266 = vpack.c.b16 %v248, %v247
  %vm285 = vcmask 261120
  %v287 = vsel %vm285, %v144, 0
  %v290 = vsel %vm285, %v147, 0
  %v293 = vsel %vm285, %v150, 0
  %v296 = vsel %vm285, %v153, 0
  %v299 = vsel %vm285, %v156, 0
  %v302 = vsel %vm285, %v159, 0
  %v305 = vsel %vm285, %v162, 0
  %307 = vmatprep.subr.bf16.mxu0 0
  %308 = vmatpush1.bf16.msra.mxu0 %v249
  %309 = vmatprep.subr.bf16.mxu0 0
  %310 = vmatpush1.bf16.msra.mxu0 %v250
  %311 = vmatprep.subr.bf16.mxu0 0
  %312 = vmatpush1.bf16.msra.mxu0 %v251
  %313 = vmatprep.subr.bf16.mxu0 0
  %314 = vmatpush1.bf16.msra.mxu0 %v252
  %315 = vmatprep.subr.bf16.mxu0 0
  %316 = vmatpush1.bf16.msra.mxu0 %v253
  %317 = vmatprep.subr.bf16.mxu0 0
  %318 = vmatpush1.bf16.msra.mxu0 %v254
  %319 = vmatprep.subr.bf16.mxu0 0
  %320 = vmatpush1.bf16.msra.mxu0 %v255
  %321 = vmatprep.subr.bf16.mxu0 0
  %322 = vmatpush1.bf16.msra.mxu0 %v256
  %323 = vmatprep.subr.bf16.mxu0 0
  %324 = vmatpush1.bf16.msra.mxu0 %v257
  %325 = vmatprep.subr.bf16.mxu0 0
  %326 = vmatpush1.bf16.msra.mxu0 %v258
  %327 = vmatprep.subr.bf16.mxu0 0
  %328 = vmatpush1.bf16.msra.mxu0 %v259
  %329 = vmatprep.subr.bf16.mxu0 0
  %330 = vmatpush1.bf16.msra.mxu0 %v260
  %331 = vmatprep.subr.bf16.mxu0 0
  %332 = vmatpush1.bf16.msra.mxu0 %v261
  %333 = vmatprep.subr.bf16.mxu0 0
  %334 = vmatpush1.bf16.msra.mxu0 %v262
  %335 = vmatprep.subr.bf16.mxu0 0
  %336 = vmatpush1.bf16.msra.mxu0 %v263
  %337 = vmatprep.subr.bf16.mxu0 0
  %338 = vmatpush1.bf16.msra.mxu0 %v264
  %339 = vmatprep.mubr.bf16.mxu0 %v143
  %340 = vmatmul.mubr.bf16.gmra.mrb[0].mxu0 %v142
  %v341 = vpop.f32.mrb[0].mxu0
  %v342 = vadd.f32 0.0, %v341
  %v343 = vpop.f32.mrb[0].mxu0
  %v344 = vpop.f32.mrb[0].mxu0
  %v345 = vadd.f32 0.0, %v344
  %v346 = vpop.f32.mrb[0].mxu0
  %347 = vmatprep.mubr.bf16.mxu0 %v146
  %348 = vmatmul.mubr.bf16.gmra.mrb[0].mxu0 %v145
  %v349 = vpop.f32.mrb[0].mxu0
  %v350 = vadd.f32 0.0, %v349
  %v351 = vpop.f32.mrb[0].mxu0
  %v352 = vpop.f32.mrb[0].mxu0
  %v353 = vadd.f32 0.0, %v352
  %v354 = vpop.f32.mrb[0].mxu0
  %355 = vmatprep.mubr.bf16.mxu0 %v149
  %356 = vmatmul.mubr.bf16.gmra.mrb[0].mxu0 %v148
  %v357 = vpop.f32.mrb[0].mxu0
  %v358 = vadd.f32 0.0, %v357
  %v359 = vpop.f32.mrb[0].mxu0
  %v360 = vpop.f32.mrb[0].mxu0
  %v361 = vadd.f32 0.0, %v360
  %v362 = vpop.f32.mrb[0].mxu0
  %363 = vmatprep.mubr.bf16.mxu0 %v152
  %364 = vmatmul.mubr.bf16.gmra.mrb[0].mxu0 %v151
  %v365 = vpop.f32.mrb[0].mxu0
  %v366 = vadd.f32 0.0, %v365
  %v367 = vpop.f32.mrb[0].mxu0
  %v368 = vpop.f32.mrb[0].mxu0
  %v369 = vadd.f32 0.0, %v368
  %v370 = vpop.f32.mrb[0].mxu0
  %371 = vmatprep.mubr.bf16.mxu0 %v155
  %372 = vmatmul.mubr.bf16.gmra.mrb[0].mxu0 %v154
  %v373 = vpop.f32.mrb[0].mxu0
  %v374 = vadd.f32 0.0, %v373
  %v375 = vpop.f32.mrb[0].mxu0
  %v376 = vpop.f32.mrb[0].mxu0
  %v377 = vadd.f32 0.0, %v376
  %v378 = vpop.f32.mrb[0].mxu0
  %379 = vmatprep.mubr.bf16.mxu0 %v158
  %380 = vmatmul.mubr.bf16.gmra.mrb[0].mxu0 %v157
  %v381 = vpop.f32.mrb[0].mxu0
  %v382 = vadd.f32 0.0, %v381
  %v383 = vpop.f32.mrb[0].mxu0
  %v384 = vpop.f32.mrb[0].mxu0
  %v385 = vadd.f32 0.0, %v384
  %v386 = vpop.f32.mrb[0].mxu0
  %387 = vmatprep.mubr.bf16.mxu0 %v161
  %388 = vmatmul.mubr.bf16.gmra.mrb[0].mxu0 %v160
  %v389 = vpop.f32.mrb[0].mxu0
  %v390 = vadd.f32 0.0, %v389
  %v391 = vpop.f32.mrb[0].mxu0
  %v392 = vpop.f32.mrb[0].mxu0
  %v393 = vpop.f32.mrb[0].mxu0
  %394 = vdwg.mxu0
  %395 = vmatprep.subr.bf16.mxu0 0
  %396 = vmatpush1.bf16.msra.mxu0 %v265
  %397 = vmatprep.subr.bf16.mxu0 0
  %398 = vmatpush1.bf16.msra.mxu0 %v266
  %399 = vmatprep.subr.bf16.mxu0 0
  %400 = vmatpush1.bf16.msra.mxu0 0
  %401 = vmatprep.subr.bf16.mxu0 0
  %402 = vmatpush1.bf16.msra.mxu0 0
  %403 = vmatprep.subr.bf16.mxu0 0
  %404 = vmatpush1.bf16.msra.mxu0 0
  %405 = vmatprep.subr.bf16.mxu0 0
  %406 = vmatpush1.bf16.msra.mxu0 0
  %407 = vmatprep.subr.bf16.mxu0 0
  %408 = vmatpush1.bf16.msra.mxu0 0
  %409 = vmatprep.subr.bf16.mxu0 0
  %410 = vmatpush1.bf16.msra.mxu0 0
  %411 = vmatprep.subr.bf16.mxu0 0
  %412 = vmatpush1.bf16.msra.mxu0 0
  %413 = vmatprep.subr.bf16.mxu0 0
  %414 = vmatpush1.bf16.msra.mxu0 0
  %415 = vmatprep.subr.bf16.mxu0 0
  %416 = vmatpush1.bf16.msra.mxu0 0
  %417 = vmatprep.subr.bf16.mxu0 0
  %418 = vmatpush1.bf16.msra.mxu0 0
  %419 = vmatprep.subr.bf16.mxu0 0
  %420 = vmatpush1.bf16.msra.mxu0 0
  %421 = vmatprep.subr.bf16.mxu0 0
  %422 = vmatpush1.bf16.msra.mxu0 0
  %423 = vmatprep.subr.bf16.mxu0 0
  %424 = vmatpush1.bf16.msra.mxu0 0
  %425 = vmatprep.subr.bf16.mxu0 0
  %426 = vmatpush1.bf16.msra.mxu0 0
  %427 = vmatprep.mubr.bf16.mxu0 0
  %428 = vmatmul.mubr.bf16.gmra.mrb[0].mxu0 %v287
  %v429 = vpop.f32.mrb[0].mxu0
  %v430 = vadd.f32 %v342, %v429
  %v431 = vpop.f32.mrb[0].mxu0
  %v432 = vpop.f32.mrb[0].mxu0
  %v433 = vadd.f32 %v345, %v432
  %v434 = vpop.f32.mrb[0].mxu0
  %435 = vmatprep.mubr.bf16.mxu0 0
  %436 = vmatmul.mubr.bf16.gmra.mrb[0].mxu0 %v290
  %v437 = vpop.f32.mrb[0].mxu0
  %v438 = vadd.f32 %v350, %v437
  %v439 = vpop.f32.mrb[0].mxu0
  %v440 = vpop.f32.mrb[0].mxu0
  %v441 = vadd.f32 %v353, %v440
  %v442 = vpop.f32.mrb[0].mxu0
  %443 = vmatprep.mubr.bf16.mxu0 0
  %444 = vmatmul.mubr.bf16.gmra.mrb[0].mxu0 %v293
  %v445 = vpop.f32.mrb[0].mxu0
  %v446 = vadd.f32 %v358, %v445
  %v447 = vpop.f32.mrb[0].mxu0
  %v448 = vpop.f32.mrb[0].mxu0
  %v449 = vadd.f32 %v361, %v448
  %v450 = vpop.f32.mrb[0].mxu0
  %451 = vmatprep.mubr.bf16.mxu0 0
  %452 = vmatmul.mubr.bf16.gmra.mrb[0].mxu0 %v296
  %v453 = vpop.f32.mrb[0].mxu0
  %v454 = vadd.f32 %v366, %v453
  %v455 = vpop.f32.mrb[0].mxu0
  %v456 = vpop.f32.mrb[0].mxu0
  %v457 = vadd.f32 %v369, %v456
  %v458 = vpop.f32.mrb[0].mxu0
  %459 = vmatprep.mubr.bf16.mxu0 0
  %460 = vmatmul.mubr.bf16.gmra.mrb[0].mxu0 %v299
  %v461 = vpop.f32.mrb[0].mxu0
  %v462 = vadd.f32 %v374, %v461
  %v463 = vpop.f32.mrb[0].mxu0
  %v464 = vpop.f32.mrb[0].mxu0
  %v465 = vadd.f32 %v377, %v464
  %v466 = vpop.f32.mrb[0].mxu0
  %467 = vmatprep.mubr.bf16.mxu0 0
  %468 = vmatmul.mubr.bf16.gmra.mrb[0].mxu0 %v302
  %v469 = vpop.f32.mrb[0].mxu0
  %v470 = vadd.f32 %v382, %v469
  %v471 = vpop.f32.mrb[0].mxu0
  %v472 = vpop.f32.mrb[0].mxu0
  %v473 = vadd.f32 %v385, %v472
  %v474 = vpop.f32.mrb[0].mxu0
  %475 = vmatprep.mubr.bf16.mxu0 0
  %476 = vmatmul.mubr.bf16.gmra.mrb[0].mxu0 %v305
  %v477 = vpop.f32.mrb[0].mxu0
  %v478 = vadd.f32 %v390, %v477
  %v479 = vpop.f32.mrb[0].mxu0
  %v480 = vpop.f32.mrb[0].mxu0
  %v481 = vpop.f32.mrb[0].mxu0
  %482 = vdwg.mxu0
  %s483 = scalar_lea.vmem %s0, 156
  %v484 = vld [vmem:[%s483] sm:$0xff]
  %v485 = vld [vmem:[%s483 + $0x8] sm:$0xf]
  %v486 = vld [vmem:[%s483 + $0xc] sm:$0xff]
  %v487 = vld [vmem:[%s483 + $0x14] sm:$0xf]
  %v488 = vld [vmem:[%s483 + $0x18] sm:$0xff]
  %v489 = vld [vmem:[%s483 + $0x20] sm:$0xf]
  %v490 = vld [vmem:[%s483 + $0x24] sm:$0xff]
  %v491 = vld [vmem:[%s483 + $0x2c] sm:$0xf]
  %v492 = vld [vmem:[%s483 + $0x30] sm:$0xff]
  %v493 = vld [vmem:[%s483 + $0x38] sm:$0xf]
  %v494 = vld [vmem:[%s483 + $0x3c] sm:$0xff]
  %v495 = vld [vmem:[%s483 + $0x44] sm:$0xf]
  %v496 = vld [vmem:[%s483 + $0x48] sm:$0xff]
  %v497 = vld [vmem:[%s483 + $0x50] sm:$0xf]
  %v498 = vld [vmem:[%s483 + $0x54] sm:$0xff]
  %v499 = vld [vmem:[%s483 + $0x5c] sm:$0xf]
  %v500 = vld [vmem:[%s483 + $0x60] sm:$0xff]
  %v501 = vld [vmem:[%s483 + $0x68] sm:$0xf]
  %v502 = vld [vmem:[%s483 + $0x6c] sm:$0xff]
  %v503 = vld [vmem:[%s483 + $0x74] sm:$0xf]
  %v504 = vld [vmem:[%s483 + $0x78] sm:$0xff]
  %v505 = vld [vmem:[%s483 + $0x80] sm:$0xf]
  %v506 = vld [vmem:[%s483 + $0x84] sm:$0xff]
  %v507 = vld [vmem:[%s483 + $0x8c] sm:$0xf]
  %v508 = vld [vmem:[%s483 + $0x90] sm:$0x11]
  %v509 = vld [vmem:[%s483 + $0x98] sm:$0x1]
  %v536 = vunpack.c.l.b16 %v484
  %v537 = vunpack.c.h.b16 %v484
  %v538 = vunpack.c.l.b16 %v485
  %v539 = vunpack.c.l.b16 %v486
  %v540 = vunpack.c.h.b16 %v486
  %v541 = vunpack.c.l.b16 %v487
  %v542 = vunpack.c.l.b16 %v488
  %v543 = vunpack.c.h.b16 %v488
  %v544 = vunpack.c.l.b16 %v489
  %v545 = vunpack.c.l.b16 %v490
  %v546 = vunpack.c.h.b16 %v490
  %v547 = vunpack.c.l.b16 %v491
  %v548 = vunpack.c.l.b16 %v492
  %v549 = vunpack.c.h.b16 %v492
  %v550 = vunpack.c.l.b16 %v493
  %v551 = vunpack.c.l.b16 %v494
  %v552 = vunpack.c.h.b16 %v494
  %v553 = vunpack.c.l.b16 %v495
  %v554 = vunpack.c.l.b16 %v496
  %v555 = vunpack.c.h.b16 %v496
  %v556 = vunpack.c.l.b16 %v497
  %v557 = vunpack.c.l.b16 %v498
  %v558 = vunpack.c.h.b16 %v498
  %v559 = vunpack.c.l.b16 %v499
  %v560 = vunpack.c.l.b16 %v500
  %v561 = vunpack.c.h.b16 %v500
  %v562 = vunpack.c.l.b16 %v501
  %v563 = vunpack.c.l.b16 %v502
  %v564 = vunpack.c.h.b16 %v502
  %v565 = vunpack.c.l.b16 %v503
  %v566 = vunpack.c.l.b16 %v504
  %v567 = vunpack.c.h.b16 %v504
  %v568 = vunpack.c.l.b16 %v505
  %v569 = vunpack.c.l.b16 %v506
  %v570 = vunpack.c.h.b16 %v506
  %v571 = vunpack.c.l.b16 %v507
  %v572 = vunpack.c.l.b16 %v508
  %v573 = vunpack.c.h.b16 %v508
  %v574 = vunpack.c.l.b16 %v509
  %v575 = vpack.c.b16 %v539, %v536
  %v576 = vpack.c.b16 %v540, %v537
  %v577 = vpack.c.b16 %v541, %v538
  %v578 = vpack.c.b16 %v545, %v542
  %v579 = vpack.c.b16 %v546, %v543
  %v580 = vpack.c.b16 %v547, %v544
  %v581 = vpack.c.b16 %v551, %v548
  %v582 = vpack.c.b16 %v552, %v549
  %v583 = vpack.c.b16 %v553, %v550
  %v584 = vpack.c.b16 %v557, %v554
  %v585 = vpack.c.b16 %v558, %v555
  %v586 = vpack.c.b16 %v559, %v556
  %v587 = vpack.c.b16 %v563, %v560
  %v588 = vpack.c.b16 %v564, %v561
  %v589 = vpack.c.b16 %v565, %v562
  %v590 = vpack.c.b16 %v569, %v566
  %v591 = vpack.c.b16 %v570, %v567
  %v592 = vpack.c.b16 %v571, %v568
  %v593 = vpack.c.b16 %v572, %v572
  %v594 = vpack.c.b16 %v573, %v573
  %v595 = vpack.c.b16 %v574, %v574
  %v611 = vsel %vm285, %v577, 0
  %v614 = vsel %vm285, %v580, 0
  %v617 = vsel %vm285, %v583, 0
  %v620 = vsel %vm285, %v586, 0
  %v623 = vsel %vm285, %v589, 0
  %v626 = vsel %vm285, %v592, 0
  %v629 = vsel %vm285, %v595, 0
  %631 = vmatprep.subr.bf16.mxu0 0
  %632 = vmatpush1.bf16.msra.mxu0 %v249
  %633 = vmatprep.subr.bf16.mxu0 0
  %634 = vmatpush1.bf16.msra.mxu0 %v250
  %635 = vmatprep.subr.bf16.mxu0 0
  %636 = vmatpush1.bf16.msra.mxu0 %v251
  %637 = vmatprep.subr.bf16.mxu0 0
  %638 = vmatpush1.bf16.msra.mxu0 %v252
  %639 = vmatprep.subr.bf16.mxu0 0
  %640 = vmatpush1.bf16.msra.mxu0 %v253
  %641 = vmatprep.subr.bf16.mxu0 0
  %642 = vmatpush1.bf16.msra.mxu0 %v254
  %643 = vmatprep.subr.bf16.mxu0 0
  %644 = vmatpush1.bf16.msra.mxu0 %v255
  %645 = vmatprep.subr.bf16.mxu0 0
  %646 = vmatpush1.bf16.msra.mxu0 %v256
  %647 = vmatprep.subr.bf16.mxu0 0
  %648 = vmatpush1.bf16.msra.mxu0 %v257
  %649 = vmatprep.subr.bf16.mxu0 0
  %650 = vmatpush1.bf16.msra.mxu0 %v258
  %651 = vmatprep.subr.bf16.mxu0 0
  %652 = vmatpush1.bf16.msra.mxu0 %v259
  %653 = vmatprep.subr.bf16.mxu0 0
  %654 = vmatpush1.bf16.msra.mxu0 %v260
  %655 = vmatprep.subr.bf16.mxu0 0
  %656 = vmatpush1.bf16.msra.mxu0 %v261
  %657 = vmatprep.subr.bf16.mxu0 0
  %658 = vmatpush1.bf16.msra.mxu0 %v262
  %659 = vmatprep.subr.bf16.mxu0 0
  %660 = vmatpush1.bf16.msra.mxu0 %v263
  %661 = vmatprep.subr.bf16.mxu0 0
  %662 = vmatpush1.bf16.msra.mxu0 %v264
  %663 = vmatprep.mubr.bf16.mxu0 %v576
  %664 = vmatmul.mubr.bf16.gmra.mrb[0].mxu0 %v575
  %v665 = vpop.f32.mrb[0].mxu0
  %v666 = vadd.f32 0.0, %v665
  %v667 = vpop.f32.mrb[0].mxu0
  %v668 = vpop.f32.mrb[0].mxu0
  %v669 = vadd.f32 0.0, %v668
  %v670 = vpop.f32.mrb[0].mxu0
  %671 = vmatprep.mubr.bf16.mxu0 %v579
  %672 = vmatmul.mubr.bf16.gmra.mrb[0].mxu0 %v578
  %v673 = vpop.f32.mrb[0].mxu0
  %v674 = vadd.f32 0.0, %v673
  %v675 = vpop.f32.mrb[0].mxu0
  %v676 = vpop.f32.mrb[0].mxu0
  %v677 = vadd.f32 0.0, %v676
  %v678 = vpop.f32.mrb[0].mxu0
  %679 = vmatprep.mubr.bf16.mxu0 %v582
  %680 = vmatmul.mubr.bf16.gmra.mrb[0].mxu0 %v581
  %v681 = vpop.f32.mrb[0].mxu0
  %v682 = vadd.f32 0.0, %v681
  %v683 = vpop.f32.mrb[0].mxu0
  %v684 = vpop.f32.mrb[0].mxu0
  %v685 = vadd.f32 0.0, %v684
  %v686 = vpop.f32.mrb[0].mxu0
  %687 = vmatprep.mubr.bf16.mxu0 %v585
  %688 = vmatmul.mubr.bf16.gmra.mrb[0].mxu0 %v584
  %v689 = vpop.f32.mrb[0].mxu0
  %v690 = vadd.f32 0.0, %v689
  %v691 = vpop.f32.mrb[0].mxu0
  %v692 = vpop.f32.mrb[0].mxu0
  %v693 = vadd.f32 0.0, %v692
  %v694 = vpop.f32.mrb[0].mxu0
  %695 = vmatprep.mubr.bf16.mxu0 %v588
  %696 = vmatmul.mubr.bf16.gmra.mrb[0].mxu0 %v587
  %v697 = vpop.f32.mrb[0].mxu0
  %v698 = vadd.f32 0.0, %v697
  %v699 = vpop.f32.mrb[0].mxu0
  %v700 = vpop.f32.mrb[0].mxu0
  %v701 = vadd.f32 0.0, %v700
  %v702 = vpop.f32.mrb[0].mxu0
  %703 = vmatprep.mubr.bf16.mxu0 %v591
  %704 = vmatmul.mubr.bf16.gmra.mrb[0].mxu0 %v590
  %v705 = vpop.f32.mrb[0].mxu0
  %v706 = vadd.f32 0.0, %v705
  %v707 = vpop.f32.mrb[0].mxu0
  %v708 = vpop.f32.mrb[0].mxu0
  %v709 = vadd.f32 0.0, %v708
  %v710 = vpop.f32.mrb[0].mxu0
  %711 = vmatprep.mubr.bf16.mxu0 %v594
  %712 = vmatmul.mubr.bf16.gmra.mrb[0].mxu0 %v593
  %v713 = vpop.f32.mrb[0].mxu0
  %v714 = vadd.f32 0.0, %v713
  %v715 = vpop.f32.mrb[0].mxu0
  %v716 = vpop.f32.mrb[0].mxu0
  %v717 = vpop.f32.mrb[0].mxu0
  %718 = vdwg.mxu0
  %719 = vmatprep.subr.bf16.mxu0 0
  %720 = vmatpush1.bf16.msra.mxu0 %v265
  %721 = vmatprep.subr.bf16.mxu0 0
  %722 = vmatpush1.bf16.msra.mxu0 %v266
  %723 = vmatprep.subr.bf16.mxu0 0
  %724 = vmatpush1.bf16.msra.mxu0 0
  %725 = vmatprep.subr.bf16.mxu0 0
  %726 = vmatpush1.bf16.msra.mxu0 0
  %727 = vmatprep.subr.bf16.mxu0 0
  %728 = vmatpush1.bf16.msra.mxu0 0
  %729 = vmatprep.subr.bf16.mxu0 0
  %730 = vmatpush1.bf16.msra.mxu0 0
  %731 = vmatprep.subr.bf16.mxu0 0
  %732 = vmatpush1.bf16.msra.mxu0 0
  %733 = vmatprep.subr.bf16.mxu0 0
  %734 = vmatpush1.bf16.msra.mxu0 0
  %735 = vmatprep.subr.bf16.mxu0 0
  %736 = vmatpush1.bf16.msra.mxu0 0
  %737 = vmatprep.subr.bf16.mxu0 0
  %738 = vmatpush1.bf16.msra.mxu0 0
  %739 = vmatprep.subr.bf16.mxu0 0
  %740 = vmatpush1.bf16.msra.mxu0 0
  %741 = vmatprep.subr.bf16.mxu0 0
  %742 = vmatpush1.bf16.msra.mxu0 0
  %743 = vmatprep.subr.bf16.mxu0 0
  %744 = vmatpush1.bf16.msra.mxu0 0
  %745 = vmatprep.subr.bf16.mxu0 0
  %746 = vmatpush1.bf16.msra.mxu0 0
  %747 = vmatprep.subr.bf16.mxu0 0
  %748 = vmatpush1.bf16.msra.mxu0 0
  %749 = vmatprep.subr.bf16.mxu0 0
  %750 = vmatpush1.bf16.msra.mxu0 0
  %751 = vmatprep.mubr.bf16.mxu0 0
  %752 = vmatmul.mubr.bf16.gmra.mrb[0].mxu0 %v611
  %v753 = vpop.f32.mrb[0].mxu0
  %v754 = vadd.f32 %v666, %v753
  %v755 = vpop.f32.mrb[0].mxu0
  %v756 = vpop.f32.mrb[0].mxu0
  %v757 = vadd.f32 %v669, %v756
  %v758 = vpop.f32.mrb[0].mxu0
  %759 = vmatprep.mubr.bf16.mxu0 0
  %760 = vmatmul.mubr.bf16.gmra.mrb[0].mxu0 %v614
  %v761 = vpop.f32.mrb[0].mxu0
  %v762 = vadd.f32 %v674, %v761
  %v763 = vpop.f32.mrb[0].mxu0
  %v764 = vpop.f32.mrb[0].mxu0
  %v765 = vadd.f32 %v677, %v764
  %v766 = vpop.f32.mrb[0].mxu0
  %767 = vmatprep.mubr.bf16.mxu0 0
  %768 = vmatmul.mubr.bf16.gmra.mrb[0].mxu0 %v617
  %v769 = vpop.f32.mrb[0].mxu0
  %v770 = vadd.f32 %v682, %v769
  %v771 = vpop.f32.mrb[0].mxu0
  %v772 = vpop.f32.mrb[0].mxu0
  %v773 = vadd.f32 %v685, %v772
  %v774 = vpop.f32.mrb[0].mxu0
  %775 = vmatprep.mubr.bf16.mxu0 0
  %776 = vmatmul.mubr.bf16.gmra.mrb[0].mxu0 %v620
  %v777 = vpop.f32.mrb[0].mxu0
  %v778 = vadd.f32 %v690, %v777
  %v779 = vpop.f32.mrb[0].mxu0
  %v780 = vpop.f32.mrb[0].mxu0
  %v781 = vadd.f32 %v693, %v780
  %v782 = vpop.f32.mrb[0].mxu0
  %783 = vmatprep.mubr.bf16.mxu0 0
  %784 = vmatmul.mubr.bf16.gmra.mrb[0].mxu0 %v623
  %v785 = vpop.f32.mrb[0].mxu0
  %v786 = vadd.f32 %v698, %v785
  %v787 = vpop.f32.mrb[0].mxu0
  %v788 = vpop.f32.mrb[0].mxu0
  %v789 = vadd.f32 %v701, %v788
  %v790 = vpop.f32.mrb[0].mxu0
  %791 = vmatprep.mubr.bf16.mxu0 0
  %792 = vmatmul.mubr.bf16.gmra.mrb[0].mxu0 %v626
  %v793 = vpop.f32.mrb[0].mxu0
  %v794 = vadd.f32 %v706, %v793
  %v795 = vpop.f32.mrb[0].mxu0
  %v796 = vpop.f32.mrb[0].mxu0
  %v797 = vadd.f32 %v709, %v796
  %v798 = vpop.f32.mrb[0].mxu0
  %799 = vmatprep.mubr.bf16.mxu0 0
  %800 = vmatmul.mubr.bf16.gmra.mrb[0].mxu0 %v629
  %v801 = vpop.f32.mrb[0].mxu0
  %v802 = vadd.f32 %v714, %v801
  %v803 = vpop.f32.mrb[0].mxu0
  %v804 = vpop.f32.mrb[0].mxu0
  %v805 = vpop.f32.mrb[0].mxu0
  %806 = vdwg.mxu0
  %v807 = vmax.f32 %v430, %v754
  %v808 = vmax.f32 %v433, %v757
  %v809 = vmax.f32 %v438, %v762
  %v810 = vmax.f32 %v441, %v765
  %v811 = vmax.f32 %v446, %v770
  %v812 = vmax.f32 %v449, %v773
  %v813 = vmax.f32 %v454, %v778
  %v814 = vmax.f32 %v457, %v781
  %v815 = vmax.f32 %v462, %v786
  %v816 = vmax.f32 %v465, %v789
  %v817 = vmax.f32 %v470, %v794
  %v818 = vmax.f32 %v473, %v797
  %v819 = vmax.f32 %v478, %v802
  %s820 = scalar_lea.vmem %s0, 312
  %v821 = vld [vmem:[%s820] sm:$0xff]
  %v822 = vld [vmem:[%s820 + $0x8] sm:$0xf]
  %v823 = vld [vmem:[%s820 + $0xc] sm:$0xff]
  %v824 = vld [vmem:[%s820 + $0x14] sm:$0xf]
  %v825 = vld [vmem:[%s820 + $0x18] sm:$0xff]
  %v826 = vld [vmem:[%s820 + $0x20] sm:$0xf]
  %v827 = vld [vmem:[%s820 + $0x24] sm:$0xff]
  %v828 = vld [vmem:[%s820 + $0x2c] sm:$0xf]
  %v829 = vld [vmem:[%s820 + $0x30] sm:$0xff]
  %v830 = vld [vmem:[%s820 + $0x38] sm:$0xf]
  %v831 = vld [vmem:[%s820 + $0x3c] sm:$0xff]
  %v832 = vld [vmem:[%s820 + $0x44] sm:$0xf]
  %v833 = vld [vmem:[%s820 + $0x48] sm:$0xff]
  %v834 = vld [vmem:[%s820 + $0x50] sm:$0xf]
  %v835 = vld [vmem:[%s820 + $0x54] sm:$0xff]
  %v836 = vld [vmem:[%s820 + $0x5c] sm:$0xf]
  %v837 = vld [vmem:[%s820 + $0x60] sm:$0xff]
  %v838 = vld [vmem:[%s820 + $0x68] sm:$0xf]
  %v839 = vld [vmem:[%s820 + $0x6c] sm:$0xff]
  %v840 = vld [vmem:[%s820 + $0x74] sm:$0xf]
  %v841 = vld [vmem:[%s820 + $0x78] sm:$0xff]
  %v842 = vld [vmem:[%s820 + $0x80] sm:$0xf]
  %v843 = vld [vmem:[%s820 + $0x84] sm:$0xff]
  %v844 = vld [vmem:[%s820 + $0x8c] sm:$0xf]
  %v845 = vld [vmem:[%s820 + $0x90] sm:$0x11]
  %v846 = vld [vmem:[%s820 + $0x98] sm:$0x1]
  %v873 = vunpack.c.l.b16 %v821
  %v874 = vunpack.c.h.b16 %v821
  %v875 = vunpack.c.l.b16 %v822
  %v876 = vunpack.c.l.b16 %v823
  %v877 = vunpack.c.h.b16 %v823
  %v878 = vunpack.c.l.b16 %v824
  %v879 = vunpack.c.l.b16 %v825
  %v880 = vunpack.c.h.b16 %v825
  %v881 = vunpack.c.l.b16 %v826
  %v882 = vunpack.c.l.b16 %v827
  %v883 = vunpack.c.h.b16 %v827
  %v884 = vunpack.c.l.b16 %v828
  %v885 = vunpack.c.l.b16 %v829
  %v886 = vunpack.c.h.b16 %v829
  %v887 = vunpack.c.l.b16 %v830
  %v888 = vunpack.c.l.b16 %v831
  %v889 = vunpack.c.h.b16 %v831
  %v890 = vunpack.c.l.b16 %v832
  %v891 = vunpack.c.l.b16 %v833
  %v892 = vunpack.c.h.b16 %v833
  %v893 = vunpack.c.l.b16 %v834
  %v894 = vunpack.c.l.b16 %v835
  %v895 = vunpack.c.h.b16 %v835
  %v896 = vunpack.c.l.b16 %v836
  %v897 = vunpack.c.l.b16 %v837
  %v898 = vunpack.c.h.b16 %v837
  %v899 = vunpack.c.l.b16 %v838
  %v900 = vunpack.c.l.b16 %v839
  %v901 = vunpack.c.h.b16 %v839
  %v902 = vunpack.c.l.b16 %v840
  %v903 = vunpack.c.l.b16 %v841
  %v904 = vunpack.c.h.b16 %v841
  %v905 = vunpack.c.l.b16 %v842
  %v906 = vunpack.c.l.b16 %v843
  %v907 = vunpack.c.h.b16 %v843
  %v908 = vunpack.c.l.b16 %v844
  %v909 = vunpack.c.l.b16 %v845
  %v910 = vunpack.c.h.b16 %v845
  %v911 = vunpack.c.l.b16 %v846
  %v912 = vpack.c.b16 %v876, %v873
  %v913 = vpack.c.b16 %v877, %v874
  %v914 = vpack.c.b16 %v878, %v875
  %v915 = vpack.c.b16 %v882, %v879
  %v916 = vpack.c.b16 %v883, %v880
  %v917 = vpack.c.b16 %v884, %v881
  %v918 = vpack.c.b16 %v888, %v885
  %v919 = vpack.c.b16 %v889, %v886
  %v920 = vpack.c.b16 %v890, %v887
  %v921 = vpack.c.b16 %v894, %v891
  %v922 = vpack.c.b16 %v895, %v892
  %v923 = vpack.c.b16 %v896, %v893
  %v924 = vpack.c.b16 %v900, %v897
  %v925 = vpack.c.b16 %v901, %v898
  %v926 = vpack.c.b16 %v902, %v899
  %v927 = vpack.c.b16 %v906, %v903
  %v928 = vpack.c.b16 %v907, %v904
  %v929 = vpack.c.b16 %v908, %v905
  %v930 = vpack.c.b16 %v909, %v909
  %v931 = vpack.c.b16 %v910, %v910
  %v932 = vpack.c.b16 %v911, %v911
  %v948 = vsel %vm285, %v914, 0
  %v951 = vsel %vm285, %v917, 0
  %v954 = vsel %vm285, %v920, 0
  %v957 = vsel %vm285, %v923, 0
  %v960 = vsel %vm285, %v926, 0
  %v963 = vsel %vm285, %v929, 0
  %v966 = vsel %vm285, %v932, 0
  %968 = vmatprep.subr.bf16.mxu0 0
  %969 = vmatpush1.bf16.msra.mxu0 %v249
  %970 = vmatprep.subr.bf16.mxu0 0
  %971 = vmatpush1.bf16.msra.mxu0 %v250
  %972 = vmatprep.subr.bf16.mxu0 0
  %973 = vmatpush1.bf16.msra.mxu0 %v251
  %974 = vmatprep.subr.bf16.mxu0 0
  %975 = vmatpush1.bf16.msra.mxu0 %v252
  %976 = vmatprep.subr.bf16.mxu0 0
  %977 = vmatpush1.bf16.msra.mxu0 %v253
  %978 = vmatprep.subr.bf16.mxu0 0
  %979 = vmatpush1.bf16.msra.mxu0 %v254
  %980 = vmatprep.subr.bf16.mxu0 0
  %981 = vmatpush1.bf16.msra.mxu0 %v255
  %982 = vmatprep.subr.bf16.mxu0 0
  %983 = vmatpush1.bf16.msra.mxu0 %v256
  %984 = vmatprep.subr.bf16.mxu0 0
  %985 = vmatpush1.bf16.msra.mxu0 %v257
  %986 = vmatprep.subr.bf16.mxu0 0
  %987 = vmatpush1.bf16.msra.mxu0 %v258
  %988 = vmatprep.subr.bf16.mxu0 0
  %989 = vmatpush1.bf16.msra.mxu0 %v259
  %990 = vmatprep.subr.bf16.mxu0 0
  %991 = vmatpush1.bf16.msra.mxu0 %v260
  %992 = vmatprep.subr.bf16.mxu0 0
  %993 = vmatpush1.bf16.msra.mxu0 %v261
  %994 = vmatprep.subr.bf16.mxu0 0
  %995 = vmatpush1.bf16.msra.mxu0 %v262
  %996 = vmatprep.subr.bf16.mxu0 0
  %997 = vmatpush1.bf16.msra.mxu0 %v263
  %998 = vmatprep.subr.bf16.mxu0 0
  %999 = vmatpush1.bf16.msra.mxu0 %v264
  %1000 = vmatprep.mubr.bf16.mxu0 %v913
  %1001 = vmatmul.mubr.bf16.gmra.mrb[0].mxu0 %v912
  %v1002 = vpop.f32.mrb[0].mxu0
  %v1003 = vadd.f32 0.0, %v1002
  %v1004 = vpop.f32.mrb[0].mxu0
  %v1005 = vpop.f32.mrb[0].mxu0
  %v1006 = vadd.f32 0.0, %v1005
  %v1007 = vpop.f32.mrb[0].mxu0
  %1008 = vmatprep.mubr.bf16.mxu0 %v916
  %1009 = vmatmul.mubr.bf16.gmra.mrb[0].mxu0 %v915
  %v1010 = vpop.f32.mrb[0].mxu0
  %v1011 = vadd.f32 0.0, %v1010
  %v1012 = vpop.f32.mrb[0].mxu0
  %v1013 = vpop.f32.mrb[0].mxu0
  %v1014 = vadd.f32 0.0, %v1013
  %v1015 = vpop.f32.mrb[0].mxu0
  %1016 = vmatprep.mubr.bf16.mxu0 %v919
  %1017 = vmatmul.mubr.bf16.gmra.mrb[0].mxu0 %v918
  %v1018 = vpop.f32.mrb[0].mxu0
  %v1019 = vadd.f32 0.0, %v1018
  %v1020 = vpop.f32.mrb[0].mxu0
  %v1021 = vpop.f32.mrb[0].mxu0
  %v1022 = vadd.f32 0.0, %v1021
  %v1023 = vpop.f32.mrb[0].mxu0
  %1024 = vmatprep.mubr.bf16.mxu0 %v922
  %1025 = vmatmul.mubr.bf16.gmra.mrb[0].mxu0 %v921
  %v1026 = vpop.f32.mrb[0].mxu0
  %v1027 = vadd.f32 0.0, %v1026
  %v1028 = vpop.f32.mrb[0].mxu0
  %v1029 = vpop.f32.mrb[0].mxu0
  %v1030 = vadd.f32 0.0, %v1029
  %v1031 = vpop.f32.mrb[0].mxu0
  %1032 = vmatprep.mubr.bf16.mxu0 %v925
  %1033 = vmatmul.mubr.bf16.gmra.mrb[0].mxu0 %v924
  %v1034 = vpop.f32.mrb[0].mxu0
  %v1035 = vadd.f32 0.0, %v1034
  %v1036 = vpop.f32.mrb[0].mxu0
  %v1037 = vpop.f32.mrb[0].mxu0
  %v1038 = vadd.f32 0.0, %v1037
  %v1039 = vpop.f32.mrb[0].mxu0
  %1040 = vmatprep.mubr.bf16.mxu0 %v928
  %1041 = vmatmul.mubr.bf16.gmra.mrb[0].mxu0 %v927
  %v1042 = vpop.f32.mrb[0].mxu0
  %v1043 = vadd.f32 0.0, %v1042
  %v1044 = vpop.f32.mrb[0].mxu0
  %v1045 = vpop.f32.mrb[0].mxu0
  %v1046 = vadd.f32 0.0, %v1045
  %v1047 = vpop.f32.mrb[0].mxu0
  %1048 = vmatprep.mubr.bf16.mxu0 %v931
  %1049 = vmatmul.mubr.bf16.gmra.mrb[0].mxu0 %v930
  %v1050 = vpop.f32.mrb[0].mxu0
  %v1051 = vadd.f32 0.0, %v1050
  %v1052 = vpop.f32.mrb[0].mxu0
  %v1053 = vpop.f32.mrb[0].mxu0
  %v1054 = vpop.f32.mrb[0].mxu0
  %1055 = vdwg.mxu0
  %1056 = vmatprep.subr.bf16.mxu0 0
  %1057 = vmatpush1.bf16.msra.mxu0 %v265
  %1058 = vmatprep.subr.bf16.mxu0 0
  %1059 = vmatpush1.bf16.msra.mxu0 %v266
  %1060 = vmatprep.subr.bf16.mxu0 0
  %1061 = vmatpush1.bf16.msra.mxu0 0
  %1062 = vmatprep.subr.bf16.mxu0 0
  %1063 = vmatpush1.bf16.msra.mxu0 0
  %1064 = vmatprep.subr.bf16.mxu0 0
  %1065 = vmatpush1.bf16.msra.mxu0 0
  %1066 = vmatprep.subr.bf16.mxu0 0
  %1067 = vmatpush1.bf16.msra.mxu0 0
  %1068 = vmatprep.subr.bf16.mxu0 0
  %1069 = vmatpush1.bf16.msra.mxu0 0
  %1070 = vmatprep.subr.bf16.mxu0 0
  %1071 = vmatpush1.bf16.msra.mxu0 0
  %1072 = vmatprep.subr.bf16.mxu0 0
  %1073 = vmatpush1.bf16.msra.mxu0 0
  %1074 = vmatprep.subr.bf16.mxu0 0
  %1075 = vmatpush1.bf16.msra.mxu0 0
  %1076 = vmatprep.subr.bf16.mxu0 0
  %1077 = vmatpush1.bf16.msra.mxu0 0
  %1078 = vmatprep.subr.bf16.mxu0 0
  %1079 = vmatpush1.bf16.msra.mxu0 0
  %1080 = vmatprep.subr.bf16.mxu0 0
  %1081 = vmatpush1.bf16.msra.mxu0 0
  %1082 = vmatprep.subr.bf16.mxu0 0
  %1083 = vmatpush1.bf16.msra.mxu0 0
  %1084 = vmatprep.subr.bf16.mxu0 0
  %1085 = vmatpush1.bf16.msra.mxu0 0
  %1086 = vmatprep.subr.bf16.mxu0 0
  %1087 = vmatpush1.bf16.msra.mxu0 0
  %1088 = vmatprep.mubr.bf16.mxu0 0
  %1089 = vmatmul.mubr.bf16.gmra.mrb[0].mxu0 %v948
  %v1090 = vpop.f32.mrb[0].mxu0
  %v1091 = vadd.f32 %v1003, %v1090
  %v1092 = vpop.f32.mrb[0].mxu0
  %v1093 = vpop.f32.mrb[0].mxu0
  %v1094 = vadd.f32 %v1006, %v1093
  %v1095 = vpop.f32.mrb[0].mxu0
  %1096 = vmatprep.mubr.bf16.mxu0 0
  %1097 = vmatmul.mubr.bf16.gmra.mrb[0].mxu0 %v951
  %v1098 = vpop.f32.mrb[0].mxu0
  %v1099 = vadd.f32 %v1011, %v1098
  %v1100 = vpop.f32.mrb[0].mxu0
  %v1101 = vpop.f32.mrb[0].mxu0
  %v1102 = vadd.f32 %v1014, %v1101
  %v1103 = vpop.f32.mrb[0].mxu0
  %1104 = vmatprep.mubr.bf16.mxu0 0
  %1105 = vmatmul.mubr.bf16.gmra.mrb[0].mxu0 %v954
  %v1106 = vpop.f32.mrb[0].mxu0
  %v1107 = vadd.f32 %v1019, %v1106
  %v1108 = vpop.f32.mrb[0].mxu0
  %v1109 = vpop.f32.mrb[0].mxu0
  %v1110 = vadd.f32 %v1022, %v1109
  %v1111 = vpop.f32.mrb[0].mxu0
  %1112 = vmatprep.mubr.bf16.mxu0 0
  %1113 = vmatmul.mubr.bf16.gmra.mrb[0].mxu0 %v957
  %v1114 = vpop.f32.mrb[0].mxu0
  %v1115 = vadd.f32 %v1027, %v1114
  %v1116 = vpop.f32.mrb[0].mxu0
  %v1117 = vpop.f32.mrb[0].mxu0
  %v1118 = vadd.f32 %v1030, %v1117
  %v1119 = vpop.f32.mrb[0].mxu0
  %1120 = vmatprep.mubr.bf16.mxu0 0
  %1121 = vmatmul.mubr.bf16.gmra.mrb[0].mxu0 %v960
  %v1122 = vpop.f32.mrb[0].mxu0
  %v1123 = vadd.f32 %v1035, %v1122
  %v1124 = vpop.f32.mrb[0].mxu0
  %v1125 = vpop.f32.mrb[0].mxu0
  %v1126 = vadd.f32 %v1038, %v1125
  %v1127 = vpop.f32.mrb[0].mxu0
  %1128 = vmatprep.mubr.bf16.mxu0 0
  %1129 = vmatmul.mubr.bf16.gmra.mrb[0].mxu0 %v963
  %v1130 = vpop.f32.mrb[0].mxu0
  %v1131 = vadd.f32 %v1043, %v1130
  %v1132 = vpop.f32.mrb[0].mxu0
  %v1133 = vpop.f32.mrb[0].mxu0
  %v1134 = vadd.f32 %v1046, %v1133
  %v1135 = vpop.f32.mrb[0].mxu0
  %1136 = vmatprep.mubr.bf16.mxu0 0
  %1137 = vmatmul.mubr.bf16.gmra.mrb[0].mxu0 %v966
  %v1138 = vpop.f32.mrb[0].mxu0
  %v1139 = vadd.f32 %v1051, %v1138
  %v1140 = vpop.f32.mrb[0].mxu0
  %v1141 = vpop.f32.mrb[0].mxu0
  %v1142 = vpop.f32.mrb[0].mxu0
  %1143 = vdwg.mxu0
  %v1144 = vmax.f32 %v807, %v1091
  %v1145 = vmax.f32 %v808, %v1094
  %v1146 = vmax.f32 %v809, %v1099
  %v1147 = vmax.f32 %v810, %v1102
  %v1148 = vmax.f32 %v811, %v1107
  %v1149 = vmax.f32 %v812, %v1110
  %v1150 = vmax.f32 %v813, %v1115
  %v1151 = vmax.f32 %v814, %v1118
  %v1152 = vmax.f32 %v815, %v1123
  %v1153 = vmax.f32 %v816, %v1126
  %v1154 = vmax.f32 %v817, %v1131
  %v1155 = vmax.f32 %v818, %v1134
  %v1156 = vmax.f32 %v819, %v1139
  %s1157 = scalar_lea.vmem %s0, 468
  %v1158 = vld [vmem:[%s1157] sm:$0xff]
  %v1159 = vld [vmem:[%s1157 + $0x8] sm:$0xf]
  %v1160 = vld [vmem:[%s1157 + $0xc] sm:$0xff]
  %v1161 = vld [vmem:[%s1157 + $0x14] sm:$0xf]
  %v1162 = vld [vmem:[%s1157 + $0x18] sm:$0xff]
  %v1163 = vld [vmem:[%s1157 + $0x20] sm:$0xf]
  %v1164 = vld [vmem:[%s1157 + $0x24] sm:$0xff]
  %v1165 = vld [vmem:[%s1157 + $0x2c] sm:$0xf]
  %v1166 = vld [vmem:[%s1157 + $0x30] sm:$0xff]
  %v1167 = vld [vmem:[%s1157 + $0x38] sm:$0xf]
  %v1168 = vld [vmem:[%s1157 + $0x3c] sm:$0xff]
  %v1169 = vld [vmem:[%s1157 + $0x44] sm:$0xf]
  %v1170 = vld [vmem:[%s1157 + $0x48] sm:$0xff]
  %v1171 = vld [vmem:[%s1157 + $0x50] sm:$0xf]
  %v1172 = vld [vmem:[%s1157 + $0x54] sm:$0xff]
  %v1173 = vld [vmem:[%s1157 + $0x5c] sm:$0xf]
  %v1174 = vld [vmem:[%s1157 + $0x60] sm:$0xff]
  %v1175 = vld [vmem:[%s1157 + $0x68] sm:$0xf]
  %v1176 = vld [vmem:[%s1157 + $0x6c] sm:$0xff]
  %v1177 = vld [vmem:[%s1157 + $0x74] sm:$0xf]
  %v1178 = vld [vmem:[%s1157 + $0x78] sm:$0xff]
  %v1179 = vld [vmem:[%s1157 + $0x80] sm:$0xf]
  %v1180 = vld [vmem:[%s1157 + $0x84] sm:$0xff]
  %v1181 = vld [vmem:[%s1157 + $0x8c] sm:$0xf]
  %v1182 = vld [vmem:[%s1157 + $0x90] sm:$0x11]
  %v1183 = vld [vmem:[%s1157 + $0x98] sm:$0x1]
  %v1210 = vunpack.c.l.b16 %v1158
  %v1211 = vunpack.c.h.b16 %v1158
  %v1212 = vunpack.c.l.b16 %v1159
  %v1213 = vunpack.c.l.b16 %v1160
  %v1214 = vunpack.c.h.b16 %v1160
  %v1215 = vunpack.c.l.b16 %v1161
  %v1216 = vunpack.c.l.b16 %v1162
  %v1217 = vunpack.c.h.b16 %v1162
  %v1218 = vunpack.c.l.b16 %v1163
  %v1219 = vunpack.c.l.b16 %v1164
  %v1220 = vunpack.c.h.b16 %v1164
  %v1221 = vunpack.c.l.b16 %v1165
  %v1222 = vunpack.c.l.b16 %v1166
  %v1223 = vunpack.c.h.b16 %v1166
  %v1224 = vunpack.c.l.b16 %v1167
  %v1225 = vunpack.c.l.b16 %v1168
  %v1226 = vunpack.c.h.b16 %v1168
  %v1227 = vunpack.c.l.b16 %v1169
  %v1228 = vunpack.c.l.b16 %v1170
  %v1229 = vunpack.c.h.b16 %v1170
  %v1230 = vunpack.c.l.b16 %v1171
  %v1231 = vunpack.c.l.b16 %v1172
  %v1232 = vunpack.c.h.b16 %v1172
  %v1233 = vunpack.c.l.b16 %v1173
  %v1234 = vunpack.c.l.b16 %v1174
  %v1235 = vunpack.c.h.b16 %v1174
  %v1236 = vunpack.c.l.b16 %v1175
  %v1237 = vunpack.c.l.b16 %v1176
  %v1238 = vunpack.c.h.b16 %v1176
  %v1239 = vunpack.c.l.b16 %v1177
  %v1240 = vunpack.c.l.b16 %v1178
  %v1241 = vunpack.c.h.b16 %v1178
  %v1242 = vunpack.c.l.b16 %v1179
  %v1243 = vunpack.c.l.b16 %v1180
  %v1244 = vunpack.c.h.b16 %v1180
  %v1245 = vunpack.c.l.b16 %v1181
  %v1246 = vunpack.c.l.b16 %v1182
  %v1247 = vunpack.c.h.b16 %v1182
  %v1248 = vunpack.c.l.b16 %v1183
  %v1249 = vpack.c.b16 %v1213, %v1210
  %v1250 = vpack.c.b16 %v1214, %v1211
  %v1251 = vpack.c.b16 %v1215, %v1212
  %v1252 = vpack.c.b16 %v1219, %v1216
  %v1253 = vpack.c.b16 %v1220, %v1217
  %v1254 = vpack.c.b16 %v1221, %v1218
  %v1255 = vpack.c.b16 %v1225, %v1222
  %v1256 = vpack.c.b16 %v1226, %v1223
  %v1257 = vpack.c.b16 %v1227, %v1224
  %v1258 = vpack.c.b16 %v1231, %v1228
  %v1259 = vpack.c.b16 %v1232, %v1229
  %v1260 = vpack.c.b16 %v1233, %v1230
  %v1261 = vpack.c.b16 %v1237, %v1234
  %v1262 = vpack.c.b16 %v1238, %v1235
  %v1263 = vpack.c.b16 %v1239, %v1236
  %v1264 = vpack.c.b16 %v1243, %v1240
  %v1265 = vpack.c.b16 %v1244, %v1241
  %v1266 = vpack.c.b16 %v1245, %v1242
  %v1267 = vpack.c.b16 %v1246, %v1246
  %v1268 = vpack.c.b16 %v1247, %v1247
  %v1269 = vpack.c.b16 %v1248, %v1248
  %v1285 = vsel %vm285, %v1251, 0
  %v1288 = vsel %vm285, %v1254, 0
  %v1291 = vsel %vm285, %v1257, 0
  %v1294 = vsel %vm285, %v1260, 0
  %v1297 = vsel %vm285, %v1263, 0
  %v1300 = vsel %vm285, %v1266, 0
  %v1303 = vsel %vm285, %v1269, 0
  %1305 = vmatprep.subr.bf16.mxu0 0
  %1306 = vmatpush1.bf16.msra.mxu0 %v249
  %1307 = vmatprep.subr.bf16.mxu0 0
  %1308 = vmatpush1.bf16.msra.mxu0 %v250
  %1309 = vmatprep.subr.bf16.mxu0 0
  %1310 = vmatpush1.bf16.msra.mxu0 %v251
  %1311 = vmatprep.subr.bf16.mxu0 0
  %1312 = vmatpush1.bf16.msra.mxu0 %v252
  %1313 = vmatprep.subr.bf16.mxu0 0
  %1314 = vmatpush1.bf16.msra.mxu0 %v253
  %1315 = vmatprep.subr.bf16.mxu0 0
  %1316 = vmatpush1.bf16.msra.mxu0 %v254
  %1317 = vmatprep.subr.bf16.mxu0 0
  %1318 = vmatpush1.bf16.msra.mxu0 %v255
  %1319 = vmatprep.subr.bf16.mxu0 0
  %1320 = vmatpush1.bf16.msra.mxu0 %v256
  %1321 = vmatprep.subr.bf16.mxu0 0
  %1322 = vmatpush1.bf16.msra.mxu0 %v257
  %1323 = vmatprep.subr.bf16.mxu0 0
  %1324 = vmatpush1.bf16.msra.mxu0 %v258
  %1325 = vmatprep.subr.bf16.mxu0 0
  %1326 = vmatpush1.bf16.msra.mxu0 %v259
  %1327 = vmatprep.subr.bf16.mxu0 0
  %1328 = vmatpush1.bf16.msra.mxu0 %v260
  %1329 = vmatprep.subr.bf16.mxu0 0
  %1330 = vmatpush1.bf16.msra.mxu0 %v261
  %1331 = vmatprep.subr.bf16.mxu0 0
  %1332 = vmatpush1.bf16.msra.mxu0 %v262
  %1333 = vmatprep.subr.bf16.mxu0 0
  %1334 = vmatpush1.bf16.msra.mxu0 %v263
  %1335 = vmatprep.subr.bf16.mxu0 0
  %1336 = vmatpush1.bf16.msra.mxu0 %v264
  %1337 = vmatprep.mubr.bf16.mxu0 %v1250
  %1338 = vmatmul.mubr.bf16.gmra.mrb[0].mxu0 %v1249
  %v1339 = vpop.f32.mrb[0].mxu0
  %v1340 = vadd.f32 0.0, %v1339
  %v1341 = vpop.f32.mrb[0].mxu0
  %v1342 = vpop.f32.mrb[0].mxu0
  %v1343 = vadd.f32 0.0, %v1342
  %v1344 = vpop.f32.mrb[0].mxu0
  %1345 = vmatprep.mubr.bf16.mxu0 %v1253
  %1346 = vmatmul.mubr.bf16.gmra.mrb[0].mxu0 %v1252
  %v1347 = vpop.f32.mrb[0].mxu0
  %v1348 = vadd.f32 0.0, %v1347
  %v1349 = vpop.f32.mrb[0].mxu0
  %v1350 = vpop.f32.mrb[0].mxu0
  %v1351 = vadd.f32 0.0, %v1350
  %v1352 = vpop.f32.mrb[0].mxu0
  %1353 = vmatprep.mubr.bf16.mxu0 %v1256
  %1354 = vmatmul.mubr.bf16.gmra.mrb[0].mxu0 %v1255
  %v1355 = vpop.f32.mrb[0].mxu0
  %v1356 = vadd.f32 0.0, %v1355
  %v1357 = vpop.f32.mrb[0].mxu0
  %v1358 = vpop.f32.mrb[0].mxu0
  %v1359 = vadd.f32 0.0, %v1358
  %v1360 = vpop.f32.mrb[0].mxu0
  %1361 = vmatprep.mubr.bf16.mxu0 %v1259
  %1362 = vmatmul.mubr.bf16.gmra.mrb[0].mxu0 %v1258
  %v1363 = vpop.f32.mrb[0].mxu0
  %v1364 = vadd.f32 0.0, %v1363
  %v1365 = vpop.f32.mrb[0].mxu0
  %v1366 = vpop.f32.mrb[0].mxu0
  %v1367 = vadd.f32 0.0, %v1366
  %v1368 = vpop.f32.mrb[0].mxu0
  %1369 = vmatprep.mubr.bf16.mxu0 %v1262
  %1370 = vmatmul.mubr.bf16.gmra.mrb[0].mxu0 %v1261
  %v1371 = vpop.f32.mrb[0].mxu0
  %v1372 = vadd.f32 0.0, %v1371
  %v1373 = vpop.f32.mrb[0].mxu0
  %v1374 = vpop.f32.mrb[0].mxu0
  %v1375 = vadd.f32 0.0, %v1374
  %v1376 = vpop.f32.mrb[0].mxu0
  %1377 = vmatprep.mubr.bf16.mxu0 %v1265
  %1378 = vmatmul.mubr.bf16.gmra.mrb[0].mxu0 %v1264
  %v1379 = vpop.f32.mrb[0].mxu0
  %v1380 = vadd.f32 0.0, %v1379
  %v1381 = vpop.f32.mrb[0].mxu0
  %v1382 = vpop.f32.mrb[0].mxu0
  %v1383 = vadd.f32 0.0, %v1382
  %v1384 = vpop.f32.mrb[0].mxu0
  %1385 = vmatprep.mubr.bf16.mxu0 %v1268
  %1386 = vmatmul.mubr.bf16.gmra.mrb[0].mxu0 %v1267
  %v1387 = vpop.f32.mrb[0].mxu0
  %v1388 = vadd.f32 0.0, %v1387
  %v1389 = vpop.f32.mrb[0].mxu0
  %v1390 = vpop.f32.mrb[0].mxu0
  %v1391 = vpop.f32.mrb[0].mxu0
  %1392 = vdwg.mxu0
  %1393 = vmatprep.subr.bf16.mxu0 0
  %1394 = vmatpush1.bf16.msra.mxu0 %v265
  %1395 = vmatprep.subr.bf16.mxu0 0
  %1396 = vmatpush1.bf16.msra.mxu0 %v266
  %1397 = vmatprep.subr.bf16.mxu0 0
  %1398 = vmatpush1.bf16.msra.mxu0 0
  %1399 = vmatprep.subr.bf16.mxu0 0
  %1400 = vmatpush1.bf16.msra.mxu0 0
  %1401 = vmatprep.subr.bf16.mxu0 0
  %1402 = vmatpush1.bf16.msra.mxu0 0
  %1403 = vmatprep.subr.bf16.mxu0 0
  %1404 = vmatpush1.bf16.msra.mxu0 0
  %1405 = vmatprep.subr.bf16.mxu0 0
  %1406 = vmatpush1.bf16.msra.mxu0 0
  %1407 = vmatprep.subr.bf16.mxu0 0
  %1408 = vmatpush1.bf16.msra.mxu0 0
  %1409 = vmatprep.subr.bf16.mxu0 0
  %1410 = vmatpush1.bf16.msra.mxu0 0
  %1411 = vmatprep.subr.bf16.mxu0 0
  %1412 = vmatpush1.bf16.msra.mxu0 0
  %1413 = vmatprep.subr.bf16.mxu0 0
  %1414 = vmatpush1.bf16.msra.mxu0 0
  %1415 = vmatprep.subr.bf16.mxu0 0
  %1416 = vmatpush1.bf16.msra.mxu0 0
  %1417 = vmatprep.subr.bf16.mxu0 0
  %1418 = vmatpush1.bf16.msra.mxu0 0
  %1419 = vmatprep.subr.bf16.mxu0 0
  %1420 = vmatpush1.bf16.msra.mxu0 0
  %1421 = vmatprep.subr.bf16.mxu0 0
  %1422 = vmatpush1.bf16.msra.mxu0 0
  %1423 = vmatprep.subr.bf16.mxu0 0
  %1424 = vmatpush1.bf16.msra.mxu0 0
  %1425 = vmatprep.mubr.bf16.mxu0 0
  %1426 = vmatmul.mubr.bf16.gmra.mrb[0].mxu0 %v1285
  %v1427 = vpop.f32.mrb[0].mxu0
  %v1428 = vadd.f32 %v1340, %v1427
  %v1429 = vpop.f32.mrb[0].mxu0
  %v1430 = vpop.f32.mrb[0].mxu0
  %v1431 = vadd.f32 %v1343, %v1430
  %v1432 = vpop.f32.mrb[0].mxu0
  %1433 = vmatprep.mubr.bf16.mxu0 0
  %1434 = vmatmul.mubr.bf16.gmra.mrb[0].mxu0 %v1288
  %v1435 = vpop.f32.mrb[0].mxu0
  %v1436 = vadd.f32 %v1348, %v1435
  %v1437 = vpop.f32.mrb[0].mxu0
  %v1438 = vpop.f32.mrb[0].mxu0
  %v1439 = vadd.f32 %v1351, %v1438
  %v1440 = vpop.f32.mrb[0].mxu0
  %1441 = vmatprep.mubr.bf16.mxu0 0
  %1442 = vmatmul.mubr.bf16.gmra.mrb[0].mxu0 %v1291
  %v1443 = vpop.f32.mrb[0].mxu0
  %v1444 = vadd.f32 %v1356, %v1443
  %v1445 = vpop.f32.mrb[0].mxu0
  %v1446 = vpop.f32.mrb[0].mxu0
  %v1447 = vadd.f32 %v1359, %v1446
  %v1448 = vpop.f32.mrb[0].mxu0
  %1449 = vmatprep.mubr.bf16.mxu0 0
  %1450 = vmatmul.mubr.bf16.gmra.mrb[0].mxu0 %v1294
  %v1451 = vpop.f32.mrb[0].mxu0
  %v1452 = vadd.f32 %v1364, %v1451
  %v1453 = vpop.f32.mrb[0].mxu0
  %v1454 = vpop.f32.mrb[0].mxu0
  %v1455 = vadd.f32 %v1367, %v1454
  %v1456 = vpop.f32.mrb[0].mxu0
  %1457 = vmatprep.mubr.bf16.mxu0 0
  %1458 = vmatmul.mubr.bf16.gmra.mrb[0].mxu0 %v1297
  %v1459 = vpop.f32.mrb[0].mxu0
  %v1460 = vadd.f32 %v1372, %v1459
  %v1461 = vpop.f32.mrb[0].mxu0
  %v1462 = vpop.f32.mrb[0].mxu0
  %v1463 = vadd.f32 %v1375, %v1462
  %v1464 = vpop.f32.mrb[0].mxu0
  %1465 = vmatprep.mubr.bf16.mxu0 0
  %1466 = vmatmul.mubr.bf16.gmra.mrb[0].mxu0 %v1300
  %v1467 = vpop.f32.mrb[0].mxu0
  %v1468 = vadd.f32 %v1380, %v1467
  %v1469 = vpop.f32.mrb[0].mxu0
  %v1470 = vpop.f32.mrb[0].mxu0
  %v1471 = vadd.f32 %v1383, %v1470
  %v1472 = vpop.f32.mrb[0].mxu0
  %1473 = vmatprep.mubr.bf16.mxu0 0
  %1474 = vmatmul.mubr.bf16.gmra.mrb[0].mxu0 %v1303
  %v1475 = vpop.f32.mrb[0].mxu0
  %v1476 = vadd.f32 %v1388, %v1475
  %v1477 = vpop.f32.mrb[0].mxu0
  %v1478 = vpop.f32.mrb[0].mxu0
  %v1479 = vpop.f32.mrb[0].mxu0
  %1480 = vdwg.mxu0
  %v1481 = vmax.f32 %v1144, %v1428
  %v1482 = vmax.f32 %v1145, %v1431
  %v1483 = vmax.f32 %v1146, %v1436
  %v1484 = vmax.f32 %v1147, %v1439
  %v1485 = vmax.f32 %v1148, %v1444
  %v1486 = vmax.f32 %v1149, %v1447
  %v1487 = vmax.f32 %v1150, %v1452
  %v1488 = vmax.f32 %v1151, %v1455
  %v1489 = vmax.f32 %v1152, %v1460
  %v1490 = vmax.f32 %v1153, %v1463
  %v1491 = vmax.f32 %v1154, %v1468
  %v1492 = vmax.f32 %v1155, %v1471
  %v1493 = vmax.f32 %v1156, %v1476
  %v1494 = vld [vmem:[%s2] sm:$0x1]
  %v1496 = vlaneseq
  %v1497 = vshrl.u32 %v1496, 7
  %v1498 = vsub.s32 0, %v1497
  %v1499 = vrot.slane %v1494, %v1498
  %v1501 = vadd.f32 %v1481, %v1499
  %v1502 = vadd.f32 %v1482, %v1499
  %v1503 = vadd.f32 %v1483, %v1499
  %v1504 = vadd.f32 %v1484, %v1499
  %v1505 = vadd.f32 %v1485, %v1499
  %v1506 = vadd.f32 %v1486, %v1499
  %v1507 = vadd.f32 %v1487, %v1499
  %v1508 = vadd.f32 %v1488, %v1499
  %v1509 = vadd.f32 %v1489, %v1499
  %v1510 = vadd.f32 %v1490, %v1499
  %v1511 = vadd.f32 %v1491, %v1499
  %v1512 = vadd.f32 %v1492, %v1499
  %v1513 = vadd.f32 %v1493, %v1499
  %v1514 = vmax.f32 %v1501, 0.0
  %v1515 = vmax.f32 %v1502, 0.0
  %v1516 = vmax.f32 %v1503, 0.0
  %v1517 = vmax.f32 %v1504, 0.0
  %v1518 = vmax.f32 %v1505, 0.0
  %v1519 = vmax.f32 %v1506, 0.0
  %v1520 = vmax.f32 %v1507, 0.0
  %v1521 = vmax.f32 %v1508, 0.0
  %v1522 = vmax.f32 %v1509, 0.0
  %v1523 = vmax.f32 %v1510, 0.0
  %v1524 = vmax.f32 %v1511, 0.0
  %v1525 = vmax.f32 %v1512, 0.0
  %v1526 = vmax.f32 %v1513, 0.0
  %v1527 = vpack.c.bf16 %v1515, %v1514
  %v1528 = vpack.c.bf16 %v1517, %v1516
  %v1529 = vpack.c.bf16 %v1519, %v1518
  %v1530 = vpack.c.bf16 %v1521, %v1520
  %v1531 = vpack.c.bf16 %v1523, %v1522
  %v1532 = vpack.c.bf16 %v1525, %v1524
  %v1533 = vpack.c.bf16 %v1526, %v1526
  %v1541 = vunpack.c.l.b16 %v1527
  %v1542 = vunpack.c.h.b16 %v1527
  %v1543 = vunpack.c.l.b16 %v1528
  %v1544 = vunpack.c.h.b16 %v1528
  %v1545 = vunpack.c.l.b16 %v1529
  %v1546 = vunpack.c.h.b16 %v1529
  %v1547 = vunpack.c.l.b16 %v1530
  %v1548 = vunpack.c.h.b16 %v1530
  %v1549 = vunpack.c.l.b16 %v1531
  %v1550 = vunpack.c.h.b16 %v1531
  %v1551 = vunpack.c.l.b16 %v1532
  %v1552 = vunpack.c.h.b16 %v1532
  %v1553 = vunpack.c.l.b16 %v1533
  %v1554 = vpack.c.b16 %v1541, %v1541
  %v1555 = vpack.c.b16 %v1542, %v1542
  %v1556 = vpack.c.b16 %v1543, %v1543
  %v1557 = vpack.c.b16 %v1544, %v1544
  %v1558 = vpack.c.b16 %v1545, %v1545
  %v1559 = vpack.c.b16 %v1546, %v1546
  %v1560 = vpack.c.b16 %v1547, %v1547
  %v1561 = vpack.c.b16 %v1548, %v1548
  %v1562 = vpack.c.b16 %v1549, %v1549
  %v1563 = vpack.c.b16 %v1550, %v1550
  %v1564 = vpack.c.b16 %v1551, %v1551
  %v1565 = vpack.c.b16 %v1552, %v1552
  %v1566 = vpack.c.b16 %v1553, %v1553
  %vm1580 = vcmask 519168
  %1581 = vst.msk [vmem:[%s3] sm:$0xf] %vm1580, %v1554
  %1582 = vst.msk [vmem:[%s3 + $0x4] sm:$0xf] %vm1580, %v1555
  %1583 = vst.msk [vmem:[%s3 + $0x8] sm:$0xf] %vm1580, %v1556
  %1584 = vst.msk [vmem:[%s3 + $0xc] sm:$0xf] %vm1580, %v1557
  %1585 = vst.msk [vmem:[%s3 + $0x10] sm:$0xf] %vm1580, %v1558
  %1586 = vst.msk [vmem:[%s3 + $0x14] sm:$0xf] %vm1580, %v1559
  %1587 = vst.msk [vmem:[%s3 + $0x18] sm:$0xf] %vm1580, %v1560
  %1588 = vst.msk [vmem:[%s3 + $0x1c] sm:$0xf] %vm1580, %v1561
  %1589 = vst.msk [vmem:[%s3 + $0x20] sm:$0xf] %vm1580, %v1562
  %1590 = vst.msk [vmem:[%s3 + $0x24] sm:$0xf] %vm1580, %v1563
  %1591 = vst.msk [vmem:[%s3 + $0x28] sm:$0xf] %vm1580, %v1564
  %1592 = vst.msk [vmem:[%s3 + $0x2c] sm:$0xf] %vm1580, %v1565
  %vm1593 = vcmask 516096
  %1594 = vst.msk [vmem:[%s3 + $0x30] sm:$0x1] %vm1593, %v1566
  // Predicated region
  $region14: #{breast_cnn_forward.4} parent=0 // pred_check
    _
  $region15: #{breast_cnn_forward.4} parent=0 // pred_check_branch
    %1596 = sbr.rel (0) target = $region17
  $region16: #{breast_cnn_forward.4} parent=0 // pred_region
    _
  $region17: #{breast_cnn_forward.4} parent=0 // pred_fallthru
    _
  // Predicated region
  $region18: #{breast_cnn_forward.4} parent=0 // pred_check
    _
  $region19: #{breast_cnn_forward.4} parent=0 // pred_check_branch
    %1598 = sbr.rel (0) target = $region21
  $region20: #{breast_cnn_forward.4} parent=0 // pred_region
    _
  $region21: #{breast_cnn_forward.4} parent=0 // pred_fallthru
    _

// kernel: breast_cnn_forward.5
$region0: #{breast_cnn_forward.5}
  #allocation0 [shape = 'u32[]', space=smem, size = 0x4, offset = 0x4, fixed_abs, tag = 'smem constant byte address 0x4 - core index']
  #allocation1 [shape = 'u32[144,128]{1,0:T(1,128)}', space=vmem, size = 0x12000, scoped, tag = 'internal scratch']
  #allocation2 [shape = 'f32[1,1]{1,0:T(1,128)S(1)}', space=vmem, size = 0x200, scoped, tag = 'scoped memory for breast_cnn_forward.5']
  %s0 = inlined_call_operand.vmem [shape: bf16[4,72,576], index: 0, kind: input, shape index: {}]
  %s1 = inlined_call_operand.vmem [shape: bf16[576,128], index: 1, kind: input, shape index: {}]
  %s2 = inlined_call_operand.vmem [shape: f32[1,128], index: 2, kind: input, shape index: {}]
  %s3 = inlined_call_operand.vmem [shape: bf16[9,128,128], index: 3, kind: input, shape index: {}]
  %s4 = inlined_call_operand.vmem [shape: f32[1,128], index: 4, kind: input, shape index: {}]
  %s5 = inlined_call_operand.vmem [shape: f32[1,128], index: 5, kind: input, shape index: {}]
  %s6 = inlined_call_operand.<no memory space> [shape: f32[1,1], index: 6, kind: input, shape index: {}]
  %s7 = inlined_call_operand.vmem [shape: f32[8,1], index: 7, kind: output, shape index: {}]
  %s8 = sld [smem:[#allocation0]]
  $region38: #{breast_cnn_forward.5} parent=0
    _
  %s10 = ssub.s32 1, %s8
  %s11 = scalar_select 0, %s10, %s8
  %v12 = vstv %s6
  %13 = vst [vmem:[#allocation2] sm:$0x1] %v12
  // Predicated region
  $region2: #{breast_cnn_forward.5} parent=0 // pred_check
    _
  $region3: #{breast_cnn_forward.5} parent=0 // pred_check_branch
    %15 = sbr.rel (0) target = $region5
  $region4: #{breast_cnn_forward.5} parent=0 // pred_region
    _
  $region5: #{breast_cnn_forward.5} parent=0 // pred_fallthru
    _
  // Predicated region
  $region6: #{breast_cnn_forward.5} parent=0 // pred_check
    _
  $region7: #{breast_cnn_forward.5} parent=0 // pred_check_branch
    %17 = sbr.rel (0) target = $region9
  $region8: #{breast_cnn_forward.5} parent=0 // pred_region
    _
  $region9: #{breast_cnn_forward.5} parent=0 // pred_fallthru
    _
  // Predicated region
  $region10: #{breast_cnn_forward.5} parent=0 // pred_check
    _
  $region11: #{breast_cnn_forward.5} parent=0 // pred_check_branch
    %19 = sbr.rel (0) target = $region13
  $region12: #{breast_cnn_forward.5} parent=0 // pred_region
    _
  $region13: #{breast_cnn_forward.5} parent=0 // pred_fallthru
    _
  // Predicated region
  $region14: #{breast_cnn_forward.5} parent=0 // pred_check
    _
  $region15: #{breast_cnn_forward.5} parent=0 // pred_check_branch
    %21 = sbr.rel (0) target = $region17
  $region16: #{breast_cnn_forward.5} parent=0 // pred_region
    _
  $region17: #{breast_cnn_forward.5} parent=0 // pred_fallthru
    _
  // Predicated region
  $region18: #{breast_cnn_forward.5} parent=0 // pred_check
    _
  $region19: #{breast_cnn_forward.5} parent=0 // pred_check_branch
    %23 = sbr.rel (0) target = $region21
  $region20: #{breast_cnn_forward.5} parent=0 // pred_region
    _
  $region21: #{breast_cnn_forward.5} parent=0 // pred_fallthru
    _
  // Predicated region
  $region22: #{breast_cnn_forward.5} parent=0 // pred_check
    _
  $region23: #{breast_cnn_forward.5} parent=0 // pred_check_branch
    %25 = sbr.rel (0) target = $region25
  $region24: #{breast_cnn_forward.5} parent=0 // pred_region
    _
  $region25: #{breast_cnn_forward.5} parent=0 // pred_fallthru
    _
  // Predicated region
  $region26: #{breast_cnn_forward.5} parent=0 // pred_check
    _
  $region27: #{breast_cnn_forward.5} parent=0 // pred_check_branch
    %27 = sbr.rel (0) target = $region29
  $region28: #{breast_cnn_forward.5} parent=0 // pred_region
    _
  $region29: #{breast_cnn_forward.5} parent=0 // pred_fallthru
    _
  %v29 = vld [vmem:[%s1] sm:$0xf]
  %v30 = vld [vmem:[%s1 + $0x4] sm:$0xf]
  %v31 = vld [vmem:[%s1 + $0x8] sm:$0xf]
  %v32 = vld [vmem:[%s1 + $0xc] sm:$0xf]
  %v33 = vld [vmem:[%s1 + $0x10] sm:$0xf]
  %v34 = vld [vmem:[%s1 + $0x14] sm:$0xf]
  %v35 = vld [vmem:[%s1 + $0x18] sm:$0xf]
  %v36 = vld [vmem:[%s1 + $0x1c] sm:$0xf]
  %v37 = vld [vmem:[%s1 + $0x20] sm:$0xf]
  %v38 = vld [vmem:[%s1 + $0x24] sm:$0xf]
  %v39 = vld [vmem:[%s1 + $0x28] sm:$0xf]
  %v40 = vld [vmem:[%s1 + $0x2c] sm:$0xf]
  %v41 = vld [vmem:[%s1 + $0x30] sm:$0xf]
  %v42 = vld [vmem:[%s1 + $0x34] sm:$0xf]
  %v43 = vld [vmem:[%s1 + $0x38] sm:$0xf]
  %v44 = vld [vmem:[%s1 + $0x3c] sm:$0xf]
  %v45 = vld [vmem:[%s1 + $0x40] sm:$0xf]
  %v46 = vld [vmem:[%s1 + $0x44] sm:$0xf]
  %v47 = vld [vmem:[%s1 + $0x48] sm:$0xf]
  %v48 = vld [vmem:[%s1 + $0x4c] sm:$0xf]
  %v49 = vld [vmem:[%s1 + $0x50] sm:$0xf]
  %v50 = vld [vmem:[%s1 + $0x54] sm:$0xf]
  %v51 = vld [vmem:[%s1 + $0x58] sm:$0xf]
  %v52 = vld [vmem:[%s1 + $0x5c] sm:$0xf]
  %v53 = vld [vmem:[%s1 + $0x60] sm:$0xf]
  %v54 = vld [vmem:[%s1 + $0x64] sm:$0xf]
  %v55 = vld [vmem:[%s1 + $0x68] sm:$0xf]
  %v56 = vld [vmem:[%s1 + $0x6c] sm:$0xf]
  %v57 = vld [vmem:[%s1 + $0x70] sm:$0xf]
  %v58 = vld [vmem:[%s1 + $0x74] sm:$0xf]
  %v59 = vld [vmem:[%s1 + $0x78] sm:$0xf]
  %v60 = vld [vmem:[%s1 + $0x7c] sm:$0xf]
  %v61 = vld [vmem:[%s1 + $0x80] sm:$0xf]
  %v62 = vld [vmem:[%s1 + $0x84] sm:$0xf]
  %v63 = vld [vmem:[%s1 + $0x88] sm:$0xf]
  %v64 = vld [vmem:[%s1 + $0x8c] sm:$0xf]
  %v65 = vld [vmem:[%s1 + $0x90] sm:$0xf]
  %v66 = vld [vmem:[%s1 + $0x94] sm:$0xf]
  %v67 = vld [vmem:[%s1 + $0x98] sm:$0xf]
  %v68 = vld [vmem:[%s1 + $0x9c] sm:$0xf]
  %v69 = vld [vmem:[%s1 + $0xa0] sm:$0xf]
  %v70 = vld [vmem:[%s1 + $0xa4] sm:$0xf]
  %v71 = vld [vmem:[%s1 + $0xa8] sm:$0xf]
  %v72 = vld [vmem:[%s1 + $0xac] sm:$0xf]
  %v73 = vld [vmem:[%s1 + $0xb0] sm:$0xf]
  %v74 = vld [vmem:[%s1 + $0xb4] sm:$0xf]
  %v75 = vld [vmem:[%s1 + $0xb8] sm:$0xf]
  %v76 = vld [vmem:[%s1 + $0xbc] sm:$0xf]
  %v77 = vld [vmem:[%s1 + $0xc0] sm:$0xf]
  %v78 = vld [vmem:[%s1 + $0xc4] sm:$0xf]
  %v79 = vld [vmem:[%s1 + $0xc8] sm:$0xf]
  %v80 = vld [vmem:[%s1 + $0xcc] sm:$0xf]
  %v81 = vld [vmem:[%s1 + $0xd0] sm:$0xf]
  %v82 = vld [vmem:[%s1 + $0xd4] sm:$0xf]
  %v83 = vld [vmem:[%s1 + $0xd8] sm:$0xf]
  %v84 = vld [vmem:[%s1 + $0xdc] sm:$0xf]
  %v85 = vld [vmem:[%s1 + $0xe0] sm:$0xf]
  %v86 = vld [vmem:[%s1 + $0xe4] sm:$0xf]
  %v87 = vld [vmem:[%s1 + $0xe8] sm:$0xf]
  %v88 = vld [vmem:[%s1 + $0xec] sm:$0xf]
  %v89 = vld [vmem:[%s1 + $0xf0] sm:$0xf]
  %v90 = vld [vmem:[%s1 + $0xf4] sm:$0xf]
  %v91 = vld [vmem:[%s1 + $0xf8] sm:$0xf]
  %v92 = vld [vmem:[%s1 + $0xfc] sm:$0xf]
  %v93 = vld [vmem:[%s1 + $0x100] sm:$0xf]
  %v94 = vld [vmem:[%s1 + $0x104] sm:$0xf]
  %v95 = vld [vmem:[%s1 + $0x108] sm:$0xf]
  %v96 = vld [vmem:[%s1 + $0x10c] sm:$0xf]
  %v97 = vld [vmem:[%s1 + $0x110] sm:$0xf]
  %v98 = vld [vmem:[%s1 + $0x114] sm:$0xf]
  %v99 = vld [vmem:[%s1 + $0x118] sm:$0xf]
  %v100 = vld [vmem:[%s1 + $0x11c] sm:$0xf]
  %v101 = vld [vmem:[%s0] sm:$0xff]
  %v102 = vld [vmem:[%s0 + $0x8] sm:$0xff]
  %v103 = vld [vmem:[%s0 + $0x10] sm:$0xf]
  %v104 = vld [vmem:[%s0 + $0x14] sm:$0xff]
  %v105 = vld [vmem:[%s0 + $0x1c] sm:$0xff]
  %v106 = vld [vmem:[%s0 + $0x24] sm:$0xf]
  %v107 = vld [vmem:[%s0 + $0x28] sm:$0xff]
  %v108 = vld [vmem:[%s0 + $0x30] sm:$0xff]
  %v109 = vld [vmem:[%s0 + $0x38] sm:$0xf]
  %v110 = vld [vmem:[%s0 + $0x3c] sm:$0xff]
  %v111 = vld [vmem:[%s0 + $0x44] sm:$0xff]
  %v112 = vld [vmem:[%s0 + $0x4c] sm:$0xf]
  %v113 = vld [vmem:[%s0 + $0x50] sm:$0xff]
  %v114 = vld [vmem:[%s0 + $0x58] sm:$0xff]
  %v115 = vld [vmem:[%s0 + $0x60] sm:$0xf]
  %v116 = vld [vmem:[%s0 + $0x64] sm:$0xff]
  %v117 = vld [vmem:[%s0 + $0x6c] sm:$0xff]
  %v118 = vld [vmem:[%s0 + $0x74] sm:$0xf]
  %v119 = vld [vmem:[%s0 + $0x78] sm:$0xff]
  %v120 = vld [vmem:[%s0 + $0x80] sm:$0xff]
  %v121 = vld [vmem:[%s0 + $0x88] sm:$0xf]
  %v122 = vld [vmem:[%s0 + $0x8c] sm:$0xff]
  %v123 = vld [vmem:[%s0 + $0x94] sm:$0xff]
  %v124 = vld [vmem:[%s0 + $0x9c] sm:$0xf]
  %v125 = vld [vmem:[%s0 + $0xa0] sm:$0xff]
  %v126 = vld [vmem:[%s0 + $0xa8] sm:$0xff]
  %v127 = vld [vmem:[%s0 + $0xb0] sm:$0xf]
  %v155 = vunpack.c.l.b16 %v101
  %v156 = vunpack.c.h.b16 %v101
  %v157 = vunpack.c.l.b16 %v102
  %v158 = vunpack.c.h.b16 %v102
  %v159 = vunpack.c.l.b16 %v103
  %v160 = vunpack.c.l.b16 %v104
  %v161 = vunpack.c.h.b16 %v104
  %v162 = vunpack.c.l.b16 %v105
  %v163 = vunpack.c.h.b16 %v105
  %v164 = vunpack.c.l.b16 %v106
  %v165 = vunpack.c.l.b16 %v107
  %v166 = vunpack.c.h.b16 %v107
  %v167 = vunpack.c.l.b16 %v108
  %v168 = vunpack.c.h.b16 %v108
  %v169 = vunpack.c.l.b16 %v109
  %v170 = vunpack.c.l.b16 %v110
  %v171 = vunpack.c.h.b16 %v110
  %v172 = vunpack.c.l.b16 %v111
  %v173 = vunpack.c.h.b16 %v111
  %v174 = vunpack.c.l.b16 %v112
  %v175 = vunpack.c.l.b16 %v113
  %v176 = vunpack.c.h.b16 %v113
  %v177 = vunpack.c.l.b16 %v114
  %v178 = vunpack.c.h.b16 %v114
  %v179 = vunpack.c.l.b16 %v115
  %v180 = vunpack.c.l.b16 %v116
  %v181 = vunpack.c.h.b16 %v116
  %v182 = vunpack.c.l.b16 %v117
  %v183 = vunpack.c.h.b16 %v117
  %v184 = vunpack.c.l.b16 %v118
  %v185 = vunpack.c.l.b16 %v119
  %v186 = vunpack.c.h.b16 %v119
  %v187 = vunpack.c.l.b16 %v120
  %v188 = vunpack.c.h.b16 %v120
  %v189 = vunpack.c.l.b16 %v121
  %v190 = vunpack.c.l.b16 %v122
  %v191 = vunpack.c.h.b16 %v122
  %v192 = vunpack.c.l.b16 %v123
  %v193 = vunpack.c.h.b16 %v123
  %v194 = vunpack.c.l.b16 %v124
  %v195 = vunpack.c.l.b16 %v125
  %v196 = vunpack.c.h.b16 %v125
  %v197 = vunpack.c.l.b16 %v126
  %v198 = vunpack.c.h.b16 %v126
  %v199 = vunpack.c.l.b16 %v127
  %v200 = vpack.c.b16 %v160, %v155
  %v201 = vpack.c.b16 %v161, %v156
  %v202 = vpack.c.b16 %v162, %v157
  %v203 = vpack.c.b16 %v163, %v158
  %v204 = vpack.c.b16 %v164, %v159
  %v205 = vpack.c.b16 %v170, %v165
  %v206 = vpack.c.b16 %v171, %v166
  %v207 = vpack.c.b16 %v172, %v167
  %v208 = vpack.c.b16 %v173, %v168
  %v209 = vpack.c.b16 %v174, %v169
  %v210 = vpack.c.b16 %v180, %v175
  %v211 = vpack.c.b16 %v181, %v176
  %v212 = vpack.c.b16 %v182, %v177
  %v213 = vpack.c.b16 %v183, %v178
  %v214 = vpack.c.b16 %v184, %v179
  %v215 = vpack.c.b16 %v190, %v185
  %v216 = vpack.c.b16 %v191, %v186
  %v217 = vpack.c.b16 %v192, %v187
  %v218 = vpack.c.b16 %v193, %v188
  %v219 = vpack.c.b16 %v194, %v189
  %v220 = vpack.c.b16 %v195, %v195
  %v221 = vpack.c.b16 %v196, %v196
  %v222 = vpack.c.b16 %v197, %v197
  %v223 = vpack.c.b16 %v198, %v198
  %v224 = vpack.c.b16 %v199, %v199
  %v317 = vunpack.c.l.b16 %v29
  %v318 = vunpack.c.l.b16 %v30
  %v319 = vunpack.c.l.b16 %v31
  %v320 = vunpack.c.l.b16 %v32
  %v321 = vunpack.c.l.b16 %v33
  %v322 = vunpack.c.l.b16 %v34
  %v323 = vunpack.c.l.b16 %v35
  %v324 = vunpack.c.l.b16 %v36
  %v325 = vunpack.c.l.b16 %v37
  %v326 = vunpack.c.l.b16 %v38
  %v327 = vunpack.c.l.b16 %v39
  %v328 = vunpack.c.l.b16 %v40
  %v329 = vunpack.c.l.b16 %v41
  %v330 = vunpack.c.l.b16 %v42
  %v331 = vunpack.c.l.b16 %v43
  %v332 = vunpack.c.l.b16 %v44
  %v333 = vunpack.c.l.b16 %v45
  %v334 = vunpack.c.l.b16 %v46
  %v335 = vunpack.c.l.b16 %v47
  %v336 = vunpack.c.l.b16 %v48
  %v337 = vunpack.c.l.b16 %v49
  %v338 = vunpack.c.l.b16 %v50
  %v339 = vunpack.c.l.b16 %v51
  %v340 = vunpack.c.l.b16 %v52
  %v341 = vunpack.c.l.b16 %v53
  %v342 = vunpack.c.l.b16 %v54
  %v343 = vunpack.c.l.b16 %v55
  %v344 = vunpack.c.l.b16 %v56
  %v345 = vunpack.c.l.b16 %v57
  %v346 = vunpack.c.l.b16 %v58
  %v347 = vunpack.c.l.b16 %v59
  %v348 = vunpack.c.l.b16 %v60
  %v349 = vunpack.c.l.b16 %v61
  %v350 = vunpack.c.l.b16 %v62
  %v351 = vunpack.c.l.b16 %v63
  %v352 = vunpack.c.l.b16 %v64
  %v353 = vunpack.c.l.b16 %v65
  %v354 = vunpack.c.l.b16 %v66
  %v355 = vunpack.c.l.b16 %v67
  %v356 = vunpack.c.l.b16 %v68
  %v357 = vunpack.c.l.b16 %v69
  %v358 = vunpack.c.l.b16 %v70
  %v359 = vunpack.c.l.b16 %v71
  %v360 = vunpack.c.l.b16 %v72
  %v361 = vunpack.c.l.b16 %v73
  %v362 = vunpack.c.l.b16 %v74
  %v363 = vunpack.c.l.b16 %v75
  %v364 = vunpack.c.l.b16 %v76
  %v365 = vunpack.c.l.b16 %v77
  %v366 = vunpack.c.l.b16 %v78
  %v367 = vunpack.c.l.b16 %v79
  %v368 = vunpack.c.l.b16 %v80
  %v369 = vunpack.c.l.b16 %v81
  %v370 = vunpack.c.l.b16 %v82
  %v371 = vunpack.c.l.b16 %v83
  %v372 = vunpack.c.l.b16 %v84
  %v373 = vunpack.c.l.b16 %v85
  %v374 = vunpack.c.l.b16 %v86
  %v375 = vunpack.c.l.b16 %v87
  %v376 = vunpack.c.l.b16 %v88
  %v377 = vunpack.c.l.b16 %v89
  %v378 = vunpack.c.l.b16 %v90
  %v379 = vunpack.c.l.b16 %v91
  %v380 = vunpack.c.l.b16 %v92
  %v381 = vunpack.c.l.b16 %v93
  %v382 = vunpack.c.l.b16 %v94
  %v383 = vunpack.c.l.b16 %v95
  %v384 = vunpack.c.l.b16 %v96
  %v385 = vunpack.c.l.b16 %v97
  %v386 = vunpack.c.l.b16 %v98
  %v387 = vunpack.c.l.b16 %v99
  %v388 = vunpack.c.l.b16 %v100
  %v389 = vpack.c.b16 %v318, %v317
  %v390 = vpack.c.b16 %v320, %v319
  %v391 = vpack.c.b16 %v322, %v321
  %v392 = vpack.c.b16 %v324, %v323
  %v393 = vpack.c.b16 %v326, %v325
  %v394 = vpack.c.b16 %v328, %v327
  %v395 = vpack.c.b16 %v330, %v329
  %v396 = vpack.c.b16 %v332, %v331
  %v397 = vpack.c.b16 %v334, %v333
  %v398 = vpack.c.b16 %v336, %v335
  %v399 = vpack.c.b16 %v338, %v337
  %v400 = vpack.c.b16 %v340, %v339
  %v401 = vpack.c.b16 %v342, %v341
  %v402 = vpack.c.b16 %v344, %v343
  %v403 = vpack.c.b16 %v346, %v345
  %v404 = vpack.c.b16 %v348, %v347
  %v405 = vpack.c.b16 %v350, %v349
  %v406 = vpack.c.b16 %v352, %v351
  %v407 = vpack.c.b16 %v354, %v353
  %v408 = vpack.c.b16 %v356, %v355
  %v409 = vpack.c.b16 %v358, %v357
  %v410 = vpack.c.b16 %v360, %v359
  %v411 = vpack.c.b16 %v362, %v361
  %v412 = vpack.c.b16 %v364, %v363
  %v413 = vpack.c.b16 %v366, %v365
  %v414 = vpack.c.b16 %v368, %v367
  %v415 = vpack.c.b16 %v370, %v369
  %v416 = vpack.c.b16 %v372, %v371
  %v417 = vpack.c.b16 %v374, %v373
  %v418 = vpack.c.b16 %v376, %v375
  %v419 = vpack.c.b16 %v378, %v377
  %v420 = vpack.c.b16 %v380, %v379
  %v421 = vpack.c.b16 %v382, %v381
  %v422 = vpack.c.b16 %v384, %v383
  %v423 = vpack.c.b16 %v386, %v385
  %v424 = vpack.c.b16 %v388, %v387
  %vm461 = vcmask 523264
  %v463 = vsel %vm461, %v204, 0
  %v466 = vsel %vm461, %v209, 0
  %v469 = vsel %vm461, %v214, 0
  %v472 = vsel %vm461, %v219, 0
  %v475 = vsel %vm461, %v224, 0
  %477 = vmatprep.subr.bf16.mxu0 0
  %478 = vmatpush1.bf16.msra.mxu0 %v389
  %479 = vmatprep.subr.bf16.mxu0 0
  %480 = vmatpush1.bf16.msra.mxu0 %v390
  %481 = vmatprep.subr.bf16.mxu0 0
  %482 = vmatpush1.bf16.msra.mxu0 %v391
  %483 = vmatprep.subr.bf16.mxu0 0
  %484 = vmatpush1.bf16.msra.mxu0 %v392
  %485 = vmatprep.subr.bf16.mxu0 0
  %486 = vmatpush1.bf16.msra.mxu0 %v393
  %487 = vmatprep.subr.bf16.mxu0 0
  %488 = vmatpush1.bf16.msra.mxu0 %v394
  %489 = vmatprep.subr.bf16.mxu0 0
  %490 = vmatpush1.bf16.msra.mxu0 %v395
  %491 = vmatprep.subr.bf16.mxu0 0
  %492 = vmatpush1.bf16.msra.mxu0 %v396
  %493 = vmatprep.subr.bf16.mxu0 0
  %494 = vmatpush1.bf16.msra.mxu0 %v397
  %495 = vmatprep.subr.bf16.mxu0 0
  %496 = vmatpush1.bf16.msra.mxu0 %v398
  %497 = vmatprep.subr.bf16.mxu0 0
  %498 = vmatpush1.bf16.msra.mxu0 %v399
  %499 = vmatprep.subr.bf16.mxu0 0
  %500 = vmatpush1.bf16.msra.mxu0 %v400
  %501 = vmatprep.subr.bf16.mxu0 0
  %502 = vmatpush1.bf16.msra.mxu0 %v401
  %503 = vmatprep.subr.bf16.mxu0 0
  %504 = vmatpush1.bf16.msra.mxu0 %v402
  %505 = vmatprep.subr.bf16.mxu0 0
  %506 = vmatpush1.bf16.msra.mxu0 %v403
  %507 = vmatprep.subr.bf16.mxu0 0
  %508 = vmatpush1.bf16.msra.mxu0 %v404
  %509 = vmatprep.mubr.bf16.mxu0 %v201
  %510 = vmatmul.mubr.bf16.gmra.mrb[0].mxu0 %v200
  %v511 = vpop.f32.mrb[0].mxu0
  %v512 = vadd.f32 0.0, %v511
  %v513 = vpop.f32.mrb[0].mxu0
  %v514 = vpop.f32.mrb[0].mxu0
  %v515 = vadd.f32 0.0, %v514
  %v516 = vpop.f32.mrb[0].mxu0
  %517 = vmatprep.mubr.bf16.mxu0 %v206
  %518 = vmatmul.mubr.bf16.gmra.mrb[0].mxu0 %v205
  %v519 = vpop.f32.mrb[0].mxu0
  %v520 = vadd.f32 0.0, %v519
  %v521 = vpop.f32.mrb[0].mxu0
  %v522 = vpop.f32.mrb[0].mxu0
  %v523 = vadd.f32 0.0, %v522
  %v524 = vpop.f32.mrb[0].mxu0
  %525 = vmatprep.mubr.bf16.mxu0 %v211
  %526 = vmatmul.mubr.bf16.gmra.mrb[0].mxu0 %v210
  %v527 = vpop.f32.mrb[0].mxu0
  %v528 = vadd.f32 0.0, %v527
  %v529 = vpop.f32.mrb[0].mxu0
  %v530 = vpop.f32.mrb[0].mxu0
  %v531 = vadd.f32 0.0, %v530
  %v532 = vpop.f32.mrb[0].mxu0
  %533 = vmatprep.mubr.bf16.mxu0 %v216
  %534 = vmatmul.mubr.bf16.gmra.mrb[0].mxu0 %v215
  %v535 = vpop.f32.mrb[0].mxu0
  %v536 = vadd.f32 0.0, %v535
  %v537 = vpop.f32.mrb[0].mxu0
  %v538 = vpop.f32.mrb[0].mxu0
  %v539 = vadd.f32 0.0, %v538
  %v540 = vpop.f32.mrb[0].mxu0
  %541 = vmatprep.mubr.bf16.mxu0 %v221
  %542 = vmatmul.mubr.bf16.gmra.mrb[0].mxu0 %v220
  %v543 = vpop.f32.mrb[0].mxu0
  %v544 = vadd.f32 0.0, %v543
  %v545 = vpop.f32.mrb[0].mxu0
  %v546 = vpop.f32.mrb[0].mxu0
  %v547 = vpop.f32.mrb[0].mxu0
  %548 = vdwg.mxu0
  %549 = vmatprep.subr.bf16.mxu0 0
  %550 = vmatpush1.bf16.msra.mxu0 %v405
  %551 = vmatprep.subr.bf16.mxu0 0
  %552 = vmatpush1.bf16.msra.mxu0 %v406
  %553 = vmatprep.subr.bf16.mxu0 0
  %554 = vmatpush1.bf16.msra.mxu0 %v407
  %555 = vmatprep.subr.bf16.mxu0 0
  %556 = vmatpush1.bf16.msra.mxu0 %v408
  %557 = vmatprep.subr.bf16.mxu0 0
  %558 = vmatpush1.bf16.msra.mxu0 %v409
  %559 = vmatprep.subr.bf16.mxu0 0
  %560 = vmatpush1.bf16.msra.mxu0 %v410
  %561 = vmatprep.subr.bf16.mxu0 0
  %562 = vmatpush1.bf16.msra.mxu0 %v411
  %563 = vmatprep.subr.bf16.mxu0 0
  %564 = vmatpush1.bf16.msra.mxu0 %v412
  %565 = vmatprep.subr.bf16.mxu0 0
  %566 = vmatpush1.bf16.msra.mxu0 %v413
  %567 = vmatprep.subr.bf16.mxu0 0
  %568 = vmatpush1.bf16.msra.mxu0 %v414
  %569 = vmatprep.subr.bf16.mxu0 0
  %570 = vmatpush1.bf16.msra.mxu0 %v415
  %571 = vmatprep.subr.bf16.mxu0 0
  %572 = vmatpush1.bf16.msra.mxu0 %v416
  %573 = vmatprep.subr.bf16.mxu0 0
  %574 = vmatpush1.bf16.msra.mxu0 %v417
  %575 = vmatprep.subr.bf16.mxu0 0
  %576 = vmatpush1.bf16.msra.mxu0 %v418
  %577 = vmatprep.subr.bf16.mxu0 0
  %578 = vmatpush1.bf16.msra.mxu0 %v419
  %579 = vmatprep.subr.bf16.mxu0 0
  %580 = vmatpush1.bf16.msra.mxu0 %v420
  %581 = vmatprep.mubr.bf16.mxu0 %v203
  %582 = vmatmul.mubr.bf16.gmra.mrb[0].mxu0 %v202
  %v583 = vpop.f32.mrb[0].mxu0
  %v584 = vadd.f32 %v512, %v583
  %v585 = vpop.f32.mrb[0].mxu0
  %v586 = vpop.f32.mrb[0].mxu0
  %v587 = vadd.f32 %v515, %v586
  %v588 = vpop.f32.mrb[0].mxu0
  %589 = vmatprep.mubr.bf16.mxu0 %v208
  %590 = vmatmul.mubr.bf16.gmra.mrb[0].mxu0 %v207
  %v591 = vpop.f32.mrb[0].mxu0
  %v592 = vadd.f32 %v520, %v591
  %v593 = vpop.f32.mrb[0].mxu0
  %v594 = vpop.f32.mrb[0].mxu0
  %v595 = vadd.f32 %v523, %v594
  %v596 = vpop.f32.mrb[0].mxu0
  %597 = vmatprep.mubr.bf16.mxu0 %v213
  %598 = vmatmul.mubr.bf16.gmra.mrb[0].mxu0 %v212
  %v599 = vpop.f32.mrb[0].mxu0
  %v600 = vadd.f32 %v528, %v599
  %v601 = vpop.f32.mrb[0].mxu0
  %v602 = vpop.f32.mrb[0].mxu0
  %v603 = vadd.f32 %v531, %v602
  %v604 = vpop.f32.mrb[0].mxu0
  %605 = vmatprep.mubr.bf16.mxu0 %v218
  %606 = vmatmul.mubr.bf16.gmra.mrb[0].mxu0 %v217
  %v607 = vpop.f32.mrb[0].mxu0
  %v608 = vadd.f32 %v536, %v607
  %v609 = vpop.f32.mrb[0].mxu0
  %v610 = vpop.f32.mrb[0].mxu0
  %v611 = vadd.f32 %v539, %v610
  %v612 = vpop.f32.mrb[0].mxu0
  %613 = vmatprep.mubr.bf16.mxu0 %v223
  %614 = vmatmul.mubr.bf16.gmra.mrb[0].mxu0 %v222
  %v615 = vpop.f32.mrb[0].mxu0
  %v616 = vadd.f32 %v544, %v615
  %v617 = vpop.f32.mrb[0].mxu0
  %v618 = vpop.f32.mrb[0].mxu0
  %v619 = vpop.f32.mrb[0].mxu0
  %620 = vdwg.mxu0
  %621 = vmatprep.subr.bf16.mxu0 0
  %622 = vmatpush1.bf16.msra.mxu0 %v421
  %623 = vmatprep.subr.bf16.mxu0 0
  %624 = vmatpush1.bf16.msra.mxu0 %v422
  %625 = vmatprep.subr.bf16.mxu0 0
  %626 = vmatpush1.bf16.msra.mxu0 %v423
  %627 = vmatprep.subr.bf16.mxu0 0
  %628 = vmatpush1.bf16.msra.mxu0 %v424
  %629 = vmatprep.subr.bf16.mxu0 0
  %630 = vmatpush1.bf16.msra.mxu0 0
  %631 = vmatprep.subr.bf16.mxu0 0
  %632 = vmatpush1.bf16.msra.mxu0 0
  %633 = vmatprep.subr.bf16.mxu0 0
  %634 = vmatpush1.bf16.msra.mxu0 0
  %635 = vmatprep.subr.bf16.mxu0 0
  %636 = vmatpush1.bf16.msra.mxu0 0
  %637 = vmatprep.subr.bf16.mxu0 0
  %638 = vmatpush1.bf16.msra.mxu0 0
  %639 = vmatprep.subr.bf16.mxu0 0
  %640 = vmatpush1.bf16.msra.mxu0 0
  %641 = vmatprep.subr.bf16.mxu0 0
  %642 = vmatpush1.bf16.msra.mxu0 0
  %643 = vmatprep.subr.bf16.mxu0 0
  %644 = vmatpush1.bf16.msra.mxu0 0
  %645 = vmatprep.subr.bf16.mxu0 0
  %646 = vmatpush1.bf16.msra.mxu0 0
  %647 = vmatprep.subr.bf16.mxu0 0
  %648 = vmatpush1.bf16.msra.mxu0 0
  %649 = vmatprep.subr.bf16.mxu0 0
  %650 = vmatpush1.bf16.msra.mxu0 0
  %651 = vmatprep.subr.bf16.mxu0 0
  %652 = vmatpush1.bf16.msra.mxu0 0
  %653 = vmatprep.mubr.bf16.mxu0 0
  %654 = vmatmul.mubr.bf16.gmra.mrb[0].mxu0 %v463
  %v655 = vpop.f32.mrb[0].mxu0
  %v656 = vadd.f32 %v584, %v655
  %v657 = vpop.f32.mrb[0].mxu0
  %v658 = vpop.f32.mrb[0].mxu0
  %v659 = vadd.f32 %v587, %v658
  %v660 = vpop.f32.mrb[0].mxu0
  %661 = vmatprep.mubr.bf16.mxu0 0
  %662 = vmatmul.mubr.bf16.gmra.mrb[0].mxu0 %v466
  %v663 = vpop.f32.mrb[0].mxu0
  %v664 = vadd.f32 %v592, %v663
  %v665 = vpop.f32.mrb[0].mxu0
  %v666 = vpop.f32.mrb[0].mxu0
  %v667 = vadd.f32 %v595, %v666
  %v668 = vpop.f32.mrb[0].mxu0
  %669 = vmatprep.mubr.bf16.mxu0 0
  %670 = vmatmul.mubr.bf16.gmra.mrb[0].mxu0 %v469
  %v671 = vpop.f32.mrb[0].mxu0
  %v672 = vadd.f32 %v600, %v671
  %v673 = vpop.f32.mrb[0].mxu0
  %v674 = vpop.f32.mrb[0].mxu0
  %v675 = vadd.f32 %v603, %v674
  %v676 = vpop.f32.mrb[0].mxu0
  %677 = vmatprep.mubr.bf16.mxu0 0
  %678 = vmatmul.mubr.bf16.gmra.mrb[0].mxu0 %v472
  %v679 = vpop.f32.mrb[0].mxu0
  %v680 = vadd.f32 %v608, %v679
  %v681 = vpop.f32.mrb[0].mxu0
  %v682 = vpop.f32.mrb[0].mxu0
  %v683 = vadd.f32 %v611, %v682
  %v684 = vpop.f32.mrb[0].mxu0
  %685 = vmatprep.mubr.bf16.mxu0 0
  %686 = vmatmul.mubr.bf16.gmra.mrb[0].mxu0 %v475
  %v687 = vpop.f32.mrb[0].mxu0
  %v688 = vadd.f32 %v616, %v687
  %v689 = vpop.f32.mrb[0].mxu0
  %v690 = vpop.f32.mrb[0].mxu0
  %v691 = vpop.f32.mrb[0].mxu0
  %692 = vdwg.mxu0
  %s693 = scalar_lea.vmem %s0, 180
  %v694 = vld [vmem:[%s693] sm:$0xff]
  %v695 = vld [vmem:[%s693 + $0x8] sm:$0xff]
  %v696 = vld [vmem:[%s693 + $0x10] sm:$0xf]
  %v697 = vld [vmem:[%s693 + $0x14] sm:$0xff]
  %v698 = vld [vmem:[%s693 + $0x1c] sm:$0xff]
  %v699 = vld [vmem:[%s693 + $0x24] sm:$0xf]
  %v700 = vld [vmem:[%s693 + $0x28] sm:$0xff]
  %v701 = vld [vmem:[%s693 + $0x30] sm:$0xff]
  %v702 = vld [vmem:[%s693 + $0x38] sm:$0xf]
  %v703 = vld [vmem:[%s693 + $0x3c] sm:$0xff]
  %v704 = vld [vmem:[%s693 + $0x44] sm:$0xff]
  %v705 = vld [vmem:[%s693 + $0x4c] sm:$0xf]
  %v706 = vld [vmem:[%s693 + $0x50] sm:$0xff]
  %v707 = vld [vmem:[%s693 + $0x58] sm:$0xff]
  %v708 = vld [vmem:[%s693 + $0x60] sm:$0xf]
  %v709 = vld [vmem:[%s693 + $0x64] sm:$0xff]
  %v710 = vld [vmem:[%s693 + $0x6c] sm:$0xff]
  %v711 = vld [vmem:[%s693 + $0x74] sm:$0xf]
  %v712 = vld [vmem:[%s693 + $0x78] sm:$0xff]
  %v713 = vld [vmem:[%s693 + $0x80] sm:$0xff]
  %v714 = vld [vmem:[%s693 + $0x88] sm:$0xf]
  %v715 = vld [vmem:[%s693 + $0x8c] sm:$0xff]
  %v716 = vld [vmem:[%s693 + $0x94] sm:$0xff]
  %v717 = vld [vmem:[%s693 + $0x9c] sm:$0xf]
  %v718 = vld [vmem:[%s693 + $0xa0] sm:$0xff]
  %v719 = vld [vmem:[%s693 + $0xa8] sm:$0xff]
  %v720 = vld [vmem:[%s693 + $0xb0] sm:$0xf]
  %v748 = vunpack.c.l.b16 %v694
  %v749 = vunpack.c.h.b16 %v694
  %v750 = vunpack.c.l.b16 %v695
  %v751 = vunpack.c.h.b16 %v695
  %v752 = vunpack.c.l.b16 %v696
  %v753 = vunpack.c.l.b16 %v697
  %v754 = vunpack.c.h.b16 %v697
  %v755 = vunpack.c.l.b16 %v698
  %v756 = vunpack.c.h.b16 %v698
  %v757 = vunpack.c.l.b16 %v699
  %v758 = vunpack.c.l.b16 %v700
  %v759 = vunpack.c.h.b16 %v700
  %v760 = vunpack.c.l.b16 %v701
  %v761 = vunpack.c.h.b16 %v701
  %v762 = vunpack.c.l.b16 %v702
  %v763 = vunpack.c.l.b16 %v703
  %v764 = vunpack.c.h.b16 %v703
  %v765 = vunpack.c.l.b16 %v704
  %v766 = vunpack.c.h.b16 %v704
  %v767 = vunpack.c.l.b16 %v705
  %v768 = vunpack.c.l.b16 %v706
  %v769 = vunpack.c.h.b16 %v706
  %v770 = vunpack.c.l.b16 %v707
  %v771 = vunpack.c.h.b16 %v707
  %v772 = vunpack.c.l.b16 %v708
  %v773 = vunpack.c.l.b16 %v709
  %v774 = vunpack.c.h.b16 %v709
  %v775 = vunpack.c.l.b16 %v710
  %v776 = vunpack.c.h.b16 %v710
  %v777 = vunpack.c.l.b16 %v711
  %v778 = vunpack.c.l.b16 %v712
  %v779 = vunpack.c.h.b16 %v712
  %v780 = vunpack.c.l.b16 %v713
  %v781 = vunpack.c.h.b16 %v713
  %v782 = vunpack.c.l.b16 %v714
  %v783 = vunpack.c.l.b16 %v715
  %v784 = vunpack.c.h.b16 %v715
  %v785 = vunpack.c.l.b16 %v716
  %v786 = vunpack.c.h.b16 %v716
  %v787 = vunpack.c.l.b16 %v717
  %v788 = vunpack.c.l.b16 %v718
  %v789 = vunpack.c.h.b16 %v718
  %v790 = vunpack.c.l.b16 %v719
  %v791 = vunpack.c.h.b16 %v719
  %v792 = vunpack.c.l.b16 %v720
  %v793 = vpack.c.b16 %v753, %v748
  %v794 = vpack.c.b16 %v754, %v749
  %v795 = vpack.c.b16 %v755, %v750
  %v796 = vpack.c.b16 %v756, %v751
  %v797 = vpack.c.b16 %v757, %v752
  %v798 = vpack.c.b16 %v763, %v758
  %v799 = vpack.c.b16 %v764, %v759
  %v800 = vpack.c.b16 %v765, %v760
  %v801 = vpack.c.b16 %v766, %v761
  %v802 = vpack.c.b16 %v767, %v762
  %v803 = vpack.c.b16 %v773, %v768
  %v804 = vpack.c.b16 %v774, %v769
  %v805 = vpack.c.b16 %v775, %v770
  %v806 = vpack.c.b16 %v776, %v771
  %v807 = vpack.c.b16 %v777, %v772
  %v808 = vpack.c.b16 %v783, %v778
  %v809 = vpack.c.b16 %v784, %v779
  %v810 = vpack.c.b16 %v785, %v780
  %v811 = vpack.c.b16 %v786, %v781
  %v812 = vpack.c.b16 %v787, %v782
  %v813 = vpack.c.b16 %v788, %v788
  %v814 = vpack.c.b16 %v789, %v789
  %v815 = vpack.c.b16 %v790, %v790
  %v816 = vpack.c.b16 %v791, %v791
  %v817 = vpack.c.b16 %v792, %v792
  %v839 = vsel %vm461, %v797, 0
  %v842 = vsel %vm461, %v802, 0
  %v845 = vsel %vm461, %v807, 0
  %v848 = vsel %vm461, %v812, 0
  %v851 = vsel %vm461, %v817, 0
  %853 = vmatprep.subr.bf16.mxu0 0
  %854 = vmatpush1.bf16.msra.mxu0 %v389
  %855 = vmatprep.subr.bf16.mxu0 0
  %856 = vmatpush1.bf16.msra.mxu0 %v390
  %857 = vmatprep.subr.bf16.mxu0 0
  %858 = vmatpush1.bf16.msra.mxu0 %v391
  %859 = vmatprep.subr.bf16.mxu0 0
  %860 = vmatpush1.bf16.msra.mxu0 %v392
  %861 = vmatprep.subr.bf16.mxu0 0
  %862 = vmatpush1.bf16.msra.mxu0 %v393
  %863 = vmatprep.subr.bf16.mxu0 0
  %864 = vmatpush1.bf16.msra.mxu0 %v394
  %865 = vmatprep.subr.bf16.mxu0 0
  %866 = vmatpush1.bf16.msra.mxu0 %v395
  %867 = vmatprep.subr.bf16.mxu0 0
  %868 = vmatpush1.bf16.msra.mxu0 %v396
  %869 = vmatprep.subr.bf16.mxu0 0
  %870 = vmatpush1.bf16.msra.mxu0 %v397
  %871 = vmatprep.subr.bf16.mxu0 0
  %872 = vmatpush1.bf16.msra.mxu0 %v398
  %873 = vmatprep.subr.bf16.mxu0 0
  %874 = vmatpush1.bf16.msra.mxu0 %v399
  %875 = vmatprep.subr.bf16.mxu0 0
  %876 = vmatpush1.bf16.msra.mxu0 %v400
  %877 = vmatprep.subr.bf16.mxu0 0
  %878 = vmatpush1.bf16.msra.mxu0 %v401
  %879 = vmatprep.subr.bf16.mxu0 0
  %880 = vmatpush1.bf16.msra.mxu0 %v402
  %881 = vmatprep.subr.bf16.mxu0 0
  %882 = vmatpush1.bf16.msra.mxu0 %v403
  %883 = vmatprep.subr.bf16.mxu0 0
  %884 = vmatpush1.bf16.msra.mxu0 %v404
  %885 = vmatprep.mubr.bf16.mxu0 %v794
  %886 = vmatmul.mubr.bf16.gmra.mrb[0].mxu0 %v793
  %v887 = vpop.f32.mrb[0].mxu0
  %v888 = vadd.f32 0.0, %v887
  %v889 = vpop.f32.mrb[0].mxu0
  %v890 = vpop.f32.mrb[0].mxu0
  %v891 = vadd.f32 0.0, %v890
  %v892 = vpop.f32.mrb[0].mxu0
  %893 = vmatprep.mubr.bf16.mxu0 %v799
  %894 = vmatmul.mubr.bf16.gmra.mrb[0].mxu0 %v798
  %v895 = vpop.f32.mrb[0].mxu0
  %v896 = vadd.f32 0.0, %v895
  %v897 = vpop.f32.mrb[0].mxu0
  %v898 = vpop.f32.mrb[0].mxu0
  %v899 = vadd.f32 0.0, %v898
  %v900 = vpop.f32.mrb[0].mxu0
  %901 = vmatprep.mubr.bf16.mxu0 %v804
  %902 = vmatmul.mubr.bf16.gmra.mrb[0].mxu0 %v803
  %v903 = vpop.f32.mrb[0].mxu0
  %v904 = vadd.f32 0.0, %v903
  %v905 = vpop.f32.mrb[0].mxu0
  %v906 = vpop.f32.mrb[0].mxu0
  %v907 = vadd.f32 0.0, %v906
  %v908 = vpop.f32.mrb[0].mxu0
  %909 = vmatprep.mubr.bf16.mxu0 %v809
  %910 = vmatmul.mubr.bf16.gmra.mrb[0].mxu0 %v808
  %v911 = vpop.f32.mrb[0].mxu0
  %v912 = vadd.f32 0.0, %v911
  %v913 = vpop.f32.mrb[0].mxu0
  %v914 = vpop.f32.mrb[0].mxu0
  %v915 = vadd.f32 0.0, %v914
  %v916 = vpop.f32.mrb[0].mxu0
  %917 = vmatprep.mubr.bf16.mxu0 %v814
  %918 = vmatmul.mubr.bf16.gmra.mrb[0].mxu0 %v813
  %v919 = vpop.f32.mrb[0].mxu0
  %v920 = vadd.f32 0.0, %v919
  %v921 = vpop.f32.mrb[0].mxu0
  %v922 = vpop.f32.mrb[0].mxu0
  %v923 = vpop.f32.mrb[0].mxu0
  %924 = vdwg.mxu0
  %925 = vmatprep.subr.bf16.mxu0 0
  %926 = vmatpush1.bf16.msra.mxu0 %v405
  %927 = vmatprep.subr.bf16.mxu0 0
  %928 = vmatpush1.bf16.msra.mxu0 %v406
  %929 = vmatprep.subr.bf16.mxu0 0
  %930 = vmatpush1.bf16.msra.mxu0 %v407
  %931 = vmatprep.subr.bf16.mxu0 0
  %932 = vmatpush1.bf16.msra.mxu0 %v408
  %933 = vmatprep.subr.bf16.mxu0 0
  %934 = vmatpush1.bf16.msra.mxu0 %v409
  %935 = vmatprep.subr.bf16.mxu0 0
  %936 = vmatpush1.bf16.msra.mxu0 %v410
  %937 = vmatprep.subr.bf16.mxu0 0
  %938 = vmatpush1.bf16.msra.mxu0 %v411
  %939 = vmatprep.subr.bf16.mxu0 0
  %940 = vmatpush1.bf16.msra.mxu0 %v412
  %941 = vmatprep.subr.bf16.mxu0 0
  %942 = vmatpush1.bf16.msra.mxu0 %v413
  %943 = vmatprep.subr.bf16.mxu0 0
  %944 = vmatpush1.bf16.msra.mxu0 %v414
  %945 = vmatprep.subr.bf16.mxu0 0
  %946 = vmatpush1.bf16.msra.mxu0 %v415
  %947 = vmatprep.subr.bf16.mxu0 0
  %948 = vmatpush1.bf16.msra.mxu0 %v416
  %949 = vmatprep.subr.bf16.mxu0 0
  %950 = vmatpush1.bf16.msra.mxu0 %v417
  %951 = vmatprep.subr.bf16.mxu0 0
  %952 = vmatpush1.bf16.msra.mxu0 %v418
  %953 = vmatprep.subr.bf16.mxu0 0
  %954 = vmatpush1.bf16.msra.mxu0 %v419
  %955 = vmatprep.subr.bf16.mxu0 0
  %956 = vmatpush1.bf16.msra.mxu0 %v420
  %957 = vmatprep.mubr.bf16.mxu0 %v796
  %958 = vmatmul.mubr.bf16.gmra.mrb[0].mxu0 %v795
  %v959 = vpop.f32.mrb[0].mxu0
  %v960 = vadd.f32 %v888, %v959
  %v961 = vpop.f32.mrb[0].mxu0
  %v962 = vpop.f32.mrb[0].mxu0
  %v963 = vadd.f32 %v891, %v962
  %v964 = vpop.f32.mrb[0].mxu0
  %965 = vmatprep.mubr.bf16.mxu0 %v801
  %966 = vmatmul.mubr.bf16.gmra.mrb[0].mxu0 %v800
  %v967 = vpop.f32.mrb[0].mxu0
  %v968 = vadd.f32 %v896, %v967
  %v969 = vpop.f32.mrb[0].mxu0
  %v970 = vpop.f32.mrb[0].mxu0
  %v971 = vadd.f32 %v899, %v970
  %v972 = vpop.f32.mrb[0].mxu0
  %973 = vmatprep.mubr.bf16.mxu0 %v806
  %974 = vmatmul.mubr.bf16.gmra.mrb[0].mxu0 %v805
  %v975 = vpop.f32.mrb[0].mxu0
  %v976 = vadd.f32 %v904, %v975
  %v977 = vpop.f32.mrb[0].mxu0
  %v978 = vpop.f32.mrb[0].mxu0
  %v979 = vadd.f32 %v907, %v978
  %v980 = vpop.f32.mrb[0].mxu0
  %981 = vmatprep.mubr.bf16.mxu0 %v811
  %982 = vmatmul.mubr.bf16.gmra.mrb[0].mxu0 %v810
  %v983 = vpop.f32.mrb[0].mxu0
  %v984 = vadd.f32 %v912, %v983
  %v985 = vpop.f32.mrb[0].mxu0
  %v986 = vpop.f32.mrb[0].mxu0
  %v987 = vadd.f32 %v915, %v986
  %v988 = vpop.f32.mrb[0].mxu0
  %989 = vmatprep.mubr.bf16.mxu0 %v816
  %990 = vmatmul.mubr.bf16.gmra.mrb[0].mxu0 %v815
  %v991 = vpop.f32.mrb[0].mxu0
  %v992 = vadd.f32 %v920, %v991
  %v993 = vpop.f32.mrb[0].mxu0
  %v994 = vpop.f32.mrb[0].mxu0
  %v995 = vpop.f32.mrb[0].mxu0
  %996 = vdwg.mxu0
  %997 = vmatprep.subr.bf16.mxu0 0
  %998 = vmatpush1.bf16.msra.mxu0 %v421
  %999 = vmatprep.subr.bf16.mxu0 0
  %1000 = vmatpush1.bf16.msra.mxu0 %v422
  %1001 = vmatprep.subr.bf16.mxu0 0
  %1002 = vmatpush1.bf16.msra.mxu0 %v423
  %1003 = vmatprep.subr.bf16.mxu0 0
  %1004 = vmatpush1.bf16.msra.mxu0 %v424
  %1005 = vmatprep.subr.bf16.mxu0 0
  %1006 = vmatpush1.bf16.msra.mxu0 0
  %1007 = vmatprep.subr.bf16.mxu0 0
  %1008 = vmatpush1.bf16.msra.mxu0 0
  %1009 = vmatprep.subr.bf16.mxu0 0
  %1010 = vmatpush1.bf16.msra.mxu0 0
  %1011 = vmatprep.subr.bf16.mxu0 0
  %1012 = vmatpush1.bf16.msra.mxu0 0
  %1013 = vmatprep.subr.bf16.mxu0 0
  %1014 = vmatpush1.bf16.msra.mxu0 0
  %1015 = vmatprep.subr.bf16.mxu0 0
  %1016 = vmatpush1.bf16.msra.mxu0 0
  %1017 = vmatprep.subr.bf16.mxu0 0
  %1018 = vmatpush1.bf16.msra.mxu0 0
  %1019 = vmatprep.subr.bf16.mxu0 0
  %1020 = vmatpush1.bf16.msra.mxu0 0
  %1021 = vmatprep.subr.bf16.mxu0 0
  %1022 = vmatpush1.bf16.msra.mxu0 0
  %1023 = vmatprep.subr.bf16.mxu0 0
  %1024 = vmatpush1.bf16.msra.mxu0 0
  %1025 = vmatprep.subr.bf16.mxu0 0
  %1026 = vmatpush1.bf16.msra.mxu0 0
  %1027 = vmatprep.subr.bf16.mxu0 0
  %1028 = vmatpush1.bf16.msra.mxu0 0
  %1029 = vmatprep.mubr.bf16.mxu0 0
  %1030 = vmatmul.mubr.bf16.gmra.mrb[0].mxu0 %v839
  %v1031 = vpop.f32.mrb[0].mxu0
  %v1032 = vadd.f32 %v960, %v1031
  %v1033 = vpop.f32.mrb[0].mxu0
  %v1034 = vpop.f32.mrb[0].mxu0
  %v1035 = vadd.f32 %v963, %v1034
  %v1036 = vpop.f32.mrb[0].mxu0
  %1037 = vmatprep.mubr.bf16.mxu0 0
  %1038 = vmatmul.mubr.bf16.gmra.mrb[0].mxu0 %v842
  %v1039 = vpop.f32.mrb[0].mxu0
  %v1040 = vadd.f32 %v968, %v1039
  %v1041 = vpop.f32.mrb[0].mxu0
  %v1042 = vpop.f32.mrb[0].mxu0
  %v1043 = vadd.f32 %v971, %v1042
  %v1044 = vpop.f32.mrb[0].mxu0
  %1045 = vmatprep.mubr.bf16.mxu0 0
  %1046 = vmatmul.mubr.bf16.gmra.mrb[0].mxu0 %v845
  %v1047 = vpop.f32.mrb[0].mxu0
  %v1048 = vadd.f32 %v976, %v1047
  %v1049 = vpop.f32.mrb[0].mxu0
  %v1050 = vpop.f32.mrb[0].mxu0
  %v1051 = vadd.f32 %v979, %v1050
  %v1052 = vpop.f32.mrb[0].mxu0
  %1053 = vmatprep.mubr.bf16.mxu0 0
  %1054 = vmatmul.mubr.bf16.gmra.mrb[0].mxu0 %v848
  %v1055 = vpop.f32.mrb[0].mxu0
  %v1056 = vadd.f32 %v984, %v1055
  %v1057 = vpop.f32.mrb[0].mxu0
  %v1058 = vpop.f32.mrb[0].mxu0
  %v1059 = vadd.f32 %v987, %v1058
  %v1060 = vpop.f32.mrb[0].mxu0
  %1061 = vmatprep.mubr.bf16.mxu0 0
  %1062 = vmatmul.mubr.bf16.gmra.mrb[0].mxu0 %v851
  %v1063 = vpop.f32.mrb[0].mxu0
  %v1064 = vadd.f32 %v992, %v1063
  %v1065 = vpop.f32.mrb[0].mxu0
  %v1066 = vpop.f32.mrb[0].mxu0
  %v1067 = vpop.f32.mrb[0].mxu0
  %1068 = vdwg.mxu0
  %v1069 = vmax.f32 %v656, %v1032
  %v1070 = vmax.f32 %v659, %v1035
  %v1071 = vmax.f32 %v664, %v1040
  %v1072 = vmax.f32 %v667, %v1043
  %v1073 = vmax.f32 %v672, %v1048
  %v1074 = vmax.f32 %v675, %v1051
  %v1075 = vmax.f32 %v680, %v1056
  %v1076 = vmax.f32 %v683, %v1059
  %v1077 = vmax.f32 %v688, %v1064
  %s1078 = scalar_lea.vmem %s0, 360
  %v1079 = vld [vmem:[%s1078] sm:$0xff]
  %v1080 = vld [vmem:[%s1078 + $0x8] sm:$0xff]
  %v1081 = vld [vmem:[%s1078 + $0x10] sm:$0xf]
  %v1082 = vld [vmem:[%s1078 + $0x14] sm:$0xff]
  %v1083 = vld [vmem:[%s1078 + $0x1c] sm:$0xff]
  %v1084 = vld [vmem:[%s1078 + $0x24] sm:$0xf]
  %v1085 = vld [vmem:[%s1078 + $0x28] sm:$0xff]
  %v1086 = vld [vmem:[%s1078 + $0x30] sm:$0xff]
  %v1087 = vld [vmem:[%s1078 + $0x38] sm:$0xf]
  %v1088 = vld [vmem:[%s1078 + $0x3c] sm:$0xff]
  %v1089 = vld [vmem:[%s1078 + $0x44] sm:$0xff]
  %v1090 = vld [vmem:[%s1078 + $0x4c] sm:$0xf]
  %v1091 = vld [vmem:[%s1078 + $0x50] sm:$0xff]
  %v1092 = vld [vmem:[%s1078 + $0x58] sm:$0xff]
  %v1093 = vld [vmem:[%s1078 + $0x60] sm:$0xf]
  %v1094 = vld [vmem:[%s1078 + $0x64] sm:$0xff]
  %v1095 = vld [vmem:[%s1078 + $0x6c] sm:$0xff]
  %v1096 = vld [vmem:[%s1078 + $0x74] sm:$0xf]
  %v1097 = vld [vmem:[%s1078 + $0x78] sm:$0xff]
  %v1098 = vld [vmem:[%s1078 + $0x80] sm:$0xff]
  %v1099 = vld [vmem:[%s1078 + $0x88] sm:$0xf]
  %v1100 = vld [vmem:[%s1078 + $0x8c] sm:$0xff]
  %v1101 = vld [vmem:[%s1078 + $0x94] sm:$0xff]
  %v1102 = vld [vmem:[%s1078 + $0x9c] sm:$0xf]
  %v1103 = vld [vmem:[%s1078 + $0xa0] sm:$0xff]
  %v1104 = vld [vmem:[%s1078 + $0xa8] sm:$0xff]
  %v1105 = vld [vmem:[%s1078 + $0xb0] sm:$0xf]
  %v1133 = vunpack.c.l.b16 %v1079
  %v1134 = vunpack.c.h.b16 %v1079
  %v1135 = vunpack.c.l.b16 %v1080
  %v1136 = vunpack.c.h.b16 %v1080
  %v1137 = vunpack.c.l.b16 %v1081
  %v1138 = vunpack.c.l.b16 %v1082
  %v1139 = vunpack.c.h.b16 %v1082
  %v1140 = vunpack.c.l.b16 %v1083
  %v1141 = vunpack.c.h.b16 %v1083
  %v1142 = vunpack.c.l.b16 %v1084
  %v1143 = vunpack.c.l.b16 %v1085
  %v1144 = vunpack.c.h.b16 %v1085
  %v1145 = vunpack.c.l.b16 %v1086
  %v1146 = vunpack.c.h.b16 %v1086
  %v1147 = vunpack.c.l.b16 %v1087
  %v1148 = vunpack.c.l.b16 %v1088
  %v1149 = vunpack.c.h.b16 %v1088
  %v1150 = vunpack.c.l.b16 %v1089
  %v1151 = vunpack.c.h.b16 %v1089
  %v1152 = vunpack.c.l.b16 %v1090
  %v1153 = vunpack.c.l.b16 %v1091
  %v1154 = vunpack.c.h.b16 %v1091
  %v1155 = vunpack.c.l.b16 %v1092
  %v1156 = vunpack.c.h.b16 %v1092
  %v1157 = vunpack.c.l.b16 %v1093
  %v1158 = vunpack.c.l.b16 %v1094
  %v1159 = vunpack.c.h.b16 %v1094
  %v1160 = vunpack.c.l.b16 %v1095
  %v1161 = vunpack.c.h.b16 %v1095
  %v1162 = vunpack.c.l.b16 %v1096
  %v1163 = vunpack.c.l.b16 %v1097
  %v1164 = vunpack.c.h.b16 %v1097
  %v1165 = vunpack.c.l.b16 %v1098
  %v1166 = vunpack.c.h.b16 %v1098
  %v1167 = vunpack.c.l.b16 %v1099
  %v1168 = vunpack.c.l.b16 %v1100
  %v1169 = vunpack.c.h.b16 %v1100
  %v1170 = vunpack.c.l.b16 %v1101
  %v1171 = vunpack.c.h.b16 %v1101
  %v1172 = vunpack.c.l.b16 %v1102
  %v1173 = vunpack.c.l.b16 %v1103
  %v1174 = vunpack.c.h.b16 %v1103
  %v1175 = vunpack.c.l.b16 %v1104
  %v1176 = vunpack.c.h.b16 %v1104
  %v1177 = vunpack.c.l.b16 %v1105
  %v1178 = vpack.c.b16 %v1138, %v1133
  %v1179 = vpack.c.b16 %v1139, %v1134
  %v1180 = vpack.c.b16 %v1140, %v1135
  %v1181 = vpack.c.b16 %v1141, %v1136
  %v1182 = vpack.c.b16 %v1142, %v1137
  %v1183 = vpack.c.b16 %v1148, %v1143
  %v1184 = vpack.c.b16 %v1149, %v1144
  %v1185 = vpack.c.b16 %v1150, %v1145
  %v1186 = vpack.c.b16 %v1151, %v1146
  %v1187 = vpack.c.b16 %v1152, %v1147
  %v1188 = vpack.c.b16 %v1158, %v1153
  %v1189 = vpack.c.b16 %v1159, %v1154
  %v1190 = vpack.c.b16 %v1160, %v1155
  %v1191 = vpack.c.b16 %v1161, %v1156
  %v1192 = vpack.c.b16 %v1162, %v1157
  %v1193 = vpack.c.b16 %v1168, %v1163
  %v1194 = vpack.c.b16 %v1169, %v1164
  %v1195 = vpack.c.b16 %v1170, %v1165
  %v1196 = vpack.c.b16 %v1171, %v1166
  %v1197 = vpack.c.b16 %v1172, %v1167
  %v1198 = vpack.c.b16 %v1173, %v1173
  %v1199 = vpack.c.b16 %v1174, %v1174
  %v1200 = vpack.c.b16 %v1175, %v1175
  %v1201 = vpack.c.b16 %v1176, %v1176
  %v1202 = vpack.c.b16 %v1177, %v1177
  %v1224 = vsel %vm461, %v1182, 0
  %v1227 = vsel %vm461, %v1187, 0
  %v1230 = vsel %vm461, %v1192, 0
  %v1233 = vsel %vm461, %v1197, 0
  %v1236 = vsel %vm461, %v1202, 0
  %1238 = vmatprep.subr.bf16.mxu0 0
  %1239 = vmatpush1.bf16.msra.mxu0 %v389
  %1240 = vmatprep.subr.bf16.mxu0 0
  %1241 = vmatpush1.bf16.msra.mxu0 %v390
  %1242 = vmatprep.subr.bf16.mxu0 0
  %1243 = vmatpush1.bf16.msra.mxu0 %v391
  %1244 = vmatprep.subr.bf16.mxu0 0
  %1245 = vmatpush1.bf16.msra.mxu0 %v392
  %1246 = vmatprep.subr.bf16.mxu0 0
  %1247 = vmatpush1.bf16.msra.mxu0 %v393
  %1248 = vmatprep.subr.bf16.mxu0 0
  %1249 = vmatpush1.bf16.msra.mxu0 %v394
  %1250 = vmatprep.subr.bf16.mxu0 0
  %1251 = vmatpush1.bf16.msra.mxu0 %v395
  %1252 = vmatprep.subr.bf16.mxu0 0
  %1253 = vmatpush1.bf16.msra.mxu0 %v396
  %1254 = vmatprep.subr.bf16.mxu0 0
  %1255 = vmatpush1.bf16.msra.mxu0 %v397
  %1256 = vmatprep.subr.bf16.mxu0 0
  %1257 = vmatpush1.bf16.msra.mxu0 %v398
  %1258 = vmatprep.subr.bf16.mxu0 0
  %1259 = vmatpush1.bf16.msra.mxu0 %v399
  %1260 = vmatprep.subr.bf16.mxu0 0
  %1261 = vmatpush1.bf16.msra.mxu0 %v400
  %1262 = vmatprep.subr.bf16.mxu0 0
  %1263 = vmatpush1.bf16.msra.mxu0 %v401
  %1264 = vmatprep.subr.bf16.mxu0 0
  %1265 = vmatpush1.bf16.msra.mxu0 %v402
  %1266 = vmatprep.subr.bf16.mxu0 0
  %1267 = vmatpush1.bf16.msra.mxu0 %v403
  %1268 = vmatprep.subr.bf16.mxu0 0
  %1269 = vmatpush1.bf16.msra.mxu0 %v404
  %1270 = vmatprep.mubr.bf16.mxu0 %v1179
  %1271 = vmatmul.mubr.bf16.gmra.mrb[0].mxu0 %v1178
  %v1272 = vpop.f32.mrb[0].mxu0
  %v1273 = vadd.f32 0.0, %v1272
  %v1274 = vpop.f32.mrb[0].mxu0
  %v1275 = vpop.f32.mrb[0].mxu0
  %v1276 = vadd.f32 0.0, %v1275
  %v1277 = vpop.f32.mrb[0].mxu0
  %1278 = vmatprep.mubr.bf16.mxu0 %v1184
  %1279 = vmatmul.mubr.bf16.gmra.mrb[0].mxu0 %v1183
  %v1280 = vpop.f32.mrb[0].mxu0
  %v1281 = vadd.f32 0.0, %v1280
  %v1282 = vpop.f32.mrb[0].mxu0
  %v1283 = vpop.f32.mrb[0].mxu0
  %v1284 = vadd.f32 0.0, %v1283
  %v1285 = vpop.f32.mrb[0].mxu0
  %1286 = vmatprep.mubr.bf16.mxu0 %v1189
  %1287 = vmatmul.mubr.bf16.gmra.mrb[0].mxu0 %v1188
  %v1288 = vpop.f32.mrb[0].mxu0
  %v1289 = vadd.f32 0.0, %v1288
  %v1290 = vpop.f32.mrb[0].mxu0
  %v1291 = vpop.f32.mrb[0].mxu0
  %v1292 = vadd.f32 0.0, %v1291
  %v1293 = vpop.f32.mrb[0].mxu0
  %1294 = vmatprep.mubr.bf16.mxu0 %v1194
  %1295 = vmatmul.mubr.bf16.gmra.mrb[0].mxu0 %v1193
  %v1296 = vpop.f32.mrb[0].mxu0
  %v1297 = vadd.f32 0.0, %v1296
  %v1298 = vpop.f32.mrb[0].mxu0
  %v1299 = vpop.f32.mrb[0].mxu0
  %v1300 = vadd.f32 0.0, %v1299
  %v1301 = vpop.f32.mrb[0].mxu0
  %1302 = vmatprep.mubr.bf16.mxu0 %v1199
  %1303 = vmatmul.mubr.bf16.gmra.mrb[0].mxu0 %v1198
  %v1304 = vpop.f32.mrb[0].mxu0
  %v1305 = vadd.f32 0.0, %v1304
  %v1306 = vpop.f32.mrb[0].mxu0
  %v1307 = vpop.f32.mrb[0].mxu0
  %v1308 = vpop.f32.mrb[0].mxu0
  %1309 = vdwg.mxu0
  %1310 = vmatprep.subr.bf16.mxu0 0
  %1311 = vmatpush1.bf16.msra.mxu0 %v405
  %1312 = vmatprep.subr.bf16.mxu0 0
  %1313 = vmatpush1.bf16.msra.mxu0 %v406
  %1314 = vmatprep.subr.bf16.mxu0 0
  %1315 = vmatpush1.bf16.msra.mxu0 %v407
  %1316 = vmatprep.subr.bf16.mxu0 0
  %1317 = vmatpush1.bf16.msra.mxu0 %v408
  %1318 = vmatprep.subr.bf16.mxu0 0
  %1319 = vmatpush1.bf16.msra.mxu0 %v409
  %1320 = vmatprep.subr.bf16.mxu0 0
  %1321 = vmatpush1.bf16.msra.mxu0 %v410
  %1322 = vmatprep.subr.bf16.mxu0 0
  %1323 = vmatpush1.bf16.msra.mxu0 %v411
  %1324 = vmatprep.subr.bf16.mxu0 0
  %1325 = vmatpush1.bf16.msra.mxu0 %v412
  %1326 = vmatprep.subr.bf16.mxu0 0
  %1327 = vmatpush1.bf16.msra.mxu0 %v413
  %1328 = vmatprep.subr.bf16.mxu0 0
  %1329 = vmatpush1.bf16.msra.mxu0 %v414
  %1330 = vmatprep.subr.bf16.mxu0 0
  %1331 = vmatpush1.bf16.msra.mxu0 %v415
  %1332 = vmatprep.subr.bf16.mxu0 0
  %1333 = vmatpush1.bf16.msra.mxu0 %v416
  %1334 = vmatprep.subr.bf16.mxu0 0
  %1335 = vmatpush1.bf16.msra.mxu0 %v417
  %1336 = vmatprep.subr.bf16.mxu0 0
  %1337 = vmatpush1.bf16.msra.mxu0 %v418
  %1338 = vmatprep.subr.bf16.mxu0 0
  %1339 = vmatpush1.bf16.msra.mxu0 %v419
  %1340 = vmatprep.subr.bf16.mxu0 0
  %1341 = vmatpush1.bf16.msra.mxu0 %v420
  %1342 = vmatprep.mubr.bf16.mxu0 %v1181
  %1343 = vmatmul.mubr.bf16.gmra.mrb[0].mxu0 %v1180
  %v1344 = vpop.f32.mrb[0].mxu0
  %v1345 = vadd.f32 %v1273, %v1344
  %v1346 = vpop.f32.mrb[0].mxu0
  %v1347 = vpop.f32.mrb[0].mxu0
  %v1348 = vadd.f32 %v1276, %v1347
  %v1349 = vpop.f32.mrb[0].mxu0
  %1350 = vmatprep.mubr.bf16.mxu0 %v1186
  %1351 = vmatmul.mubr.bf16.gmra.mrb[0].mxu0 %v1185
  %v1352 = vpop.f32.mrb[0].mxu0
  %v1353 = vadd.f32 %v1281, %v1352
  %v1354 = vpop.f32.mrb[0].mxu0
  %v1355 = vpop.f32.mrb[0].mxu0
  %v1356 = vadd.f32 %v1284, %v1355
  %v1357 = vpop.f32.mrb[0].mxu0
  %1358 = vmatprep.mubr.bf16.mxu0 %v1191
  %1359 = vmatmul.mubr.bf16.gmra.mrb[0].mxu0 %v1190
  %v1360 = vpop.f32.mrb[0].mxu0
  %v1361 = vadd.f32 %v1289, %v1360
  %v1362 = vpop.f32.mrb[0].mxu0
  %v1363 = vpop.f32.mrb[0].mxu0
  %v1364 = vadd.f32 %v1292, %v1363
  %v1365 = vpop.f32.mrb[0].mxu0
  %1366 = vmatprep.mubr.bf16.mxu0 %v1196
  %1367 = vmatmul.mubr.bf16.gmra.mrb[0].mxu0 %v1195
  %v1368 = vpop.f32.mrb[0].mxu0
  %v1369 = vadd.f32 %v1297, %v1368
  %v1370 = vpop.f32.mrb[0].mxu0
  %v1371 = vpop.f32.mrb[0].mxu0
  %v1372 = vadd.f32 %v1300, %v1371
  %v1373 = vpop.f32.mrb[0].mxu0
  %1374 = vmatprep.mubr.bf16.mxu0 %v1201
  %1375 = vmatmul.mubr.bf16.gmra.mrb[0].mxu0 %v1200
  %v1376 = vpop.f32.mrb[0].mxu0
  %v1377 = vadd.f32 %v1305, %v1376
  %v1378 = vpop.f32.mrb[0].mxu0
  %v1379 = vpop.f32.mrb[0].mxu0
  %v1380 = vpop.f32.mrb[0].mxu0
  %1381 = vdwg.mxu0
  %1382 = vmatprep.subr.bf16.mxu0 0
  %1383 = vmatpush1.bf16.msra.mxu0 %v421
  %1384 = vmatprep.subr.bf16.mxu0 0
  %1385 = vmatpush1.bf16.msra.mxu0 %v422
  %1386 = vmatprep.subr.bf16.mxu0 0
  %1387 = vmatpush1.bf16.msra.mxu0 %v423
  %1388 = vmatprep.subr.bf16.mxu0 0
  %1389 = vmatpush1.bf16.msra.mxu0 %v424
  %1390 = vmatprep.subr.bf16.mxu0 0
  %1391 = vmatpush1.bf16.msra.mxu0 0
  %1392 = vmatprep.subr.bf16.mxu0 0
  %1393 = vmatpush1.bf16.msra.mxu0 0
  %1394 = vmatprep.subr.bf16.mxu0 0
  %1395 = vmatpush1.bf16.msra.mxu0 0
  %1396 = vmatprep.subr.bf16.mxu0 0
  %1397 = vmatpush1.bf16.msra.mxu0 0
  %1398 = vmatprep.subr.bf16.mxu0 0
  %1399 = vmatpush1.bf16.msra.mxu0 0
  %1400 = vmatprep.subr.bf16.mxu0 0
  %1401 = vmatpush1.bf16.msra.mxu0 0
  %1402 = vmatprep.subr.bf16.mxu0 0
  %1403 = vmatpush1.bf16.msra.mxu0 0
  %1404 = vmatprep.subr.bf16.mxu0 0
  %1405 = vmatpush1.bf16.msra.mxu0 0
  %1406 = vmatprep.subr.bf16.mxu0 0
  %1407 = vmatpush1.bf16.msra.mxu0 0
  %1408 = vmatprep.subr.bf16.mxu0 0
  %1409 = vmatpush1.bf16.msra.mxu0 0
  %1410 = vmatprep.subr.bf16.mxu0 0
  %1411 = vmatpush1.bf16.msra.mxu0 0
  %1412 = vmatprep.subr.bf16.mxu0 0
  %1413 = vmatpush1.bf16.msra.mxu0 0
  %1414 = vmatprep.mubr.bf16.mxu0 0
  %1415 = vmatmul.mubr.bf16.gmra.mrb[0].mxu0 %v1224
  %v1416 = vpop.f32.mrb[0].mxu0
  %v1417 = vadd.f32 %v1345, %v1416
  %v1418 = vpop.f32.mrb[0].mxu0
  %v1419 = vpop.f32.mrb[0].mxu0
  %v1420 = vadd.f32 %v1348, %v1419
  %v1421 = vpop.f32.mrb[0].mxu0
  %1422 = vmatprep.mubr.bf16.mxu0 0
  %1423 = vmatmul.mubr.bf16.gmra.mrb[0].mxu0 %v1227
  %v1424 = vpop.f32.mrb[0].mxu0
  %v1425 = vadd.f32 %v1353, %v1424
  %v1426 = vpop.f32.mrb[0].mxu0
  %v1427 = vpop.f32.mrb[0].mxu0
  %v1428 = vadd.f32 %v1356, %v1427
  %v1429 = vpop.f32.mrb[0].mxu0
  %1430 = vmatprep.mubr.bf16.mxu0 0
  %1431 = vmatmul.mubr.bf16.gmra.mrb[0].mxu0 %v1230
  %v1432 = vpop.f32.mrb[0].mxu0
  %v1433 = vadd.f32 %v1361, %v1432
  %v1434 = vpop.f32.mrb[0].mxu0
  %v1435 = vpop.f32.mrb[0].mxu0
  %v1436 = vadd.f32 %v1364, %v1435
  %v1437 = vpop.f32.mrb[0].mxu0
  %1438 = vmatprep.mubr.bf16.mxu0 0
  %1439 = vmatmul.mubr.bf16.gmra.mrb[0].mxu0 %v1233
  %v1440 = vpop.f32.mrb[0].mxu0
  %v1441 = vadd.f32 %v1369, %v1440
  %v1442 = vpop.f32.mrb[0].mxu0
  %v1443 = vpop.f32.mrb[0].mxu0
  %v1444 = vadd.f32 %v1372, %v1443
  %v1445 = vpop.f32.mrb[0].mxu0
  %1446 = vmatprep.mubr.bf16.mxu0 0
  %1447 = vmatmul.mubr.bf16.gmra.mrb[0].mxu0 %v1236
  %v1448 = vpop.f32.mrb[0].mxu0
  %v1449 = vadd.f32 %v1377, %v1448
  %v1450 = vpop.f32.mrb[0].mxu0
  %v1451 = vpop.f32.mrb[0].mxu0
  %v1452 = vpop.f32.mrb[0].mxu0
  %1453 = vdwg.mxu0
  %v1454 = vmax.f32 %v1069, %v1417
  %v1455 = vmax.f32 %v1070, %v1420
  %v1456 = vmax.f32 %v1071, %v1425
  %v1457 = vmax.f32 %v1072, %v1428
  %v1458 = vmax.f32 %v1073, %v1433
  %v1459 = vmax.f32 %v1074, %v1436
  %v1460 = vmax.f32 %v1075, %v1441
  %v1461 = vmax.f32 %v1076, %v1444
  %v1462 = vmax.f32 %v1077, %v1449
  %s1463 = scalar_lea.vmem %s0, 540
  %v1464 = vld [vmem:[%s1463] sm:$0xff]
  %v1465 = vld [vmem:[%s1463 + $0x8] sm:$0xff]
  %v1466 = vld [vmem:[%s1463 + $0x10] sm:$0xf]
  %v1467 = vld [vmem:[%s1463 + $0x14] sm:$0xff]
  %v1468 = vld [vmem:[%s1463 + $0x1c] sm:$0xff]
  %v1469 = vld [vmem:[%s1463 + $0x24] sm:$0xf]
  %v1470 = vld [vmem:[%s1463 + $0x28] sm:$0xff]
  %v1471 = vld [vmem:[%s1463 + $0x30] sm:$0xff]
  %v1472 = vld [vmem:[%s1463 + $0x38] sm:$0xf]
  %v1473 = vld [vmem:[%s1463 + $0x3c] sm:$0xff]
  %v1474 = vld [vmem:[%s1463 + $0x44] sm:$0xff]
  %v1475 = vld [vmem:[%s1463 + $0x4c] sm:$0xf]
  %v1476 = vld [vmem:[%s1463 + $0x50] sm:$0xff]
  %v1477 = vld [vmem:[%s1463 + $0x58] sm:$0xff]
  %v1478 = vld [vmem:[%s1463 + $0x60] sm:$0xf]
  %v1479 = vld [vmem:[%s1463 + $0x64] sm:$0xff]
  %v1480 = vld [vmem:[%s1463 + $0x6c] sm:$0xff]
  %v1481 = vld [vmem:[%s1463 + $0x74] sm:$0xf]
  %v1482 = vld [vmem:[%s1463 + $0x78] sm:$0xff]
  %v1483 = vld [vmem:[%s1463 + $0x80] sm:$0xff]
  %v1484 = vld [vmem:[%s1463 + $0x88] sm:$0xf]
  %v1485 = vld [vmem:[%s1463 + $0x8c] sm:$0xff]
  %v1486 = vld [vmem:[%s1463 + $0x94] sm:$0xff]
  %v1487 = vld [vmem:[%s1463 + $0x9c] sm:$0xf]
  %v1488 = vld [vmem:[%s1463 + $0xa0] sm:$0xff]
  %v1489 = vld [vmem:[%s1463 + $0xa8] sm:$0xff]
  %v1490 = vld [vmem:[%s1463 + $0xb0] sm:$0xf]
  %v1518 = vunpack.c.l.b16 %v1464
  %v1519 = vunpack.c.h.b16 %v1464
  %v1520 = vunpack.c.l.b16 %v1465
  %v1521 = vunpack.c.h.b16 %v1465
  %v1522 = vunpack.c.l.b16 %v1466
  %v1523 = vunpack.c.l.b16 %v1467
  %v1524 = vunpack.c.h.b16 %v1467
  %v1525 = vunpack.c.l.b16 %v1468
  %v1526 = vunpack.c.h.b16 %v1468
  %v1527 = vunpack.c.l.b16 %v1469
  %v1528 = vunpack.c.l.b16 %v1470
  %v1529 = vunpack.c.h.b16 %v1470
  %v1530 = vunpack.c.l.b16 %v1471
  %v1531 = vunpack.c.h.b16 %v1471
  %v1532 = vunpack.c.l.b16 %v1472
  %v1533 = vunpack.c.l.b16 %v1473
  %v1534 = vunpack.c.h.b16 %v1473
  %v1535 = vunpack.c.l.b16 %v1474
  %v1536 = vunpack.c.h.b16 %v1474
  %v1537 = vunpack.c.l.b16 %v1475
  %v1538 = vunpack.c.l.b16 %v1476
  %v1539 = vunpack.c.h.b16 %v1476
  %v1540 = vunpack.c.l.b16 %v1477
  %v1541 = vunpack.c.h.b16 %v1477
  %v1542 = vunpack.c.l.b16 %v1478
  %v1543 = vunpack.c.l.b16 %v1479
  %v1544 = vunpack.c.h.b16 %v1479
  %v1545 = vunpack.c.l.b16 %v1480
  %v1546 = vunpack.c.h.b16 %v1480
  %v1547 = vunpack.c.l.b16 %v1481
  %v1548 = vunpack.c.l.b16 %v1482
  %v1549 = vunpack.c.h.b16 %v1482
  %v1550 = vunpack.c.l.b16 %v1483
  %v1551 = vunpack.c.h.b16 %v1483
  %v1552 = vunpack.c.l.b16 %v1484
  %v1553 = vunpack.c.l.b16 %v1485
  %v1554 = vunpack.c.h.b16 %v1485
  %v1555 = vunpack.c.l.b16 %v1486
  %v1556 = vunpack.c.h.b16 %v1486
  %v1557 = vunpack.c.l.b16 %v1487
  %v1558 = vunpack.c.l.b16 %v1488
  %v1559 = vunpack.c.h.b16 %v1488
  %v1560 = vunpack.c.l.b16 %v1489
  %v1561 = vunpack.c.h.b16 %v1489
  %v1562 = vunpack.c.l.b16 %v1490
  %v1563 = vpack.c.b16 %v1523, %v1518
  %v1564 = vpack.c.b16 %v1524, %v1519
  %v1565 = vpack.c.b16 %v1525, %v1520
  %v1566 = vpack.c.b16 %v1526, %v1521
  %v1567 = vpack.c.b16 %v1527, %v1522
  %v1568 = vpack.c.b16 %v1533, %v1528
  %v1569 = vpack.c.b16 %v1534, %v1529
  %v1570 = vpack.c.b16 %v1535, %v1530
  %v1571 = vpack.c.b16 %v1536, %v1531
  %v1572 = vpack.c.b16 %v1537, %v1532
  %v1573 = vpack.c.b16 %v1543, %v1538
  %v1574 = vpack.c.b16 %v1544, %v1539
  %v1575 = vpack.c.b16 %v1545, %v1540
  %v1576 = vpack.c.b16 %v1546, %v1541
  %v1577 = vpack.c.b16 %v1547, %v1542
  %v1578 = vpack.c.b16 %v1553, %v1548
  %v1579 = vpack.c.b16 %v1554, %v1549
  %v1580 = vpack.c.b16 %v1555, %v1550
  %v1581 = vpack.c.b16 %v1556, %v1551
  %v1582 = vpack.c.b16 %v1557, %v1552
  %v1583 = vpack.c.b16 %v1558, %v1558
  %v1584 = vpack.c.b16 %v1559, %v1559
  %v1585 = vpack.c.b16 %v1560, %v1560
  %v1586 = vpack.c.b16 %v1561, %v1561
  %v1587 = vpack.c.b16 %v1562, %v1562
  %v1609 = vsel %vm461, %v1567, 0
  %v1612 = vsel %vm461, %v1572, 0
  %v1615 = vsel %vm461, %v1577, 0
  %v1618 = vsel %vm461, %v1582, 0
  %v1621 = vsel %vm461, %v1587, 0
  %1623 = vmatprep.subr.bf16.mxu0 0
  %1624 = vmatpush1.bf16.msra.mxu0 %v389
  %1625 = vmatprep.subr.bf16.mxu0 0
  %1626 = vmatpush1.bf16.msra.mxu0 %v390
  %1627 = vmatprep.subr.bf16.mxu0 0
  %1628 = vmatpush1.bf16.msra.mxu0 %v391
  %1629 = vmatprep.subr.bf16.mxu0 0
  %1630 = vmatpush1.bf16.msra.mxu0 %v392
  %1631 = vmatprep.subr.bf16.mxu0 0
  %1632 = vmatpush1.bf16.msra.mxu0 %v393
  %1633 = vmatprep.subr.bf16.mxu0 0
  %1634 = vmatpush1.bf16.msra.mxu0 %v394
  %1635 = vmatprep.subr.bf16.mxu0 0
  %1636 = vmatpush1.bf16.msra.mxu0 %v395
  %1637 = vmatprep.subr.bf16.mxu0 0
  %1638 = vmatpush1.bf16.msra.mxu0 %v396
  %1639 = vmatprep.subr.bf16.mxu0 0
  %1640 = vmatpush1.bf16.msra.mxu0 %v397
  %1641 = vmatprep.subr.bf16.mxu0 0
  %1642 = vmatpush1.bf16.msra.mxu0 %v398
  %1643 = vmatprep.subr.bf16.mxu0 0
  %1644 = vmatpush1.bf16.msra.mxu0 %v399
  %1645 = vmatprep.subr.bf16.mxu0 0
  %1646 = vmatpush1.bf16.msra.mxu0 %v400
  %1647 = vmatprep.subr.bf16.mxu0 0
  %1648 = vmatpush1.bf16.msra.mxu0 %v401
  %1649 = vmatprep.subr.bf16.mxu0 0
  %1650 = vmatpush1.bf16.msra.mxu0 %v402
  %1651 = vmatprep.subr.bf16.mxu0 0
  %1652 = vmatpush1.bf16.msra.mxu0 %v403
  %1653 = vmatprep.subr.bf16.mxu0 0
  %1654 = vmatpush1.bf16.msra.mxu0 %v404
  %1655 = vmatprep.mubr.bf16.mxu0 %v1564
  %1656 = vmatmul.mubr.bf16.gmra.mrb[0].mxu0 %v1563
  %v1657 = vpop.f32.mrb[0].mxu0
  %v1658 = vadd.f32 0.0, %v1657
  %v1659 = vpop.f32.mrb[0].mxu0
  %v1660 = vpop.f32.mrb[0].mxu0
  %v1661 = vadd.f32 0.0, %v1660
  %v1662 = vpop.f32.mrb[0].mxu0
  %1663 = vmatprep.mubr.bf16.mxu0 %v1569
  %1664 = vmatmul.mubr.bf16.gmra.mrb[0].mxu0 %v1568
  %v1665 = vpop.f32.mrb[0].mxu0
  %v1666 = vadd.f32 0.0, %v1665
  %v1667 = vpop.f32.mrb[0].mxu0
  %v1668 = vpop.f32.mrb[0].mxu0
  %v1669 = vadd.f32 0.0, %v1668
  %v1670 = vpop.f32.mrb[0].mxu0
  %1671 = vmatprep.mubr.bf16.mxu0 %v1574
  %1672 = vmatmul.mubr.bf16.gmra.mrb[0].mxu0 %v1573
  %v1673 = vpop.f32.mrb[0].mxu0
  %v1674 = vadd.f32 0.0, %v1673
  %v1675 = vpop.f32.mrb[0].mxu0
  %v1676 = vpop.f32.mrb[0].mxu0
  %v1677 = vadd.f32 0.0, %v1676
  %v1678 = vpop.f32.mrb[0].mxu0
  %1679 = vmatprep.mubr.bf16.mxu0 %v1579
  %1680 = vmatmul.mubr.bf16.gmra.mrb[0].mxu0 %v1578
  %v1681 = vpop.f32.mrb[0].mxu0
  %v1682 = vadd.f32 0.0, %v1681
  %v1683 = vpop.f32.mrb[0].mxu0
  %v1684 = vpop.f32.mrb[0].mxu0
  %v1685 = vadd.f32 0.0, %v1684
  %v1686 = vpop.f32.mrb[0].mxu0
  %1687 = vmatprep.mubr.bf16.mxu0 %v1584
  %1688 = vmatmul.mubr.bf16.gmra.mrb[0].mxu0 %v1583
  %v1689 = vpop.f32.mrb[0].mxu0
  %v1690 = vadd.f32 0.0, %v1689
  %v1691 = vpop.f32.mrb[0].mxu0
  %v1692 = vpop.f32.mrb[0].mxu0
  %v1693 = vpop.f32.mrb[0].mxu0
  %1694 = vdwg.mxu0
  %1695 = vmatprep.subr.bf16.mxu0 0
  %1696 = vmatpush1.bf16.msra.mxu0 %v405
  %1697 = vmatprep.subr.bf16.mxu0 0
  %1698 = vmatpush1.bf16.msra.mxu0 %v406
  %1699 = vmatprep.subr.bf16.mxu0 0
  %1700 = vmatpush1.bf16.msra.mxu0 %v407
  %1701 = vmatprep.subr.bf16.mxu0 0
  %1702 = vmatpush1.bf16.msra.mxu0 %v408
  %1703 = vmatprep.subr.bf16.mxu0 0
  %1704 = vmatpush1.bf16.msra.mxu0 %v409
  %1705 = vmatprep.subr.bf16.mxu0 0
  %1706 = vmatpush1.bf16.msra.mxu0 %v410
  %1707 = vmatprep.subr.bf16.mxu0 0
  %1708 = vmatpush1.bf16.msra.mxu0 %v411
  %1709 = vmatprep.subr.bf16.mxu0 0
  %1710 = vmatpush1.bf16.msra.mxu0 %v412
  %1711 = vmatprep.subr.bf16.mxu0 0
  %1712 = vmatpush1.bf16.msra.mxu0 %v413
  %1713 = vmatprep.subr.bf16.mxu0 0
  %1714 = vmatpush1.bf16.msra.mxu0 %v414
  %1715 = vmatprep.subr.bf16.mxu0 0
  %1716 = vmatpush1.bf16.msra.mxu0 %v415
  %1717 = vmatprep.subr.bf16.mxu0 0
  %1718 = vmatpush1.bf16.msra.mxu0 %v416
  %1719 = vmatprep.subr.bf16.mxu0 0
  %1720 = vmatpush1.bf16.msra.mxu0 %v417
  %1721 = vmatprep.subr.bf16.mxu0 0
  %1722 = vmatpush1.bf16.msra.mxu0 %v418
  %1723 = vmatprep.subr.bf16.mxu0 0
  %1724 = vmatpush1.bf16.msra.mxu0 %v419
  %1725 = vmatprep.subr.bf16.mxu0 0
  %1726 = vmatpush1.bf16.msra.mxu0 %v420
  %1727 = vmatprep.mubr.bf16.mxu0 %v1566
  %1728 = vmatmul.mubr.bf16.gmra.mrb[0].mxu0 %v1565
  %v1729 = vpop.f32.mrb[0].mxu0
  %v1730 = vadd.f32 %v1658, %v1729
  %v1731 = vpop.f32.mrb[0].mxu0
  %v1732 = vpop.f32.mrb[0].mxu0
  %v1733 = vadd.f32 %v1661, %v1732
  %v1734 = vpop.f32.mrb[0].mxu0
  %1735 = vmatprep.mubr.bf16.mxu0 %v1571
  %1736 = vmatmul.mubr.bf16.gmra.mrb[0].mxu0 %v1570
  %v1737 = vpop.f32.mrb[0].mxu0
  %v1738 = vadd.f32 %v1666, %v1737
  %v1739 = vpop.f32.mrb[0].mxu0
  %v1740 = vpop.f32.mrb[0].mxu0
  %v1741 = vadd.f32 %v1669, %v1740
  %v1742 = vpop.f32.mrb[0].mxu0
  %1743 = vmatprep.mubr.bf16.mxu0 %v1576
  %1744 = vmatmul.mubr.bf16.gmra.mrb[0].mxu0 %v1575
  %v1745 = vpop.f32.mrb[0].mxu0
  %v1746 = vadd.f32 %v1674, %v1745
  %v1747 = vpop.f32.mrb[0].mxu0
  %v1748 = vpop.f32.mrb[0].mxu0
  %v1749 = vadd.f32 %v1677, %v1748
  %v1750 = vpop.f32.mrb[0].mxu0
  %1751 = vmatprep.mubr.bf16.mxu0 %v1581
  %1752 = vmatmul.mubr.bf16.gmra.mrb[0].mxu0 %v1580
  %v1753 = vpop.f32.mrb[0].mxu0
  %v1754 = vadd.f32 %v1682, %v1753
  %v1755 = vpop.f32.mrb[0].mxu0
  %v1756 = vpop.f32.mrb[0].mxu0
  %v1757 = vadd.f32 %v1685, %v1756
  %v1758 = vpop.f32.mrb[0].mxu0
  %1759 = vmatprep.mubr.bf16.mxu0 %v1586
  %1760 = vmatmul.mubr.bf16.gmra.mrb[0].mxu0 %v1585
  %v1761 = vpop.f32.mrb[0].mxu0
  %v1762 = vadd.f32 %v1690, %v1761
  %v1763 = vpop.f32.mrb[0].mxu0
  %v1764 = vpop.f32.mrb[0].mxu0
  %v1765 = vpop.f32.mrb[0].mxu0
  %1766 = vdwg.mxu0
  %1767 = vmatprep.subr.bf16.mxu0 0
  %1768 = vmatpush1.bf16.msra.mxu0 %v421
  %1769 = vmatprep.subr.bf16.mxu0 0
  %1770 = vmatpush1.bf16.msra.mxu0 %v422
  %1771 = vmatprep.subr.bf16.mxu0 0
  %1772 = vmatpush1.bf16.msra.mxu0 %v423
  %1773 = vmatprep.subr.bf16.mxu0 0
  %1774 = vmatpush1.bf16.msra.mxu0 %v424
  %1775 = vmatprep.subr.bf16.mxu0 0
  %1776 = vmatpush1.bf16.msra.mxu0 0
  %1777 = vmatprep.subr.bf16.mxu0 0
  %1778 = vmatpush1.bf16.msra.mxu0 0
  %1779 = vmatprep.subr.bf16.mxu0 0
  %1780 = vmatpush1.bf16.msra.mxu0 0
  %1781 = vmatprep.subr.bf16.mxu0 0
  %1782 = vmatpush1.bf16.msra.mxu0 0
  %1783 = vmatprep.subr.bf16.mxu0 0
  %1784 = vmatpush1.bf16.msra.mxu0 0
  %1785 = vmatprep.subr.bf16.mxu0 0
  %1786 = vmatpush1.bf16.msra.mxu0 0
  %1787 = vmatprep.subr.bf16.mxu0 0
  %1788 = vmatpush1.bf16.msra.mxu0 0
  %1789 = vmatprep.subr.bf16.mxu0 0
  %1790 = vmatpush1.bf16.msra.mxu0 0
  %1791 = vmatprep.subr.bf16.mxu0 0
  %1792 = vmatpush1.bf16.msra.mxu0 0
  %1793 = vmatprep.subr.bf16.mxu0 0
  %1794 = vmatpush1.bf16.msra.mxu0 0
  %1795 = vmatprep.subr.bf16.mxu0 0
  %1796 = vmatpush1.bf16.msra.mxu0 0
  %1797 = vmatprep.subr.bf16.mxu0 0
  %1798 = vmatpush1.bf16.msra.mxu0 0
  %1799 = vmatprep.mubr.bf16.mxu0 0
  %1800 = vmatmul.mubr.bf16.gmra.mrb[0].mxu0 %v1609
  %v1801 = vpop.f32.mrb[0].mxu0
  %v1802 = vadd.f32 %v1730, %v1801
  %v1803 = vpop.f32.mrb[0].mxu0
  %v1804 = vpop.f32.mrb[0].mxu0
  %v1805 = vadd.f32 %v1733, %v1804
  %v1806 = vpop.f32.mrb[0].mxu0
  %1807 = vmatprep.mubr.bf16.mxu0 0
  %1808 = vmatmul.mubr.bf16.gmra.mrb[0].mxu0 %v1612
  %v1809 = vpop.f32.mrb[0].mxu0
  %v1810 = vadd.f32 %v1738, %v1809
  %v1811 = vpop.f32.mrb[0].mxu0
  %v1812 = vpop.f32.mrb[0].mxu0
  %v1813 = vadd.f32 %v1741, %v1812
  %v1814 = vpop.f32.mrb[0].mxu0
  %1815 = vmatprep.mubr.bf16.mxu0 0
  %1816 = vmatmul.mubr.bf16.gmra.mrb[0].mxu0 %v1615
  %v1817 = vpop.f32.mrb[0].mxu0
  %v1818 = vadd.f32 %v1746, %v1817
  %v1819 = vpop.f32.mrb[0].mxu0
  %v1820 = vpop.f32.mrb[0].mxu0
  %v1821 = vadd.f32 %v1749, %v1820
  %v1822 = vpop.f32.mrb[0].mxu0
  %1823 = vmatprep.mubr.bf16.mxu0 0
  %1824 = vmatmul.mubr.bf16.gmra.mrb[0].mxu0 %v1618
  %v1825 = vpop.f32.mrb[0].mxu0
  %v1826 = vadd.f32 %v1754, %v1825
  %v1827 = vpop.f32.mrb[0].mxu0
  %v1828 = vpop.f32.mrb[0].mxu0
  %v1829 = vadd.f32 %v1757, %v1828
  %v1830 = vpop.f32.mrb[0].mxu0
  %1831 = vmatprep.mubr.bf16.mxu0 0
  %1832 = vmatmul.mubr.bf16.gmra.mrb[0].mxu0 %v1621
  %v1833 = vpop.f32.mrb[0].mxu0
  %v1834 = vadd.f32 %v1762, %v1833
  %v1835 = vpop.f32.mrb[0].mxu0
  %v1836 = vpop.f32.mrb[0].mxu0
  %v1837 = vpop.f32.mrb[0].mxu0
  %1838 = vdwg.mxu0
  %v1839 = vmax.f32 %v1454, %v1802
  %v1840 = vmax.f32 %v1455, %v1805
  %v1841 = vmax.f32 %v1456, %v1810
  %v1842 = vmax.f32 %v1457, %v1813
  %v1843 = vmax.f32 %v1458, %v1818
  %v1844 = vmax.f32 %v1459, %v1821
  %v1845 = vmax.f32 %v1460, %v1826
  %v1846 = vmax.f32 %v1461, %v1829
  %v1847 = vmax.f32 %v1462, %v1834
  %v1848 = vld [vmem:[%s2] sm:$0x1]
  %v1850 = vlaneseq
  %v1851 = vshrl.u32 %v1850, 7
  %v1852 = vsub.s32 0, %v1851
  %v1853 = vrot.slane %v1848, %v1852
  %v1855 = vadd.f32 %v1839, %v1853
  %v1856 = vadd.f32 %v1840, %v1853
  %v1857 = vadd.f32 %v1841, %v1853
  %v1858 = vadd.f32 %v1842, %v1853
  %v1859 = vadd.f32 %v1843, %v1853
  %v1860 = vadd.f32 %v1844, %v1853
  %v1861 = vadd.f32 %v1845, %v1853
  %v1862 = vadd.f32 %v1846, %v1853
  %v1863 = vadd.f32 %v1847, %v1853
  %v1864 = vmax.f32 %v1855, 0.0
  %v1865 = vmax.f32 %v1856, 0.0
  %v1866 = vmax.f32 %v1857, 0.0
  %v1867 = vmax.f32 %v1858, 0.0
  %v1868 = vmax.f32 %v1859, 0.0
  %v1869 = vmax.f32 %v1860, 0.0
  %v1870 = vmax.f32 %v1861, 0.0
  %v1871 = vmax.f32 %v1862, 0.0
  %v1872 = vmax.f32 %v1863, 0.0
  %v1873 = vpack.c.bf16 %v1865, %v1864
  %v1874 = vpack.c.bf16 %v1867, %v1866
  %v1875 = vpack.c.bf16 %v1869, %v1868
  %v1876 = vpack.c.bf16 %v1871, %v1870
  %v1877 = vpack.c.bf16 %v1872, %v1872
  %v1878 = vld [vmem:[%s3] sm:$0xf]
  %v1879 = vld [vmem:[%s3 + $0x4] sm:$0xf]
  %v1880 = vld [vmem:[%s3 + $0x8] sm:$0xf]
  %v1881 = vld [vmem:[%s3 + $0xc] sm:$0xf]
  %v1882 = vld [vmem:[%s3 + $0x10] sm:$0xf]
  %v1883 = vld [vmem:[%s3 + $0x14] sm:$0xf]
  %v1884 = vld [vmem:[%s3 + $0x18] sm:$0xf]
  %v1885 = vld [vmem:[%s3 + $0x1c] sm:$0xf]
  %v1886 = vld [vmem:[%s3 + $0x20] sm:$0xf]
  %v1887 = vld [vmem:[%s3 + $0x24] sm:$0xf]
  %v1888 = vld [vmem:[%s3 + $0x28] sm:$0xf]
  %v1889 = vld [vmem:[%s3 + $0x2c] sm:$0xf]
  %v1890 = vld [vmem:[%s3 + $0x30] sm:$0xf]
  %v1891 = vld [vmem:[%s3 + $0x34] sm:$0xf]
  %v1892 = vld [vmem:[%s3 + $0x38] sm:$0xf]
  %v1893 = vld [vmem:[%s3 + $0x3c] sm:$0xf]
  %s1894 = scalar_lea.vmem %s3, 64
  %v1895 = vld [vmem:[%s1894] sm:$0xf]
  %v1896 = vld [vmem:[%s1894 + $0x4] sm:$0xf]
  %v1897 = vld [vmem:[%s1894 + $0x8] sm:$0xf]
  %v1898 = vld [vmem:[%s1894 + $0xc] sm:$0xf]
  %v1899 = vld [vmem:[%s1894 + $0x10] sm:$0xf]
  %v1900 = vld [vmem:[%s1894 + $0x14] sm:$0xf]
  %v1901 = vld [vmem:[%s1894 + $0x18] sm:$0xf]
  %v1902 = vld [vmem:[%s1894 + $0x1c] sm:$0xf]
  %v1903 = vld [vmem:[%s1894 + $0x20] sm:$0xf]
  %v1904 = vld [vmem:[%s1894 + $0x24] sm:$0xf]
  %v1905 = vld [vmem:[%s1894 + $0x28] sm:$0xf]
  %v1906 = vld [vmem:[%s1894 + $0x2c] sm:$0xf]
  %v1907 = vld [vmem:[%s1894 + $0x30] sm:$0xf]
  %v1908 = vld [vmem:[%s1894 + $0x34] sm:$0xf]
  %v1909 = vld [vmem:[%s1894 + $0x38] sm:$0xf]
  %v1910 = vld [vmem:[%s1894 + $0x3c] sm:$0xf]
  %v1912 = vrot.slane %v1873, 4
  %v1930 = vunpack.c.l.b16 %v1895
  %v1931 = vunpack.c.l.b16 %v1896
  %v1932 = vunpack.c.l.b16 %v1897
  %v1933 = vunpack.c.l.b16 %v1898
  %v1934 = vunpack.c.l.b16 %v1899
  %v1935 = vunpack.c.l.b16 %v1900
  %v1936 = vunpack.c.l.b16 %v1901
  %v1937 = vunpack.c.l.b16 %v1902
  %v1938 = vunpack.c.l.b16 %v1903
  %v1939 = vunpack.c.l.b16 %v1904
  %v1940 = vunpack.c.l.b16 %v1905
  %v1941 = vunpack.c.l.b16 %v1906
  %v1942 = vunpack.c.l.b16 %v1907
  %v1943 = vunpack.c.l.b16 %v1908
  %v1944 = vunpack.c.l.b16 %v1909
  %v1945 = vunpack.c.l.b16 %v1910
  %v1946 = vpack.c.b16 %v1931, %v1930
  %v1947 = vpack.c.b16 %v1933, %v1932
  %v1948 = vpack.c.b16 %v1935, %v1934
  %v1949 = vpack.c.b16 %v1937, %v1936
  %v1950 = vpack.c.b16 %v1939, %v1938
  %v1951 = vpack.c.b16 %v1941, %v1940
  %v1952 = vpack.c.b16 %v1943, %v1942
  %v1953 = vpack.c.b16 %v1945, %v1944
  %1962 = vmatprep.subr.bf16.mxu0 0
  %1963 = vmatpush1.bf16.msra.mxu0 %v1946
  %1964 = vmatprep.subr.bf16.mxu0 0
  %1965 = vmatpush1.bf16.msra.mxu0 %v1947
  %1966 = vmatprep.subr.bf16.mxu0 0
  %1967 = vmatpush1.bf16.msra.mxu0 %v1948
  %1968 = vmatprep.subr.bf16.mxu0 0
  %1969 = vmatpush1.bf16.msra.mxu0 %v1949
  %1970 = vmatprep.subr.bf16.mxu0 0
  %1971 = vmatpush1.bf16.msra.mxu0 %v1950
  %1972 = vmatprep.subr.bf16.mxu0 0
  %1973 = vmatpush1.bf16.msra.mxu0 %v1951
  %1974 = vmatprep.subr.bf16.mxu0 0
  %1975 = vmatpush1.bf16.msra.mxu0 %v1952
  %1976 = vmatprep.subr.bf16.mxu0 0
  %1977 = vmatpush1.bf16.msra.mxu0 %v1953
  %1978 = vmatprep.subr.bf16.mxu0 0
  %1979 = vmatpush1.bf16.msra.mxu0 0
  %1980 = vmatprep.subr.bf16.mxu0 0
  %1981 = vmatpush1.bf16.msra.mxu0 0
  %1982 = vmatprep.subr.bf16.mxu0 0
  %1983 = vmatpush1.bf16.msra.mxu0 0
  %1984 = vmatprep.subr.bf16.mxu0 0
  %1985 = vmatpush1.bf16.msra.mxu0 0
  %1986 = vmatprep.subr.bf16.mxu0 0
  %1987 = vmatpush1.bf16.msra.mxu0 0
  %1988 = vmatprep.subr.bf16.mxu0 0
  %1989 = vmatpush1.bf16.msra.mxu0 0
  %1990 = vmatprep.subr.bf16.mxu0 0
  %1991 = vmatpush1.bf16.msra.mxu0 0
  %1992 = vmatprep.subr.bf16.mxu0 0
  %1993 = vmatpush1.bf16.msra.mxu0 0
  %1994 = vmatprep.mubr.bf16.mxu0 0
  %1995 = vmatmul.mubr.bf16.gmra.mrb[0].mxu0 %v1912
  %v1996 = vpop.f32.mrb[0].mxu0
  %v1997 = vadd.f32 0.0, %v1996
  %v1998 = vpop.f32.mrb[0].mxu0
  %v1999 = vpop.f32.mrb[0].mxu0
  %v2000 = vpop.f32.mrb[0].mxu0
  %2001 = vdwg.mxu0
  %v2018 = vunpack.c.l.b16 %v1878
  %v2019 = vunpack.c.l.b16 %v1879
  %v2020 = vunpack.c.l.b16 %v1880
  %v2021 = vunpack.c.l.b16 %v1881
  %v2022 = vunpack.c.l.b16 %v1882
  %v2023 = vunpack.c.l.b16 %v1883
  %v2024 = vunpack.c.l.b16 %v1884
  %v2025 = vunpack.c.l.b16 %v1885
  %v2026 = vunpack.c.l.b16 %v1886
  %v2027 = vunpack.c.l.b16 %v1887
  %v2028 = vunpack.c.l.b16 %v1888
  %v2029 = vunpack.c.l.b16 %v1889
  %v2030 = vunpack.c.l.b16 %v1890
  %v2031 = vunpack.c.l.b16 %v1891
  %v2032 = vunpack.c.l.b16 %v1892
  %v2033 = vunpack.c.l.b16 %v1893
  %v2034 = vpack.c.b16 %v2019, %v2018
  %v2035 = vpack.c.b16 %v2021, %v2020
  %v2036 = vpack.c.b16 %v2023, %v2022
  %v2037 = vpack.c.b16 %v2025, %v2024
  %v2038 = vpack.c.b16 %v2027, %v2026
  %v2039 = vpack.c.b16 %v2029, %v2028
  %v2040 = vpack.c.b16 %v2031, %v2030
  %v2041 = vpack.c.b16 %v2033, %v2032
  %2050 = vmatprep.subr.bf16.mxu0 0
  %2051 = vmatpush1.bf16.msra.mxu0 %v2034
  %2052 = vmatprep.subr.bf16.mxu0 0
  %2053 = vmatpush1.bf16.msra.mxu0 %v2035
  %2054 = vmatprep.subr.bf16.mxu0 0
  %2055 = vmatpush1.bf16.msra.mxu0 %v2036
  %2056 = vmatprep.subr.bf16.mxu0 0
  %2057 = vmatpush1.bf16.msra.mxu0 %v2037
  %2058 = vmatprep.subr.bf16.mxu0 0
  %2059 = vmatpush1.bf16.msra.mxu0 %v2038
  %2060 = vmatprep.subr.bf16.mxu0 0
  %2061 = vmatpush1.bf16.msra.mxu0 %v2039
  %2062 = vmatprep.subr.bf16.mxu0 0
  %2063 = vmatpush1.bf16.msra.mxu0 %v2040
  %2064 = vmatprep.subr.bf16.mxu0 0
  %2065 = vmatpush1.bf16.msra.mxu0 %v2041
  %2066 = vmatprep.subr.bf16.mxu0 0
  %2067 = vmatpush1.bf16.msra.mxu0 0
  %2068 = vmatprep.subr.bf16.mxu0 0
  %2069 = vmatpush1.bf16.msra.mxu0 0
  %2070 = vmatprep.subr.bf16.mxu0 0
  %2071 = vmatpush1.bf16.msra.mxu0 0
  %2072 = vmatprep.subr.bf16.mxu0 0
  %2073 = vmatpush1.bf16.msra.mxu0 0
  %2074 = vmatprep.subr.bf16.mxu0 0
  %2075 = vmatpush1.bf16.msra.mxu0 0
  %2076 = vmatprep.subr.bf16.mxu0 0
  %2077 = vmatpush1.bf16.msra.mxu0 0
  %2078 = vmatprep.subr.bf16.mxu0 0
  %2079 = vmatpush1.bf16.msra.mxu0 0
  %2080 = vmatprep.subr.bf16.mxu0 0
  %2081 = vmatpush1.bf16.msra.mxu0 0
  %2082 = vmatprep.mubr.bf16.mxu0 0
  %2083 = vmatmul.mubr.bf16.gmra.mrb[0].mxu0 %v1873
  %v2084 = vpop.f32.mrb[0].mxu0
  %v2085 = vadd.f32 %v1997, %v2084
  %v2086 = vpop.f32.mrb[0].mxu0
  %v2087 = vpop.f32.mrb[0].mxu0
  %v2088 = vpop.f32.mrb[0].mxu0
  %2089 = vdwg.mxu0
  %s2090 = scalar_lea.vmem %s3, 128
  %v2091 = vld [vmem:[%s2090] sm:$0xf]
  %v2092 = vld [vmem:[%s2090 + $0x4] sm:$0xf]
  %v2093 = vld [vmem:[%s2090 + $0x8] sm:$0xf]
  %v2094 = vld [vmem:[%s2090 + $0xc] sm:$0xf]
  %v2095 = vld [vmem:[%s2090 + $0x10] sm:$0xf]
  %v2096 = vld [vmem:[%s2090 + $0x14] sm:$0xf]
  %v2097 = vld [vmem:[%s2090 + $0x18] sm:$0xf]
  %v2098 = vld [vmem:[%s2090 + $0x1c] sm:$0xf]
  %v2099 = vld [vmem:[%s2090 + $0x20] sm:$0xf]
  %v2100 = vld [vmem:[%s2090 + $0x24] sm:$0xf]
  %v2101 = vld [vmem:[%s2090 + $0x28] sm:$0xf]
  %v2102 = vld [vmem:[%s2090 + $0x2c] sm:$0xf]
  %v2103 = vld [vmem:[%s2090 + $0x30] sm:$0xf]
  %v2104 = vld [vmem:[%s2090 + $0x34] sm:$0xf]
  %v2105 = vld [vmem:[%s2090 + $0x38] sm:$0xf]
  %v2106 = vld [vmem:[%s2090 + $0x3c] sm:$0xf]
  %v2123 = vunpack.c.l.b16 %v2091
  %v2124 = vunpack.c.l.b16 %v2092
  %v2125 = vunpack.c.l.b16 %v2093
  %v2126 = vunpack.c.l.b16 %v2094
  %v2127 = vunpack.c.l.b16 %v2095
  %v2128 = vunpack.c.l.b16 %v2096
  %v2129 = vunpack.c.l.b16 %v2097
  %v2130 = vunpack.c.l.b16 %v2098
  %v2131 = vunpack.c.l.b16 %v2099
  %v2132 = vunpack.c.l.b16 %v2100
  %v2133 = vunpack.c.l.b16 %v2101
  %v2134 = vunpack.c.l.b16 %v2102
  %v2135 = vunpack.c.l.b16 %v2103
  %v2136 = vunpack.c.l.b16 %v2104
  %v2137 = vunpack.c.l.b16 %v2105
  %v2138 = vunpack.c.l.b16 %v2106
  %v2139 = vpack.c.b16 %v2124, %v2123
  %v2140 = vpack.c.b16 %v2126, %v2125
  %v2141 = vpack.c.b16 %v2128, %v2127
  %v2142 = vpack.c.b16 %v2130, %v2129
  %v2143 = vpack.c.b16 %v2132, %v2131
  %v2144 = vpack.c.b16 %v2134, %v2133
  %v2145 = vpack.c.b16 %v2136, %v2135
  %v2146 = vpack.c.b16 %v2138, %v2137
  %2155 = vmatprep.subr.bf16.mxu0 0
  %2156 = vmatpush1.bf16.msra.mxu0 %v2139
  %2157 = vmatprep.subr.bf16.mxu0 0
  %2158 = vmatpush1.bf16.msra.mxu0 %v2140
  %2159 = vmatprep.subr.bf16.mxu0 0
  %2160 = vmatpush1.bf16.msra.mxu0 %v2141
  %2161 = vmatprep.subr.bf16.mxu0 0
  %2162 = vmatpush1.bf16.msra.mxu0 %v2142
  %2163 = vmatprep.subr.bf16.mxu0 0
  %2164 = vmatpush1.bf16.msra.mxu0 %v2143
  %2165 = vmatprep.subr.bf16.mxu0 0
  %2166 = vmatpush1.bf16.msra.mxu0 %v2144
  %2167 = vmatprep.subr.bf16.mxu0 0
  %2168 = vmatpush1.bf16.msra.mxu0 %v2145
  %2169 = vmatprep.subr.bf16.mxu0 0
  %2170 = vmatpush1.bf16.msra.mxu0 %v2146
  %2171 = vmatprep.subr.bf16.mxu0 0
  %2172 = vmatpush1.bf16.msra.mxu0 0
  %2173 = vmatprep.subr.bf16.mxu0 0
  %2174 = vmatpush1.bf16.msra.mxu0 0
  %2175 = vmatprep.subr.bf16.mxu0 0
  %2176 = vmatpush1.bf16.msra.mxu0 0
  %2177 = vmatprep.subr.bf16.mxu0 0
  %2178 = vmatpush1.bf16.msra.mxu0 0
  %2179 = vmatprep.subr.bf16.mxu0 0
  %2180 = vmatpush1.bf16.msra.mxu0 0
  %2181 = vmatprep.subr.bf16.mxu0 0
  %2182 = vmatpush1.bf16.msra.mxu0 0
  %2183 = vmatprep.subr.bf16.mxu0 0
  %2184 = vmatpush1.bf16.msra.mxu0 0
  %2185 = vmatprep.subr.bf16.mxu0 0
  %2186 = vmatpush1.bf16.msra.mxu0 0
  %2187 = vmatprep.mubr.bf16.mxu0 0
  %2188 = vmatmul.mubr.bf16.gmra.mrb[0].mxu0 %v1874
  %v2189 = vpop.f32.mrb[0].mxu0
  %v2190 = vadd.f32 0.0, %v2189
  %v2191 = vpop.f32.mrb[0].mxu0
  %v2192 = vpop.f32.mrb[0].mxu0
  %v2193 = vpop.f32.mrb[0].mxu0
  %2194 = vdwg.mxu0
  %v2195 = vadd.f32 %v2085, %v2190
  %s2196 = scalar_lea.vmem %s3, 192
  %v2197 = vld [vmem:[%s2196] sm:$0xf]
  %v2198 = vld [vmem:[%s2196 + $0x4] sm:$0xf]
  %v2199 = vld [vmem:[%s2196 + $0x8] sm:$0xf]
  %v2200 = vld [vmem:[%s2196 + $0xc] sm:$0xf]
  %v2201 = vld [vmem:[%s2196 + $0x10] sm:$0xf]
  %v2202 = vld [vmem:[%s2196 + $0x14] sm:$0xf]
  %v2203 = vld [vmem:[%s2196 + $0x18] sm:$0xf]
  %v2204 = vld [vmem:[%s2196 + $0x1c] sm:$0xf]
  %v2205 = vld [vmem:[%s2196 + $0x20] sm:$0xf]
  %v2206 = vld [vmem:[%s2196 + $0x24] sm:$0xf]
  %v2207 = vld [vmem:[%s2196 + $0x28] sm:$0xf]
  %v2208 = vld [vmem:[%s2196 + $0x2c] sm:$0xf]
  %v2209 = vld [vmem:[%s2196 + $0x30] sm:$0xf]
  %v2210 = vld [vmem:[%s2196 + $0x34] sm:$0xf]
  %v2211 = vld [vmem:[%s2196 + $0x38] sm:$0xf]
  %v2212 = vld [vmem:[%s2196 + $0x3c] sm:$0xf]
  %v2214 = vrot.slane %v1874, 4
  %v2232 = vunpack.c.l.b16 %v2197
  %v2233 = vunpack.c.l.b16 %v2198
  %v2234 = vunpack.c.l.b16 %v2199
  %v2235 = vunpack.c.l.b16 %v2200
  %v2236 = vunpack.c.l.b16 %v2201
  %v2237 = vunpack.c.l.b16 %v2202
  %v2238 = vunpack.c.l.b16 %v2203
  %v2239 = vunpack.c.l.b16 %v2204
  %v2240 = vunpack.c.l.b16 %v2205
  %v2241 = vunpack.c.l.b16 %v2206
  %v2242 = vunpack.c.l.b16 %v2207
  %v2243 = vunpack.c.l.b16 %v2208
  %v2244 = vunpack.c.l.b16 %v2209
  %v2245 = vunpack.c.l.b16 %v2210
  %v2246 = vunpack.c.l.b16 %v2211
  %v2247 = vunpack.c.l.b16 %v2212
  %v2248 = vpack.c.b16 %v2233, %v2232
  %v2249 = vpack.c.b16 %v2235, %v2234
  %v2250 = vpack.c.b16 %v2237, %v2236
  %v2251 = vpack.c.b16 %v2239, %v2238
  %v2252 = vpack.c.b16 %v2241, %v2240
  %v2253 = vpack.c.b16 %v2243, %v2242
  %v2254 = vpack.c.b16 %v2245, %v2244
  %v2255 = vpack.c.b16 %v2247, %v2246
  %2264 = vmatprep.subr.bf16.mxu0 0
  %2265 = vmatpush1.bf16.msra.mxu0 %v2248
  %2266 = vmatprep.subr.bf16.mxu0 0
  %2267 = vmatpush1.bf16.msra.mxu0 %v2249
  %2268 = vmatprep.subr.bf16.mxu0 0
  %2269 = vmatpush1.bf16.msra.mxu0 %v2250
  %2270 = vmatprep.subr.bf16.mxu0 0
  %2271 = vmatpush1.bf16.msra.mxu0 %v2251
  %2272 = vmatprep.subr.bf16.mxu0 0
  %2273 = vmatpush1.bf16.msra.mxu0 %v2252
  %2274 = vmatprep.subr.bf16.mxu0 0
  %2275 = vmatpush1.bf16.msra.mxu0 %v2253
  %2276 = vmatprep.subr.bf16.mxu0 0
  %2277 = vmatpush1.bf16.msra.mxu0 %v2254
  %2278 = vmatprep.subr.bf16.mxu0 0
  %2279 = vmatpush1.bf16.msra.mxu0 %v2255
  %2280 = vmatprep.subr.bf16.mxu0 0
  %2281 = vmatpush1.bf16.msra.mxu0 0
  %2282 = vmatprep.subr.bf16.mxu0 0
  %2283 = vmatpush1.bf16.msra.mxu0 0
  %2284 = vmatprep.subr.bf16.mxu0 0
  %2285 = vmatpush1.bf16.msra.mxu0 0
  %2286 = vmatprep.subr.bf16.mxu0 0
  %2287 = vmatpush1.bf16.msra.mxu0 0
  %2288 = vmatprep.subr.bf16.mxu0 0
  %2289 = vmatpush1.bf16.msra.mxu0 0
  %2290 = vmatprep.subr.bf16.mxu0 0
  %2291 = vmatpush1.bf16.msra.mxu0 0
  %2292 = vmatprep.subr.bf16.mxu0 0
  %2293 = vmatpush1.bf16.msra.mxu0 0
  %2294 = vmatprep.subr.bf16.mxu0 0
  %2295 = vmatpush1.bf16.msra.mxu0 0
  %2296 = vmatprep.mubr.bf16.mxu0 0
  %2297 = vmatmul.mubr.bf16.gmra.mrb[0].mxu0 %v2214
  %v2298 = vpop.f32.mrb[0].mxu0
  %v2299 = vadd.f32 0.0, %v2298
  %v2300 = vpop.f32.mrb[0].mxu0
  %v2301 = vpop.f32.mrb[0].mxu0
  %v2302 = vpop.f32.mrb[0].mxu0
  %2303 = vdwg.mxu0
  %v2304 = vadd.f32 %v2195, %v2299
  %s2305 = scalar_lea.vmem %s3, 256
  %v2306 = vld [vmem:[%s2305] sm:$0xf]
  %v2307 = vld [vmem:[%s2305 + $0x4] sm:$0xf]
  %v2308 = vld [vmem:[%s2305 + $0x8] sm:$0xf]
  %v2309 = vld [vmem:[%s2305 + $0xc] sm:$0xf]
  %v2310 = vld [vmem:[%s2305 + $0x10] sm:$0xf]
  %v2311 = vld [vmem:[%s2305 + $0x14] sm:$0xf]
  %v2312 = vld [vmem:[%s2305 + $0x18] sm:$0xf]
  %v2313 = vld [vmem:[%s2305 + $0x1c] sm:$0xf]
  %v2314 = vld [vmem:[%s2305 + $0x20] sm:$0xf]
  %v2315 = vld [vmem:[%s2305 + $0x24] sm:$0xf]
  %v2316 = vld [vmem:[%s2305 + $0x28] sm:$0xf]
  %v2317 = vld [vmem:[%s2305 + $0x2c] sm:$0xf]
  %v2318 = vld [vmem:[%s2305 + $0x30] sm:$0xf]
  %v2319 = vld [vmem:[%s2305 + $0x34] sm:$0xf]
  %v2320 = vld [vmem:[%s2305 + $0x38] sm:$0xf]
  %v2321 = vld [vmem:[%s2305 + $0x3c] sm:$0xf]
  %v2338 = vunpack.c.l.b16 %v2306
  %v2339 = vunpack.c.l.b16 %v2307
  %v2340 = vunpack.c.l.b16 %v2308
  %v2341 = vunpack.c.l.b16 %v2309
  %v2342 = vunpack.c.l.b16 %v2310
  %v2343 = vunpack.c.l.b16 %v2311
  %v2344 = vunpack.c.l.b16 %v2312
  %v2345 = vunpack.c.l.b16 %v2313
  %v2346 = vunpack.c.l.b16 %v2314
  %v2347 = vunpack.c.l.b16 %v2315
  %v2348 = vunpack.c.l.b16 %v2316
  %v2349 = vunpack.c.l.b16 %v2317
  %v2350 = vunpack.c.l.b16 %v2318
  %v2351 = vunpack.c.l.b16 %v2319
  %v2352 = vunpack.c.l.b16 %v2320
  %v2353 = vunpack.c.l.b16 %v2321
  %v2354 = vpack.c.b16 %v2339, %v2338
  %v2355 = vpack.c.b16 %v2341, %v2340
  %v2356 = vpack.c.b16 %v2343, %v2342
  %v2357 = vpack.c.b16 %v2345, %v2344
  %v2358 = vpack.c.b16 %v2347, %v2346
  %v2359 = vpack.c.b16 %v2349, %v2348
  %v2360 = vpack.c.b16 %v2351, %v2350
  %v2361 = vpack.c.b16 %v2353, %v2352
  %2370 = vmatprep.subr.bf16.mxu0 0
  %2371 = vmatpush1.bf16.msra.mxu0 %v2354
  %2372 = vmatprep.subr.bf16.mxu0 0
  %2373 = vmatpush1.bf16.msra.mxu0 %v2355
  %2374 = vmatprep.subr.bf16.mxu0 0
  %2375 = vmatpush1.bf16.msra.mxu0 %v2356
  %2376 = vmatprep.subr.bf16.mxu0 0
  %2377 = vmatpush1.bf16.msra.mxu0 %v2357
  %2378 = vmatprep.subr.bf16.mxu0 0
  %2379 = vmatpush1.bf16.msra.mxu0 %v2358
  %2380 = vmatprep.subr.bf16.mxu0 0
  %2381 = vmatpush1.bf16.msra.mxu0 %v2359
  %2382 = vmatprep.subr.bf16.mxu0 0
  %2383 = vmatpush1.bf16.msra.mxu0 %v2360
  %2384 = vmatprep.subr.bf16.mxu0 0
  %2385 = vmatpush1.bf16.msra.mxu0 %v2361
  %2386 = vmatprep.subr.bf16.mxu0 0
  %2387 = vmatpush1.bf16.msra.mxu0 0
  %2388 = vmatprep.subr.bf16.mxu0 0
  %2389 = vmatpush1.bf16.msra.mxu0 0
  %2390 = vmatprep.subr.bf16.mxu0 0
  %2391 = vmatpush1.bf16.msra.mxu0 0
  %2392 = vmatprep.subr.bf16.mxu0 0
  %2393 = vmatpush1.bf16.msra.mxu0 0
  %2394 = vmatprep.subr.bf16.mxu0 0
  %2395 = vmatpush1.bf16.msra.mxu0 0
  %2396 = vmatprep.subr.bf16.mxu0 0
  %2397 = vmatpush1.bf16.msra.mxu0 0
  %2398 = vmatprep.subr.bf16.mxu0 0
  %2399 = vmatpush1.bf16.msra.mxu0 0
  %2400 = vmatprep.subr.bf16.mxu0 0
  %2401 = vmatpush1.bf16.msra.mxu0 0
  %2402 = vmatprep.mubr.bf16.mxu0 0
  %2403 = vmatmul.mubr.bf16.gmra.mrb[0].mxu0 %v1875
  %v2404 = vpop.f32.mrb[0].mxu0
  %v2405 = vadd.f32 0.0, %v2404
  %v2406 = vpop.f32.mrb[0].mxu0
  %v2407 = vpop.f32.mrb[0].mxu0
  %v2408 = vpop.f32.mrb[0].mxu0
  %2409 = vdwg.mxu0
  %v2410 = vadd.f32 %v2304, %v2405
  %s2411 = scalar_lea.vmem %s3, 320
  %v2412 = vld [vmem:[%s2411] sm:$0xf]
  %v2413 = vld [vmem:[%s2411 + $0x4] sm:$0xf]
  %v2414 = vld [vmem:[%s2411 + $0x8] sm:$0xf]
  %v2415 = vld [vmem:[%s2411 + $0xc] sm:$0xf]
  %v2416 = vld [vmem:[%s2411 + $0x10] sm:$0xf]
  %v2417 = vld [vmem:[%s2411 + $0x14] sm:$0xf]
  %v2418 = vld [vmem:[%s2411 + $0x18] sm:$0xf]
  %v2419 = vld [vmem:[%s2411 + $0x1c] sm:$0xf]
  %v2420 = vld [vmem:[%s2411 + $0x20] sm:$0xf]
  %v2421 = vld [vmem:[%s2411 + $0x24] sm:$0xf]
  %v2422 = vld [vmem:[%s2411 + $0x28] sm:$0xf]
  %v2423 = vld [vmem:[%s2411 + $0x2c] sm:$0xf]
  %v2424 = vld [vmem:[%s2411 + $0x30] sm:$0xf]
  %v2425 = vld [vmem:[%s2411 + $0x34] sm:$0xf]
  %v2426 = vld [vmem:[%s2411 + $0x38] sm:$0xf]
  %v2427 = vld [vmem:[%s2411 + $0x3c] sm:$0xf]
  %v2429 = vrot.slane %v1875, 4
  %v2447 = vunpack.c.l.b16 %v2412
  %v2448 = vunpack.c.l.b16 %v2413
  %v2449 = vunpack.c.l.b16 %v2414
  %v2450 = vunpack.c.l.b16 %v2415
  %v2451 = vunpack.c.l.b16 %v2416
  %v2452 = vunpack.c.l.b16 %v2417
  %v2453 = vunpack.c.l.b16 %v2418
  %v2454 = vunpack.c.l.b16 %v2419
  %v2455 = vunpack.c.l.b16 %v2420
  %v2456 = vunpack.c.l.b16 %v2421
  %v2457 = vunpack.c.l.b16 %v2422
  %v2458 = vunpack.c.l.b16 %v2423
  %v2459 = vunpack.c.l.b16 %v2424
  %v2460 = vunpack.c.l.b16 %v2425
  %v2461 = vunpack.c.l.b16 %v2426
  %v2462 = vunpack.c.l.b16 %v2427
  %v2463 = vpack.c.b16 %v2448, %v2447
  %v2464 = vpack.c.b16 %v2450, %v2449
  %v2465 = vpack.c.b16 %v2452, %v2451
  %v2466 = vpack.c.b16 %v2454, %v2453
  %v2467 = vpack.c.b16 %v2456, %v2455
  %v2468 = vpack.c.b16 %v2458, %v2457
  %v2469 = vpack.c.b16 %v2460, %v2459
  %v2470 = vpack.c.b16 %v2462, %v2461
  %2479 = vmatprep.subr.bf16.mxu0 0
  %2480 = vmatpush1.bf16.msra.mxu0 %v2463
  %2481 = vmatprep.subr.bf16.mxu0 0
  %2482 = vmatpush1.bf16.msra.mxu0 %v2464
  %2483 = vmatprep.subr.bf16.mxu0 0
  %2484 = vmatpush1.bf16.msra.mxu0 %v2465
  %2485 = vmatprep.subr.bf16.mxu0 0
  %2486 = vmatpush1.bf16.msra.mxu0 %v2466
  %2487 = vmatprep.subr.bf16.mxu0 0
  %2488 = vmatpush1.bf16.msra.mxu0 %v2467
  %2489 = vmatprep.subr.bf16.mxu0 0
  %2490 = vmatpush1.bf16.msra.mxu0 %v2468
  %2491 = vmatprep.subr.bf16.mxu0 0
  %2492 = vmatpush1.bf16.msra.mxu0 %v2469
  %2493 = vmatprep.subr.bf16.mxu0 0
  %2494 = vmatpush1.bf16.msra.mxu0 %v2470
  %2495 = vmatprep.subr.bf16.mxu0 0
  %2496 = vmatpush1.bf16.msra.mxu0 0
  %2497 = vmatprep.subr.bf16.mxu0 0
  %2498 = vmatpush1.bf16.msra.mxu0 0
  %2499 = vmatprep.subr.bf16.mxu0 0
  %2500 = vmatpush1.bf16.msra.mxu0 0
  %2501 = vmatprep.subr.bf16.mxu0 0
  %2502 = vmatpush1.bf16.msra.mxu0 0
  %2503 = vmatprep.subr.bf16.mxu0 0
  %2504 = vmatpush1.bf16.msra.mxu0 0
  %2505 = vmatprep.subr.bf16.mxu0 0
  %2506 = vmatpush1.bf16.msra.mxu0 0
  %2507 = vmatprep.subr.bf16.mxu0 0
  %2508 = vmatpush1.bf16.msra.mxu0 0
  %2509 = vmatprep.subr.bf16.mxu0 0
  %2510 = vmatpush1.bf16.msra.mxu0 0
  %2511 = vmatprep.mubr.bf16.mxu0 0
  %2512 = vmatmul.mubr.bf16.gmra.mrb[0].mxu0 %v2429
  %v2513 = vpop.f32.mrb[0].mxu0
  %v2514 = vadd.f32 0.0, %v2513
  %v2515 = vpop.f32.mrb[0].mxu0
  %v2516 = vpop.f32.mrb[0].mxu0
  %v2517 = vpop.f32.mrb[0].mxu0
  %2518 = vdwg.mxu0
  %v2519 = vadd.f32 %v2410, %v2514
  %s2520 = scalar_lea.vmem %s3, 384
  %v2521 = vld [vmem:[%s2520] sm:$0xf]
  %v2522 = vld [vmem:[%s2520 + $0x4] sm:$0xf]
  %v2523 = vld [vmem:[%s2520 + $0x8] sm:$0xf]
  %v2524 = vld [vmem:[%s2520 + $0xc] sm:$0xf]
  %v2525 = vld [vmem:[%s2520 + $0x10] sm:$0xf]
  %v2526 = vld [vmem:[%s2520 + $0x14] sm:$0xf]
  %v2527 = vld [vmem:[%s2520 + $0x18] sm:$0xf]
  %v2528 = vld [vmem:[%s2520 + $0x1c] sm:$0xf]
  %v2529 = vld [vmem:[%s2520 + $0x20] sm:$0xf]
  %v2530 = vld [vmem:[%s2520 + $0x24] sm:$0xf]
  %v2531 = vld [vmem:[%s2520 + $0x28] sm:$0xf]
  %v2532 = vld [vmem:[%s2520 + $0x2c] sm:$0xf]
  %v2533 = vld [vmem:[%s2520 + $0x30] sm:$0xf]
  %v2534 = vld [vmem:[%s2520 + $0x34] sm:$0xf]
  %v2535 = vld [vmem:[%s2520 + $0x38] sm:$0xf]
  %v2536 = vld [vmem:[%s2520 + $0x3c] sm:$0xf]
  %v2553 = vunpack.c.l.b16 %v2521
  %v2554 = vunpack.c.l.b16 %v2522
  %v2555 = vunpack.c.l.b16 %v2523
  %v2556 = vunpack.c.l.b16 %v2524
  %v2557 = vunpack.c.l.b16 %v2525
  %v2558 = vunpack.c.l.b16 %v2526
  %v2559 = vunpack.c.l.b16 %v2527
  %v2560 = vunpack.c.l.b16 %v2528
  %v2561 = vunpack.c.l.b16 %v2529
  %v2562 = vunpack.c.l.b16 %v2530
  %v2563 = vunpack.c.l.b16 %v2531
  %v2564 = vunpack.c.l.b16 %v2532
  %v2565 = vunpack.c.l.b16 %v2533
  %v2566 = vunpack.c.l.b16 %v2534
  %v2567 = vunpack.c.l.b16 %v2535
  %v2568 = vunpack.c.l.b16 %v2536
  %v2569 = vpack.c.b16 %v2554, %v2553
  %v2570 = vpack.c.b16 %v2556, %v2555
  %v2571 = vpack.c.b16 %v2558, %v2557
  %v2572 = vpack.c.b16 %v2560, %v2559
  %v2573 = vpack.c.b16 %v2562, %v2561
  %v2574 = vpack.c.b16 %v2564, %v2563
  %v2575 = vpack.c.b16 %v2566, %v2565
  %v2576 = vpack.c.b16 %v2568, %v2567
  %2585 = vmatprep.subr.bf16.mxu0 0
  %2586 = vmatpush1.bf16.msra.mxu0 %v2569
  %2587 = vmatprep.subr.bf16.mxu0 0
  %2588 = vmatpush1.bf16.msra.mxu0 %v2570
  %2589 = vmatprep.subr.bf16.mxu0 0
  %2590 = vmatpush1.bf16.msra.mxu0 %v2571
  %2591 = vmatprep.subr.bf16.mxu0 0
  %2592 = vmatpush1.bf16.msra.mxu0 %v2572
  %2593 = vmatprep.subr.bf16.mxu0 0
  %2594 = vmatpush1.bf16.msra.mxu0 %v2573
  %2595 = vmatprep.subr.bf16.mxu0 0
  %2596 = vmatpush1.bf16.msra.mxu0 %v2574
  %2597 = vmatprep.subr.bf16.mxu0 0
  %2598 = vmatpush1.bf16.msra.mxu0 %v2575
  %2599 = vmatprep.subr.bf16.mxu0 0
  %2600 = vmatpush1.bf16.msra.mxu0 %v2576
  %2601 = vmatprep.subr.bf16.mxu0 0
  %2602 = vmatpush1.bf16.msra.mxu0 0
  %2603 = vmatprep.subr.bf16.mxu0 0
  %2604 = vmatpush1.bf16.msra.mxu0 0
  %2605 = vmatprep.subr.bf16.mxu0 0
  %2606 = vmatpush1.bf16.msra.mxu0 0
  %2607 = vmatprep.subr.bf16.mxu0 0
  %2608 = vmatpush1.bf16.msra.mxu0 0
  %2609 = vmatprep.subr.bf16.mxu0 0
  %2610 = vmatpush1.bf16.msra.mxu0 0
  %2611 = vmatprep.subr.bf16.mxu0 0
  %2612 = vmatpush1.bf16.msra.mxu0 0
  %2613 = vmatprep.subr.bf16.mxu0 0
  %2614 = vmatpush1.bf16.msra.mxu0 0
  %2615 = vmatprep.subr.bf16.mxu0 0
  %2616 = vmatpush1.bf16.msra.mxu0 0
  %2617 = vmatprep.mubr.bf16.mxu0 0
  %2618 = vmatmul.mubr.bf16.gmra.mrb[0].mxu0 %v1876
  %v2619 = vpop.f32.mrb[0].mxu0
  %v2620 = vadd.f32 0.0, %v2619
  %v2621 = vpop.f32.mrb[0].mxu0
  %v2622 = vpop.f32.mrb[0].mxu0
  %v2623 = vpop.f32.mrb[0].mxu0
  %2624 = vdwg.mxu0
  %v2625 = vadd.f32 %v2519, %v2620
  %s2626 = scalar_lea.vmem %s3, 448
  %v2627 = vld [vmem:[%s2626] sm:$0xf]
  %v2628 = vld [vmem:[%s2626 + $0x4] sm:$0xf]
  %v2629 = vld [vmem:[%s2626 + $0x8] sm:$0xf]
  %v2630 = vld [vmem:[%s2626 + $0xc] sm:$0xf]
  %v2631 = vld [vmem:[%s2626 + $0x10] sm:$0xf]
  %v2632 = vld [vmem:[%s2626 + $0x14] sm:$0xf]
  %v2633 = vld [vmem:[%s2626 + $0x18] sm:$0xf]
  %v2634 = vld [vmem:[%s2626 + $0x1c] sm:$0xf]
  %v2635 = vld [vmem:[%s2626 + $0x20] sm:$0xf]
  %v2636 = vld [vmem:[%s2626 + $0x24] sm:$0xf]
  %v2637 = vld [vmem:[%s2626 + $0x28] sm:$0xf]
  %v2638 = vld [vmem:[%s2626 + $0x2c] sm:$0xf]
  %v2639 = vld [vmem:[%s2626 + $0x30] sm:$0xf]
  %v2640 = vld [vmem:[%s2626 + $0x34] sm:$0xf]
  %v2641 = vld [vmem:[%s2626 + $0x38] sm:$0xf]
  %v2642 = vld [vmem:[%s2626 + $0x3c] sm:$0xf]
  %v2644 = vrot.slane %v1876, 4
  %v2662 = vunpack.c.l.b16 %v2627
  %v2663 = vunpack.c.l.b16 %v2628
  %v2664 = vunpack.c.l.b16 %v2629
  %v2665 = vunpack.c.l.b16 %v2630
  %v2666 = vunpack.c.l.b16 %v2631
  %v2667 = vunpack.c.l.b16 %v2632
  %v2668 = vunpack.c.l.b16 %v2633
  %v2669 = vunpack.c.l.b16 %v2634
  %v2670 = vunpack.c.l.b16 %v2635
  %v2671 = vunpack.c.l.b16 %v2636
  %v2672 = vunpack.c.l.b16 %v2637
  %v2673 = vunpack.c.l.b16 %v2638
  %v2674 = vunpack.c.l.b16 %v2639
  %v2675 = vunpack.c.l.b16 %v2640
  %v2676 = vunpack.c.l.b16 %v2641
  %v2677 = vunpack.c.l.b16 %v2642
  %v2678 = vpack.c.b16 %v2663, %v2662
  %v2679 = vpack.c.b16 %v2665, %v2664
  %v2680 = vpack.c.b16 %v2667, %v2666
  %v2681 = vpack.c.b16 %v2669, %v2668
  %v2682 = vpack.c.b16 %v2671, %v2670
  %v2683 = vpack.c.b16 %v2673, %v2672
  %v2684 = vpack.c.b16 %v2675, %v2674
  %v2685 = vpack.c.b16 %v2677, %v2676
  %2694 = vmatprep.subr.bf16.mxu0 0
  %2695 = vmatpush1.bf16.msra.mxu0 %v2678
  %2696 = vmatprep.subr.bf16.mxu0 0
  %2697 = vmatpush1.bf16.msra.mxu0 %v2679
  %2698 = vmatprep.subr.bf16.mxu0 0
  %2699 = vmatpush1.bf16.msra.mxu0 %v2680
  %2700 = vmatprep.subr.bf16.mxu0 0
  %2701 = vmatpush1.bf16.msra.mxu0 %v2681
  %2702 = vmatprep.subr.bf16.mxu0 0
  %2703 = vmatpush1.bf16.msra.mxu0 %v2682
  %2704 = vmatprep.subr.bf16.mxu0 0
  %2705 = vmatpush1.bf16.msra.mxu0 %v2683
  %2706 = vmatprep.subr.bf16.mxu0 0
  %2707 = vmatpush1.bf16.msra.mxu0 %v2684
  %2708 = vmatprep.subr.bf16.mxu0 0
  %2709 = vmatpush1.bf16.msra.mxu0 %v2685
  %2710 = vmatprep.subr.bf16.mxu0 0
  %2711 = vmatpush1.bf16.msra.mxu0 0
  %2712 = vmatprep.subr.bf16.mxu0 0
  %2713 = vmatpush1.bf16.msra.mxu0 0
  %2714 = vmatprep.subr.bf16.mxu0 0
  %2715 = vmatpush1.bf16.msra.mxu0 0
  %2716 = vmatprep.subr.bf16.mxu0 0
  %2717 = vmatpush1.bf16.msra.mxu0 0
  %2718 = vmatprep.subr.bf16.mxu0 0
  %2719 = vmatpush1.bf16.msra.mxu0 0
  %2720 = vmatprep.subr.bf16.mxu0 0
  %2721 = vmatpush1.bf16.msra.mxu0 0
  %2722 = vmatprep.subr.bf16.mxu0 0
  %2723 = vmatpush1.bf16.msra.mxu0 0
  %2724 = vmatprep.subr.bf16.mxu0 0
  %2725 = vmatpush1.bf16.msra.mxu0 0
  %2726 = vmatprep.mubr.bf16.mxu0 0
  %2727 = vmatmul.mubr.bf16.gmra.mrb[0].mxu0 %v2644
  %v2728 = vpop.f32.mrb[0].mxu0
  %v2729 = vadd.f32 0.0, %v2728
  %v2730 = vpop.f32.mrb[0].mxu0
  %v2731 = vpop.f32.mrb[0].mxu0
  %v2732 = vpop.f32.mrb[0].mxu0
  %2733 = vdwg.mxu0
  %v2734 = vadd.f32 %v2625, %v2729
  %s2735 = scalar_lea.vmem %s3, 512
  %v2736 = vld [vmem:[%s2735] sm:$0xf]
  %v2737 = vld [vmem:[%s2735 + $0x4] sm:$0xf]
  %v2738 = vld [vmem:[%s2735 + $0x8] sm:$0xf]
  %v2739 = vld [vmem:[%s2735 + $0xc] sm:$0xf]
  %v2740 = vld [vmem:[%s2735 + $0x10] sm:$0xf]
  %v2741 = vld [vmem:[%s2735 + $0x14] sm:$0xf]
  %v2742 = vld [vmem:[%s2735 + $0x18] sm:$0xf]
  %v2743 = vld [vmem:[%s2735 + $0x1c] sm:$0xf]
  %v2744 = vld [vmem:[%s2735 + $0x20] sm:$0xf]
  %v2745 = vld [vmem:[%s2735 + $0x24] sm:$0xf]
  %v2746 = vld [vmem:[%s2735 + $0x28] sm:$0xf]
  %v2747 = vld [vmem:[%s2735 + $0x2c] sm:$0xf]
  %v2748 = vld [vmem:[%s2735 + $0x30] sm:$0xf]
  %v2749 = vld [vmem:[%s2735 + $0x34] sm:$0xf]
  %v2750 = vld [vmem:[%s2735 + $0x38] sm:$0xf]
  %v2751 = vld [vmem:[%s2735 + $0x3c] sm:$0xf]
  %v2768 = vunpack.c.l.b16 %v2736
  %v2769 = vunpack.c.l.b16 %v2737
  %v2770 = vunpack.c.l.b16 %v2738
  %v2771 = vunpack.c.l.b16 %v2739
  %v2772 = vunpack.c.l.b16 %v2740
  %v2773 = vunpack.c.l.b16 %v2741
  %v2774 = vunpack.c.l.b16 %v2742
  %v2775 = vunpack.c.l.b16 %v2743
  %v2776 = vunpack.c.l.b16 %v2744
  %v2777 = vunpack.c.l.b16 %v2745
  %v2778 = vunpack.c.l.b16 %v2746
  %v2779 = vunpack.c.l.b16 %v2747
  %v2780 = vunpack.c.l.b16 %v2748
  %v2781 = vunpack.c.l.b16 %v2749
  %v2782 = vunpack.c.l.b16 %v2750
  %v2783 = vunpack.c.l.b16 %v2751
  %v2784 = vpack.c.b16 %v2769, %v2768
  %v2785 = vpack.c.b16 %v2771, %v2770
  %v2786 = vpack.c.b16 %v2773, %v2772
  %v2787 = vpack.c.b16 %v2775, %v2774
  %v2788 = vpack.c.b16 %v2777, %v2776
  %v2789 = vpack.c.b16 %v2779, %v2778
  %v2790 = vpack.c.b16 %v2781, %v2780
  %v2791 = vpack.c.b16 %v2783, %v2782
  %2800 = vmatprep.subr.bf16.mxu0 0
  %2801 = vmatpush1.bf16.msra.mxu0 %v2784
  %2802 = vmatprep.subr.bf16.mxu0 0
  %2803 = vmatpush1.bf16.msra.mxu0 %v2785
  %2804 = vmatprep.subr.bf16.mxu0 0
  %2805 = vmatpush1.bf16.msra.mxu0 %v2786
  %2806 = vmatprep.subr.bf16.mxu0 0
  %2807 = vmatpush1.bf16.msra.mxu0 %v2787
  %2808 = vmatprep.subr.bf16.mxu0 0
  %2809 = vmatpush1.bf16.msra.mxu0 %v2788
  %2810 = vmatprep.subr.bf16.mxu0 0
  %2811 = vmatpush1.bf16.msra.mxu0 %v2789
  %2812 = vmatprep.subr.bf16.mxu0 0
  %2813 = vmatpush1.bf16.msra.mxu0 %v2790
  %2814 = vmatprep.subr.bf16.mxu0 0
  %2815 = vmatpush1.bf16.msra.mxu0 %v2791
  %2816 = vmatprep.subr.bf16.mxu0 0
  %2817 = vmatpush1.bf16.msra.mxu0 0
  %2818 = vmatprep.subr.bf16.mxu0 0
  %2819 = vmatpush1.bf16.msra.mxu0 0
  %2820 = vmatprep.subr.bf16.mxu0 0
  %2821 = vmatpush1.bf16.msra.mxu0 0
  %2822 = vmatprep.subr.bf16.mxu0 0
  %2823 = vmatpush1.bf16.msra.mxu0 0
  %2824 = vmatprep.subr.bf16.mxu0 0
  %2825 = vmatpush1.bf16.msra.mxu0 0
  %2826 = vmatprep.subr.bf16.mxu0 0
  %2827 = vmatpush1.bf16.msra.mxu0 0
  %2828 = vmatprep.subr.bf16.mxu0 0
  %2829 = vmatpush1.bf16.msra.mxu0 0
  %2830 = vmatprep.subr.bf16.mxu0 0
  %2831 = vmatpush1.bf16.msra.mxu0 0
  %2832 = vmatprep.mubr.bf16.mxu0 0
  %2833 = vmatmul.mubr.bf16.gmra.mrb[0].mxu0 %v1877
  %v2834 = vpop.f32.mrb[0].mxu0
  %v2835 = vadd.f32 0.0, %v2834
  %v2836 = vpop.f32.mrb[0].mxu0
  %v2837 = vpop.f32.mrb[0].mxu0
  %v2838 = vpop.f32.mrb[0].mxu0
  %2839 = vdwg.mxu0
  %v2840 = vadd.f32 %v2734, %v2835
  %v2841 = vld [vmem:[%s4] sm:$0x1]
  %v2843 = vlaneseq
  %v2844 = vshrl.u32 %v2843, 7
  %v2845 = vsub.s32 0, %v2844
  %v2846 = vrot.slane %v2841, %v2845
  %v2848 = vadd.f32 %v2840, %v2846
  %v2849 = vmax.f32 %v2848, 0.0
  %v2850 = vld [vmem:[%s5] sm:$0x1]
  %v2852 = vlaneseq
  %v2853 = vshrl.u32 %v2852, 7
  %v2854 = vsub.s32 0, %v2853
  %v2855 = vrot.slane %v2850, %v2854
  %v2857 = vmul.f32 %v2849, %v2855
  %2858 = vadd.xlane.f32.xlu0 %v2857
  %v2859 = vpop.xlane.xlu0 %2858
  %v2860 = vld [vmem:[#allocation2] sm:$0x1]
  %v2862 = vlaneseq
  %v2863 = vshrl.u32 %v2862, 7
  %v2864 = vsub.s32 0, %v2863
  %v2865 = vrot.slane %v2860, %v2864
  %v2867 = vadd.f32 %v2859, %v2865
  %v2868 = vsub.f32 0.0, %v2867
  %v2869 = vmul.f32 %v2868, 1.442695
  %v2870 = vpow.pop %v2869
  %v2871 = vadd.f32 %v2870, 1.0
  %v2872 = vrcp.pop %v2871
  %v2873 = vmul.f32 1.0, %v2872
  %vm2874 = vcmask 7168
  %2875 = vst.msk [vmem:[%s7] sm:$0xff] %vm2874, %v2873
  // Predicated region
  $region30: #{breast_cnn_forward.5} parent=0 // pred_check
    _
  $region31: #{breast_cnn_forward.5} parent=0 // pred_check_branch
    %2877 = sbr.rel (0) target = $region33
  $region32: #{breast_cnn_forward.5} parent=0 // pred_region
    _
  $region33: #{breast_cnn_forward.5} parent=0 // pred_fallthru
    _
  // Predicated region
  $region34: #{breast_cnn_forward.5} parent=0 // pred_check
    _
  $region35: #{breast_cnn_forward.5} parent=0 // pred_check_branch
    %2879 = sbr.rel (0) target = $region37
  $region36: #{breast_cnn_forward.5} parent=0 // pred_region
    _
  $region37: #{breast_cnn_forward.5} parent=0 // pred_fallthru
    _

</llo_original>
